<compile_context>
chip_gen: v5e
topology: v5e:2x2
jax: 0.10.0
libtpu: 0.0.40
codegen_flags: <defaults>
</compile_context>

<pallas_src>
import math

import jax
import jax.numpy as jnp
from jax.experimental import pallas as pl
from jax.experimental.pallas import tpu as pltpu

LANE = 128                      # TPU lane width: all channel dims are padded to this
ACT_DTYPE = jnp.bfloat16        # storage dtype for activations / weights (f32 accumulate)


def _compiler_params():
    return pltpu.CompilerParams(
        dimension_semantics=("parallel",),
        vmem_limit_bytes=32 * 1024 * 1024,
    )


# ---------------------------------------------------------------------------
# In-kernel helpers
# ---------------------------------------------------------------------------

def _conv3x3_from_pad(xpad_ref, col_ref, w_ref, s_ref, b_ref, H, W, C):
    """3x3 conv over a zero-padded f32 VMEM scratch as ONE im2col matmul.

    xpad_ref: (H+2, W+2, C) f32 scratch, border already zero
    col_ref : (H*W, >= 9*C) bf16 scratch for im2col patches
    w_ref   : (9*C, C)  bf16 packed weights, rows ordered (dy, dx, cin)
    s_ref/b_ref: (1, C) f32 folded BatchNorm scale / bias
    Returns the (H*W, C) f32 activation after affine + ReLU.
    """
    HW = H * W
    for t in range(9):
        dy, dx = divmod(t, 3)
        patch = xpad_ref[dy:dy + H, dx:dx + W, :]                    # (H, W, C) f32
        col_ref[:, t * C:(t + 1) * C] = patch.reshape(HW, C).astype(col_ref.dtype)
    acc = jnp.dot(col_ref[:, :9 * C], w_ref[...],
                  preferred_element_type=jnp.float32)                # (HW, C) f32
    return jnp.maximum(acc * s_ref[...] + b_ref[...], 0.0)


# ---------------------------------------------------------------------------
# Pallas kernels (one per UNet block)
# ---------------------------------------------------------------------------

def _double_conv_kernel(x_ref, w1_ref, s1_ref, b1_ref, w2_ref, s2_ref, b2_ref,
                        o_ref, xpad_ref, col_ref):
    """DoubleConv: (Conv3x3 + BN + ReLU) x 2, intermediate kept in VMEM."""
    _, H, W, C = o_ref.shape
    xpad_ref[...] = jnp.zeros_like(xpad_ref)
    xpad_ref[1:H + 1, 1:W + 1, :] = x_ref[0].astype(jnp.float32)
    y = _conv3x3_from_pad(xpad_ref, col_ref, w1_ref, s1_ref, b1_ref, H, W, C)
    xpad_ref[1:H + 1, 1:W + 1, :] = y.reshape(H, W, C)               # border still zero
    y = _conv3x3_from_pad(xpad_ref, col_ref, w2_ref, s2_ref, b2_ref, H, W, C)
    o_ref[0] = y.reshape(H, W, C).astype(o_ref.dtype)


def _down_kernel(x_ref, w1_ref, s1_ref, b1_ref, w2_ref, s2_ref, b2_ref,
                 o_ref, xpad_ref, col_ref):
    """Down: fused MaxPool2d(2) + DoubleConv.  Input is read from HBM once."""
    _, H, W, C = o_ref.shape                 # pooled resolution
    H2, W2 = 2 * H, 2 * W

    # 2x2/stride-2 max pool using only layout-preserving reshapes + static slices.
    x = x_ref[0].astype(jnp.float32)                                 # (H2, W2, C)
    xr = x.reshape(H, 2, W2, C)
    mrow = jnp.maximum(xr[:, 0], xr[:, 1])                           # (H, W2, C)
    mc = mrow.reshape(H, W, 2, C)
    pooled = jnp.maximum(mc[:, :, 0, :], mc[:, :, 1, :])             # (H, W, C)

    xpad_ref[...] = jnp.zeros_like(xpad_ref)
    xpad_ref[1:H + 1, 1:W + 1, :] = pooled
    y = _conv3x3_from_pad(xpad_ref, col_ref, w1_ref, s1_ref, b1_ref, H, W, C)
    xpad_ref[1:H + 1, 1:W + 1, :] = y.reshape(H, W, C)
    y = _conv3x3_from_pad(xpad_ref, col_ref, w2_ref, s2_ref, b2_ref, H, W, C)
    o_ref[0] = y.reshape(H, W, C).astype(o_ref.dtype)


def _up_kernel(x1_ref, x2_ref, wt_ref, bt_ref, w1_ref, s1_ref, b1_ref,
               w2_ref, s2_ref, b2_ref, o_ref,
               y4_ref, ypad_ref, x2pad_ref, col_ref):
    """Up: ConvTranspose2d(k=2, s=2) + depth-to-space + cat([x2, y]) + DoubleConv.

    The channel concat is fused by splitting the first conv's weight: the
    im2col matrix has 18 tap-blocks (9 over the skip x2, 9 over the upsampled y)
    and a single (18*C, C) matmul produces conv1.
    """
    _, H2, W2, C = o_ref.shape
    H1, W1 = H2 // 2, W2 // 2
    HW2 = H2 * W2

    # ConvTranspose2d(k=2, s=2): one matmul over the 4 packed taps.
    # (reshape via f32 keeps the relayout on the well-trodden 8x128 path)
    x1f = x1_ref[0].astype(jnp.float32).reshape(H1 * W1, C).astype(ACT_DTYPE)
    taps = jnp.dot(x1f, wt_ref[...],
                   preferred_element_type=jnp.float32) + bt_ref[...]  # (H1*W1, 4*C)

    # Depth-to-space through a (H1, 2, W1, 2, C) scratch: the flat layout of
    # [i, dy, j, dx, c] IS the (2*H1, 2*W1, C) image, so a plain reshape
    # interleaves the four taps with no strided access.
    for t in range(4):
        dy, dx = divmod(t, 2)
        y4_ref[:, dy, :, dx, :] = taps[:, t * C:(t + 1) * C].reshape(H1, W1, C)
    yup = y4_ref[...].reshape(H2, W2, C)                              # f32

    ypad_ref[...] = jnp.zeros_like(ypad_ref)
    ypad_ref[1:H2 + 1, 1:W2 + 1, :] = yup
    x2pad_ref[...] = jnp.zeros_like(x2pad_ref)
    x2pad_ref[1:H2 + 1, 1:W2 + 1, :] = x2_ref[0].astype(jnp.float32)

    # conv1: fused concat([x2, y]) as an 18-tap im2col matmul.
    for t in range(9):
        dy, dx = divmod(t, 3)
        col_ref[:, t * C:(t + 1) * C] = (
            x2pad_ref[dy:dy + H2, dx:dx + W2, :].reshape(HW2, C).astype(col_ref.dtype))
        col_ref[:, (9 + t) * C:(10 + t) * C] = (
            ypad_ref[dy:dy + H2, dx:dx + W2, :].reshape(HW2, C).astype(col_ref.dtype))
    acc = jnp.dot(col_ref[...], w1_ref[...], preferred_element_type=jnp.float32)
    y = jnp.maximum(acc * s1_ref[...] + b1_ref[...], 0.0)

    # conv2 (reuse x2pad as the zero-padded input buffer; border is still zero).
    x2pad_ref[1:H2 + 1, 1:W2 + 1, :] = y.reshape(H2, W2, C)
    y = _conv3x3_from_pad(x2pad_ref, col_ref, w2_ref, s2_ref, b2_ref, H2, W2, C)
    o_ref[0] = y.reshape(H2, W2, C).astype(o_ref.dtype)


def _conv1x1_kernel(x_ref, w_ref, b_ref, o_ref):
    """Final 1x1 conv as a channel matmul; output channels lane-padded to 128."""
    _, H, W, Cout = o_ref.shape
    C = x_ref.shape[-1]
    x = x_ref[0].astype(jnp.float32).reshape(H * W, C).astype(ACT_DTYPE)
    y = jnp.dot(x, w_ref[...], preferred_element_type=jnp.float32) + b_ref[...]
    o_ref[0] = y.reshape(H, W, Cout).astype(o_ref.dtype)


# ---------------------------------------------------------------------------
# pallas_call wrappers
# ---------------------------------------------------------------------------

def _batch_spec(shape):
    tail = (0,) * (len(shape) - 1)
    return pl.BlockSpec((1,) + tuple(shape[1:]), lambda b: (b,) + tail)


def _whole_spec(arr):
    zeros = (0,) * arr.ndim
    return pl.BlockSpec(arr.shape, lambda b: zeros)


def double_conv_call(x, p):
    B, H, W, C = x.shape
    weights = (p["w1"], p["s1"], p["b1"], p["w2"], p["s2"], p["b2"])
    return pl.pallas_call(
        _double_conv_kernel,
        out_shape=jax.ShapeDtypeStruct((B, H, W, C), ACT_DTYPE),
        grid=(B,),
        in_specs=[_batch_spec(x.shape)] + [_whole_spec(w) for w in weights],
        out_specs=_batch_spec((B, H, W, C)),
        scratch_shapes=[
            pltpu.VMEM((H + 2, W + 2, C), jnp.float32),   # zero-padded activation
            pltpu.VMEM((H * W, 9 * C), ACT_DTYPE),        # im2col patches
        ],
        compiler_params=_compiler_params(),
    )(x, *weights)


def down_call(x, p):
    B, H2, W2, C = x.shape
    H, W = H2 // 2, W2 // 2
    weights = (p["w1"], p["s1"], p["b1"], p["w2"], p["s2"], p["b2"])
    return pl.pallas_call(
        _down_kernel,
        out_shape=jax.ShapeDtypeStruct((B, H, W, C), ACT_DTYPE),
        grid=(B,),
        in_specs=[_batch_spec(x.shape)] + [_whole_spec(w) for w in weights],
        out_specs=_batch_spec((B, H, W, C)),
        scratch_shapes=[
            pltpu.VMEM((H + 2, W + 2, C), jnp.float32),
            pltpu.VMEM((H * W, 9 * C), ACT_DTYPE),
        ],
        compiler_params=_compiler_params(),
    )(x, *weights)


def up_call(x1, x2, p):
    B, H1, W1, C = x1.shape
    _, H2, W2, _ = x2.shape
    assert H2 == 2 * H1 and W2 == 2 * W1, "odd spatial sizes not supported (see TODO)"
    weights = (p["wt"], p["bt"], p["w1"], p["s1"], p["b1"],
               p["w2"], p["s2"], p["b2"])
    return pl.pallas_call(
        _up_kernel,
        out_shape=jax.ShapeDtypeStruct((B, H2, W2, C), ACT_DTYPE),
        grid=(B,),
        in_specs=[_batch_spec(x1.shape), _batch_spec(x2.shape)]
                 + [_whole_spec(w) for w in weights],
        out_specs=_batch_spec((B, H2, W2, C)),
        scratch_shapes=[
            pltpu.VMEM((H1, 2, W1, 2, C), jnp.float32),   # depth-to-space buffer
            pltpu.VMEM((H2 + 2, W2 + 2, C), jnp.float32),  # padded upsampled y
            pltpu.VMEM((H2 + 2, W2 + 2, C), jnp.float32),  # padded skip / conv2 input
            pltpu.VMEM((H2 * W2, 18 * C), ACT_DTYPE),      # im2col patches (concat fused)
        ],
        compiler_params=_compiler_params(),
    )(x1, x2, *weights)


def final_conv_call(x, w, b):
    B, H, W, _ = x.shape
    Cout = w.shape[1]
    return pl.pallas_call(
        _conv1x1_kernel,
        out_shape=jax.ShapeDtypeStruct((B, H, W, Cout), jnp.float32),
        grid=(B,),
        in_specs=[_batch_spec(x.shape), _whole_spec(w), _whole_spec(b)],
        out_specs=_batch_spec((B, H, W, Cout)),
        compiler_params=_compiler_params(),
    )(x, w, b)


# ---------------------------------------------------------------------------
# Forward pass
# ---------------------------------------------------------------------------

def unet_forward(params, x_nchw, num_layers, sigmoid_on_output=False):
    cp = params["cp"]
    blocks = params["blocks"]
    x = jnp.transpose(x_nchw, (0, 2, 3, 1))                  # NCHW -> NHWC (lanes = C)
    x = _pad_axis(x, 3, cp).astype(ACT_DTYPE)                # lane-pad channels once
    xi = [double_conv_call(x, blocks[0][1])]
    for _, p in blocks[1:num_layers]:                        # Down blocks
        xi.append(down_call(xi[-1], p))
    for i, (_, p) in enumerate(blocks[num_layers:-1]):       # Up blocks
        xi[-1] = up_call(xi[-1], xi[-2 - i], p)
    fin = blocks[-1][1]
    out = final_conv_call(xi[-1], fin["w"], fin["b"])        # (B, H, W, 128) f32
    out = out[..., :fin["ncls"]]
    if sigmoid_on_output:
        out = jax.nn.sigmoid(out)
    return jnp.transpose(out, (0, 3, 1, 2))                  # NHWC -> NCHW


# ---------------------------------------------------------------------------
# Deterministic parameter construction (PyTorch layouts -> packed TPU layouts)
# ---------------------------------------------------------------------------

def _pad_axis(a, axis, target):
    if a.shape[axis] == target:
        return a
    pad = [(0, 0)] * a.ndim
    pad[axis] = (0, target - a.shape[axis])
    return jnp.pad(a, pad)


def _fold_bn(key, cout, conv_bias, eps=1e-5):
    k1, k2, k3, k4 = jax.random.split(key, 4)
    gamma = 1.0 + 0.1 * jax.random.normal(k1, (cout,), jnp.float32)
    beta = 0.1 * jax.random.normal(k2, (cout,), jnp.float32)
    r_mean = 0.1 * jax.random.normal(k3, (cout,), jnp.float32)
    r_var = 1.0 + 0.1 * jnp.abs(jax.random.normal(k4, (cout,), jnp.float32))
    scale = gamma / jnp.sqrt(r_var + eps)
    bias = beta + (conv_bias - r_mean) * scale
    return scale, bias


def _raw_conv_bn(key, cin, cout):
    k1, k2, k3 = jax.random.split(key, 3)
    w = jax.random.normal(k1, (3, 3, cin, cout), jnp.float32) / math.sqrt(9 * cin)
    b = 0.1 * jax.random.normal(k2, (cout,), jnp.float32)
    s, bb = _fold_bn(k3, cout, b)
    return w, s, bb


def _pack_w3x3(w_hwio, cp_in, cp_out):
    """(3,3,cin,cout) HWIO -> (9*cp_in, cp_out) bf16, rows ordered (dy, dx, cin)."""
    w = _pad_axis(_pad_axis(w_hwio, 2, cp_in), 3, cp_out)
    return w.reshape(9 * cp_in, cp_out).astype(ACT_DTYPE)


def _pack_vec(v, cp):
    return _pad_axis(v, 0, cp).reshape(1, cp).astype(jnp.float32)


def init_double_conv(key, cin, cout, cp):
    k1, k2 = jax.random.split(key)
    w1, s1, b1 = _raw_conv_bn(k1, cin, cout)
    w2, s2, b2 = _raw_conv_bn(k2, cout, cout)
    return dict(
        w1=_pack_w3x3(w1, cp, cp), s1=_pack_vec(s1, cp), b1=_pack_vec(b1, cp),
        w2=_pack_w3x3(w2, cp, cp), s2=_pack_vec(s2, cp), b2=_pack_vec(b2, cp),
    )


def init_up(key, cin, cout, cp):
    """Up(cin, cout): ConvTranspose2d(cin, cin//2, 2, 2) then DoubleConv(cin, cout)."""
    k1, k2, k3, k4 = jax.random.split(key, 4)
    half = cin // 2
    # PyTorch ConvTranspose2d weight layout: (in_ch, out_ch, kH, kW)
    w_pt = jax.random.normal(k1, (cin, half, 2, 2), jnp.float32) / math.sqrt(4 * cin)
    bt_raw = 0.1 * jax.random.normal(k2, (half,), jnp.float32)
    # Pack the 4 taps along the output (lane) axis: (cp, 4*cp), blocks t = dy*2+dx.
    wt = jnp.transpose(w_pt, (2, 3, 0, 1))                   # (2, 2, cin, half)
    wt = _pad_axis(_pad_axis(wt, 2, cp), 3, cp)              # (2, 2, cp, cp)
    wt = jnp.transpose(wt, (2, 0, 1, 3)).reshape(cp, 4 * cp).astype(ACT_DTYPE)
    bt = jnp.tile(_pad_axis(bt_raw, 0, cp), 4).reshape(1, 4 * cp).astype(jnp.float32)
    # DoubleConv(cin, cout); first conv split along Cin to fuse cat([x2, y]).
    w1, s1, b1 = _raw_conv_bn(k3, cin, cout)
    w1a = _pack_w3x3(w1[:, :, :half, :], cp, cp)             # acts on skip x2
    w1b = _pack_w3x3(w1[:, :, half:, :], cp, cp)             # acts on upsampled y
    w1p = jnp.concatenate([w1a, w1b], axis=0)                # (18*cp, cp)
    w2, s2, b2 = _raw_conv_bn(k4, cout, cout)
    return dict(
        wt=wt, bt=bt,
        w1=w1p, s1=_pack_vec(s1, cp), b1=_pack_vec(b1, cp),
        w2=_pack_w3x3(w2, cp, cp), s2=_pack_vec(s2, cp), b2=_pack_vec(b2, cp),
    )


def init_final(key, cin, ncls, cp):
    k1, k2 = jax.random.split(key)
    w = jax.random.normal(k1, (cin, ncls), jnp.float32) / math.sqrt(cin)
    b = 0.1 * jax.random.normal(k2, (ncls,), jnp.float32)
    wp = _pad_axis(_pad_axis(w, 0, cp), 1, LANE).astype(ACT_DTYPE)
    bp = _pad_axis(b, 0, LANE).reshape(1, LANE).astype(jnp.float32)
    return dict(w=wp, b=bp, ncls=ncls)


def init_unet_params(key, input_channels, output_channels, num_layers, features_start):
    feats_max = features_start * (2 ** (num_layers - 1))
    cmax = max(input_channels, feats_max)
    cp = max(LANE, ((cmax + LANE - 1) // LANE) * LANE)       # global lane-padded width
    blocks = []
    key, k = jax.random.split(key)
    blocks.append(("double_conv",
                   init_double_conv(k, input_channels, features_start, cp)))
    feats = features_start
    for _ in range(num_layers - 1):
        key, k = jax.random.split(key)
        blocks.append(("down", init_double_conv(k, feats, feats * 2, cp)))
        feats *= 2
    for _ in range(num_layers - 1):
        key, k = jax.random.split(key)
        blocks.append(("up", init_up(k, feats, feats // 2, cp)))
        feats //= 2
    key, k = jax.random.split(key)
    blocks.append(("final", init_final(k, feats, output_channels, cp)))
    return dict(cp=cp, blocks=blocks)


# ---------------------------------------------------------------------------
# Demo
# ---------------------------------------------------------------------------

if __name__ == "__main__":
    # UNet(input_channels=4, output_channels=3, num_layers=3, features_start=8,
    #      bilinear=False, sigmoid_on_output=False), input NCHW (2, 4, 16, 16).
    B, CIN, H, W = 2, 4, 16, 16
    NUM_LAYERS, FEATURES_START, OUT_CH = 3, 8, 3

    key = jax.random.PRNGKey(0)
    x_key, p_key = jax.random.split(key)
    x = jax.random.normal(x_key, (B, CIN, H, W), jnp.float32)

    params = init_unet_params(p_key, CIN, OUT_CH, NUM_LAYERS, FEATURES_START)
    y = unet_forward(params, x, NUM_LAYERS, sigmoid_on_output=False)
    y = jax.block_until_ready(y)
    assert y.shape == (B, OUT_CH, H, W), y.shape
    assert bool(jnp.all(jnp.isfinite(y)))
    print("KERNEL_OK")
</pallas_src>

<mosaic_0001>
module attributes {stable_mosaic.version = 11 : i64} {
  func.func @_double_conv_kernel(%arg0: i32, %arg1: memref<1x16x16x128xbf16, #tpu.memory_space<vmem>>, %arg2: memref<1152x128xbf16, #tpu.memory_space<vmem>>, %arg3: memref<1x128xf32, #tpu.memory_space<vmem>>, %arg4: memref<1x128xf32, #tpu.memory_space<vmem>>, %arg5: memref<1152x128xbf16, #tpu.memory_space<vmem>>, %arg6: memref<1x128xf32, #tpu.memory_space<vmem>>, %arg7: memref<1x128xf32, #tpu.memory_space<vmem>>, %arg8: memref<1x16x16x128xbf16, #tpu.memory_space<vmem>>, %arg9: memref<18x18x128xf32, #tpu.memory_space<vmem>>, %arg10: memref<256x1152xbf16, #tpu.memory_space<vmem>>) attributes {dimension_semantics = [#tpu.dimension_semantics<parallel>], iteration_bounds = array<i64: 2>, scalar_prefetch = 0 : i64, scratch_operands = 2 : i64, tpu.core_type = #tpu.core_type<tc>, window_params = [{transform_indices = @transform_0, window_bounds = array<i64: 1, 16, 16, 128>}, {pipeline_mode = #tpu.pipeline_mode<synchronous>, transform_indices = @transform_1, window_bounds = array<i64: 1152, 128>}, {pipeline_mode = #tpu.pipeline_mode<synchronous>, transform_indices = @transform_2, window_bounds = array<i64: 1, 128>}, {pipeline_mode = #tpu.pipeline_mode<synchronous>, transform_indices = @transform_3, window_bounds = array<i64: 1, 128>}, {pipeline_mode = #tpu.pipeline_mode<synchronous>, transform_indices = @transform_4, window_bounds = array<i64: 1152, 128>}, {pipeline_mode = #tpu.pipeline_mode<synchronous>, transform_indices = @transform_5, window_bounds = array<i64: 1, 128>}, {pipeline_mode = #tpu.pipeline_mode<synchronous>, transform_indices = @transform_6, window_bounds = array<i64: 1, 128>}, {transform_indices = @transform_7, window_bounds = array<i64: 1, 16, 16, 128>}]} {
    %cst = arith.constant 0.000000e+00 : f32
    %0 = vector.broadcast %cst : f32 to vector<18x18x128xf32>
    %c0 = arith.constant 0 : index
    %c0_0 = arith.constant 0 : index
    %c0_1 = arith.constant 0 : index
    %1 = vector.load %arg9[%c0, %c0_0, %c0_1] : memref<18x18x128xf32, #tpu.memory_space<vmem>>, vector<18x18x128xf32>
    tpu.vector_store %arg9[%c0, %c0_0, %c0_1], %0 {strides = array<i32>} : memref<18x18x128xf32, #tpu.memory_space<vmem>>, vector<18x18x128xf32>,
    %c0_2 = arith.constant 0 : index
    %c0_3 = arith.constant 0 : index
    %c0_4 = arith.constant 0 : index
    %c0_5 = arith.constant 0 : index
    %2 = vector.load %arg1[%c0_2, %c0_3, %c0_4, %c0_5] : memref<1x16x16x128xbf16, #tpu.memory_space<vmem>>, vector<1x16x16x128xbf16>
    %3 = vector.shape_cast %2 : vector<1x16x16x128xbf16> to vector<16x16x128xbf16>
    %4 = arith.extf %3 : vector<16x16x128xbf16> to vector<16x16x128xf32>
    %c1 = arith.constant 1 : index
    %c1_6 = arith.constant 1 : index
    %c0_7 = arith.constant 0 : index
    %5 = vector.load %arg9[%c1, %c1_6, %c0_7] : memref<18x18x128xf32, #tpu.memory_space<vmem>>, vector<16x16x128xf32>
    tpu.vector_store %arg9[%c1, %c1_6, %c0_7], %4 {strides = array<i32>} : memref<18x18x128xf32, #tpu.memory_space<vmem>>, vector<16x16x128xf32>,
    %c0_8 = arith.constant 0 : index
    %c0_9 = arith.constant 0 : index
    %c0_10 = arith.constant 0 : index
    %6 = vector.load %arg9[%c0_8, %c0_9, %c0_10] : memref<18x18x128xf32, #tpu.memory_space<vmem>>, vector<16x16x128xf32>
    %7 = vector.shape_cast %6 : vector<16x16x128xf32> to vector<256x128xf32>
    %8 = arith.truncf %7 : vector<256x128xf32> to vector<256x128xbf16>
    %c0_11 = arith.constant 0 : index
    %c0_12 = arith.constant 0 : index
    %9 = vector.load %arg10[%c0_11, %c0_12] : memref<256x1152xbf16, #tpu.memory_space<vmem>>, vector<256x128xbf16>
    tpu.vector_store %arg10[%c0_11, %c0_12], %8 {strides = array<i32>} : memref<256x1152xbf16, #tpu.memory_space<vmem>>, vector<256x128xbf16>,
    %c0_13 = arith.constant 0 : index
    %c1_14 = arith.constant 1 : index
    %c0_15 = arith.constant 0 : index
    %10 = vector.load %arg9[%c0_13, %c1_14, %c0_15] : memref<18x18x128xf32, #tpu.memory_space<vmem>>, vector<16x16x128xf32>
    %11 = vector.shape_cast %10 : vector<16x16x128xf32> to vector<256x128xf32>
    %12 = arith.truncf %11 : vector<256x128xf32> to vector<256x128xbf16>
    %c0_16 = arith.constant 0 : index
    %c128 = arith.constant 128 : index
    %13 = vector.load %arg10[%c0_16, %c128] : memref<256x1152xbf16, #tpu.memory_space<vmem>>, vector<256x128xbf16>
    tpu.vector_store %arg10[%c0_16, %c128], %12 {strides = array<i32>} : memref<256x1152xbf16, #tpu.memory_space<vmem>>, vector<256x128xbf16>,
    %c0_17 = arith.constant 0 : index
    %c2 = arith.constant 2 : index
    %c0_18 = arith.constant 0 : index
    %14 = vector.load %arg9[%c0_17, %c2, %c0_18] : memref<18x18x128xf32, #tpu.memory_space<vmem>>, vector<16x16x128xf32>
    %15 = vector.shape_cast %14 : vector<16x16x128xf32> to vector<256x128xf32>
    %16 = arith.truncf %15 : vector<256x128xf32> to vector<256x128xbf16>
    %c0_19 = arith.constant 0 : index
    %c256 = arith.constant 256 : index
    %17 = vector.load %arg10[%c0_19, %c256] : memref<256x1152xbf16, #tpu.memory_space<vmem>>, vector<256x128xbf16>
    tpu.vector_store %arg10[%c0_19, %c256], %16 {strides = array<i32>} : memref<256x1152xbf16, #tpu.memory_space<vmem>>, vector<256x128xbf16>,
    %c1_20 = arith.constant 1 : index
    %c0_21 = arith.constant 0 : index
    %c0_22 = arith.constant 0 : index
    %18 = vector.load %arg9[%c1_20, %c0_21, %c0_22] : memref<18x18x128xf32, #tpu.memory_space<vmem>>, vector<16x16x128xf32>
    %19 = vector.shape_cast %18 : vector<16x16x128xf32> to vector<256x128xf32>
    %20 = arith.truncf %19 : vector<256x128xf32> to vector<256x128xbf16>
    %c0_23 = arith.constant 0 : index
    %c384 = arith.constant 384 : index
    %21 = vector.load %arg10[%c0_23, %c384] : memref<256x1152xbf16, #tpu.memory_space<vmem>>, vector<256x128xbf16>
    tpu.vector_store %arg10[%c0_23, %c384], %20 {strides = array<i32>} : memref<256x1152xbf16, #tpu.memory_space<vmem>>, vector<256x128xbf16>,
    %c1_24 = arith.constant 1 : index
    %c1_25 = arith.constant 1 : index
    %c0_26 = arith.constant 0 : index
    %22 = vector.load %arg9[%c1_24, %c1_25, %c0_26] : memref<18x18x128xf32, #tpu.memory_space<vmem>>, vector<16x16x128xf32>
    %23 = vector.shape_cast %22 : vector<16x16x128xf32> to vector<256x128xf32>
    %24 = arith.truncf %23 : vector<256x128xf32> to vector<256x128xbf16>
    %c0_27 = arith.constant 0 : index
    %c512 = arith.constant 512 : index
    %25 = vector.load %arg10[%c0_27, %c512] : memref<256x1152xbf16, #tpu.memory_space<vmem>>, vector<256x128xbf16>
    tpu.vector_store %arg10[%c0_27, %c512], %24 {strides = array<i32>} : memref<256x1152xbf16, #tpu.memory_space<vmem>>, vector<256x128xbf16>,
    %c1_28 = arith.constant 1 : index
    %c2_29 = arith.constant 2 : index
    %c0_30 = arith.constant 0 : index
    %26 = vector.load %arg9[%c1_28, %c2_29, %c0_30] : memref<18x18x128xf32, #tpu.memory_space<vmem>>, vector<16x16x128xf32>
    %27 = vector.shape_cast %26 : vector<16x16x128xf32> to vector<256x128xf32>
    %28 = arith.truncf %27 : vector<256x128xf32> to vector<256x128xbf16>
    %c0_31 = arith.constant 0 : index
    %c640 = arith.constant 640 : index
    %29 = vector.load %arg10[%c0_31, %c640] : memref<256x1152xbf16, #tpu.memory_space<vmem>>, vector<256x128xbf16>
    tpu.vector_store %arg10[%c0_31, %c640], %28 {strides = array<i32>} : memref<256x1152xbf16, #tpu.memory_space<vmem>>, vector<256x128xbf16>,
    %c2_32 = arith.constant 2 : index
    %c0_33 = arith.constant 0 : index
    %c0_34 = arith.constant 0 : index
    %30 = vector.load %arg9[%c2_32, %c0_33, %c0_34] : memref<18x18x128xf32, #tpu.memory_space<vmem>>, vector<16x16x128xf32>
    %31 = vector.shape_cast %30 : vector<16x16x128xf32> to vector<256x128xf32>
    %32 = arith.truncf %31 : vector<256x128xf32> to vector<256x128xbf16>
    %c0_35 = arith.constant 0 : index
    %c768 = arith.constant 768 : index
    %33 = vector.load %arg10[%c0_35, %c768] : memref<256x1152xbf16, #tpu.memory_space<vmem>>, vector<256x128xbf16>
    tpu.vector_store %arg10[%c0_35, %c768], %32 {strides = array<i32>} : memref<256x1152xbf16, #tpu.memory_space<vmem>>, vector<256x128xbf16>,
    %c2_36 = arith.constant 2 : index
    %c1_37 = arith.constant 1 : index
    %c0_38 = arith.constant 0 : index
    %34 = vector.load %arg9[%c2_36, %c1_37, %c0_38] : memref<18x18x128xf32, #tpu.memory_space<vmem>>, vector<16x16x128xf32>
    %35 = vector.shape_cast %34 : vector<16x16x128xf32> to vector<256x128xf32>
    %36 = arith.truncf %35 : vector<256x128xf32> to vector<256x128xbf16>
    %c0_39 = arith.constant 0 : index
    %c896 = arith.constant 896 : index
    %37 = vector.load %arg10[%c0_39, %c896] : memref<256x1152xbf16, #tpu.memory_space<vmem>>, vector<256x128xbf16>
    tpu.vector_store %arg10[%c0_39, %c896], %36 {strides = array<i32>} : memref<256x1152xbf16, #tpu.memory_space<vmem>>, vector<256x128xbf16>,
    %c2_40 = arith.constant 2 : index
    %c2_41 = arith.constant 2 : index
    %c0_42 = arith.constant 0 : index
    %38 = vector.load %arg9[%c2_40, %c2_41, %c0_42] : memref<18x18x128xf32, #tpu.memory_space<vmem>>, vector<16x16x128xf32>
    %39 = vector.shape_cast %38 : vector<16x16x128xf32> to vector<256x128xf32>
    %40 = arith.truncf %39 : vector<256x128xf32> to vector<256x128xbf16>
    %c0_43 = arith.constant 0 : index
    %c1024 = arith.constant 1024 : index
    %41 = vector.load %arg10[%c0_43, %c1024] : memref<256x1152xbf16, #tpu.memory_space<vmem>>, vector<256x128xbf16>
    tpu.vector_store %arg10[%c0_43, %c1024], %40 {strides = array<i32>} : memref<256x1152xbf16, #tpu.memory_space<vmem>>, vector<256x128xbf16>,
    %c0_44 = arith.constant 0 : index
    %c0_45 = arith.constant 0 : index
    %42 = vector.load %arg10[%c0_44, %c0_45] : memref<256x1152xbf16, #tpu.memory_space<vmem>>, vector<256x1152xbf16>
    %c0_46 = arith.constant 0 : index
    %c0_47 = arith.constant 0 : index
    %43 = vector.load %arg2[%c0_46, %c0_47] : memref<1152x128xbf16, #tpu.memory_space<vmem>>, vector<1152x128xbf16>
    %cst_48 = arith.constant dense<0.000000e+00> : vector<256x128xf32>
    %44 = tpu.matmul %42, %43, %cst_48 {dimension_numbers = #tpu.dot_dimension_numbers<[1], [0], [0], [1], [0, 0, 1, 1], [], []>} : vector<256x1152xbf16>, vector<1152x128xbf16>, vector<256x128xf32> -> vector<256x128xf32>
    %c0_49 = arith.constant 0 : index
    %c0_50 = arith.constant 0 : index
    %45 = vector.load %arg3[%c0_49, %c0_50] : memref<1x128xf32, #tpu.memory_space<vmem>>, vector<1x128xf32>
    %46 = vector.broadcast %45 : vector<1x128xf32> to vector<256x128xf32>
    %47 = arith.mulf %44, %46 : vector<256x128xf32>
    %c0_51 = arith.constant 0 : index
    %c0_52 = arith.constant 0 : index
    %48 = vector.load %arg4[%c0_51, %c0_52] : memref<1x128xf32, #tpu.memory_space<vmem>>, vector<1x128xf32>
    %49 = vector.broadcast %48 : vector<1x128xf32> to vector<256x128xf32>
    %50 = arith.addf %47, %49 : vector<256x128xf32>
    %cst_53 = arith.constant 0.000000e+00 : f32
    %51 = vector.broadcast %cst_53 : f32 to vector<256x128xf32>
    %52 = arith.maximumf %50, %51 : vector<256x128xf32>
    %53 = vector.shape_cast %52 : vector<256x128xf32> to vector<16x16x128xf32>
    %c1_54 = arith.constant 1 : index
    %c1_55 = arith.constant 1 : index
    %c0_56 = arith.constant 0 : index
    %54 = vector.load %arg9[%c1_54, %c1_55, %c0_56] : memref<18x18x128xf32, #tpu.memory_space<vmem>>, vector<16x16x128xf32>
    tpu.vector_store %arg9[%c1_54, %c1_55, %c0_56], %53 {strides = array<i32>} : memref<18x18x128xf32, #tpu.memory_space<vmem>>, vector<16x16x128xf32>,
    %c0_57 = arith.constant 0 : index
    %c0_58 = arith.constant 0 : index
    %c0_59 = arith.constant 0 : index
    %55 = vector.load %arg9[%c0_57, %c0_58, %c0_59] : memref<18x18x128xf32, #tpu.memory_space<vmem>>, vector<16x16x128xf32>
    %56 = vector.shape_cast %55 : vector<16x16x128xf32> to vector<256x128xf32>
    %57 = arith.truncf %56 : vector<256x128xf32> to vector<256x128xbf16>
    %c0_60 = arith.constant 0 : index
    %c0_61 = arith.constant 0 : index
    %58 = vector.load %arg10[%c0_60, %c0_61] : memref<256x1152xbf16, #tpu.memory_space<vmem>>, vector<256x128xbf16>
    tpu.vector_store %arg10[%c0_60, %c0_61], %57 {strides = array<i32>} : memref<256x1152xbf16, #tpu.memory_space<vmem>>, vector<256x128xbf16>,
    %c0_62 = arith.constant 0 : index
    %c1_63 = arith.constant 1 : index
    %c0_64 = arith.constant 0 : index
    %59 = vector.load %arg9[%c0_62, %c1_63, %c0_64] : memref<18x18x128xf32, #tpu.memory_space<vmem>>, vector<16x16x128xf32>
    %60 = vector.shape_cast %59 : vector<16x16x128xf32> to vector<256x128xf32>
    %61 = arith.truncf %60 : vector<256x128xf32> to vector<256x128xbf16>
    %c0_65 = arith.constant 0 : index
    %c128_66 = arith.constant 128 : index
    %62 = vector.load %arg10[%c0_65, %c128_66] : memref<256x1152xbf16, #tpu.memory_space<vmem>>, vector<256x128xbf16>
    tpu.vector_store %arg10[%c0_65, %c128_66], %61 {strides = array<i32>} : memref<256x1152xbf16, #tpu.memory_space<vmem>>, vector<256x128xbf16>,
    %c0_67 = arith.constant 0 : index
    %c2_68 = arith.constant 2 : index
    %c0_69 = arith.constant 0 : index
    %63 = vector.load %arg9[%c0_67, %c2_68, %c0_69] : memref<18x18x128xf32, #tpu.memory_space<vmem>>, vector<16x16x128xf32>
    %64 = vector.shape_cast %63 : vector<16x16x128xf32> to vector<256x128xf32>
    %65 = arith.truncf %64 : vector<256x128xf32> to vector<256x128xbf16>
    %c0_70 = arith.constant 0 : index
    %c256_71 = arith.constant 256 : index
    %66 = vector.load %arg10[%c0_70, %c256_71] : memref<256x1152xbf16, #tpu.memory_space<vmem>>, vector<256x128xbf16>
    tpu.vector_store %arg10[%c0_70, %c256_71], %65 {strides = array<i32>} : memref<256x1152xbf16, #tpu.memory_space<vmem>>, vector<256x128xbf16>,
    %c1_72 = arith.constant 1 : index
    %c0_73 = arith.constant 0 : index
    %c0_74 = arith.constant 0 : index
    %67 = vector.load %arg9[%c1_72, %c0_73, %c0_74] : memref<18x18x128xf32, #tpu.memory_space<vmem>>, vector<16x16x128xf32>
    %68 = vector.shape_cast %67 : vector<16x16x128xf32> to vector<256x128xf32>
    %69 = arith.truncf %68 : vector<256x128xf32> to vector<256x128xbf16>
    %c0_75 = arith.constant 0 : index
    %c384_76 = arith.constant 384 : index
    %70 = vector.load %arg10[%c0_75, %c384_76] : memref<256x1152xbf16, #tpu.memory_space<vmem>>, vector<256x128xbf16>
    tpu.vector_store %arg10[%c0_75, %c384_76], %69 {strides = array<i32>} : memref<256x1152xbf16, #tpu.memory_space<vmem>>, vector<256x128xbf16>,
    %c1_77 = arith.constant 1 : index
    %c1_78 = arith.constant 1 : index
    %c0_79 = arith.constant 0 : index
    %71 = vector.load %arg9[%c1_77, %c1_78, %c0_79] : memref<18x18x128xf32, #tpu.memory_space<vmem>>, vector<16x16x128xf32>
    %72 = vector.shape_cast %71 : vector<16x16x128xf32> to vector<256x128xf32>
    %73 = arith.truncf %72 : vector<256x128xf32> to vector<256x128xbf16>
    %c0_80 = arith.constant 0 : index
    %c512_81 = arith.constant 512 : index
    %74 = vector.load %arg10[%c0_80, %c512_81] : memref<256x1152xbf16, #tpu.memory_space<vmem>>, vector<256x128xbf16>
    tpu.vector_store %arg10[%c0_80, %c512_81], %73 {strides = array<i32>} : memref<256x1152xbf16, #tpu.memory_space<vmem>>, vector<256x128xbf16>,
    %c1_82 = arith.constant 1 : index
    %c2_83 = arith.constant 2 : index
    %c0_84 = arith.constant 0 : index
    %75 = vector.load %arg9[%c1_82, %c2_83, %c0_84] : memref<18x18x128xf32, #tpu.memory_space<vmem>>, vector<16x16x128xf32>
    %76 = vector.shape_cast %75 : vector<16x16x128xf32> to vector<256x128xf32>
    %77 = arith.truncf %76 : vector<256x128xf32> to vector<256x128xbf16>
    %c0_85 = arith.constant 0 : index
    %c640_86 = arith.constant 640 : index
    %78 = vector.load %arg10[%c0_85, %c640_86] : memref<256x1152xbf16, #tpu.memory_space<vmem>>, vector<256x128xbf16>
    tpu.vector_store %arg10[%c0_85, %c640_86], %77 {strides = array<i32>} : memref<256x1152xbf16, #tpu.memory_space<vmem>>, vector<256x128xbf16>,
    %c2_87 = arith.constant 2 : index
    %c0_88 = arith.constant 0 : index
    %c0_89 = arith.constant 0 : index
    %79 = vector.load %arg9[%c2_87, %c0_88, %c0_89] : memref<18x18x128xf32, #tpu.memory_space<vmem>>, vector<16x16x128xf32>
    %80 = vector.shape_cast %79 : vector<16x16x128xf32> to vector<256x128xf32>
    %81 = arith.truncf %80 : vector<256x128xf32> to vector<256x128xbf16>
    %c0_90 = arith.constant 0 : index
    %c768_91 = arith.constant 768 : index
    %82 = vector.load %arg10[%c0_90, %c768_91] : memref<256x1152xbf16, #tpu.memory_space<vmem>>, vector<256x128xbf16>
    tpu.vector_store %arg10[%c0_90, %c768_91], %81 {strides = array<i32>} : memref<256x1152xbf16, #tpu.memory_space<vmem>>, vector<256x128xbf16>,
    %c2_92 = arith.constant 2 : index
    %c1_93 = arith.constant 1 : index
    %c0_94 = arith.constant 0 : index
    %83 = vector.load %arg9[%c2_92, %c1_93, %c0_94] : memref<18x18x128xf32, #tpu.memory_space<vmem>>, vector<16x16x128xf32>
    %84 = vector.shape_cast %83 : vector<16x16x128xf32> to vector<256x128xf32>
    %85 = arith.truncf %84 : vector<256x128xf32> to vector<256x128xbf16>
    %c0_95 = arith.constant 0 : index
    %c896_96 = arith.constant 896 : index
    %86 = vector.load %arg10[%c0_95, %c896_96] : memref<256x1152xbf16, #tpu.memory_space<vmem>>, vector<256x128xbf16>
    tpu.vector_store %arg10[%c0_95, %c896_96], %85 {strides = array<i32>} : memref<256x1152xbf16, #tpu.memory_space<vmem>>, vector<256x128xbf16>,
    %c2_97 = arith.constant 2 : index
    %c2_98 = arith.constant 2 : index
    %c0_99 = arith.constant 0 : index
    %87 = vector.load %arg9[%c2_97, %c2_98, %c0_99] : memref<18x18x128xf32, #tpu.memory_space<vmem>>, vector<16x16x128xf32>
    %88 = vector.shape_cast %87 : vector<16x16x128xf32> to vector<256x128xf32>
    %89 = arith.truncf %88 : vector<256x128xf32> to vector<256x128xbf16>
    %c0_100 = arith.constant 0 : index
    %c1024_101 = arith.constant 1024 : index
    %90 = vector.load %arg10[%c0_100, %c1024_101] : memref<256x1152xbf16, #tpu.memory_space<vmem>>, vector<256x128xbf16>
    tpu.vector_store %arg10[%c0_100, %c1024_101], %89 {strides = array<i32>} : memref<256x1152xbf16, #tpu.memory_space<vmem>>, vector<256x128xbf16>,
    %c0_102 = arith.constant 0 : index
    %c0_103 = arith.constant 0 : index
    %91 = vector.load %arg10[%c0_102, %c0_103] : memref<256x1152xbf16, #tpu.memory_space<vmem>>, vector<256x1152xbf16>
    %c0_104 = arith.constant 0 : index
    %c0_105 = arith.constant 0 : index
    %92 = vector.load %arg5[%c0_104, %c0_105] : memref<1152x128xbf16, #tpu.memory_space<vmem>>, vector<1152x128xbf16>
    %cst_106 = arith.constant dense<0.000000e+00> : vector<256x128xf32>
    %93 = tpu.matmul %91, %92, %cst_106 {dimension_numbers = #tpu.dot_dimension_numbers<[1], [0], [0], [1], [0, 0, 1, 1], [], []>} : vector<256x1152xbf16>, vector<1152x128xbf16>, vector<256x128xf32> -> vector<256x128xf32>
    %c0_107 = arith.constant 0 : index
    %c0_108 = arith.constant 0 : index
    %94 = vector.load %arg6[%c0_107, %c0_108] : memref<1x128xf32, #tpu.memory_space<vmem>>, vector<1x128xf32>
    %95 = vector.broadcast %94 : vector<1x128xf32> to vector<256x128xf32>
    %96 = arith.mulf %93, %95 : vector<256x128xf32>
    %c0_109 = arith.constant 0 : index
    %c0_110 = arith.constant 0 : index
    %97 = vector.load %arg7[%c0_109, %c0_110] : memref<1x128xf32, #tpu.memory_space<vmem>>, vector<1x128xf32>
    %98 = vector.broadcast %97 : vector<1x128xf32> to vector<256x128xf32>
    %99 = arith.addf %96, %98 : vector<256x128xf32>
    %cst_111 = arith.constant 0.000000e+00 : f32
    %100 = vector.broadcast %cst_111 : f32 to vector<256x128xf32>
    %101 = arith.maximumf %99, %100 : vector<256x128xf32>
    %102 = vector.shape_cast %101 : vector<256x128xf32> to vector<16x16x128xf32>
    %103 = arith.truncf %102 : vector<16x16x128xf32> to vector<16x16x128xbf16>
    %c0_112 = arith.constant 0 : index
    %c0_113 = arith.constant 0 : index
    %c0_114 = arith.constant 0 : index
    %c0_115 = arith.constant 0 : index
    %104 = vector.load %arg8[%c0_112, %c0_113, %c0_114, %c0_115] : memref<1x16x16x128xbf16, #tpu.memory_space<vmem>>, vector<1x16x16x128xbf16>
    %105 = vector.shape_cast %104 : vector<1x16x16x128xbf16> to vector<16x16x128xbf16>
    %106 = vector.shape_cast %103 : vector<16x16x128xbf16> to vector<1x16x16x128xbf16>
    tpu.vector_store %arg8[%c0_112, %c0_113, %c0_114, %c0_115], %106 {strides = array<i32>} : memref<1x16x16x128xbf16, #tpu.memory_space<vmem>>, vector<1x16x16x128xbf16>,
    return
  }
  func.func @transform_0(%arg0: i32) -> (i32, i32, i32, i32) {
    %c0_i32 = arith.constant 0 : i32
    %c0_i32_0 = arith.constant 0 : i32
    %c0_i32_1 = arith.constant 0 : i32
    %c0_i32_2 = arith.constant 0 : i32
    return %arg0, %c0_i32, %c0_i32_0, %c0_i32_1 : i32, i32, i32, i32
  }
  func.func @transform_1(%arg0: i32) -> (i32, i32) {
    %c0_i32 = arith.constant 0 : i32
    %c0_i32_0 = arith.constant 0 : i32
    %c0_i32_1 = arith.constant 0 : i32
    return %c0_i32, %c0_i32_0 : i32, i32
  }
  func.func @transform_2(%arg0: i32) -> (i32, i32) {
    %c0_i32 = arith.constant 0 : i32
    %c0_i32_0 = arith.constant 0 : i32
    %c0_i32_1 = arith.constant 0 : i32
    return %c0_i32, %c0_i32_0 : i32, i32
  }
  func.func @transform_3(%arg0: i32) -> (i32, i32) {
    %c0_i32 = arith.constant 0 : i32
    %c0_i32_0 = arith.constant 0 : i32
    %c0_i32_1 = arith.constant 0 : i32
    return %c0_i32, %c0_i32_0 : i32, i32
  }
  func.func @transform_4(%arg0: i32) -> (i32, i32) {
    %c0_i32 = arith.constant 0 : i32
    %c0_i32_0 = arith.constant 0 : i32
    %c0_i32_1 = arith.constant 0 : i32
    return %c0_i32, %c0_i32_0 : i32, i32
  }
  func.func @transform_5(%arg0: i32) -> (i32, i32) {
    %c0_i32 = arith.constant 0 : i32
    %c0_i32_0 = arith.constant 0 : i32
    %c0_i32_1 = arith.constant 0 : i32
    return %c0_i32, %c0_i32_0 : i32, i32
  }
  func.func @transform_6(%arg0: i32) -> (i32, i32) {
    %c0_i32 = arith.constant 0 : i32
    %c0_i32_0 = arith.constant 0 : i32
    %c0_i32_1 = arith.constant 0 : i32
    return %c0_i32, %c0_i32_0 : i32, i32
  }
  func.func @transform_7(%arg0: i32) -> (i32, i32, i32, i32) {
    %c0_i32 = arith.constant 0 : i32
    %c0_i32_0 = arith.constant 0 : i32
    %c0_i32_1 = arith.constant 0 : i32
    %c0_i32_2 = arith.constant 0 : i32
    return %arg0, %c0_i32, %c0_i32_0, %c0_i32_1 : i32, i32, i32, i32
  }
}

</mosaic_0001>

<llo_original>
// kernel: tpu_custom_call.1
$region0: #{tpu_custom_call.1}
  #allocation0 [shape = 'u32[]', space=smem, size = 0x4, offset = 0x4, fixed_abs, tag = 'smem constant byte address 0x4 - core index']
  #allocation1 [shape = 'u32[72,128]{1,0:T(1,128)}', space=vmem, size = 0x9000, scoped, tag = 'internal scratch']
  #allocation2 [shape = 'f32[18,18,128]{2,1,0:T(8,128)}', space=vmem, size = 0x36000, scoped, tag = 'scratch operand']
  #allocation3 [shape = 'bf16[256,1152]{1,0:T(8,128)(2,1)}', space=vmem, size = 0x90000, scoped, tag = 'scratch operand']
  %s0 = inlined_call_operand.hbm [shape: bf16[2,16,16,128], index: 0, kind: input, shape index: {}]
  %s1 = inlined_call_operand.hbm [shape: bf16[1152,128], index: 1, kind: input, shape index: {}]
  %s2 = inlined_call_operand.vmem [shape: f32[1,128], index: 2, kind: input, shape index: {}]
  %s3 = inlined_call_operand.vmem [shape: f32[1,128], index: 3, kind: input, shape index: {}]
  %s4 = inlined_call_operand.hbm [shape: bf16[1152,128], index: 4, kind: input, shape index: {}]
  %s5 = inlined_call_operand.vmem [shape: f32[1,128], index: 5, kind: input, shape index: {}]
  %s6 = inlined_call_operand.vmem [shape: f32[1,128], index: 6, kind: input, shape index: {}]
  %s7 = inlined_call_operand.hbm [shape: bf16[2,16,16,128], index: 7, kind: output, shape index: {}]
  %s8 = sld [smem:[#allocation0]]
  $region73: #{tpu_custom_call.1} parent=0
    _
  %s10 = ssub.s32 1, %s8
  %s11 = scalar_select 0, %s10, %s8
  $region1: #{tpu_custom_call.1} parent=0
    #allocation4 [shape = 'u8[131072]{0}', space=vmem, size = 0x20000, scoped, tag = 'input window, operand 0']
    #allocation5 [shape = 's32[2]{0}', space=sflag, size = 0x8, scoped, tag = 'scoped memory for tpu_custom_call.1']
    #allocation6 [shape = 's32[2]{0}', space=sflag, size = 0x8, scoped, tag = 'scoped memory for tpu_custom_call.1']
    #allocation7 [shape = 'u8[294912]{0}', space=vmem, size = 0x48000, scoped, tag = 'input window, operand 1, single buffered']
    #allocation8 [shape = 's32[1]{0}', space=sflag, size = 0x4, scoped, tag = 'scoped memory for tpu_custom_call.1']
    #allocation9 [shape = 'u8[294912]{0}', space=vmem, size = 0x48000, scoped, tag = 'input window, operand 4, single buffered']
    #allocation10 [shape = 'u8[131072]{0}', space=vmem, size = 0x20000, scoped, tag = 'output window, operand 0']
    %12 = vsyncpa [#allocation5], 0
    %s13 = scalar_lea.sflag [#allocation5], 1
    %14 = vsyncpa %s13, 0
    %15 = vsyncpa [#allocation8], 0
    %16 = vsyncpa [#allocation6], 0
    %s17 = scalar_lea.sflag [#allocation6], 1
    %18 = vsyncpa %s17, 0
    loop: start=0, step=1, limit=4
    $region2: #{tpu_custom_call.1} parent=1 // loop_pre_header
      _
    $region3: #{tpu_custom_call.1} parent=1 // loop_header
      %s20 = sphi 0, %s24
      %p21 = scmp.ge.s32.totalorder %s20, 4
      %s30 = sphi 0, %s32
      %s33 = sphi 0, %s30
      %s34 = sphi 0, %s33
      %s50 = sphi 0, %s34
      %s54 = sphi 0, %s54
      %s56 = sphi 0, %s54
      %s57 = sphi 0, %s56
      %s71 = sphi 0, %s57
      %s75 = sphi 0, %s75
      %s77 = sphi 0, %s75
      %s78 = sphi 0, %s77
      %s92 = sphi 0, %s78
      %s96 = sphi 0, %s96
      %s98 = sphi 0, %s96
      %s99 = sphi 0, %s98
      %s113 = sphi 0, %s99
      %s117 = sphi 0, %s117
      %s119 = sphi 0, %s117
      %s120 = sphi 0, %s119
      %s134 = sphi 0, %s120
      %s138 = sphi 0, %s138
      %s140 = sphi 0, %s138
      %s141 = sphi 0, %s140
      %s155 = sphi 0, %s141
      %s159 = sphi 0, %s159
      %s161 = sphi 0, %s159
      %s162 = sphi 0, %s161
      %s176 = sphi 0, %s162
      %s182 = sphi 0, %s184
      %s185 = sphi 0, %s182
      %s186 = sphi 0, %s185
      %s202 = sphi 0, %s186
    $region4: #{tpu_custom_call.1} parent=1 // loop_header_branch
      %23 = sbr.rel (%p21) target = $region8
    $region5: #{tpu_custom_call.1} parent=1 // loop_body
      %s25 = ssub.s32 %s20, 1
      %s26 = ssub.s32 %s20, 2
      %s27 = sadd.s32 %s20, 1
      %s28 = ssub.s32 %s20, %s27
      %p29 = scmp.eq.s32.totalorder %s28, 0
      %s31 = sadd.s32 %s30, 1
      %s32 = scalar_select %p29, %s30, %s31
      %p35 = pneg %p29
      %p36 = scmp.eq.s32.totalorder %s20, 1
      %p37 = por %p35, %p36
      %p38 = scmp.ne.s32.totalorder %s30, %s33
      %p39 = scmp.eq.s32.totalorder %s20, 0
      %p40 = por %p38, %p39
      %p41 = scmp.ne.s32.totalorder %s30, %s33
      %p42 = scmp.eq.s32.totalorder %s25, 1
      %p43 = por %p41, %p42
      %p44 = scmp.ne.s32.totalorder %s33, %s34
      %p45 = scmp.eq.s32.totalorder %s25, 0
      %p46 = por %p44, %p45
      %p47 = scmp.ne.s32.totalorder %s33, %s34
      %p48 = scmp.eq.s32.totalorder %s26, 1
      %p49 = por %p47, %p48
      %p51 = scmp.ne.s32.totalorder %s34, %s50
      %p52 = scmp.eq.s32.totalorder %s26, 0
      %p53 = por %p51, %p52
      %s55 = sadd.s32 %s54, 1
      %p58 = scmp.eq.s32.totalorder %s20, 1
      %p59 = scmp.ne.s32.totalorder %s54, %s56
      %p60 = scmp.eq.s32.totalorder %s20, 0
      %p61 = por %p59, %p60
      %p62 = scmp.ne.s32.totalorder %s54, %s56
      %p63 = scmp.eq.s32.totalorder %s25, 1
      %p64 = por %p62, %p63
      %p65 = scmp.ne.s32.totalorder %s56, %s57
      %p66 = scmp.eq.s32.totalorder %s25, 0
      %p67 = por %p65, %p66
      %p68 = scmp.ne.s32.totalorder %s56, %s57
      %p69 = scmp.eq.s32.totalorder %s26, 1
      %p70 = por %p68, %p69
      %p72 = scmp.ne.s32.totalorder %s57, %s71
      %p73 = scmp.eq.s32.totalorder %s26, 0
      %p74 = por %p72, %p73
      %s76 = sadd.s32 %s75, 1
      %p79 = scmp.eq.s32.totalorder %s20, 1
      %p80 = scmp.ne.s32.totalorder %s75, %s77
      %p81 = scmp.eq.s32.totalorder %s20, 0
      %p82 = por %p80, %p81
      %p83 = scmp.ne.s32.totalorder %s75, %s77
      %p84 = scmp.eq.s32.totalorder %s25, 1
      %p85 = por %p83, %p84
      %p86 = scmp.ne.s32.totalorder %s77, %s78
      %p87 = scmp.eq.s32.totalorder %s25, 0
      %p88 = por %p86, %p87
      %p89 = scmp.ne.s32.totalorder %s77, %s78
      %p90 = scmp.eq.s32.totalorder %s26, 1
      %p91 = por %p89, %p90
      %p93 = scmp.ne.s32.totalorder %s78, %s92
      %p94 = scmp.eq.s32.totalorder %s26, 0
      %p95 = por %p93, %p94
      %s97 = sadd.s32 %s96, 1
      %p100 = scmp.eq.s32.totalorder %s20, 1
      %p101 = scmp.ne.s32.totalorder %s96, %s98
      %p102 = scmp.eq.s32.totalorder %s20, 0
      %p103 = por %p101, %p102
      %p104 = scmp.ne.s32.totalorder %s96, %s98
      %p105 = scmp.eq.s32.totalorder %s25, 1
      %p106 = por %p104, %p105
      %p107 = scmp.ne.s32.totalorder %s98, %s99
      %p108 = scmp.eq.s32.totalorder %s25, 0
      %p109 = por %p107, %p108
      %p110 = scmp.ne.s32.totalorder %s98, %s99
      %p111 = scmp.eq.s32.totalorder %s26, 1
      %p112 = por %p110, %p111
      %p114 = scmp.ne.s32.totalorder %s99, %s113
      %p115 = scmp.eq.s32.totalorder %s26, 0
      %p116 = por %p114, %p115
      %s118 = sadd.s32 %s117, 1
      %p121 = scmp.eq.s32.totalorder %s20, 1
      %p122 = scmp.ne.s32.totalorder %s117, %s119
      %p123 = scmp.eq.s32.totalorder %s20, 0
      %p124 = por %p122, %p123
      %p125 = scmp.ne.s32.totalorder %s117, %s119
      %p126 = scmp.eq.s32.totalorder %s25, 1
      %p127 = por %p125, %p126
      %p128 = scmp.ne.s32.totalorder %s119, %s120
      %p129 = scmp.eq.s32.totalorder %s25, 0
      %p130 = por %p128, %p129
      %p131 = scmp.ne.s32.totalorder %s119, %s120
      %p132 = scmp.eq.s32.totalorder %s26, 1
      %p133 = por %p131, %p132
      %p135 = scmp.ne.s32.totalorder %s120, %s134
      %p136 = scmp.eq.s32.totalorder %s26, 0
      %p137 = por %p135, %p136
      %s139 = sadd.s32 %s138, 1
      %p142 = scmp.eq.s32.totalorder %s20, 1
      %p143 = scmp.ne.s32.totalorder %s138, %s140
      %p144 = scmp.eq.s32.totalorder %s20, 0
      %p145 = por %p143, %p144
      %p146 = scmp.ne.s32.totalorder %s138, %s140
      %p147 = scmp.eq.s32.totalorder %s25, 1
      %p148 = por %p146, %p147
      %p149 = scmp.ne.s32.totalorder %s140, %s141
      %p150 = scmp.eq.s32.totalorder %s25, 0
      %p151 = por %p149, %p150
      %p152 = scmp.ne.s32.totalorder %s140, %s141
      %p153 = scmp.eq.s32.totalorder %s26, 1
      %p154 = por %p152, %p153
      %p156 = scmp.ne.s32.totalorder %s141, %s155
      %p157 = scmp.eq.s32.totalorder %s26, 0
      %p158 = por %p156, %p157
      %s160 = sadd.s32 %s159, 1
      %p163 = scmp.eq.s32.totalorder %s20, 1
      %p164 = scmp.ne.s32.totalorder %s159, %s161
      %p165 = scmp.eq.s32.totalorder %s20, 0
      %p166 = por %p164, %p165
      %p167 = scmp.ne.s32.totalorder %s159, %s161
      %p168 = scmp.eq.s32.totalorder %s25, 1
      %p169 = por %p167, %p168
      %p170 = scmp.ne.s32.totalorder %s161, %s162
      %p171 = scmp.eq.s32.totalorder %s25, 0
      %p172 = por %p170, %p171
      %p173 = scmp.ne.s32.totalorder %s161, %s162
      %p174 = scmp.eq.s32.totalorder %s26, 1
      %p175 = por %p173, %p174
      %p177 = scmp.ne.s32.totalorder %s162, %s176
      %p178 = scmp.eq.s32.totalorder %s26, 0
      %p179 = por %p177, %p178
      %s180 = ssub.s32 %s20, %s27
      %p181 = scmp.eq.s32.totalorder %s180, 0
      %s183 = sadd.s32 %s182, 1
      %s184 = scalar_select %p181, %s182, %s183
      %p187 = pneg %p181
      %p188 = scmp.eq.s32.totalorder %s20, 1
      %p189 = por %p187, %p188
      %p190 = scmp.ne.s32.totalorder %s182, %s185
      %p191 = scmp.eq.s32.totalorder %s20, 0
      %p192 = por %p190, %p191
      %p193 = scmp.ne.s32.totalorder %s182, %s185
      %p194 = scmp.eq.s32.totalorder %s25, 1
      %p195 = por %p193, %p194
      %p196 = scmp.ne.s32.totalorder %s185, %s186
      %p197 = scmp.eq.s32.totalorder %s25, 0
      %p198 = por %p196, %p197
      %p199 = scmp.ne.s32.totalorder %s185, %s186
      %p200 = scmp.eq.s32.totalorder %s26, 1
      %p201 = por %p199, %p200
      %p203 = scmp.ne.s32.totalorder %s186, %s202
      %p204 = scmp.eq.s32.totalorder %s26, 0
      %p205 = por %p203, %p204
      %p206 = scmp.le.s32.totalorder 1, %s20
      %p207 = scmp.lt.s32.totalorder %s20, 3
      %p208 = pnand %p206, %p207
      %p209 = pneg %p208
      // Predicated region
      $region9: #{tpu_custom_call.1} parent=5 // pred_check
        _
      $region10: #{tpu_custom_call.1} parent=5 // pred_check_branch
        %211 = sbr.rel (%p208) target = $region12
      $region11: #{tpu_custom_call.1} parent=5 // pred_region
        %s212 = ssub.s32 %s20, 1
        // Predicated region
        $region13: #{tpu_custom_call.1} parent=11 // pred_check
          %p213 = pneg %p67
        $region14: #{tpu_custom_call.1} parent=11 // pred_check_branch
          %215 = sbr.rel (%p213) target = $region16
        $region15: #{tpu_custom_call.1} parent=11 // pred_region
          %217 = vsyncadd [#allocation8], 0
          %s218 = sshll.u32 %s1, 4
          %s219 = int_to_ptr.hbm [resolvable:$true] %s218
          %s220 = sshll.u32 [#allocation7], 4
          %s221 = int_to_ptr.vmem [resolvable:$true] %s220
          %226 = dma.hbm_to_vmem [thread:$0]  %s219, 9216, %s221, [#allocation8], 64, 64, 4
        $region16: #{tpu_custom_call.1} parent=11 // pred_fallthru
          _
        // Predicated region
        $region17: #{tpu_custom_call.1} parent=11 // pred_check
          %p227 = pneg %p88
        $region18: #{tpu_custom_call.1} parent=11 // pred_check_branch
          %229 = sbr.rel (%p227) target = $region20
        $region19: #{tpu_custom_call.1} parent=11 // pred_region
          _
        $region20: #{tpu_custom_call.1} parent=11 // pred_fallthru
          _
        // Predicated region
        $region21: #{tpu_custom_call.1} parent=11 // pred_check
          %p230 = pneg %p109
        $region22: #{tpu_custom_call.1} parent=11 // pred_check_branch
          %232 = sbr.rel (%p230) target = $region24
        $region23: #{tpu_custom_call.1} parent=11 // pred_region
          _
        $region24: #{tpu_custom_call.1} parent=11 // pred_fallthru
          _
        // Predicated region
        $region25: #{tpu_custom_call.1} parent=11 // pred_check
          %p233 = pneg %p130
        $region26: #{tpu_custom_call.1} parent=11 // pred_check_branch
          %235 = sbr.rel (%p233) target = $region28
        $region27: #{tpu_custom_call.1} parent=11 // pred_region
          %237 = vsyncadd [#allocation8], 0
          %s238 = sshll.u32 %s4, 4
          %s239 = int_to_ptr.hbm [resolvable:$true] %s238
          %s240 = sshll.u32 [#allocation9], 4
          %s241 = int_to_ptr.vmem [resolvable:$true] %s240
          %246 = dma.hbm_to_vmem [thread:$0]  %s239, 9216, %s241, [#allocation8], 64, 64, 4
        $region28: #{tpu_custom_call.1} parent=11 // pred_fallthru
          _
        // Predicated region
        $region29: #{tpu_custom_call.1} parent=11 // pred_check
          %p247 = pneg %p151
        $region30: #{tpu_custom_call.1} parent=11 // pred_check_branch
          %249 = sbr.rel (%p247) target = $region32
        $region31: #{tpu_custom_call.1} parent=11 // pred_region
          _
        $region32: #{tpu_custom_call.1} parent=11 // pred_fallthru
          _
        // Predicated region
        $region33: #{tpu_custom_call.1} parent=11 // pred_check
          %p250 = pneg %p172
        $region34: #{tpu_custom_call.1} parent=11 // pred_check_branch
          %252 = sbr.rel (%p250) target = $region36
        $region35: #{tpu_custom_call.1} parent=11 // pred_region
          _
        $region36: #{tpu_custom_call.1} parent=11 // pred_fallthru
          _
      $region12: #{tpu_custom_call.1} parent=5 // pred_fallthru
        _
      %p253 = scmp.lt.s32.totalorder %s20, 2
      // Predicated region
      $region37: #{tpu_custom_call.1} parent=5 // pred_check
        %p254 = pneg %p253
      $region38: #{tpu_custom_call.1} parent=5 // pred_check_branch
        %256 = sbr.rel (%p254) target = $region40
      $region39: #{tpu_custom_call.1} parent=5 // pred_region
        // Predicated region
        $region41: #{tpu_custom_call.1} parent=39 // pred_check
          %p257 = pneg %p40
        $region42: #{tpu_custom_call.1} parent=39 // pred_check_branch
          %259 = sbr.rel (%p257) target = $region44
        $region43: #{tpu_custom_call.1} parent=39 // pred_region
          %s260 = sand.u32 %s30, 1
          %s261 = scalar_lea.sflag [#allocation5], %s260
          %s262 = sand.u32 %s30, 1
          %s263 = smul.addr %s262, 128
          %s264 = scalar_lea.vmem [#allocation4], %s263
          %266 = vsyncadd %s261, 0
          %s267 = smul.addr %s20, 32
          %s268 = smul.addr %s267, 4
          %s269 = scalar_lea.hbm %s0, %s268
          %s270 = sshll.u32 %s269, 4
          %s271 = int_to_ptr.hbm [resolvable:$true] %s270
          %s272 = sshll.u32 %s264, 4
          %s273 = int_to_ptr.vmem [resolvable:$true] %s272
          %278 = dma.hbm_to_vmem [thread:$0]  %s271, 2048, %s273, %s261, 64, 64, 4
        $region44: #{tpu_custom_call.1} parent=39 // pred_fallthru
          _
      $region40: #{tpu_custom_call.1} parent=5 // pred_fallthru
        _
      %p279 = scmp.le.s32.totalorder 1, %s20
      %p280 = scmp.lt.s32.totalorder %s20, 3
      %p281 = pnand %p279, %p280
      %p282 = pneg %p281
      // Predicated region
      $region45: #{tpu_custom_call.1} parent=5 // pred_check
        _
      $region46: #{tpu_custom_call.1} parent=5 // pred_check_branch
        %284 = sbr.rel (%p281) target = $region48
      $region47: #{tpu_custom_call.1} parent=5 // pred_region
        %s285 = ssub.s32 %s20, 1
        %s286 = sand.u32 %s33, 1
        %s287 = scalar_lea.sflag [#allocation5], %s286
        %s288 = sand.u32 %s33, 1
        %s289 = smul.addr %s288, 128
        %s290 = scalar_lea.vmem [#allocation4], %s289
        // Predicated region
        $region49: #{tpu_custom_call.1} parent=47 // pred_check
          %p291 = pneg %p46
        $region50: #{tpu_custom_call.1} parent=47 // pred_check_branch
          %293 = sbr.rel (%p291) target = $region52
        $region51: #{tpu_custom_call.1} parent=47 // pred_region
          %295 = dma.done %s287, 2048
        $region52: #{tpu_custom_call.1} parent=47 // pred_fallthru
          _
        // Predicated region
        $region53: #{tpu_custom_call.1} parent=47 // pred_check
          %p296 = pneg %p67
        $region54: #{tpu_custom_call.1} parent=47 // pred_check_branch
          %298 = sbr.rel (%p296) target = $region56
        $region55: #{tpu_custom_call.1} parent=47 // pred_region
          %300 = dma.done [#allocation8], 9216
        $region56: #{tpu_custom_call.1} parent=47 // pred_fallthru
          _
        // Predicated region
        $region57: #{tpu_custom_call.1} parent=47 // pred_check
          %p301 = pneg %p130
        $region58: #{tpu_custom_call.1} parent=47 // pred_check_branch
          %303 = sbr.rel (%p301) target = $region60
        $region59: #{tpu_custom_call.1} parent=47 // pred_region
          %305 = dma.done [#allocation8], 9216
        $region60: #{tpu_custom_call.1} parent=47 // pred_fallthru
          _
        %s306 = sand.u32 %s33, 1
        %s307 = scalar_lea.sflag [#allocation5], %s306
        %s308 = sand.u32 %s33, 1
        %s309 = smul.addr %s308, 128
        %s310 = scalar_lea.vmem [#allocation4], %s309
        %p311 = pneg %p46
        %p312 = pneg %p43
        %p313 = pneg %p67
        %p314 = pneg %p64
        %p315 = pneg %p88
        %p316 = pneg %p85
        %p317 = pneg %p109
        %p318 = pneg %p106
        %p319 = pneg %p130
        %p320 = pneg %p127
        %p321 = pneg %p151
        %p322 = pneg %p148
        %p323 = pneg %p172
        %p324 = pneg %p169
        %p325 = pneg %p198
        %p326 = pneg %p195
        %s327 = sand.u32 %s185, 1
        %s328 = scalar_lea.sflag [#allocation6], %s327
        %s329 = sand.u32 %s185, 1
        %s330 = smul.addr %s329, 128
        %s331 = scalar_lea.vmem [#allocation10], %s330
        %332 = vst [vmem:[#allocation2] sm:$0xff] 0.0
        %333 = vst [vmem:[#allocation2 + $0x8] sm:$0xff] 0.0
        %334 = vst [vmem:[#allocation2 + $0x10] sm:$0x3] 0.0
        %335 = vst [vmem:[#allocation2 + $0x18] sm:$0xff] 0.0
        %336 = vst [vmem:[#allocation2 + $0x20] sm:$0xff] 0.0
        %337 = vst [vmem:[#allocation2 + $0x28] sm:$0x3] 0.0
        %338 = vst [vmem:[#allocation2 + $0x30] sm:$0xff] 0.0
        %339 = vst [vmem:[#allocation2 + $0x38] sm:$0xff] 0.0
        %340 = vst [vmem:[#allocation2 + $0x40] sm:$0x3] 0.0
        %341 = vst [vmem:[#allocation2 + $0x48] sm:$0xff] 0.0
        %342 = vst [vmem:[#allocation2 + $0x50] sm:$0xff] 0.0
        %343 = vst [vmem:[#allocation2 + $0x58] sm:$0x3] 0.0
        %344 = vst [vmem:[#allocation2 + $0x60] sm:$0xff] 0.0
        %345 = vst [vmem:[#allocation2 + $0x68] sm:$0xff] 0.0
        %346 = vst [vmem:[#allocation2 + $0x70] sm:$0x3] 0.0
        %347 = vst [vmem:[#allocation2 + $0x78] sm:$0xff] 0.0
        %348 = vst [vmem:[#allocation2 + $0x80] sm:$0xff] 0.0
        %349 = vst [vmem:[#allocation2 + $0x88] sm:$0x3] 0.0
        %350 = vst [vmem:[#allocation2 + $0x90] sm:$0xff] 0.0
        %351 = vst [vmem:[#allocation2 + $0x98] sm:$0xff] 0.0
        %352 = vst [vmem:[#allocation2 + $0xa0] sm:$0x3] 0.0
        %353 = vst [vmem:[#allocation2 + $0xa8] sm:$0xff] 0.0
        %354 = vst [vmem:[#allocation2 + $0xb0] sm:$0xff] 0.0
        %355 = vst [vmem:[#allocation2 + $0xb8] sm:$0x3] 0.0
        %356 = vst [vmem:[#allocation2 + $0xc0] sm:$0xff] 0.0
        %357 = vst [vmem:[#allocation2 + $0xc8] sm:$0xff] 0.0
        %358 = vst [vmem:[#allocation2 + $0xd0] sm:$0x3] 0.0
        %359 = vst [vmem:[#allocation2 + $0xd8] sm:$0xff] 0.0
        %360 = vst [vmem:[#allocation2 + $0xe0] sm:$0xff] 0.0
        %361 = vst [vmem:[#allocation2 + $0xe8] sm:$0x3] 0.0
        %362 = vst [vmem:[#allocation2 + $0xf0] sm:$0xff] 0.0
        %363 = vst [vmem:[#allocation2 + $0xf8] sm:$0xff] 0.0
        %364 = vst [vmem:[#allocation2 + $0x100] sm:$0x3] 0.0
        %365 = vst [vmem:[#allocation2 + $0x108] sm:$0xff] 0.0
        %366 = vst [vmem:[#allocation2 + $0x110] sm:$0xff] 0.0
        %367 = vst [vmem:[#allocation2 + $0x118] sm:$0x3] 0.0
        %368 = vst [vmem:[#allocation2 + $0x120] sm:$0xff] 0.0
        %369 = vst [vmem:[#allocation2 + $0x128] sm:$0xff] 0.0
        %370 = vst [vmem:[#allocation2 + $0x130] sm:$0x3] 0.0
        %371 = vst [vmem:[#allocation2 + $0x138] sm:$0xff] 0.0
        %372 = vst [vmem:[#allocation2 + $0x140] sm:$0xff] 0.0
        %373 = vst [vmem:[#allocation2 + $0x148] sm:$0x3] 0.0
        %374 = vst [vmem:[#allocation2 + $0x150] sm:$0xff] 0.0
        %375 = vst [vmem:[#allocation2 + $0x158] sm:$0xff] 0.0
        %376 = vst [vmem:[#allocation2 + $0x160] sm:$0x3] 0.0
        %377 = vst [vmem:[#allocation2 + $0x168] sm:$0xff] 0.0
        %378 = vst [vmem:[#allocation2 + $0x170] sm:$0xff] 0.0
        %379 = vst [vmem:[#allocation2 + $0x178] sm:$0x3] 0.0
        %380 = vst [vmem:[#allocation2 + $0x180] sm:$0xff] 0.0
        %381 = vst [vmem:[#allocation2 + $0x188] sm:$0xff] 0.0
        %382 = vst [vmem:[#allocation2 + $0x190] sm:$0x3] 0.0
        %383 = vst [vmem:[#allocation2 + $0x198] sm:$0xff] 0.0
        %384 = vst [vmem:[#allocation2 + $0x1a0] sm:$0xff] 0.0
        %385 = vst [vmem:[#allocation2 + $0x1a8] sm:$0x3] 0.0
        %v386 = vld [vmem:[%s290] sm:$0xf]
        %v387 = vld [vmem:[%s290 + $0x4] sm:$0xf]
        %v388 = vld [vmem:[%s290 + $0x8] sm:$0xf]
        %v389 = vld [vmem:[%s290 + $0xc] sm:$0xf]
        %v390 = vld [vmem:[%s290 + $0x10] sm:$0xf]
        %v391 = vld [vmem:[%s290 + $0x14] sm:$0xf]
        %v392 = vld [vmem:[%s290 + $0x18] sm:$0xf]
        %v393 = vld [vmem:[%s290 + $0x1c] sm:$0xf]
        %v394 = vld [vmem:[%s290 + $0x20] sm:$0xf]
        %v395 = vld [vmem:[%s290 + $0x24] sm:$0xf]
        %v396 = vld [vmem:[%s290 + $0x28] sm:$0xf]
        %v397 = vld [vmem:[%s290 + $0x2c] sm:$0xf]
        %v398 = vld [vmem:[%s290 + $0x30] sm:$0xf]
        %v399 = vld [vmem:[%s290 + $0x34] sm:$0xf]
        %v400 = vld [vmem:[%s290 + $0x38] sm:$0xf]
        %v401 = vld [vmem:[%s290 + $0x3c] sm:$0xf]
        %v402 = vld [vmem:[%s290 + $0x40] sm:$0xf]
        %v403 = vld [vmem:[%s290 + $0x44] sm:$0xf]
        %v404 = vld [vmem:[%s290 + $0x48] sm:$0xf]
        %v405 = vld [vmem:[%s290 + $0x4c] sm:$0xf]
        %v406 = vld [vmem:[%s290 + $0x50] sm:$0xf]
        %v407 = vld [vmem:[%s290 + $0x54] sm:$0xf]
        %v408 = vld [vmem:[%s290 + $0x58] sm:$0xf]
        %v409 = vld [vmem:[%s290 + $0x5c] sm:$0xf]
        %v410 = vld [vmem:[%s290 + $0x60] sm:$0xf]
        %v411 = vld [vmem:[%s290 + $0x64] sm:$0xf]
        %v412 = vld [vmem:[%s290 + $0x68] sm:$0xf]
        %v413 = vld [vmem:[%s290 + $0x6c] sm:$0xf]
        %v414 = vld [vmem:[%s290 + $0x70] sm:$0xf]
        %v415 = vld [vmem:[%s290 + $0x74] sm:$0xf]
        %v416 = vld [vmem:[%s290 + $0x78] sm:$0xf]
        %v417 = vld [vmem:[%s290 + $0x7c] sm:$0xf]
        %v418 = vunpack.c.l.bf16 %v386
        %v419 = vunpack.c.l.bf16 %v387
        %v420 = vunpack.c.l.bf16 %v388
        %v421 = vunpack.c.l.bf16 %v389
        %v422 = vunpack.c.l.bf16 %v390
        %v423 = vunpack.c.l.bf16 %v391
        %v424 = vunpack.c.l.bf16 %v392
        %v425 = vunpack.c.l.bf16 %v393
        %v426 = vunpack.c.l.bf16 %v394
        %v427 = vunpack.c.l.bf16 %v395
        %v428 = vunpack.c.l.bf16 %v396
        %v429 = vunpack.c.l.bf16 %v397
        %v430 = vunpack.c.l.bf16 %v398
        %v431 = vunpack.c.l.bf16 %v399
        %v432 = vunpack.c.l.bf16 %v400
        %v433 = vunpack.c.l.bf16 %v401
        %v434 = vunpack.c.l.bf16 %v402
        %v435 = vunpack.c.l.bf16 %v403
        %v436 = vunpack.c.l.bf16 %v404
        %v437 = vunpack.c.l.bf16 %v405
        %v438 = vunpack.c.l.bf16 %v406
        %v439 = vunpack.c.l.bf16 %v407
        %v440 = vunpack.c.l.bf16 %v408
        %v441 = vunpack.c.l.bf16 %v409
        %v442 = vunpack.c.l.bf16 %v410
        %v443 = vunpack.c.l.bf16 %v411
        %v444 = vunpack.c.l.bf16 %v412
        %v445 = vunpack.c.l.bf16 %v413
        %v446 = vunpack.c.l.bf16 %v414
        %v447 = vunpack.c.l.bf16 %v415
        %v448 = vunpack.c.l.bf16 %v416
        %v449 = vunpack.c.l.bf16 %v417
        %s450 = scalar_lea.vmem [#allocation2], 24
        %451 = vst [vmem:[%s450 + $0x1] sm:$0xff] %v418
        %452 = vst [vmem:[%s450 + $0x9] sm:$0xff] %v419
        %453 = vst [vmem:[%s450 + $0x19] sm:$0xff] %v420
        %454 = vst [vmem:[%s450 + $0x21] sm:$0xff] %v421
        %455 = vst [vmem:[%s450 + $0x31] sm:$0xff] %v422
        %456 = vst [vmem:[%s450 + $0x39] sm:$0xff] %v423
        %457 = vst [vmem:[%s450 + $0x49] sm:$0xff] %v424
        %458 = vst [vmem:[%s450 + $0x51] sm:$0xff] %v425
        %459 = vst [vmem:[%s450 + $0x61] sm:$0xff] %v426
        %460 = vst [vmem:[%s450 + $0x69] sm:$0xff] %v427
        %461 = vst [vmem:[%s450 + $0x79] sm:$0xff] %v428
        %462 = vst [vmem:[%s450 + $0x81] sm:$0xff] %v429
        %463 = vst [vmem:[%s450 + $0x91] sm:$0xff] %v430
        %464 = vst [vmem:[%s450 + $0x99] sm:$0xff] %v431
        %465 = vst [vmem:[%s450 + $0xa9] sm:$0xff] %v432
        %466 = vst [vmem:[%s450 + $0xb1] sm:$0xff] %v433
        %467 = vst [vmem:[%s450 + $0xc1] sm:$0xff] %v434
        %468 = vst [vmem:[%s450 + $0xc9] sm:$0xff] %v435
        %469 = vst [vmem:[%s450 + $0xd9] sm:$0xff] %v436
        %470 = vst [vmem:[%s450 + $0xe1] sm:$0xff] %v437
        %471 = vst [vmem:[%s450 + $0xf1] sm:$0xff] %v438
        %472 = vst [vmem:[%s450 + $0xf9] sm:$0xff] %v439
        %473 = vst [vmem:[%s450 + $0x109] sm:$0xff] %v440
        %474 = vst [vmem:[%s450 + $0x111] sm:$0xff] %v441
        %475 = vst [vmem:[%s450 + $0x121] sm:$0xff] %v442
        %476 = vst [vmem:[%s450 + $0x129] sm:$0xff] %v443
        %477 = vst [vmem:[%s450 + $0x139] sm:$0xff] %v444
        %478 = vst [vmem:[%s450 + $0x141] sm:$0xff] %v445
        %479 = vst [vmem:[%s450 + $0x151] sm:$0xff] %v446
        %480 = vst [vmem:[%s450 + $0x159] sm:$0xff] %v447
        %481 = vst [vmem:[%s450 + $0x169] sm:$0xff] %v448
        %482 = vst [vmem:[%s450 + $0x171] sm:$0xff] %v449
        %v483 = vld [vmem:[#allocation2] sm:$0xff]
        %v484 = vld [vmem:[#allocation2 + $0x8] sm:$0xff]
        %v485 = vld [vmem:[#allocation2 + $0x18] sm:$0xff]
        %v486 = vld [vmem:[#allocation2 + $0x20] sm:$0xff]
        %v487 = vld [vmem:[#allocation2 + $0x30] sm:$0xff]
        %v488 = vld [vmem:[#allocation2 + $0x38] sm:$0xff]
        %v489 = vld [vmem:[#allocation2 + $0x48] sm:$0xff]
        %v490 = vld [vmem:[#allocation2 + $0x50] sm:$0xff]
        %v491 = vld [vmem:[#allocation2 + $0x60] sm:$0xff]
        %v492 = vld [vmem:[#allocation2 + $0x68] sm:$0xff]
        %v493 = vld [vmem:[#allocation2 + $0x78] sm:$0xff]
        %v494 = vld [vmem:[#allocation2 + $0x80] sm:$0xff]
        %v495 = vld [vmem:[#allocation2 + $0x90] sm:$0xff]
        %v496 = vld [vmem:[#allocation2 + $0x98] sm:$0xff]
        %v497 = vld [vmem:[#allocation2 + $0xa8] sm:$0xff]
        %v498 = vld [vmem:[#allocation2 + $0xb0] sm:$0xff]
        %v499 = vld [vmem:[#allocation2 + $0xc0] sm:$0xff]
        %v500 = vld [vmem:[#allocation2 + $0xc8] sm:$0xff]
        %v501 = vld [vmem:[#allocation2 + $0xd8] sm:$0xff]
        %v502 = vld [vmem:[#allocation2 + $0xe0] sm:$0xff]
        %v503 = vld [vmem:[#allocation2 + $0xf0] sm:$0xff]
        %v504 = vld [vmem:[#allocation2 + $0xf8] sm:$0xff]
        %v505 = vld [vmem:[#allocation2 + $0x108] sm:$0xff]
        %v506 = vld [vmem:[#allocation2 + $0x110] sm:$0xff]
        %v507 = vld [vmem:[#allocation2 + $0x120] sm:$0xff]
        %v508 = vld [vmem:[#allocation2 + $0x128] sm:$0xff]
        %v509 = vld [vmem:[#allocation2 + $0x138] sm:$0xff]
        %v510 = vld [vmem:[#allocation2 + $0x140] sm:$0xff]
        %v511 = vld [vmem:[#allocation2 + $0x150] sm:$0xff]
        %v512 = vld [vmem:[#allocation2 + $0x158] sm:$0xff]
        %v513 = vld [vmem:[#allocation2 + $0x168] sm:$0xff]
        %v514 = vld [vmem:[#allocation2 + $0x170] sm:$0xff]
        %v515 = vpack.c.bf16 %v483, %v483
        %v516 = vpack.c.bf16 %v484, %v484
        %v517 = vpack.c.bf16 %v485, %v485
        %v518 = vpack.c.bf16 %v486, %v486
        %v519 = vpack.c.bf16 %v487, %v487
        %v520 = vpack.c.bf16 %v488, %v488
        %v521 = vpack.c.bf16 %v489, %v489
        %v522 = vpack.c.bf16 %v490, %v490
        %v523 = vpack.c.bf16 %v491, %v491
        %v524 = vpack.c.bf16 %v492, %v492
        %v525 = vpack.c.bf16 %v493, %v493
        %v526 = vpack.c.bf16 %v494, %v494
        %v527 = vpack.c.bf16 %v495, %v495
        %v528 = vpack.c.bf16 %v496, %v496
        %v529 = vpack.c.bf16 %v497, %v497
        %v530 = vpack.c.bf16 %v498, %v498
        %v531 = vpack.c.bf16 %v499, %v499
        %v532 = vpack.c.bf16 %v500, %v500
        %v533 = vpack.c.bf16 %v501, %v501
        %v534 = vpack.c.bf16 %v502, %v502
        %v535 = vpack.c.bf16 %v503, %v503
        %v536 = vpack.c.bf16 %v504, %v504
        %v537 = vpack.c.bf16 %v505, %v505
        %v538 = vpack.c.bf16 %v506, %v506
        %v539 = vpack.c.bf16 %v507, %v507
        %v540 = vpack.c.bf16 %v508, %v508
        %v541 = vpack.c.bf16 %v509, %v509
        %v542 = vpack.c.bf16 %v510, %v510
        %v543 = vpack.c.bf16 %v511, %v511
        %v544 = vpack.c.bf16 %v512, %v512
        %v545 = vpack.c.bf16 %v513, %v513
        %v546 = vpack.c.bf16 %v514, %v514
        %547 = vst [vmem:[#allocation3] sm:$0xf] %v515
        %548 = vst [vmem:[#allocation3 + $0x24] sm:$0xf] %v516
        %549 = vst [vmem:[#allocation3 + $0x48] sm:$0xf] %v517
        %550 = vst [vmem:[#allocation3 + $0x6c] sm:$0xf] %v518
        %551 = vst [vmem:[#allocation3 + $0x90] sm:$0xf] %v519
        %552 = vst [vmem:[#allocation3 + $0xb4] sm:$0xf] %v520
        %553 = vst [vmem:[#allocation3 + $0xd8] sm:$0xf] %v521
        %554 = vst [vmem:[#allocation3 + $0xfc] sm:$0xf] %v522
        %555 = vst [vmem:[#allocation3 + $0x120] sm:$0xf] %v523
        %556 = vst [vmem:[#allocation3 + $0x144] sm:$0xf] %v524
        %557 = vst [vmem:[#allocation3 + $0x168] sm:$0xf] %v525
        %558 = vst [vmem:[#allocation3 + $0x18c] sm:$0xf] %v526
        %559 = vst [vmem:[#allocation3 + $0x1b0] sm:$0xf] %v527
        %560 = vst [vmem:[#allocation3 + $0x1d4] sm:$0xf] %v528
        %561 = vst [vmem:[#allocation3 + $0x1f8] sm:$0xf] %v529
        %562 = vst [vmem:[#allocation3 + $0x21c] sm:$0xf] %v530
        %563 = vst [vmem:[#allocation3 + $0x240] sm:$0xf] %v531
        %564 = vst [vmem:[#allocation3 + $0x264] sm:$0xf] %v532
        %565 = vst [vmem:[#allocation3 + $0x288] sm:$0xf] %v533
        %566 = vst [vmem:[#allocation3 + $0x2ac] sm:$0xf] %v534
        %567 = vst [vmem:[#allocation3 + $0x2d0] sm:$0xf] %v535
        %568 = vst [vmem:[#allocation3 + $0x2f4] sm:$0xf] %v536
        %569 = vst [vmem:[#allocation3 + $0x318] sm:$0xf] %v537
        %570 = vst [vmem:[#allocation3 + $0x33c] sm:$0xf] %v538
        %571 = vst [vmem:[#allocation3 + $0x360] sm:$0xf] %v539
        %572 = vst [vmem:[#allocation3 + $0x384] sm:$0xf] %v540
        %573 = vst [vmem:[#allocation3 + $0x3a8] sm:$0xf] %v541
        %574 = vst [vmem:[#allocation3 + $0x3cc] sm:$0xf] %v542
        %575 = vst [vmem:[#allocation3 + $0x3f0] sm:$0xf] %v543
        %576 = vst [vmem:[#allocation3 + $0x414] sm:$0xf] %v544
        %577 = vst [vmem:[#allocation3 + $0x438] sm:$0xf] %v545
        %578 = vst [vmem:[#allocation3 + $0x45c] sm:$0xf] %v546
        %v579 = vld [vmem:[#allocation2 + $0x1] sm:$0xff]
        %v580 = vld [vmem:[#allocation2 + $0x9] sm:$0xff]
        %v581 = vld [vmem:[#allocation2 + $0x19] sm:$0xff]
        %v582 = vld [vmem:[#allocation2 + $0x21] sm:$0xff]
        %v583 = vld [vmem:[#allocation2 + $0x31] sm:$0xff]
        %v584 = vld [vmem:[#allocation2 + $0x39] sm:$0xff]
        %v585 = vld [vmem:[#allocation2 + $0x49] sm:$0xff]
        %v586 = vld [vmem:[#allocation2 + $0x51] sm:$0xff]
        %v587 = vld [vmem:[#allocation2 + $0x61] sm:$0xff]
        %v588 = vld [vmem:[#allocation2 + $0x69] sm:$0xff]
        %v589 = vld [vmem:[#allocation2 + $0x79] sm:$0xff]
        %v590 = vld [vmem:[#allocation2 + $0x81] sm:$0xff]
        %v591 = vld [vmem:[#allocation2 + $0x91] sm:$0xff]
        %v592 = vld [vmem:[#allocation2 + $0x99] sm:$0xff]
        %v593 = vld [vmem:[#allocation2 + $0xa9] sm:$0xff]
        %v594 = vld [vmem:[#allocation2 + $0xb1] sm:$0xff]
        %v595 = vld [vmem:[#allocation2 + $0xc1] sm:$0xff]
        %v596 = vld [vmem:[#allocation2 + $0xc9] sm:$0xff]
        %v597 = vld [vmem:[#allocation2 + $0xd9] sm:$0xff]
        %v598 = vld [vmem:[#allocation2 + $0xe1] sm:$0xff]
        %v599 = vld [vmem:[#allocation2 + $0xf1] sm:$0xff]
        %v600 = vld [vmem:[#allocation2 + $0xf9] sm:$0xff]
        %v601 = vld [vmem:[#allocation2 + $0x109] sm:$0xff]
        %v602 = vld [vmem:[#allocation2 + $0x111] sm:$0xff]
        %v603 = vld [vmem:[#allocation2 + $0x121] sm:$0xff]
        %v604 = vld [vmem:[#allocation2 + $0x129] sm:$0xff]
        %v605 = vld [vmem:[#allocation2 + $0x139] sm:$0xff]
        %v606 = vld [vmem:[#allocation2 + $0x141] sm:$0xff]
        %v607 = vld [vmem:[#allocation2 + $0x151] sm:$0xff]
        %v608 = vld [vmem:[#allocation2 + $0x159] sm:$0xff]
        %v609 = vld [vmem:[#allocation2 + $0x169] sm:$0xff]
        %v610 = vld [vmem:[#allocation2 + $0x171] sm:$0xff]
        %v611 = vpack.c.bf16 %v579, %v579
        %v612 = vpack.c.bf16 %v580, %v580
        %v613 = vpack.c.bf16 %v581, %v581
        %v614 = vpack.c.bf16 %v582, %v582
        %v615 = vpack.c.bf16 %v583, %v583
        %v616 = vpack.c.bf16 %v584, %v584
        %v617 = vpack.c.bf16 %v585, %v585
        %v618 = vpack.c.bf16 %v586, %v586
        %v619 = vpack.c.bf16 %v587, %v587
        %v620 = vpack.c.bf16 %v588, %v588
        %v621 = vpack.c.bf16 %v589, %v589
        %v622 = vpack.c.bf16 %v590, %v590
        %v623 = vpack.c.bf16 %v591, %v591
        %v624 = vpack.c.bf16 %v592, %v592
        %v625 = vpack.c.bf16 %v593, %v593
        %v626 = vpack.c.bf16 %v594, %v594
        %v627 = vpack.c.bf16 %v595, %v595
        %v628 = vpack.c.bf16 %v596, %v596
        %v629 = vpack.c.bf16 %v597, %v597
        %v630 = vpack.c.bf16 %v598, %v598
        %v631 = vpack.c.bf16 %v599, %v599
        %v632 = vpack.c.bf16 %v600, %v600
        %v633 = vpack.c.bf16 %v601, %v601
        %v634 = vpack.c.bf16 %v602, %v602
        %v635 = vpack.c.bf16 %v603, %v603
        %v636 = vpack.c.bf16 %v604, %v604
        %v637 = vpack.c.bf16 %v605, %v605
        %v638 = vpack.c.bf16 %v606, %v606
        %v639 = vpack.c.bf16 %v607, %v607
        %v640 = vpack.c.bf16 %v608, %v608
        %v641 = vpack.c.bf16 %v609, %v609
        %v642 = vpack.c.bf16 %v610, %v610
        %643 = vst [vmem:[#allocation3 + $0x4] sm:$0xf] %v611
        %644 = vst [vmem:[#allocation3 + $0x28] sm:$0xf] %v612
        %645 = vst [vmem:[#allocation3 + $0x4c] sm:$0xf] %v613
        %646 = vst [vmem:[#allocation3 + $0x70] sm:$0xf] %v614
        %647 = vst [vmem:[#allocation3 + $0x94] sm:$0xf] %v615
        %648 = vst [vmem:[#allocation3 + $0xb8] sm:$0xf] %v616
        %649 = vst [vmem:[#allocation3 + $0xdc] sm:$0xf] %v617
        %650 = vst [vmem:[#allocation3 + $0x100] sm:$0xf] %v618
        %651 = vst [vmem:[#allocation3 + $0x124] sm:$0xf] %v619
        %652 = vst [vmem:[#allocation3 + $0x148] sm:$0xf] %v620
        %653 = vst [vmem:[#allocation3 + $0x16c] sm:$0xf] %v621
        %654 = vst [vmem:[#allocation3 + $0x190] sm:$0xf] %v622
        %655 = vst [vmem:[#allocation3 + $0x1b4] sm:$0xf] %v623
        %656 = vst [vmem:[#allocation3 + $0x1d8] sm:$0xf] %v624
        %657 = vst [vmem:[#allocation3 + $0x1fc] sm:$0xf] %v625
        %658 = vst [vmem:[#allocation3 + $0x220] sm:$0xf] %v626
        %659 = vst [vmem:[#allocation3 + $0x244] sm:$0xf] %v627
        %660 = vst [vmem:[#allocation3 + $0x268] sm:$0xf] %v628
        %661 = vst [vmem:[#allocation3 + $0x28c] sm:$0xf] %v629
        %662 = vst [vmem:[#allocation3 + $0x2b0] sm:$0xf] %v630
        %663 = vst [vmem:[#allocation3 + $0x2d4] sm:$0xf] %v631
        %664 = vst [vmem:[#allocation3 + $0x2f8] sm:$0xf] %v632
        %665 = vst [vmem:[#allocation3 + $0x31c] sm:$0xf] %v633
        %666 = vst [vmem:[#allocation3 + $0x340] sm:$0xf] %v634
        %667 = vst [vmem:[#allocation3 + $0x364] sm:$0xf] %v635
        %668 = vst [vmem:[#allocation3 + $0x388] sm:$0xf] %v636
        %669 = vst [vmem:[#allocation3 + $0x3ac] sm:$0xf] %v637
        %670 = vst [vmem:[#allocation3 + $0x3d0] sm:$0xf] %v638
        %671 = vst [vmem:[#allocation3 + $0x3f4] sm:$0xf] %v639
        %672 = vst [vmem:[#allocation3 + $0x418] sm:$0xf] %v640
        %673 = vst [vmem:[#allocation3 + $0x43c] sm:$0xf] %v641
        %674 = vst [vmem:[#allocation3 + $0x460] sm:$0xf] %v642
        %v675 = vld [vmem:[#allocation2 + $0x2] sm:$0xff]
        %v676 = vld [vmem:[#allocation2 + $0xa] sm:$0xff]
        %v677 = vld [vmem:[#allocation2 + $0x1a] sm:$0xff]
        %v678 = vld [vmem:[#allocation2 + $0x22] sm:$0xff]
        %v679 = vld [vmem:[#allocation2 + $0x32] sm:$0xff]
        %v680 = vld [vmem:[#allocation2 + $0x3a] sm:$0xff]
        %v681 = vld [vmem:[#allocation2 + $0x4a] sm:$0xff]
        %v682 = vld [vmem:[#allocation2 + $0x52] sm:$0xff]
        %v683 = vld [vmem:[#allocation2 + $0x62] sm:$0xff]
        %v684 = vld [vmem:[#allocation2 + $0x6a] sm:$0xff]
        %v685 = vld [vmem:[#allocation2 + $0x7a] sm:$0xff]
        %v686 = vld [vmem:[#allocation2 + $0x82] sm:$0xff]
        %v687 = vld [vmem:[#allocation2 + $0x92] sm:$0xff]
        %v688 = vld [vmem:[#allocation2 + $0x9a] sm:$0xff]
        %v689 = vld [vmem:[#allocation2 + $0xaa] sm:$0xff]
        %v690 = vld [vmem:[#allocation2 + $0xb2] sm:$0xff]
        %v691 = vld [vmem:[#allocation2 + $0xc2] sm:$0xff]
        %v692 = vld [vmem:[#allocation2 + $0xca] sm:$0xff]
        %v693 = vld [vmem:[#allocation2 + $0xda] sm:$0xff]
        %v694 = vld [vmem:[#allocation2 + $0xe2] sm:$0xff]
        %v695 = vld [vmem:[#allocation2 + $0xf2] sm:$0xff]
        %v696 = vld [vmem:[#allocation2 + $0xfa] sm:$0xff]
        %v697 = vld [vmem:[#allocation2 + $0x10a] sm:$0xff]
        %v698 = vld [vmem:[#allocation2 + $0x112] sm:$0xff]
        %v699 = vld [vmem:[#allocation2 + $0x122] sm:$0xff]
        %v700 = vld [vmem:[#allocation2 + $0x12a] sm:$0xff]
        %v701 = vld [vmem:[#allocation2 + $0x13a] sm:$0xff]
        %v702 = vld [vmem:[#allocation2 + $0x142] sm:$0xff]
        %v703 = vld [vmem:[#allocation2 + $0x152] sm:$0xff]
        %v704 = vld [vmem:[#allocation2 + $0x15a] sm:$0xff]
        %v705 = vld [vmem:[#allocation2 + $0x16a] sm:$0xff]
        %v706 = vld [vmem:[#allocation2 + $0x172] sm:$0xff]
        %v707 = vpack.c.bf16 %v675, %v675
        %v708 = vpack.c.bf16 %v676, %v676
        %v709 = vpack.c.bf16 %v677, %v677
        %v710 = vpack.c.bf16 %v678, %v678
        %v711 = vpack.c.bf16 %v679, %v679
        %v712 = vpack.c.bf16 %v680, %v680
        %v713 = vpack.c.bf16 %v681, %v681
        %v714 = vpack.c.bf16 %v682, %v682
        %v715 = vpack.c.bf16 %v683, %v683
        %v716 = vpack.c.bf16 %v684, %v684
        %v717 = vpack.c.bf16 %v685, %v685
        %v718 = vpack.c.bf16 %v686, %v686
        %v719 = vpack.c.bf16 %v687, %v687
        %v720 = vpack.c.bf16 %v688, %v688
        %v721 = vpack.c.bf16 %v689, %v689
        %v722 = vpack.c.bf16 %v690, %v690
        %v723 = vpack.c.bf16 %v691, %v691
        %v724 = vpack.c.bf16 %v692, %v692
        %v725 = vpack.c.bf16 %v693, %v693
        %v726 = vpack.c.bf16 %v694, %v694
        %v727 = vpack.c.bf16 %v695, %v695
        %v728 = vpack.c.bf16 %v696, %v696
        %v729 = vpack.c.bf16 %v697, %v697
        %v730 = vpack.c.bf16 %v698, %v698
        %v731 = vpack.c.bf16 %v699, %v699
        %v732 = vpack.c.bf16 %v700, %v700
        %v733 = vpack.c.bf16 %v701, %v701
        %v734 = vpack.c.bf16 %v702, %v702
        %v735 = vpack.c.bf16 %v703, %v703
        %v736 = vpack.c.bf16 %v704, %v704
        %v737 = vpack.c.bf16 %v705, %v705
        %v738 = vpack.c.bf16 %v706, %v706
        %739 = vst [vmem:[#allocation3 + $0x8] sm:$0xf] %v707
        %740 = vst [vmem:[#allocation3 + $0x2c] sm:$0xf] %v708
        %741 = vst [vmem:[#allocation3 + $0x50] sm:$0xf] %v709
        %742 = vst [vmem:[#allocation3 + $0x74] sm:$0xf] %v710
        %743 = vst [vmem:[#allocation3 + $0x98] sm:$0xf] %v711
        %744 = vst [vmem:[#allocation3 + $0xbc] sm:$0xf] %v712
        %745 = vst [vmem:[#allocation3 + $0xe0] sm:$0xf] %v713
        %746 = vst [vmem:[#allocation3 + $0x104] sm:$0xf] %v714
        %747 = vst [vmem:[#allocation3 + $0x128] sm:$0xf] %v715
        %748 = vst [vmem:[#allocation3 + $0x14c] sm:$0xf] %v716
        %749 = vst [vmem:[#allocation3 + $0x170] sm:$0xf] %v717
        %750 = vst [vmem:[#allocation3 + $0x194] sm:$0xf] %v718
        %751 = vst [vmem:[#allocation3 + $0x1b8] sm:$0xf] %v719
        %752 = vst [vmem:[#allocation3 + $0x1dc] sm:$0xf] %v720
        %753 = vst [vmem:[#allocation3 + $0x200] sm:$0xf] %v721
        %754 = vst [vmem:[#allocation3 + $0x224] sm:$0xf] %v722
        %755 = vst [vmem:[#allocation3 + $0x248] sm:$0xf] %v723
        %756 = vst [vmem:[#allocation3 + $0x26c] sm:$0xf] %v724
        %757 = vst [vmem:[#allocation3 + $0x290] sm:$0xf] %v725
        %758 = vst [vmem:[#allocation3 + $0x2b4] sm:$0xf] %v726
        %759 = vst [vmem:[#allocation3 + $0x2d8] sm:$0xf] %v727
        %760 = vst [vmem:[#allocation3 + $0x2fc] sm:$0xf] %v728
        %761 = vst [vmem:[#allocation3 + $0x320] sm:$0xf] %v729
        %762 = vst [vmem:[#allocation3 + $0x344] sm:$0xf] %v730
        %763 = vst [vmem:[#allocation3 + $0x368] sm:$0xf] %v731
        %764 = vst [vmem:[#allocation3 + $0x38c] sm:$0xf] %v732
        %765 = vst [vmem:[#allocation3 + $0x3b0] sm:$0xf] %v733
        %766 = vst [vmem:[#allocation3 + $0x3d4] sm:$0xf] %v734
        %767 = vst [vmem:[#allocation3 + $0x3f8] sm:$0xf] %v735
        %768 = vst [vmem:[#allocation3 + $0x41c] sm:$0xf] %v736
        %769 = vst [vmem:[#allocation3 + $0x440] sm:$0xf] %v737
        %770 = vst [vmem:[#allocation3 + $0x464] sm:$0xf] %v738
        %v771 = vld [vmem:[%s450] sm:$0xff]
        %v772 = vld [vmem:[%s450 + $0x8] sm:$0xff]
        %v773 = vld [vmem:[%s450 + $0x18] sm:$0xff]
        %v774 = vld [vmem:[%s450 + $0x20] sm:$0xff]
        %v775 = vld [vmem:[%s450 + $0x30] sm:$0xff]
        %v776 = vld [vmem:[%s450 + $0x38] sm:$0xff]
        %v777 = vld [vmem:[%s450 + $0x48] sm:$0xff]
        %v778 = vld [vmem:[%s450 + $0x50] sm:$0xff]
        %v779 = vld [vmem:[%s450 + $0x60] sm:$0xff]
        %v780 = vld [vmem:[%s450 + $0x68] sm:$0xff]
        %v781 = vld [vmem:[%s450 + $0x78] sm:$0xff]
        %v782 = vld [vmem:[%s450 + $0x80] sm:$0xff]
        %v783 = vld [vmem:[%s450 + $0x90] sm:$0xff]
        %v784 = vld [vmem:[%s450 + $0x98] sm:$0xff]
        %v785 = vld [vmem:[%s450 + $0xa8] sm:$0xff]
        %v786 = vld [vmem:[%s450 + $0xb0] sm:$0xff]
        %v787 = vld [vmem:[%s450 + $0xc0] sm:$0xff]
        %v788 = vld [vmem:[%s450 + $0xc8] sm:$0xff]
        %v789 = vld [vmem:[%s450 + $0xd8] sm:$0xff]
        %v790 = vld [vmem:[%s450 + $0xe0] sm:$0xff]
        %v791 = vld [vmem:[%s450 + $0xf0] sm:$0xff]
        %v792 = vld [vmem:[%s450 + $0xf8] sm:$0xff]
        %v793 = vld [vmem:[%s450 + $0x108] sm:$0xff]
        %v794 = vld [vmem:[%s450 + $0x110] sm:$0xff]
        %v795 = vld [vmem:[%s450 + $0x120] sm:$0xff]
        %v796 = vld [vmem:[%s450 + $0x128] sm:$0xff]
        %v797 = vld [vmem:[%s450 + $0x138] sm:$0xff]
        %v798 = vld [vmem:[%s450 + $0x140] sm:$0xff]
        %v799 = vld [vmem:[%s450 + $0x150] sm:$0xff]
        %v800 = vld [vmem:[%s450 + $0x158] sm:$0xff]
        %v801 = vld [vmem:[%s450 + $0x168] sm:$0xff]
        %v802 = vld [vmem:[%s450 + $0x170] sm:$0xff]
        %v803 = vpack.c.bf16 %v771, %v771
        %v804 = vpack.c.bf16 %v772, %v772
        %v805 = vpack.c.bf16 %v773, %v773
        %v806 = vpack.c.bf16 %v774, %v774
        %v807 = vpack.c.bf16 %v775, %v775
        %v808 = vpack.c.bf16 %v776, %v776
        %v809 = vpack.c.bf16 %v777, %v777
        %v810 = vpack.c.bf16 %v778, %v778
        %v811 = vpack.c.bf16 %v779, %v779
        %v812 = vpack.c.bf16 %v780, %v780
        %v813 = vpack.c.bf16 %v781, %v781
        %v814 = vpack.c.bf16 %v782, %v782
        %v815 = vpack.c.bf16 %v783, %v783
        %v816 = vpack.c.bf16 %v784, %v784
        %v817 = vpack.c.bf16 %v785, %v785
        %v818 = vpack.c.bf16 %v786, %v786
        %v819 = vpack.c.bf16 %v787, %v787
        %v820 = vpack.c.bf16 %v788, %v788
        %v821 = vpack.c.bf16 %v789, %v789
        %v822 = vpack.c.bf16 %v790, %v790
        %v823 = vpack.c.bf16 %v791, %v791
        %v824 = vpack.c.bf16 %v792, %v792
        %v825 = vpack.c.bf16 %v793, %v793
        %v826 = vpack.c.bf16 %v794, %v794
        %v827 = vpack.c.bf16 %v795, %v795
        %v828 = vpack.c.bf16 %v796, %v796
        %v829 = vpack.c.bf16 %v797, %v797
        %v830 = vpack.c.bf16 %v798, %v798
        %v831 = vpack.c.bf16 %v799, %v799
        %v832 = vpack.c.bf16 %v800, %v800
        %v833 = vpack.c.bf16 %v801, %v801
        %v834 = vpack.c.bf16 %v802, %v802
        %835 = vst [vmem:[#allocation3 + $0xc] sm:$0xf] %v803
        %836 = vst [vmem:[#allocation3 + $0x30] sm:$0xf] %v804
        %837 = vst [vmem:[#allocation3 + $0x54] sm:$0xf] %v805
        %838 = vst [vmem:[#allocation3 + $0x78] sm:$0xf] %v806
        %839 = vst [vmem:[#allocation3 + $0x9c] sm:$0xf] %v807
        %840 = vst [vmem:[#allocation3 + $0xc0] sm:$0xf] %v808
        %841 = vst [vmem:[#allocation3 + $0xe4] sm:$0xf] %v809
        %842 = vst [vmem:[#allocation3 + $0x108] sm:$0xf] %v810
        %843 = vst [vmem:[#allocation3 + $0x12c] sm:$0xf] %v811
        %844 = vst [vmem:[#allocation3 + $0x150] sm:$0xf] %v812
        %845 = vst [vmem:[#allocation3 + $0x174] sm:$0xf] %v813
        %846 = vst [vmem:[#allocation3 + $0x198] sm:$0xf] %v814
        %847 = vst [vmem:[#allocation3 + $0x1bc] sm:$0xf] %v815
        %848 = vst [vmem:[#allocation3 + $0x1e0] sm:$0xf] %v816
        %849 = vst [vmem:[#allocation3 + $0x204] sm:$0xf] %v817
        %850 = vst [vmem:[#allocation3 + $0x228] sm:$0xf] %v818
        %851 = vst [vmem:[#allocation3 + $0x24c] sm:$0xf] %v819
        %852 = vst [vmem:[#allocation3 + $0x270] sm:$0xf] %v820
        %853 = vst [vmem:[#allocation3 + $0x294] sm:$0xf] %v821
        %854 = vst [vmem:[#allocation3 + $0x2b8] sm:$0xf] %v822
        %855 = vst [vmem:[#allocation3 + $0x2dc] sm:$0xf] %v823
        %856 = vst [vmem:[#allocation3 + $0x300] sm:$0xf] %v824
        %857 = vst [vmem:[#allocation3 + $0x324] sm:$0xf] %v825
        %858 = vst [vmem:[#allocation3 + $0x348] sm:$0xf] %v826
        %859 = vst [vmem:[#allocation3 + $0x36c] sm:$0xf] %v827
        %860 = vst [vmem:[#allocation3 + $0x390] sm:$0xf] %v828
        %861 = vst [vmem:[#allocation3 + $0x3b4] sm:$0xf] %v829
        %862 = vst [vmem:[#allocation3 + $0x3d8] sm:$0xf] %v830
        %863 = vst [vmem:[#allocation3 + $0x3fc] sm:$0xf] %v831
        %864 = vst [vmem:[#allocation3 + $0x420] sm:$0xf] %v832
        %865 = vst [vmem:[#allocation3 + $0x444] sm:$0xf] %v833
        %866 = vst [vmem:[#allocation3 + $0x468] sm:$0xf] %v834
        %v867 = vld [vmem:[%s450 + $0x1] sm:$0xff]
        %v868 = vld [vmem:[%s450 + $0x9] sm:$0xff]
        %v869 = vld [vmem:[%s450 + $0x19] sm:$0xff]
        %v870 = vld [vmem:[%s450 + $0x21] sm:$0xff]
        %v871 = vld [vmem:[%s450 + $0x31] sm:$0xff]
        %v872 = vld [vmem:[%s450 + $0x39] sm:$0xff]
        %v873 = vld [vmem:[%s450 + $0x49] sm:$0xff]
        %v874 = vld [vmem:[%s450 + $0x51] sm:$0xff]
        %v875 = vld [vmem:[%s450 + $0x61] sm:$0xff]
        %v876 = vld [vmem:[%s450 + $0x69] sm:$0xff]
        %v877 = vld [vmem:[%s450 + $0x79] sm:$0xff]
        %v878 = vld [vmem:[%s450 + $0x81] sm:$0xff]
        %v879 = vld [vmem:[%s450 + $0x91] sm:$0xff]
        %v880 = vld [vmem:[%s450 + $0x99] sm:$0xff]
        %v881 = vld [vmem:[%s450 + $0xa9] sm:$0xff]
        %v882 = vld [vmem:[%s450 + $0xb1] sm:$0xff]
        %v883 = vld [vmem:[%s450 + $0xc1] sm:$0xff]
        %v884 = vld [vmem:[%s450 + $0xc9] sm:$0xff]
        %v885 = vld [vmem:[%s450 + $0xd9] sm:$0xff]
        %v886 = vld [vmem:[%s450 + $0xe1] sm:$0xff]
        %v887 = vld [vmem:[%s450 + $0xf1] sm:$0xff]
        %v888 = vld [vmem:[%s450 + $0xf9] sm:$0xff]
        %v889 = vld [vmem:[%s450 + $0x109] sm:$0xff]
        %v890 = vld [vmem:[%s450 + $0x111] sm:$0xff]
        %v891 = vld [vmem:[%s450 + $0x121] sm:$0xff]
        %v892 = vld [vmem:[%s450 + $0x129] sm:$0xff]
        %v893 = vld [vmem:[%s450 + $0x139] sm:$0xff]
        %v894 = vld [vmem:[%s450 + $0x141] sm:$0xff]
        %v895 = vld [vmem:[%s450 + $0x151] sm:$0xff]
        %v896 = vld [vmem:[%s450 + $0x159] sm:$0xff]
        %v897 = vld [vmem:[%s450 + $0x169] sm:$0xff]
        %v898 = vld [vmem:[%s450 + $0x171] sm:$0xff]
        %v899 = vpack.c.bf16 %v867, %v867
        %v900 = vpack.c.bf16 %v868, %v868
        %v901 = vpack.c.bf16 %v869, %v869
        %v902 = vpack.c.bf16 %v870, %v870
        %v903 = vpack.c.bf16 %v871, %v871
        %v904 = vpack.c.bf16 %v872, %v872
        %v905 = vpack.c.bf16 %v873, %v873
        %v906 = vpack.c.bf16 %v874, %v874
        %v907 = vpack.c.bf16 %v875, %v875
        %v908 = vpack.c.bf16 %v876, %v876
        %v909 = vpack.c.bf16 %v877, %v877
        %v910 = vpack.c.bf16 %v878, %v878
        %v911 = vpack.c.bf16 %v879, %v879
        %v912 = vpack.c.bf16 %v880, %v880
        %v913 = vpack.c.bf16 %v881, %v881
        %v914 = vpack.c.bf16 %v882, %v882
        %v915 = vpack.c.bf16 %v883, %v883
        %v916 = vpack.c.bf16 %v884, %v884
        %v917 = vpack.c.bf16 %v885, %v885
        %v918 = vpack.c.bf16 %v886, %v886
        %v919 = vpack.c.bf16 %v887, %v887
        %v920 = vpack.c.bf16 %v888, %v888
        %v921 = vpack.c.bf16 %v889, %v889
        %v922 = vpack.c.bf16 %v890, %v890
        %v923 = vpack.c.bf16 %v891, %v891
        %v924 = vpack.c.bf16 %v892, %v892
        %v925 = vpack.c.bf16 %v893, %v893
        %v926 = vpack.c.bf16 %v894, %v894
        %v927 = vpack.c.bf16 %v895, %v895
        %v928 = vpack.c.bf16 %v896, %v896
        %v929 = vpack.c.bf16 %v897, %v897
        %v930 = vpack.c.bf16 %v898, %v898
        %931 = vst [vmem:[#allocation3 + $0x10] sm:$0xf] %v899
        %932 = vst [vmem:[#allocation3 + $0x34] sm:$0xf] %v900
        %933 = vst [vmem:[#allocation3 + $0x58] sm:$0xf] %v901
        %934 = vst [vmem:[#allocation3 + $0x7c] sm:$0xf] %v902
        %935 = vst [vmem:[#allocation3 + $0xa0] sm:$0xf] %v903
        %936 = vst [vmem:[#allocation3 + $0xc4] sm:$0xf] %v904
        %937 = vst [vmem:[#allocation3 + $0xe8] sm:$0xf] %v905
        %938 = vst [vmem:[#allocation3 + $0x10c] sm:$0xf] %v906
        %939 = vst [vmem:[#allocation3 + $0x130] sm:$0xf] %v907
        %940 = vst [vmem:[#allocation3 + $0x154] sm:$0xf] %v908
        %941 = vst [vmem:[#allocation3 + $0x178] sm:$0xf] %v909
        %942 = vst [vmem:[#allocation3 + $0x19c] sm:$0xf] %v910
        %943 = vst [vmem:[#allocation3 + $0x1c0] sm:$0xf] %v911
        %944 = vst [vmem:[#allocation3 + $0x1e4] sm:$0xf] %v912
        %945 = vst [vmem:[#allocation3 + $0x208] sm:$0xf] %v913
        %946 = vst [vmem:[#allocation3 + $0x22c] sm:$0xf] %v914
        %947 = vst [vmem:[#allocation3 + $0x250] sm:$0xf] %v915
        %948 = vst [vmem:[#allocation3 + $0x274] sm:$0xf] %v916
        %949 = vst [vmem:[#allocation3 + $0x298] sm:$0xf] %v917
        %950 = vst [vmem:[#allocation3 + $0x2bc] sm:$0xf] %v918
        %951 = vst [vmem:[#allocation3 + $0x2e0] sm:$0xf] %v919
        %952 = vst [vmem:[#allocation3 + $0x304] sm:$0xf] %v920
        %953 = vst [vmem:[#allocation3 + $0x328] sm:$0xf] %v921
        %954 = vst [vmem:[#allocation3 + $0x34c] sm:$0xf] %v922
        %955 = vst [vmem:[#allocation3 + $0x370] sm:$0xf] %v923
        %956 = vst [vmem:[#allocation3 + $0x394] sm:$0xf] %v924
        %957 = vst [vmem:[#allocation3 + $0x3b8] sm:$0xf] %v925
        %958 = vst [vmem:[#allocation3 + $0x3dc] sm:$0xf] %v926
        %959 = vst [vmem:[#allocation3 + $0x400] sm:$0xf] %v927
        %960 = vst [vmem:[#allocation3 + $0x424] sm:$0xf] %v928
        %961 = vst [vmem:[#allocation3 + $0x448] sm:$0xf] %v929
        %962 = vst [vmem:[#allocation3 + $0x46c] sm:$0xf] %v930
        %v963 = vld [vmem:[%s450 + $0x2] sm:$0xff]
        %v964 = vld [vmem:[%s450 + $0xa] sm:$0xff]
        %v965 = vld [vmem:[%s450 + $0x1a] sm:$0xff]
        %v966 = vld [vmem:[%s450 + $0x22] sm:$0xff]
        %v967 = vld [vmem:[%s450 + $0x32] sm:$0xff]
        %v968 = vld [vmem:[%s450 + $0x3a] sm:$0xff]
        %v969 = vld [vmem:[%s450 + $0x4a] sm:$0xff]
        %v970 = vld [vmem:[%s450 + $0x52] sm:$0xff]
        %v971 = vld [vmem:[%s450 + $0x62] sm:$0xff]
        %v972 = vld [vmem:[%s450 + $0x6a] sm:$0xff]
        %v973 = vld [vmem:[%s450 + $0x7a] sm:$0xff]
        %v974 = vld [vmem:[%s450 + $0x82] sm:$0xff]
        %v975 = vld [vmem:[%s450 + $0x92] sm:$0xff]
        %v976 = vld [vmem:[%s450 + $0x9a] sm:$0xff]
        %v977 = vld [vmem:[%s450 + $0xaa] sm:$0xff]
        %v978 = vld [vmem:[%s450 + $0xb2] sm:$0xff]
        %v979 = vld [vmem:[%s450 + $0xc2] sm:$0xff]
        %v980 = vld [vmem:[%s450 + $0xca] sm:$0xff]
        %v981 = vld [vmem:[%s450 + $0xda] sm:$0xff]
        %v982 = vld [vmem:[%s450 + $0xe2] sm:$0xff]
        %v983 = vld [vmem:[%s450 + $0xf2] sm:$0xff]
        %v984 = vld [vmem:[%s450 + $0xfa] sm:$0xff]
        %v985 = vld [vmem:[%s450 + $0x10a] sm:$0xff]
        %v986 = vld [vmem:[%s450 + $0x112] sm:$0xff]
        %v987 = vld [vmem:[%s450 + $0x122] sm:$0xff]
        %v988 = vld [vmem:[%s450 + $0x12a] sm:$0xff]
        %v989 = vld [vmem:[%s450 + $0x13a] sm:$0xff]
        %v990 = vld [vmem:[%s450 + $0x142] sm:$0xff]
        %v991 = vld [vmem:[%s450 + $0x152] sm:$0xff]
        %v992 = vld [vmem:[%s450 + $0x15a] sm:$0xff]
        %v993 = vld [vmem:[%s450 + $0x16a] sm:$0xff]
        %v994 = vld [vmem:[%s450 + $0x172] sm:$0xff]
        %v995 = vpack.c.bf16 %v963, %v963
        %v996 = vpack.c.bf16 %v964, %v964
        %v997 = vpack.c.bf16 %v965, %v965
        %v998 = vpack.c.bf16 %v966, %v966
        %v999 = vpack.c.bf16 %v967, %v967
        %v1000 = vpack.c.bf16 %v968, %v968
        %v1001 = vpack.c.bf16 %v969, %v969
        %v1002 = vpack.c.bf16 %v970, %v970
        %v1003 = vpack.c.bf16 %v971, %v971
        %v1004 = vpack.c.bf16 %v972, %v972
        %v1005 = vpack.c.bf16 %v973, %v973
        %v1006 = vpack.c.bf16 %v974, %v974
        %v1007 = vpack.c.bf16 %v975, %v975
        %v1008 = vpack.c.bf16 %v976, %v976
        %v1009 = vpack.c.bf16 %v977, %v977
        %v1010 = vpack.c.bf16 %v978, %v978
        %v1011 = vpack.c.bf16 %v979, %v979
        %v1012 = vpack.c.bf16 %v980, %v980
        %v1013 = vpack.c.bf16 %v981, %v981
        %v1014 = vpack.c.bf16 %v982, %v982
        %v1015 = vpack.c.bf16 %v983, %v983
        %v1016 = vpack.c.bf16 %v984, %v984
        %v1017 = vpack.c.bf16 %v985, %v985
        %v1018 = vpack.c.bf16 %v986, %v986
        %v1019 = vpack.c.bf16 %v987, %v987
        %v1020 = vpack.c.bf16 %v988, %v988
        %v1021 = vpack.c.bf16 %v989, %v989
        %v1022 = vpack.c.bf16 %v990, %v990
        %v1023 = vpack.c.bf16 %v991, %v991
        %v1024 = vpack.c.bf16 %v992, %v992
        %v1025 = vpack.c.bf16 %v993, %v993
        %v1026 = vpack.c.bf16 %v994, %v994
        %1027 = vst [vmem:[#allocation3 + $0x14] sm:$0xf] %v995
        %1028 = vst [vmem:[#allocation3 + $0x38] sm:$0xf] %v996
        %1029 = vst [vmem:[#allocation3 + $0x5c] sm:$0xf] %v997
        %1030 = vst [vmem:[#allocation3 + $0x80] sm:$0xf] %v998
        %1031 = vst [vmem:[#allocation3 + $0xa4] sm:$0xf] %v999
        %1032 = vst [vmem:[#allocation3 + $0xc8] sm:$0xf] %v1000
        %1033 = vst [vmem:[#allocation3 + $0xec] sm:$0xf] %v1001
        %1034 = vst [vmem:[#allocation3 + $0x110] sm:$0xf] %v1002
        %1035 = vst [vmem:[#allocation3 + $0x134] sm:$0xf] %v1003
        %1036 = vst [vmem:[#allocation3 + $0x158] sm:$0xf] %v1004
        %1037 = vst [vmem:[#allocation3 + $0x17c] sm:$0xf] %v1005
        %1038 = vst [vmem:[#allocation3 + $0x1a0] sm:$0xf] %v1006
        %1039 = vst [vmem:[#allocation3 + $0x1c4] sm:$0xf] %v1007
        %1040 = vst [vmem:[#allocation3 + $0x1e8] sm:$0xf] %v1008
        %1041 = vst [vmem:[#allocation3 + $0x20c] sm:$0xf] %v1009
        %1042 = vst [vmem:[#allocation3 + $0x230] sm:$0xf] %v1010
        %1043 = vst [vmem:[#allocation3 + $0x254] sm:$0xf] %v1011
        %1044 = vst [vmem:[#allocation3 + $0x278] sm:$0xf] %v1012
        %1045 = vst [vmem:[#allocation3 + $0x29c] sm:$0xf] %v1013
        %1046 = vst [vmem:[#allocation3 + $0x2c0] sm:$0xf] %v1014
        %1047 = vst [vmem:[#allocation3 + $0x2e4] sm:$0xf] %v1015
        %1048 = vst [vmem:[#allocation3 + $0x308] sm:$0xf] %v1016
        %1049 = vst [vmem:[#allocation3 + $0x32c] sm:$0xf] %v1017
        %1050 = vst [vmem:[#allocation3 + $0x350] sm:$0xf] %v1018
        %1051 = vst [vmem:[#allocation3 + $0x374] sm:$0xf] %v1019
        %1052 = vst [vmem:[#allocation3 + $0x398] sm:$0xf] %v1020
        %1053 = vst [vmem:[#allocation3 + $0x3bc] sm:$0xf] %v1021
        %1054 = vst [vmem:[#allocation3 + $0x3e0] sm:$0xf] %v1022
        %1055 = vst [vmem:[#allocation3 + $0x404] sm:$0xf] %v1023
        %1056 = vst [vmem:[#allocation3 + $0x428] sm:$0xf] %v1024
        %1057 = vst [vmem:[#allocation3 + $0x44c] sm:$0xf] %v1025
        %1058 = vst [vmem:[#allocation3 + $0x470] sm:$0xf] %v1026
        %s1059 = scalar_lea.vmem [#allocation2], 48
        %v1060 = vld [vmem:[%s1059] sm:$0xff]
        %v1061 = vld [vmem:[%s1059 + $0x8] sm:$0xff]
        %v1062 = vld [vmem:[%s1059 + $0x18] sm:$0xff]
        %v1063 = vld [vmem:[%s1059 + $0x20] sm:$0xff]
        %v1064 = vld [vmem:[%s1059 + $0x30] sm:$0xff]
        %v1065 = vld [vmem:[%s1059 + $0x38] sm:$0xff]
        %v1066 = vld [vmem:[%s1059 + $0x48] sm:$0xff]
        %v1067 = vld [vmem:[%s1059 + $0x50] sm:$0xff]
        %v1068 = vld [vmem:[%s1059 + $0x60] sm:$0xff]
        %v1069 = vld [vmem:[%s1059 + $0x68] sm:$0xff]
        %v1070 = vld [vmem:[%s1059 + $0x78] sm:$0xff]
        %v1071 = vld [vmem:[%s1059 + $0x80] sm:$0xff]
        %v1072 = vld [vmem:[%s1059 + $0x90] sm:$0xff]
        %v1073 = vld [vmem:[%s1059 + $0x98] sm:$0xff]
        %v1074 = vld [vmem:[%s1059 + $0xa8] sm:$0xff]
        %v1075 = vld [vmem:[%s1059 + $0xb0] sm:$0xff]
        %v1076 = vld [vmem:[%s1059 + $0xc0] sm:$0xff]
        %v1077 = vld [vmem:[%s1059 + $0xc8] sm:$0xff]
        %v1078 = vld [vmem:[%s1059 + $0xd8] sm:$0xff]
        %v1079 = vld [vmem:[%s1059 + $0xe0] sm:$0xff]
        %v1080 = vld [vmem:[%s1059 + $0xf0] sm:$0xff]
        %v1081 = vld [vmem:[%s1059 + $0xf8] sm:$0xff]
        %v1082 = vld [vmem:[%s1059 + $0x108] sm:$0xff]
        %v1083 = vld [vmem:[%s1059 + $0x110] sm:$0xff]
        %v1084 = vld [vmem:[%s1059 + $0x120] sm:$0xff]
        %v1085 = vld [vmem:[%s1059 + $0x128] sm:$0xff]
        %v1086 = vld [vmem:[%s1059 + $0x138] sm:$0xff]
        %v1087 = vld [vmem:[%s1059 + $0x140] sm:$0xff]
        %v1088 = vld [vmem:[%s1059 + $0x150] sm:$0xff]
        %v1089 = vld [vmem:[%s1059 + $0x158] sm:$0xff]
        %v1090 = vld [vmem:[%s1059 + $0x168] sm:$0xff]
        %v1091 = vld [vmem:[%s1059 + $0x170] sm:$0xff]
        %v1092 = vpack.c.bf16 %v1060, %v1060
        %v1093 = vpack.c.bf16 %v1061, %v1061
        %v1094 = vpack.c.bf16 %v1062, %v1062
        %v1095 = vpack.c.bf16 %v1063, %v1063
        %v1096 = vpack.c.bf16 %v1064, %v1064
        %v1097 = vpack.c.bf16 %v1065, %v1065
        %v1098 = vpack.c.bf16 %v1066, %v1066
        %v1099 = vpack.c.bf16 %v1067, %v1067
        %v1100 = vpack.c.bf16 %v1068, %v1068
        %v1101 = vpack.c.bf16 %v1069, %v1069
        %v1102 = vpack.c.bf16 %v1070, %v1070
        %v1103 = vpack.c.bf16 %v1071, %v1071
        %v1104 = vpack.c.bf16 %v1072, %v1072
        %v1105 = vpack.c.bf16 %v1073, %v1073
        %v1106 = vpack.c.bf16 %v1074, %v1074
        %v1107 = vpack.c.bf16 %v1075, %v1075
        %v1108 = vpack.c.bf16 %v1076, %v1076
        %v1109 = vpack.c.bf16 %v1077, %v1077
        %v1110 = vpack.c.bf16 %v1078, %v1078
        %v1111 = vpack.c.bf16 %v1079, %v1079
        %v1112 = vpack.c.bf16 %v1080, %v1080
        %v1113 = vpack.c.bf16 %v1081, %v1081
        %v1114 = vpack.c.bf16 %v1082, %v1082
        %v1115 = vpack.c.bf16 %v1083, %v1083
        %v1116 = vpack.c.bf16 %v1084, %v1084
        %v1117 = vpack.c.bf16 %v1085, %v1085
        %v1118 = vpack.c.bf16 %v1086, %v1086
        %v1119 = vpack.c.bf16 %v1087, %v1087
        %v1120 = vpack.c.bf16 %v1088, %v1088
        %v1121 = vpack.c.bf16 %v1089, %v1089
        %v1122 = vpack.c.bf16 %v1090, %v1090
        %v1123 = vpack.c.bf16 %v1091, %v1091
        %1124 = vst [vmem:[#allocation3 + $0x18] sm:$0xf] %v1092
        %1125 = vst [vmem:[#allocation3 + $0x3c] sm:$0xf] %v1093
        %1126 = vst [vmem:[#allocation3 + $0x60] sm:$0xf] %v1094
        %1127 = vst [vmem:[#allocation3 + $0x84] sm:$0xf] %v1095
        %1128 = vst [vmem:[#allocation3 + $0xa8] sm:$0xf] %v1096
        %1129 = vst [vmem:[#allocation3 + $0xcc] sm:$0xf] %v1097
        %1130 = vst [vmem:[#allocation3 + $0xf0] sm:$0xf] %v1098
        %1131 = vst [vmem:[#allocation3 + $0x114] sm:$0xf] %v1099
        %1132 = vst [vmem:[#allocation3 + $0x138] sm:$0xf] %v1100
        %1133 = vst [vmem:[#allocation3 + $0x15c] sm:$0xf] %v1101
        %1134 = vst [vmem:[#allocation3 + $0x180] sm:$0xf] %v1102
        %1135 = vst [vmem:[#allocation3 + $0x1a4] sm:$0xf] %v1103
        %1136 = vst [vmem:[#allocation3 + $0x1c8] sm:$0xf] %v1104
        %1137 = vst [vmem:[#allocation3 + $0x1ec] sm:$0xf] %v1105
        %1138 = vst [vmem:[#allocation3 + $0x210] sm:$0xf] %v1106
        %1139 = vst [vmem:[#allocation3 + $0x234] sm:$0xf] %v1107
        %1140 = vst [vmem:[#allocation3 + $0x258] sm:$0xf] %v1108
        %1141 = vst [vmem:[#allocation3 + $0x27c] sm:$0xf] %v1109
        %1142 = vst [vmem:[#allocation3 + $0x2a0] sm:$0xf] %v1110
        %1143 = vst [vmem:[#allocation3 + $0x2c4] sm:$0xf] %v1111
        %1144 = vst [vmem:[#allocation3 + $0x2e8] sm:$0xf] %v1112
        %1145 = vst [vmem:[#allocation3 + $0x30c] sm:$0xf] %v1113
        %1146 = vst [vmem:[#allocation3 + $0x330] sm:$0xf] %v1114
        %1147 = vst [vmem:[#allocation3 + $0x354] sm:$0xf] %v1115
        %1148 = vst [vmem:[#allocation3 + $0x378] sm:$0xf] %v1116
        %1149 = vst [vmem:[#allocation3 + $0x39c] sm:$0xf] %v1117
        %1150 = vst [vmem:[#allocation3 + $0x3c0] sm:$0xf] %v1118
        %1151 = vst [vmem:[#allocation3 + $0x3e4] sm:$0xf] %v1119
        %1152 = vst [vmem:[#allocation3 + $0x408] sm:$0xf] %v1120
        %1153 = vst [vmem:[#allocation3 + $0x42c] sm:$0xf] %v1121
        %1154 = vst [vmem:[#allocation3 + $0x450] sm:$0xf] %v1122
        %1155 = vst [vmem:[#allocation3 + $0x474] sm:$0xf] %v1123
        %v1156 = vld [vmem:[%s1059 + $0x1] sm:$0xff]
        %v1157 = vld [vmem:[%s1059 + $0x9] sm:$0xff]
        %v1158 = vld [vmem:[%s1059 + $0x19] sm:$0xff]
        %v1159 = vld [vmem:[%s1059 + $0x21] sm:$0xff]
        %v1160 = vld [vmem:[%s1059 + $0x31] sm:$0xff]
        %v1161 = vld [vmem:[%s1059 + $0x39] sm:$0xff]
        %v1162 = vld [vmem:[%s1059 + $0x49] sm:$0xff]
        %v1163 = vld [vmem:[%s1059 + $0x51] sm:$0xff]
        %v1164 = vld [vmem:[%s1059 + $0x61] sm:$0xff]
        %v1165 = vld [vmem:[%s1059 + $0x69] sm:$0xff]
        %v1166 = vld [vmem:[%s1059 + $0x79] sm:$0xff]
        %v1167 = vld [vmem:[%s1059 + $0x81] sm:$0xff]
        %v1168 = vld [vmem:[%s1059 + $0x91] sm:$0xff]
        %v1169 = vld [vmem:[%s1059 + $0x99] sm:$0xff]
        %v1170 = vld [vmem:[%s1059 + $0xa9] sm:$0xff]
        %v1171 = vld [vmem:[%s1059 + $0xb1] sm:$0xff]
        %v1172 = vld [vmem:[%s1059 + $0xc1] sm:$0xff]
        %v1173 = vld [vmem:[%s1059 + $0xc9] sm:$0xff]
        %v1174 = vld [vmem:[%s1059 + $0xd9] sm:$0xff]
        %v1175 = vld [vmem:[%s1059 + $0xe1] sm:$0xff]
        %v1176 = vld [vmem:[%s1059 + $0xf1] sm:$0xff]
        %v1177 = vld [vmem:[%s1059 + $0xf9] sm:$0xff]
        %v1178 = vld [vmem:[%s1059 + $0x109] sm:$0xff]
        %v1179 = vld [vmem:[%s1059 + $0x111] sm:$0xff]
        %v1180 = vld [vmem:[%s1059 + $0x121] sm:$0xff]
        %v1181 = vld [vmem:[%s1059 + $0x129] sm:$0xff]
        %v1182 = vld [vmem:[%s1059 + $0x139] sm:$0xff]
        %v1183 = vld [vmem:[%s1059 + $0x141] sm:$0xff]
        %v1184 = vld [vmem:[%s1059 + $0x151] sm:$0xff]
        %v1185 = vld [vmem:[%s1059 + $0x159] sm:$0xff]
        %v1186 = vld [vmem:[%s1059 + $0x169] sm:$0xff]
        %v1187 = vld [vmem:[%s1059 + $0x171] sm:$0xff]
        %v1188 = vpack.c.bf16 %v1156, %v1156
        %v1189 = vpack.c.bf16 %v1157, %v1157
        %v1190 = vpack.c.bf16 %v1158, %v1158
        %v1191 = vpack.c.bf16 %v1159, %v1159
        %v1192 = vpack.c.bf16 %v1160, %v1160
        %v1193 = vpack.c.bf16 %v1161, %v1161
        %v1194 = vpack.c.bf16 %v1162, %v1162
        %v1195 = vpack.c.bf16 %v1163, %v1163
        %v1196 = vpack.c.bf16 %v1164, %v1164
        %v1197 = vpack.c.bf16 %v1165, %v1165
        %v1198 = vpack.c.bf16 %v1166, %v1166
        %v1199 = vpack.c.bf16 %v1167, %v1167
        %v1200 = vpack.c.bf16 %v1168, %v1168
        %v1201 = vpack.c.bf16 %v1169, %v1169
        %v1202 = vpack.c.bf16 %v1170, %v1170
        %v1203 = vpack.c.bf16 %v1171, %v1171
        %v1204 = vpack.c.bf16 %v1172, %v1172
        %v1205 = vpack.c.bf16 %v1173, %v1173
        %v1206 = vpack.c.bf16 %v1174, %v1174
        %v1207 = vpack.c.bf16 %v1175, %v1175
        %v1208 = vpack.c.bf16 %v1176, %v1176
        %v1209 = vpack.c.bf16 %v1177, %v1177
        %v1210 = vpack.c.bf16 %v1178, %v1178
        %v1211 = vpack.c.bf16 %v1179, %v1179
        %v1212 = vpack.c.bf16 %v1180, %v1180
        %v1213 = vpack.c.bf16 %v1181, %v1181
        %v1214 = vpack.c.bf16 %v1182, %v1182
        %v1215 = vpack.c.bf16 %v1183, %v1183
        %v1216 = vpack.c.bf16 %v1184, %v1184
        %v1217 = vpack.c.bf16 %v1185, %v1185
        %v1218 = vpack.c.bf16 %v1186, %v1186
        %v1219 = vpack.c.bf16 %v1187, %v1187
        %1220 = vst [vmem:[#allocation3 + $0x1c] sm:$0xf] %v1188
        %1221 = vst [vmem:[#allocation3 + $0x40] sm:$0xf] %v1189
        %1222 = vst [vmem:[#allocation3 + $0x64] sm:$0xf] %v1190
        %1223 = vst [vmem:[#allocation3 + $0x88] sm:$0xf] %v1191
        %1224 = vst [vmem:[#allocation3 + $0xac] sm:$0xf] %v1192
        %1225 = vst [vmem:[#allocation3 + $0xd0] sm:$0xf] %v1193
        %1226 = vst [vmem:[#allocation3 + $0xf4] sm:$0xf] %v1194
        %1227 = vst [vmem:[#allocation3 + $0x118] sm:$0xf] %v1195
        %1228 = vst [vmem:[#allocation3 + $0x13c] sm:$0xf] %v1196
        %1229 = vst [vmem:[#allocation3 + $0x160] sm:$0xf] %v1197
        %1230 = vst [vmem:[#allocation3 + $0x184] sm:$0xf] %v1198
        %1231 = vst [vmem:[#allocation3 + $0x1a8] sm:$0xf] %v1199
        %1232 = vst [vmem:[#allocation3 + $0x1cc] sm:$0xf] %v1200
        %1233 = vst [vmem:[#allocation3 + $0x1f0] sm:$0xf] %v1201
        %1234 = vst [vmem:[#allocation3 + $0x214] sm:$0xf] %v1202
        %1235 = vst [vmem:[#allocation3 + $0x238] sm:$0xf] %v1203
        %1236 = vst [vmem:[#allocation3 + $0x25c] sm:$0xf] %v1204
        %1237 = vst [vmem:[#allocation3 + $0x280] sm:$0xf] %v1205
        %1238 = vst [vmem:[#allocation3 + $0x2a4] sm:$0xf] %v1206
        %1239 = vst [vmem:[#allocation3 + $0x2c8] sm:$0xf] %v1207
        %1240 = vst [vmem:[#allocation3 + $0x2ec] sm:$0xf] %v1208
        %1241 = vst [vmem:[#allocation3 + $0x310] sm:$0xf] %v1209
        %1242 = vst [vmem:[#allocation3 + $0x334] sm:$0xf] %v1210
        %1243 = vst [vmem:[#allocation3 + $0x358] sm:$0xf] %v1211
        %1244 = vst [vmem:[#allocation3 + $0x37c] sm:$0xf] %v1212
        %1245 = vst [vmem:[#allocation3 + $0x3a0] sm:$0xf] %v1213
        %1246 = vst [vmem:[#allocation3 + $0x3c4] sm:$0xf] %v1214
        %1247 = vst [vmem:[#allocation3 + $0x3e8] sm:$0xf] %v1215
        %1248 = vst [vmem:[#allocation3 + $0x40c] sm:$0xf] %v1216
        %1249 = vst [vmem:[#allocation3 + $0x430] sm:$0xf] %v1217
        %1250 = vst [vmem:[#allocation3 + $0x454] sm:$0xf] %v1218
        %1251 = vst [vmem:[#allocation3 + $0x478] sm:$0xf] %v1219
        %v1252 = vld [vmem:[%s1059 + $0x2] sm:$0xff]
        %v1253 = vld [vmem:[%s1059 + $0xa] sm:$0xff]
        %v1254 = vld [vmem:[%s1059 + $0x1a] sm:$0xff]
        %v1255 = vld [vmem:[%s1059 + $0x22] sm:$0xff]
        %v1256 = vld [vmem:[%s1059 + $0x32] sm:$0xff]
        %v1257 = vld [vmem:[%s1059 + $0x3a] sm:$0xff]
        %v1258 = vld [vmem:[%s1059 + $0x4a] sm:$0xff]
        %v1259 = vld [vmem:[%s1059 + $0x52] sm:$0xff]
        %v1260 = vld [vmem:[%s1059 + $0x62] sm:$0xff]
        %v1261 = vld [vmem:[%s1059 + $0x6a] sm:$0xff]
        %v1262 = vld [vmem:[%s1059 + $0x7a] sm:$0xff]
        %v1263 = vld [vmem:[%s1059 + $0x82] sm:$0xff]
        %v1264 = vld [vmem:[%s1059 + $0x92] sm:$0xff]
        %v1265 = vld [vmem:[%s1059 + $0x9a] sm:$0xff]
        %v1266 = vld [vmem:[%s1059 + $0xaa] sm:$0xff]
        %v1267 = vld [vmem:[%s1059 + $0xb2] sm:$0xff]
        %v1268 = vld [vmem:[%s1059 + $0xc2] sm:$0xff]
        %v1269 = vld [vmem:[%s1059 + $0xca] sm:$0xff]
        %v1270 = vld [vmem:[%s1059 + $0xda] sm:$0xff]
        %v1271 = vld [vmem:[%s1059 + $0xe2] sm:$0xff]
        %v1272 = vld [vmem:[%s1059 + $0xf2] sm:$0xff]
        %v1273 = vld [vmem:[%s1059 + $0xfa] sm:$0xff]
        %v1274 = vld [vmem:[%s1059 + $0x10a] sm:$0xff]
        %v1275 = vld [vmem:[%s1059 + $0x112] sm:$0xff]
        %v1276 = vld [vmem:[%s1059 + $0x122] sm:$0xff]
        %v1277 = vld [vmem:[%s1059 + $0x12a] sm:$0xff]
        %v1278 = vld [vmem:[%s1059 + $0x13a] sm:$0xff]
        %v1279 = vld [vmem:[%s1059 + $0x142] sm:$0xff]
        %v1280 = vld [vmem:[%s1059 + $0x152] sm:$0xff]
        %v1281 = vld [vmem:[%s1059 + $0x15a] sm:$0xff]
        %v1282 = vld [vmem:[%s1059 + $0x16a] sm:$0xff]
        %v1283 = vld [vmem:[%s1059 + $0x172] sm:$0xff]
        %v1284 = vpack.c.bf16 %v1252, %v1252
        %v1285 = vpack.c.bf16 %v1253, %v1253
        %v1286 = vpack.c.bf16 %v1254, %v1254
        %v1287 = vpack.c.bf16 %v1255, %v1255
        %v1288 = vpack.c.bf16 %v1256, %v1256
        %v1289 = vpack.c.bf16 %v1257, %v1257
        %v1290 = vpack.c.bf16 %v1258, %v1258
        %v1291 = vpack.c.bf16 %v1259, %v1259
        %v1292 = vpack.c.bf16 %v1260, %v1260
        %v1293 = vpack.c.bf16 %v1261, %v1261
        %v1294 = vpack.c.bf16 %v1262, %v1262
        %v1295 = vpack.c.bf16 %v1263, %v1263
        %v1296 = vpack.c.bf16 %v1264, %v1264
        %v1297 = vpack.c.bf16 %v1265, %v1265
        %v1298 = vpack.c.bf16 %v1266, %v1266
        %v1299 = vpack.c.bf16 %v1267, %v1267
        %v1300 = vpack.c.bf16 %v1268, %v1268
        %v1301 = vpack.c.bf16 %v1269, %v1269
        %v1302 = vpack.c.bf16 %v1270, %v1270
        %v1303 = vpack.c.bf16 %v1271, %v1271
        %v1304 = vpack.c.bf16 %v1272, %v1272
        %v1305 = vpack.c.bf16 %v1273, %v1273
        %v1306 = vpack.c.bf16 %v1274, %v1274
        %v1307 = vpack.c.bf16 %v1275, %v1275
        %v1308 = vpack.c.bf16 %v1276, %v1276
        %v1309 = vpack.c.bf16 %v1277, %v1277
        %v1310 = vpack.c.bf16 %v1278, %v1278
        %v1311 = vpack.c.bf16 %v1279, %v1279
        %v1312 = vpack.c.bf16 %v1280, %v1280
        %v1313 = vpack.c.bf16 %v1281, %v1281
        %v1314 = vpack.c.bf16 %v1282, %v1282
        %v1315 = vpack.c.bf16 %v1283, %v1283
        %1316 = vst [vmem:[#allocation3 + $0x20] sm:$0xf] %v1284
        %1317 = vst [vmem:[#allocation3 + $0x44] sm:$0xf] %v1285
        %1318 = vst [vmem:[#allocation3 + $0x68] sm:$0xf] %v1286
        %1319 = vst [vmem:[#allocation3 + $0x8c] sm:$0xf] %v1287
        %1320 = vst [vmem:[#allocation3 + $0xb0] sm:$0xf] %v1288
        %1321 = vst [vmem:[#allocation3 + $0xd4] sm:$0xf] %v1289
        %1322 = vst [vmem:[#allocation3 + $0xf8] sm:$0xf] %v1290
        %1323 = vst [vmem:[#allocation3 + $0x11c] sm:$0xf] %v1291
        %1324 = vst [vmem:[#allocation3 + $0x140] sm:$0xf] %v1292
        %1325 = vst [vmem:[#allocation3 + $0x164] sm:$0xf] %v1293
        %1326 = vst [vmem:[#allocation3 + $0x188] sm:$0xf] %v1294
        %1327 = vst [vmem:[#allocation3 + $0x1ac] sm:$0xf] %v1295
        %1328 = vst [vmem:[#allocation3 + $0x1d0] sm:$0xf] %v1296
        %1329 = vst [vmem:[#allocation3 + $0x1f4] sm:$0xf] %v1297
        %1330 = vst [vmem:[#allocation3 + $0x218] sm:$0xf] %v1298
        %1331 = vst [vmem:[#allocation3 + $0x23c] sm:$0xf] %v1299
        %1332 = vst [vmem:[#allocation3 + $0x260] sm:$0xf] %v1300
        %1333 = vst [vmem:[#allocation3 + $0x284] sm:$0xf] %v1301
        %1334 = vst [vmem:[#allocation3 + $0x2a8] sm:$0xf] %v1302
        %1335 = vst [vmem:[#allocation3 + $0x2cc] sm:$0xf] %v1303
        %1336 = vst [vmem:[#allocation3 + $0x2f0] sm:$0xf] %v1304
        %1337 = vst [vmem:[#allocation3 + $0x314] sm:$0xf] %v1305
        %1338 = vst [vmem:[#allocation3 + $0x338] sm:$0xf] %v1306
        %1339 = vst [vmem:[#allocation3 + $0x35c] sm:$0xf] %v1307
        %1340 = vst [vmem:[#allocation3 + $0x380] sm:$0xf] %v1308
        %1341 = vst [vmem:[#allocation3 + $0x3a4] sm:$0xf] %v1309
        %1342 = vst [vmem:[#allocation3 + $0x3c8] sm:$0xf] %v1310
        %1343 = vst [vmem:[#allocation3 + $0x3ec] sm:$0xf] %v1311
        %1344 = vst [vmem:[#allocation3 + $0x410] sm:$0xf] %v1312
        %1345 = vst [vmem:[#allocation3 + $0x434] sm:$0xf] %v1313
        %1346 = vst [vmem:[#allocation3 + $0x458] sm:$0xf] %v1314
        %1347 = vst [vmem:[#allocation3 + $0x47c] sm:$0xf] %v1315
        %v1348 = vld [vmem:[#allocation3] sm:$0xff]
        %v1349 = vld [vmem:[#allocation3 + $0x8] sm:$0xff]
        %v1350 = vld [vmem:[#allocation3 + $0x10] sm:$0xff]
        %v1351 = vld [vmem:[#allocation3 + $0x18] sm:$0xff]
        %v1352 = vld [vmem:[#allocation3 + $0x20] sm:$0xf]
        %v1353 = vld [vmem:[#allocation3 + $0x24] sm:$0xff]
        %v1354 = vld [vmem:[#allocation3 + $0x2c] sm:$0xff]
        %v1355 = vld [vmem:[#allocation3 + $0x34] sm:$0xff]
        %v1356 = vld [vmem:[#allocation3 + $0x3c] sm:$0xff]
        %v1357 = vld [vmem:[#allocation3 + $0x44] sm:$0xf]
        %v1358 = vld [vmem:[#allocation3 + $0x48] sm:$0xff]
        %v1359 = vld [vmem:[#allocation3 + $0x50] sm:$0xff]
        %v1360 = vld [vmem:[#allocation3 + $0x58] sm:$0xff]
        %v1361 = vld [vmem:[#allocation3 + $0x60] sm:$0xff]
        %v1362 = vld [vmem:[#allocation3 + $0x68] sm:$0xf]
        %v1363 = vld [vmem:[#allocation3 + $0x6c] sm:$0xff]
        %v1364 = vld [vmem:[#allocation3 + $0x74] sm:$0xff]
        %v1365 = vld [vmem:[#allocation3 + $0x7c] sm:$0xff]
        %v1366 = vld [vmem:[#allocation3 + $0x84] sm:$0xff]
        %v1367 = vld [vmem:[#allocation3 + $0x8c] sm:$0xf]
        %v1368 = vld [vmem:[#allocation3 + $0x90] sm:$0xff]
        %v1369 = vld [vmem:[#allocation3 + $0x98] sm:$0xff]
        %v1370 = vld [vmem:[#allocation3 + $0xa0] sm:$0xff]
        %v1371 = vld [vmem:[#allocation3 + $0xa8] sm:$0xff]
        %v1372 = vld [vmem:[#allocation3 + $0xb0] sm:$0xf]
        %v1373 = vld [vmem:[#allocation3 + $0xb4] sm:$0xff]
        %v1374 = vld [vmem:[#allocation3 + $0xbc] sm:$0xff]
        %v1375 = vld [vmem:[#allocation3 + $0xc4] sm:$0xff]
        %v1376 = vld [vmem:[#allocation3 + $0xcc] sm:$0xff]
        %v1377 = vld [vmem:[#allocation3 + $0xd4] sm:$0xf]
        %v1378 = vld [vmem:[#allocation3 + $0xd8] sm:$0xff]
        %v1379 = vld [vmem:[#allocation3 + $0xe0] sm:$0xff]
        %v1380 = vld [vmem:[#allocation3 + $0xe8] sm:$0xff]
        %v1381 = vld [vmem:[#allocation3 + $0xf0] sm:$0xff]
        %v1382 = vld [vmem:[#allocation3 + $0xf8] sm:$0xf]
        %v1383 = vld [vmem:[#allocation3 + $0xfc] sm:$0xff]
        %v1384 = vld [vmem:[#allocation3 + $0x104] sm:$0xff]
        %v1385 = vld [vmem:[#allocation3 + $0x10c] sm:$0xff]
        %v1386 = vld [vmem:[#allocation3 + $0x114] sm:$0xff]
        %v1387 = vld [vmem:[#allocation3 + $0x11c] sm:$0xf]
        %v1388 = vld [vmem:[#allocation3 + $0x120] sm:$0xff]
        %v1389 = vld [vmem:[#allocation3 + $0x128] sm:$0xff]
        %v1390 = vld [vmem:[#allocation3 + $0x130] sm:$0xff]
        %v1391 = vld [vmem:[#allocation3 + $0x138] sm:$0xff]
        %v1392 = vld [vmem:[#allocation3 + $0x140] sm:$0xf]
        %v1393 = vld [vmem:[#allocation3 + $0x144] sm:$0xff]
        %v1394 = vld [vmem:[#allocation3 + $0x14c] sm:$0xff]
        %v1395 = vld [vmem:[#allocation3 + $0x154] sm:$0xff]
        %v1396 = vld [vmem:[#allocation3 + $0x15c] sm:$0xff]
        %v1397 = vld [vmem:[#allocation3 + $0x164] sm:$0xf]
        %v1398 = vld [vmem:[#allocation3 + $0x168] sm:$0xff]
        %v1399 = vld [vmem:[#allocation3 + $0x170] sm:$0xff]
        %v1400 = vld [vmem:[#allocation3 + $0x178] sm:$0xff]
        %v1401 = vld [vmem:[#allocation3 + $0x180] sm:$0xff]
        %v1402 = vld [vmem:[#allocation3 + $0x188] sm:$0xf]
        %v1403 = vld [vmem:[#allocation3 + $0x18c] sm:$0xff]
        %v1404 = vld [vmem:[#allocation3 + $0x194] sm:$0xff]
        %v1405 = vld [vmem:[#allocation3 + $0x19c] sm:$0xff]
        %v1406 = vld [vmem:[#allocation3 + $0x1a4] sm:$0xff]
        %v1407 = vld [vmem:[#allocation3 + $0x1ac] sm:$0xf]
        %v1408 = vld [vmem:[#allocation3 + $0x1b0] sm:$0xff]
        %v1409 = vld [vmem:[#allocation3 + $0x1b8] sm:$0xff]
        %v1410 = vld [vmem:[#allocation3 + $0x1c0] sm:$0xff]
        %v1411 = vld [vmem:[#allocation3 + $0x1c8] sm:$0xff]
        %v1412 = vld [vmem:[#allocation3 + $0x1d0] sm:$0xf]
        %v1413 = vld [vmem:[#allocation3 + $0x1d4] sm:$0xff]
        %v1414 = vld [vmem:[#allocation3 + $0x1dc] sm:$0xff]
        %v1415 = vld [vmem:[#allocation3 + $0x1e4] sm:$0xff]
        %v1416 = vld [vmem:[#allocation3 + $0x1ec] sm:$0xff]
        %v1417 = vld [vmem:[#allocation3 + $0x1f4] sm:$0xf]
        %v1418 = vld [vmem:[#allocation3 + $0x1f8] sm:$0xff]
        %v1419 = vld [vmem:[#allocation3 + $0x200] sm:$0xff]
        %v1420 = vld [vmem:[#allocation3 + $0x208] sm:$0xff]
        %v1421 = vld [vmem:[#allocation3 + $0x210] sm:$0xff]
        %v1422 = vld [vmem:[#allocation3 + $0x218] sm:$0xf]
        %v1423 = vld [vmem:[#allocation3 + $0x21c] sm:$0xff]
        %v1424 = vld [vmem:[#allocation3 + $0x224] sm:$0xff]
        %v1425 = vld [vmem:[#allocation3 + $0x22c] sm:$0xff]
        %v1426 = vld [vmem:[#allocation3 + $0x234] sm:$0xff]
        %v1427 = vld [vmem:[#allocation3 + $0x23c] sm:$0xf]
        %v1428 = vld [vmem:[#allocation3 + $0x240] sm:$0xff]
        %v1429 = vld [vmem:[#allocation3 + $0x248] sm:$0xff]
        %v1430 = vld [vmem:[#allocation3 + $0x250] sm:$0xff]
        %v1431 = vld [vmem:[#allocation3 + $0x258] sm:$0xff]
        %v1432 = vld [vmem:[#allocation3 + $0x260] sm:$0xf]
        %v1433 = vld [vmem:[#allocation3 + $0x264] sm:$0xff]
        %v1434 = vld [vmem:[#allocation3 + $0x26c] sm:$0xff]
        %v1435 = vld [vmem:[#allocation3 + $0x274] sm:$0xff]
        %v1436 = vld [vmem:[#allocation3 + $0x27c] sm:$0xff]
        %v1437 = vld [vmem:[#allocation3 + $0x284] sm:$0xf]
        %v1438 = vld [vmem:[#allocation3 + $0x288] sm:$0xff]
        %v1439 = vld [vmem:[#allocation3 + $0x290] sm:$0xff]
        %v1440 = vld [vmem:[#allocation3 + $0x298] sm:$0xff]
        %v1441 = vld [vmem:[#allocation3 + $0x2a0] sm:$0xff]
        %v1442 = vld [vmem:[#allocation3 + $0x2a8] sm:$0xf]
        %v1443 = vld [vmem:[#allocation3 + $0x2ac] sm:$0xff]
        %v1444 = vld [vmem:[#allocation3 + $0x2b4] sm:$0xff]
        %v1445 = vld [vmem:[#allocation3 + $0x2bc] sm:$0xff]
        %v1446 = vld [vmem:[#allocation3 + $0x2c4] sm:$0xff]
        %v1447 = vld [vmem:[#allocation3 + $0x2cc] sm:$0xf]
        %v1448 = vld [vmem:[#allocation3 + $0x2d0] sm:$0xff]
        %v1449 = vld [vmem:[#allocation3 + $0x2d8] sm:$0xff]
        %v1450 = vld [vmem:[#allocation3 + $0x2e0] sm:$0xff]
        %v1451 = vld [vmem:[#allocation3 + $0x2e8] sm:$0xff]
        %v1452 = vld [vmem:[#allocation3 + $0x2f0] sm:$0xf]
        %v1453 = vld [vmem:[#allocation3 + $0x2f4] sm:$0xff]
        %v1454 = vld [vmem:[#allocation3 + $0x2fc] sm:$0xff]
        %v1455 = vld [vmem:[#allocation3 + $0x304] sm:$0xff]
        %v1456 = vld [vmem:[#allocation3 + $0x30c] sm:$0xff]
        %v1457 = vld [vmem:[#allocation3 + $0x314] sm:$0xf]
        %v1458 = vld [vmem:[#allocation3 + $0x318] sm:$0xff]
        %v1459 = vld [vmem:[#allocation3 + $0x320] sm:$0xff]
        %v1460 = vld [vmem:[#allocation3 + $0x328] sm:$0xff]
        %v1461 = vld [vmem:[#allocation3 + $0x330] sm:$0xff]
        %v1462 = vld [vmem:[#allocation3 + $0x338] sm:$0xf]
        %v1463 = vld [vmem:[#allocation3 + $0x33c] sm:$0xff]
        %v1464 = vld [vmem:[#allocation3 + $0x344] sm:$0xff]
        %v1465 = vld [vmem:[#allocation3 + $0x34c] sm:$0xff]
        %v1466 = vld [vmem:[#allocation3 + $0x354] sm:$0xff]
        %v1467 = vld [vmem:[#allocation3 + $0x35c] sm:$0xf]
        %v1468 = vld [vmem:[#allocation3 + $0x360] sm:$0xff]
        %v1469 = vld [vmem:[#allocation3 + $0x368] sm:$0xff]
        %v1470 = vld [vmem:[#allocation3 + $0x370] sm:$0xff]
        %v1471 = vld [vmem:[#allocation3 + $0x378] sm:$0xff]
        %v1472 = vld [vmem:[#allocation3 + $0x380] sm:$0xf]
        %v1473 = vld [vmem:[#allocation3 + $0x384] sm:$0xff]
        %v1474 = vld [vmem:[#allocation3 + $0x38c] sm:$0xff]
        %v1475 = vld [vmem:[#allocation3 + $0x394] sm:$0xff]
        %v1476 = vld [vmem:[#allocation3 + $0x39c] sm:$0xff]
        %v1477 = vld [vmem:[#allocation3 + $0x3a4] sm:$0xf]
        %v1478 = vld [vmem:[#allocation3 + $0x3a8] sm:$0xff]
        %v1479 = vld [vmem:[#allocation3 + $0x3b0] sm:$0xff]
        %v1480 = vld [vmem:[#allocation3 + $0x3b8] sm:$0xff]
        %v1481 = vld [vmem:[#allocation3 + $0x3c0] sm:$0xff]
        %v1482 = vld [vmem:[#allocation3 + $0x3c8] sm:$0xf]
        %v1483 = vld [vmem:[#allocation3 + $0x3cc] sm:$0xff]
        %v1484 = vld [vmem:[#allocation3 + $0x3d4] sm:$0xff]
        %v1485 = vld [vmem:[#allocation3 + $0x3dc] sm:$0xff]
        %v1486 = vld [vmem:[#allocation3 + $0x3e4] sm:$0xff]
        %v1487 = vld [vmem:[#allocation3 + $0x3ec] sm:$0xf]
        %v1488 = vld [vmem:[#allocation3 + $0x3f0] sm:$0xff]
        %v1489 = vld [vmem:[#allocation3 + $0x3f8] sm:$0xff]
        %v1490 = vld [vmem:[#allocation3 + $0x400] sm:$0xff]
        %v1491 = vld [vmem:[#allocation3 + $0x408] sm:$0xff]
        %v1492 = vld [vmem:[#allocation3 + $0x410] sm:$0xf]
        %v1493 = vld [vmem:[#allocation3 + $0x414] sm:$0xff]
        %v1494 = vld [vmem:[#allocation3 + $0x41c] sm:$0xff]
        %v1495 = vld [vmem:[#allocation3 + $0x424] sm:$0xff]
        %v1496 = vld [vmem:[#allocation3 + $0x42c] sm:$0xff]
        %v1497 = vld [vmem:[#allocation3 + $0x434] sm:$0xf]
        %v1498 = vld [vmem:[#allocation3 + $0x438] sm:$0xff]
        %v1499 = vld [vmem:[#allocation3 + $0x440] sm:$0xff]
        %v1500 = vld [vmem:[#allocation3 + $0x448] sm:$0xff]
        %v1501 = vld [vmem:[#allocation3 + $0x450] sm:$0xff]
        %v1502 = vld [vmem:[#allocation3 + $0x458] sm:$0xf]
        %v1503 = vld [vmem:[#allocation3 + $0x45c] sm:$0xff]
        %v1504 = vld [vmem:[#allocation3 + $0x464] sm:$0xff]
        %v1505 = vld [vmem:[#allocation3 + $0x46c] sm:$0xff]
        %v1506 = vld [vmem:[#allocation3 + $0x474] sm:$0xff]
        %v1507 = vld [vmem:[#allocation3 + $0x47c] sm:$0xf]
        %v1508 = vld [vmem:[#allocation7] sm:$0xf]
        %v1509 = vld [vmem:[#allocation7 + $0x4] sm:$0xf]
        %v1510 = vld [vmem:[#allocation7 + $0x8] sm:$0xf]
        %v1511 = vld [vmem:[#allocation7 + $0xc] sm:$0xf]
        %v1512 = vld [vmem:[#allocation7 + $0x10] sm:$0xf]
        %v1513 = vld [vmem:[#allocation7 + $0x14] sm:$0xf]
        %v1514 = vld [vmem:[#allocation7 + $0x18] sm:$0xf]
        %v1515 = vld [vmem:[#allocation7 + $0x1c] sm:$0xf]
        %v1516 = vld [vmem:[#allocation7 + $0x20] sm:$0xf]
        %v1517 = vld [vmem:[#allocation7 + $0x24] sm:$0xf]
        %v1518 = vld [vmem:[#allocation7 + $0x28] sm:$0xf]
        %v1519 = vld [vmem:[#allocation7 + $0x2c] sm:$0xf]
        %v1520 = vld [vmem:[#allocation7 + $0x30] sm:$0xf]
        %v1521 = vld [vmem:[#allocation7 + $0x34] sm:$0xf]
        %v1522 = vld [vmem:[#allocation7 + $0x38] sm:$0xf]
        %v1523 = vld [vmem:[#allocation7 + $0x3c] sm:$0xf]
        %v1524 = vld [vmem:[#allocation7 + $0x40] sm:$0xf]
        %v1525 = vld [vmem:[#allocation7 + $0x44] sm:$0xf]
        %v1526 = vld [vmem:[#allocation7 + $0x48] sm:$0xf]
        %v1527 = vld [vmem:[#allocation7 + $0x4c] sm:$0xf]
        %v1528 = vld [vmem:[#allocation7 + $0x50] sm:$0xf]
        %v1529 = vld [vmem:[#allocation7 + $0x54] sm:$0xf]
        %v1530 = vld [vmem:[#allocation7 + $0x58] sm:$0xf]
        %v1531 = vld [vmem:[#allocation7 + $0x5c] sm:$0xf]
        %v1532 = vld [vmem:[#allocation7 + $0x60] sm:$0xf]
        %v1533 = vld [vmem:[#allocation7 + $0x64] sm:$0xf]
        %v1534 = vld [vmem:[#allocation7 + $0x68] sm:$0xf]
        %v1535 = vld [vmem:[#allocation7 + $0x6c] sm:$0xf]
        %v1536 = vld [vmem:[#allocation7 + $0x70] sm:$0xf]
        %v1537 = vld [vmem:[#allocation7 + $0x74] sm:$0xf]
        %v1538 = vld [vmem:[#allocation7 + $0x78] sm:$0xf]
        %v1539 = vld [vmem:[#allocation7 + $0x7c] sm:$0xf]
        %v1540 = vld [vmem:[#allocation7 + $0x80] sm:$0xf]
        %v1541 = vld [vmem:[#allocation7 + $0x84] sm:$0xf]
        %v1542 = vld [vmem:[#allocation7 + $0x88] sm:$0xf]
        %v1543 = vld [vmem:[#allocation7 + $0x8c] sm:$0xf]
        %v1544 = vld [vmem:[#allocation7 + $0x90] sm:$0xf]
        %v1545 = vld [vmem:[#allocation7 + $0x94] sm:$0xf]
        %v1546 = vld [vmem:[#allocation7 + $0x98] sm:$0xf]
        %v1547 = vld [vmem:[#allocation7 + $0x9c] sm:$0xf]
        %v1548 = vld [vmem:[#allocation7 + $0xa0] sm:$0xf]
        %v1549 = vld [vmem:[#allocation7 + $0xa4] sm:$0xf]
        %v1550 = vld [vmem:[#allocation7 + $0xa8] sm:$0xf]
        %v1551 = vld [vmem:[#allocation7 + $0xac] sm:$0xf]
        %v1552 = vld [vmem:[#allocation7 + $0xb0] sm:$0xf]
        %v1553 = vld [vmem:[#allocation7 + $0xb4] sm:$0xf]
        %v1554 = vld [vmem:[#allocation7 + $0xb8] sm:$0xf]
        %v1555 = vld [vmem:[#allocation7 + $0xbc] sm:$0xf]
        %v1556 = vld [vmem:[#allocation7 + $0xc0] sm:$0xf]
        %v1557 = vld [vmem:[#allocation7 + $0xc4] sm:$0xf]
        %v1558 = vld [vmem:[#allocation7 + $0xc8] sm:$0xf]
        %v1559 = vld [vmem:[#allocation7 + $0xcc] sm:$0xf]
        %v1560 = vld [vmem:[#allocation7 + $0xd0] sm:$0xf]
        %v1561 = vld [vmem:[#allocation7 + $0xd4] sm:$0xf]
        %v1562 = vld [vmem:[#allocation7 + $0xd8] sm:$0xf]
        %v1563 = vld [vmem:[#allocation7 + $0xdc] sm:$0xf]
        %v1564 = vld [vmem:[#allocation7 + $0xe0] sm:$0xf]
        %v1565 = vld [vmem:[#allocation7 + $0xe4] sm:$0xf]
        %v1566 = vld [vmem:[#allocation7 + $0xe8] sm:$0xf]
        %v1567 = vld [vmem:[#allocation7 + $0xec] sm:$0xf]
        %v1568 = vld [vmem:[#allocation7 + $0xf0] sm:$0xf]
        %v1569 = vld [vmem:[#allocation7 + $0xf4] sm:$0xf]
        %v1570 = vld [vmem:[#allocation7 + $0xf8] sm:$0xf]
        %v1571 = vld [vmem:[#allocation7 + $0xfc] sm:$0xf]
        %v1572 = vld [vmem:[#allocation7 + $0x100] sm:$0xf]
        %v1573 = vld [vmem:[#allocation7 + $0x104] sm:$0xf]
        %v1574 = vld [vmem:[#allocation7 + $0x108] sm:$0xf]
        %v1575 = vld [vmem:[#allocation7 + $0x10c] sm:$0xf]
        %v1576 = vld [vmem:[#allocation7 + $0x110] sm:$0xf]
        %v1577 = vld [vmem:[#allocation7 + $0x114] sm:$0xf]
        %v1578 = vld [vmem:[#allocation7 + $0x118] sm:$0xf]
        %v1579 = vld [vmem:[#allocation7 + $0x11c] sm:$0xf]
        %v1580 = vld [vmem:[#allocation7 + $0x120] sm:$0xf]
        %v1581 = vld [vmem:[#allocation7 + $0x124] sm:$0xf]
        %v1582 = vld [vmem:[#allocation7 + $0x128] sm:$0xf]
        %v1583 = vld [vmem:[#allocation7 + $0x12c] sm:$0xf]
        %v1584 = vld [vmem:[#allocation7 + $0x130] sm:$0xf]
        %v1585 = vld [vmem:[#allocation7 + $0x134] sm:$0xf]
        %v1586 = vld [vmem:[#allocation7 + $0x138] sm:$0xf]
        %v1587 = vld [vmem:[#allocation7 + $0x13c] sm:$0xf]
        %v1588 = vld [vmem:[#allocation7 + $0x140] sm:$0xf]
        %v1589 = vld [vmem:[#allocation7 + $0x144] sm:$0xf]
        %v1590 = vld [vmem:[#allocation7 + $0x148] sm:$0xf]
        %v1591 = vld [vmem:[#allocation7 + $0x14c] sm:$0xf]
        %v1592 = vld [vmem:[#allocation7 + $0x150] sm:$0xf]
        %v1593 = vld [vmem:[#allocation7 + $0x154] sm:$0xf]
        %v1594 = vld [vmem:[#allocation7 + $0x158] sm:$0xf]
        %v1595 = vld [vmem:[#allocation7 + $0x15c] sm:$0xf]
        %v1596 = vld [vmem:[#allocation7 + $0x160] sm:$0xf]
        %v1597 = vld [vmem:[#allocation7 + $0x164] sm:$0xf]
        %v1598 = vld [vmem:[#allocation7 + $0x168] sm:$0xf]
        %v1599 = vld [vmem:[#allocation7 + $0x16c] sm:$0xf]
        %v1600 = vld [vmem:[#allocation7 + $0x170] sm:$0xf]
        %v1601 = vld [vmem:[#allocation7 + $0x174] sm:$0xf]
        %v1602 = vld [vmem:[#allocation7 + $0x178] sm:$0xf]
        %v1603 = vld [vmem:[#allocation7 + $0x17c] sm:$0xf]
        %v1604 = vld [vmem:[#allocation7 + $0x180] sm:$0xf]
        %v1605 = vld [vmem:[#allocation7 + $0x184] sm:$0xf]
        %v1606 = vld [vmem:[#allocation7 + $0x188] sm:$0xf]
        %v1607 = vld [vmem:[#allocation7 + $0x18c] sm:$0xf]
        %v1608 = vld [vmem:[#allocation7 + $0x190] sm:$0xf]
        %v1609 = vld [vmem:[#allocation7 + $0x194] sm:$0xf]
        %v1610 = vld [vmem:[#allocation7 + $0x198] sm:$0xf]
        %v1611 = vld [vmem:[#allocation7 + $0x19c] sm:$0xf]
        %v1612 = vld [vmem:[#allocation7 + $0x1a0] sm:$0xf]
        %v1613 = vld [vmem:[#allocation7 + $0x1a4] sm:$0xf]
        %v1614 = vld [vmem:[#allocation7 + $0x1a8] sm:$0xf]
        %v1615 = vld [vmem:[#allocation7 + $0x1ac] sm:$0xf]
        %v1616 = vld [vmem:[#allocation7 + $0x1b0] sm:$0xf]
        %v1617 = vld [vmem:[#allocation7 + $0x1b4] sm:$0xf]
        %v1618 = vld [vmem:[#allocation7 + $0x1b8] sm:$0xf]
        %v1619 = vld [vmem:[#allocation7 + $0x1bc] sm:$0xf]
        %v1620 = vld [vmem:[#allocation7 + $0x1c0] sm:$0xf]
        %v1621 = vld [vmem:[#allocation7 + $0x1c4] sm:$0xf]
        %v1622 = vld [vmem:[#allocation7 + $0x1c8] sm:$0xf]
        %v1623 = vld [vmem:[#allocation7 + $0x1cc] sm:$0xf]
        %v1624 = vld [vmem:[#allocation7 + $0x1d0] sm:$0xf]
        %v1625 = vld [vmem:[#allocation7 + $0x1d4] sm:$0xf]
        %v1626 = vld [vmem:[#allocation7 + $0x1d8] sm:$0xf]
        %v1627 = vld [vmem:[#allocation7 + $0x1dc] sm:$0xf]
        %v1628 = vld [vmem:[#allocation7 + $0x1e0] sm:$0xf]
        %v1629 = vld [vmem:[#allocation7 + $0x1e4] sm:$0xf]
        %v1630 = vld [vmem:[#allocation7 + $0x1e8] sm:$0xf]
        %v1631 = vld [vmem:[#allocation7 + $0x1ec] sm:$0xf]
        %v1632 = vld [vmem:[#allocation7 + $0x1f0] sm:$0xf]
        %v1633 = vld [vmem:[#allocation7 + $0x1f4] sm:$0xf]
        %v1634 = vld [vmem:[#allocation7 + $0x1f8] sm:$0xf]
        %v1635 = vld [vmem:[#allocation7 + $0x1fc] sm:$0xf]
        %v1636 = vld [vmem:[#allocation7 + $0x200] sm:$0xf]
        %v1637 = vld [vmem:[#allocation7 + $0x204] sm:$0xf]
        %v1638 = vld [vmem:[#allocation7 + $0x208] sm:$0xf]
        %v1639 = vld [vmem:[#allocation7 + $0x20c] sm:$0xf]
        %v1640 = vld [vmem:[#allocation7 + $0x210] sm:$0xf]
        %v1641 = vld [vmem:[#allocation7 + $0x214] sm:$0xf]
        %v1642 = vld [vmem:[#allocation7 + $0x218] sm:$0xf]
        %v1643 = vld [vmem:[#allocation7 + $0x21c] sm:$0xf]
        %v1644 = vld [vmem:[#allocation7 + $0x220] sm:$0xf]
        %v1645 = vld [vmem:[#allocation7 + $0x224] sm:$0xf]
        %v1646 = vld [vmem:[#allocation7 + $0x228] sm:$0xf]
        %v1647 = vld [vmem:[#allocation7 + $0x22c] sm:$0xf]
        %v1648 = vld [vmem:[#allocation7 + $0x230] sm:$0xf]
        %v1649 = vld [vmem:[#allocation7 + $0x234] sm:$0xf]
        %v1650 = vld [vmem:[#allocation7 + $0x238] sm:$0xf]
        %v1651 = vld [vmem:[#allocation7 + $0x23c] sm:$0xf]
        %v1812 = vunpack.c.l.b16 %v1348
        %v1813 = vunpack.c.h.b16 %v1348
        %v1814 = vunpack.c.l.b16 %v1349
        %v1815 = vunpack.c.h.b16 %v1349
        %v1816 = vunpack.c.l.b16 %v1350
        %v1817 = vunpack.c.h.b16 %v1350
        %v1818 = vunpack.c.l.b16 %v1351
        %v1819 = vunpack.c.h.b16 %v1351
        %v1820 = vunpack.c.l.b16 %v1352
        %v1821 = vunpack.c.l.b16 %v1353
        %v1822 = vunpack.c.h.b16 %v1353
        %v1823 = vunpack.c.l.b16 %v1354
        %v1824 = vunpack.c.h.b16 %v1354
        %v1825 = vunpack.c.l.b16 %v1355
        %v1826 = vunpack.c.h.b16 %v1355
        %v1827 = vunpack.c.l.b16 %v1356
        %v1828 = vunpack.c.h.b16 %v1356
        %v1829 = vunpack.c.l.b16 %v1357
        %v1830 = vunpack.c.l.b16 %v1358
        %v1831 = vunpack.c.h.b16 %v1358
        %v1832 = vunpack.c.l.b16 %v1359
        %v1833 = vunpack.c.h.b16 %v1359
        %v1834 = vunpack.c.l.b16 %v1360
        %v1835 = vunpack.c.h.b16 %v1360
        %v1836 = vunpack.c.l.b16 %v1361
        %v1837 = vunpack.c.h.b16 %v1361
        %v1838 = vunpack.c.l.b16 %v1362
        %v1839 = vunpack.c.l.b16 %v1363
        %v1840 = vunpack.c.h.b16 %v1363
        %v1841 = vunpack.c.l.b16 %v1364
        %v1842 = vunpack.c.h.b16 %v1364
        %v1843 = vunpack.c.l.b16 %v1365
        %v1844 = vunpack.c.h.b16 %v1365
        %v1845 = vunpack.c.l.b16 %v1366
        %v1846 = vunpack.c.h.b16 %v1366
        %v1847 = vunpack.c.l.b16 %v1367
        %v1848 = vunpack.c.l.b16 %v1368
        %v1849 = vunpack.c.h.b16 %v1368
        %v1850 = vunpack.c.l.b16 %v1369
        %v1851 = vunpack.c.h.b16 %v1369
        %v1852 = vunpack.c.l.b16 %v1370
        %v1853 = vunpack.c.h.b16 %v1370
        %v1854 = vunpack.c.l.b16 %v1371
        %v1855 = vunpack.c.h.b16 %v1371
        %v1856 = vunpack.c.l.b16 %v1372
        %v1857 = vunpack.c.l.b16 %v1373
        %v1858 = vunpack.c.h.b16 %v1373
        %v1859 = vunpack.c.l.b16 %v1374
        %v1860 = vunpack.c.h.b16 %v1374
        %v1861 = vunpack.c.l.b16 %v1375
        %v1862 = vunpack.c.h.b16 %v1375
        %v1863 = vunpack.c.l.b16 %v1376
        %v1864 = vunpack.c.h.b16 %v1376
        %v1865 = vunpack.c.l.b16 %v1377
        %v1866 = vunpack.c.l.b16 %v1378
        %v1867 = vunpack.c.h.b16 %v1378
        %v1868 = vunpack.c.l.b16 %v1379
        %v1869 = vunpack.c.h.b16 %v1379
        %v1870 = vunpack.c.l.b16 %v1380
        %v1871 = vunpack.c.h.b16 %v1380
        %v1872 = vunpack.c.l.b16 %v1381
        %v1873 = vunpack.c.h.b16 %v1381
        %v1874 = vunpack.c.l.b16 %v1382
        %v1875 = vunpack.c.l.b16 %v1383
        %v1876 = vunpack.c.h.b16 %v1383
        %v1877 = vunpack.c.l.b16 %v1384
        %v1878 = vunpack.c.h.b16 %v1384
        %v1879 = vunpack.c.l.b16 %v1385
        %v1880 = vunpack.c.h.b16 %v1385
        %v1881 = vunpack.c.l.b16 %v1386
        %v1882 = vunpack.c.h.b16 %v1386
        %v1883 = vunpack.c.l.b16 %v1387
        %v1884 = vunpack.c.l.b16 %v1388
        %v1885 = vunpack.c.h.b16 %v1388
        %v1886 = vunpack.c.l.b16 %v1389
        %v1887 = vunpack.c.h.b16 %v1389
        %v1888 = vunpack.c.l.b16 %v1390
        %v1889 = vunpack.c.h.b16 %v1390
        %v1890 = vunpack.c.l.b16 %v1391
        %v1891 = vunpack.c.h.b16 %v1391
        %v1892 = vunpack.c.l.b16 %v1392
        %v1893 = vunpack.c.l.b16 %v1393
        %v1894 = vunpack.c.h.b16 %v1393
        %v1895 = vunpack.c.l.b16 %v1394
        %v1896 = vunpack.c.h.b16 %v1394
        %v1897 = vunpack.c.l.b16 %v1395
        %v1898 = vunpack.c.h.b16 %v1395
        %v1899 = vunpack.c.l.b16 %v1396
        %v1900 = vunpack.c.h.b16 %v1396
        %v1901 = vunpack.c.l.b16 %v1397
        %v1902 = vunpack.c.l.b16 %v1398
        %v1903 = vunpack.c.h.b16 %v1398
        %v1904 = vunpack.c.l.b16 %v1399
        %v1905 = vunpack.c.h.b16 %v1399
        %v1906 = vunpack.c.l.b16 %v1400
        %v1907 = vunpack.c.h.b16 %v1400
        %v1908 = vunpack.c.l.b16 %v1401
        %v1909 = vunpack.c.h.b16 %v1401
        %v1910 = vunpack.c.l.b16 %v1402
        %v1911 = vunpack.c.l.b16 %v1403
        %v1912 = vunpack.c.h.b16 %v1403
        %v1913 = vunpack.c.l.b16 %v1404
        %v1914 = vunpack.c.h.b16 %v1404
        %v1915 = vunpack.c.l.b16 %v1405
        %v1916 = vunpack.c.h.b16 %v1405
        %v1917 = vunpack.c.l.b16 %v1406
        %v1918 = vunpack.c.h.b16 %v1406
        %v1919 = vunpack.c.l.b16 %v1407
        %v1920 = vunpack.c.l.b16 %v1408
        %v1921 = vunpack.c.h.b16 %v1408
        %v1922 = vunpack.c.l.b16 %v1409
        %v1923 = vunpack.c.h.b16 %v1409
        %v1924 = vunpack.c.l.b16 %v1410
        %v1925 = vunpack.c.h.b16 %v1410
        %v1926 = vunpack.c.l.b16 %v1411
        %v1927 = vunpack.c.h.b16 %v1411
        %v1928 = vunpack.c.l.b16 %v1412
        %v1929 = vunpack.c.l.b16 %v1413
        %v1930 = vunpack.c.h.b16 %v1413
        %v1931 = vunpack.c.l.b16 %v1414
        %v1932 = vunpack.c.h.b16 %v1414
        %v1933 = vunpack.c.l.b16 %v1415
        %v1934 = vunpack.c.h.b16 %v1415
        %v1935 = vunpack.c.l.b16 %v1416
        %v1936 = vunpack.c.h.b16 %v1416
        %v1937 = vunpack.c.l.b16 %v1417
        %v1938 = vunpack.c.l.b16 %v1418
        %v1939 = vunpack.c.h.b16 %v1418
        %v1940 = vunpack.c.l.b16 %v1419
        %v1941 = vunpack.c.h.b16 %v1419
        %v1942 = vunpack.c.l.b16 %v1420
        %v1943 = vunpack.c.h.b16 %v1420
        %v1944 = vunpack.c.l.b16 %v1421
        %v1945 = vunpack.c.h.b16 %v1421
        %v1946 = vunpack.c.l.b16 %v1422
        %v1947 = vunpack.c.l.b16 %v1423
        %v1948 = vunpack.c.h.b16 %v1423
        %v1949 = vunpack.c.l.b16 %v1424
        %v1950 = vunpack.c.h.b16 %v1424
        %v1951 = vunpack.c.l.b16 %v1425
        %v1952 = vunpack.c.h.b16 %v1425
        %v1953 = vunpack.c.l.b16 %v1426
        %v1954 = vunpack.c.h.b16 %v1426
        %v1955 = vunpack.c.l.b16 %v1427
        %v1956 = vunpack.c.l.b16 %v1428
        %v1957 = vunpack.c.h.b16 %v1428
        %v1958 = vunpack.c.l.b16 %v1429
        %v1959 = vunpack.c.h.b16 %v1429
        %v1960 = vunpack.c.l.b16 %v1430
        %v1961 = vunpack.c.h.b16 %v1430
        %v1962 = vunpack.c.l.b16 %v1431
        %v1963 = vunpack.c.h.b16 %v1431
        %v1964 = vunpack.c.l.b16 %v1432
        %v1965 = vunpack.c.l.b16 %v1433
        %v1966 = vunpack.c.h.b16 %v1433
        %v1967 = vunpack.c.l.b16 %v1434
        %v1968 = vunpack.c.h.b16 %v1434
        %v1969 = vunpack.c.l.b16 %v1435
        %v1970 = vunpack.c.h.b16 %v1435
        %v1971 = vunpack.c.l.b16 %v1436
        %v1972 = vunpack.c.h.b16 %v1436
        %v1973 = vunpack.c.l.b16 %v1437
        %v1974 = vunpack.c.l.b16 %v1438
        %v1975 = vunpack.c.h.b16 %v1438
        %v1976 = vunpack.c.l.b16 %v1439
        %v1977 = vunpack.c.h.b16 %v1439
        %v1978 = vunpack.c.l.b16 %v1440
        %v1979 = vunpack.c.h.b16 %v1440
        %v1980 = vunpack.c.l.b16 %v1441
        %v1981 = vunpack.c.h.b16 %v1441
        %v1982 = vunpack.c.l.b16 %v1442
        %v1983 = vunpack.c.l.b16 %v1443
        %v1984 = vunpack.c.h.b16 %v1443
        %v1985 = vunpack.c.l.b16 %v1444
        %v1986 = vunpack.c.h.b16 %v1444
        %v1987 = vunpack.c.l.b16 %v1445
        %v1988 = vunpack.c.h.b16 %v1445
        %v1989 = vunpack.c.l.b16 %v1446
        %v1990 = vunpack.c.h.b16 %v1446
        %v1991 = vunpack.c.l.b16 %v1447
        %v1992 = vunpack.c.l.b16 %v1448
        %v1993 = vunpack.c.h.b16 %v1448
        %v1994 = vunpack.c.l.b16 %v1449
        %v1995 = vunpack.c.h.b16 %v1449
        %v1996 = vunpack.c.l.b16 %v1450
        %v1997 = vunpack.c.h.b16 %v1450
        %v1998 = vunpack.c.l.b16 %v1451
        %v1999 = vunpack.c.h.b16 %v1451
        %v2000 = vunpack.c.l.b16 %v1452
        %v2001 = vunpack.c.l.b16 %v1453
        %v2002 = vunpack.c.h.b16 %v1453
        %v2003 = vunpack.c.l.b16 %v1454
        %v2004 = vunpack.c.h.b16 %v1454
        %v2005 = vunpack.c.l.b16 %v1455
        %v2006 = vunpack.c.h.b16 %v1455
        %v2007 = vunpack.c.l.b16 %v1456
        %v2008 = vunpack.c.h.b16 %v1456
        %v2009 = vunpack.c.l.b16 %v1457
        %v2010 = vunpack.c.l.b16 %v1458
        %v2011 = vunpack.c.h.b16 %v1458
        %v2012 = vunpack.c.l.b16 %v1459
        %v2013 = vunpack.c.h.b16 %v1459
        %v2014 = vunpack.c.l.b16 %v1460
        %v2015 = vunpack.c.h.b16 %v1460
        %v2016 = vunpack.c.l.b16 %v1461
        %v2017 = vunpack.c.h.b16 %v1461
        %v2018 = vunpack.c.l.b16 %v1462
        %v2019 = vunpack.c.l.b16 %v1463
        %v2020 = vunpack.c.h.b16 %v1463
        %v2021 = vunpack.c.l.b16 %v1464
        %v2022 = vunpack.c.h.b16 %v1464
        %v2023 = vunpack.c.l.b16 %v1465
        %v2024 = vunpack.c.h.b16 %v1465
        %v2025 = vunpack.c.l.b16 %v1466
        %v2026 = vunpack.c.h.b16 %v1466
        %v2027 = vunpack.c.l.b16 %v1467
        %v2028 = vunpack.c.l.b16 %v1468
        %v2029 = vunpack.c.h.b16 %v1468
        %v2030 = vunpack.c.l.b16 %v1469
        %v2031 = vunpack.c.h.b16 %v1469
        %v2032 = vunpack.c.l.b16 %v1470
        %v2033 = vunpack.c.h.b16 %v1470
        %v2034 = vunpack.c.l.b16 %v1471
        %v2035 = vunpack.c.h.b16 %v1471
        %v2036 = vunpack.c.l.b16 %v1472
        %v2037 = vunpack.c.l.b16 %v1473
        %v2038 = vunpack.c.h.b16 %v1473
        %v2039 = vunpack.c.l.b16 %v1474
        %v2040 = vunpack.c.h.b16 %v1474
        %v2041 = vunpack.c.l.b16 %v1475
        %v2042 = vunpack.c.h.b16 %v1475
        %v2043 = vunpack.c.l.b16 %v1476
        %v2044 = vunpack.c.h.b16 %v1476
        %v2045 = vunpack.c.l.b16 %v1477
        %v2046 = vunpack.c.l.b16 %v1478
        %v2047 = vunpack.c.h.b16 %v1478
        %v2048 = vunpack.c.l.b16 %v1479
        %v2049 = vunpack.c.h.b16 %v1479
        %v2050 = vunpack.c.l.b16 %v1480
        %v2051 = vunpack.c.h.b16 %v1480
        %v2052 = vunpack.c.l.b16 %v1481
        %v2053 = vunpack.c.h.b16 %v1481
        %v2054 = vunpack.c.l.b16 %v1482
        %v2055 = vunpack.c.l.b16 %v1483
        %v2056 = vunpack.c.h.b16 %v1483
        %v2057 = vunpack.c.l.b16 %v1484
        %v2058 = vunpack.c.h.b16 %v1484
        %v2059 = vunpack.c.l.b16 %v1485
        %v2060 = vunpack.c.h.b16 %v1485
        %v2061 = vunpack.c.l.b16 %v1486
        %v2062 = vunpack.c.h.b16 %v1486
        %v2063 = vunpack.c.l.b16 %v1487
        %v2064 = vunpack.c.l.b16 %v1488
        %v2065 = vunpack.c.h.b16 %v1488
        %v2066 = vunpack.c.l.b16 %v1489
        %v2067 = vunpack.c.h.b16 %v1489
        %v2068 = vunpack.c.l.b16 %v1490
        %v2069 = vunpack.c.h.b16 %v1490
        %v2070 = vunpack.c.l.b16 %v1491
        %v2071 = vunpack.c.h.b16 %v1491
        %v2072 = vunpack.c.l.b16 %v1492
        %v2073 = vunpack.c.l.b16 %v1493
        %v2074 = vunpack.c.h.b16 %v1493
        %v2075 = vunpack.c.l.b16 %v1494
        %v2076 = vunpack.c.h.b16 %v1494
        %v2077 = vunpack.c.l.b16 %v1495
        %v2078 = vunpack.c.h.b16 %v1495
        %v2079 = vunpack.c.l.b16 %v1496
        %v2080 = vunpack.c.h.b16 %v1496
        %v2081 = vunpack.c.l.b16 %v1497
        %v2082 = vunpack.c.l.b16 %v1498
        %v2083 = vunpack.c.h.b16 %v1498
        %v2084 = vunpack.c.l.b16 %v1499
        %v2085 = vunpack.c.h.b16 %v1499
        %v2086 = vunpack.c.l.b16 %v1500
        %v2087 = vunpack.c.h.b16 %v1500
        %v2088 = vunpack.c.l.b16 %v1501
        %v2089 = vunpack.c.h.b16 %v1501
        %v2090 = vunpack.c.l.b16 %v1502
        %v2091 = vunpack.c.l.b16 %v1503
        %v2092 = vunpack.c.h.b16 %v1503
        %v2093 = vunpack.c.l.b16 %v1504
        %v2094 = vunpack.c.h.b16 %v1504
        %v2095 = vunpack.c.l.b16 %v1505
        %v2096 = vunpack.c.h.b16 %v1505
        %v2097 = vunpack.c.l.b16 %v1506
        %v2098 = vunpack.c.h.b16 %v1506
        %v2099 = vunpack.c.l.b16 %v1507
        %v2100 = vpack.c.b16 %v1821, %v1812
        %v2101 = vpack.c.b16 %v1822, %v1813
        %v2102 = vpack.c.b16 %v1823, %v1814
        %v2103 = vpack.c.b16 %v1824, %v1815
        %v2104 = vpack.c.b16 %v1825, %v1816
        %v2105 = vpack.c.b16 %v1826, %v1817
        %v2106 = vpack.c.b16 %v1827, %v1818
        %v2107 = vpack.c.b16 %v1828, %v1819
        %v2108 = vpack.c.b16 %v1829, %v1820
        %v2109 = vpack.c.b16 %v1839, %v1830
        %v2110 = vpack.c.b16 %v1840, %v1831
        %v2111 = vpack.c.b16 %v1841, %v1832
        %v2112 = vpack.c.b16 %v1842, %v1833
        %v2113 = vpack.c.b16 %v1843, %v1834
        %v2114 = vpack.c.b16 %v1844, %v1835
        %v2115 = vpack.c.b16 %v1845, %v1836
        %v2116 = vpack.c.b16 %v1846, %v1837
        %v2117 = vpack.c.b16 %v1847, %v1838
        %v2118 = vpack.c.b16 %v1857, %v1848
        %v2119 = vpack.c.b16 %v1858, %v1849
        %v2120 = vpack.c.b16 %v1859, %v1850
        %v2121 = vpack.c.b16 %v1860, %v1851
        %v2122 = vpack.c.b16 %v1861, %v1852
        %v2123 = vpack.c.b16 %v1862, %v1853
        %v2124 = vpack.c.b16 %v1863, %v1854
        %v2125 = vpack.c.b16 %v1864, %v1855
        %v2126 = vpack.c.b16 %v1865, %v1856
        %v2127 = vpack.c.b16 %v1875, %v1866
        %v2128 = vpack.c.b16 %v1876, %v1867
        %v2129 = vpack.c.b16 %v1877, %v1868
        %v2130 = vpack.c.b16 %v1878, %v1869
        %v2131 = vpack.c.b16 %v1879, %v1870
        %v2132 = vpack.c.b16 %v1880, %v1871
        %v2133 = vpack.c.b16 %v1881, %v1872
        %v2134 = vpack.c.b16 %v1882, %v1873
        %v2135 = vpack.c.b16 %v1883, %v1874
        %v2136 = vpack.c.b16 %v1893, %v1884
        %v2137 = vpack.c.b16 %v1894, %v1885
        %v2138 = vpack.c.b16 %v1895, %v1886
        %v2139 = vpack.c.b16 %v1896, %v1887
        %v2140 = vpack.c.b16 %v1897, %v1888
        %v2141 = vpack.c.b16 %v1898, %v1889
        %v2142 = vpack.c.b16 %v1899, %v1890
        %v2143 = vpack.c.b16 %v1900, %v1891
        %v2144 = vpack.c.b16 %v1901, %v1892
        %v2145 = vpack.c.b16 %v1911, %v1902
        %v2146 = vpack.c.b16 %v1912, %v1903
        %v2147 = vpack.c.b16 %v1913, %v1904
        %v2148 = vpack.c.b16 %v1914, %v1905
        %v2149 = vpack.c.b16 %v1915, %v1906
        %v2150 = vpack.c.b16 %v1916, %v1907
        %v2151 = vpack.c.b16 %v1917, %v1908
        %v2152 = vpack.c.b16 %v1918, %v1909
        %v2153 = vpack.c.b16 %v1919, %v1910
        %v2154 = vpack.c.b16 %v1929, %v1920
        %v2155 = vpack.c.b16 %v1930, %v1921
        %v2156 = vpack.c.b16 %v1931, %v1922
        %v2157 = vpack.c.b16 %v1932, %v1923
        %v2158 = vpack.c.b16 %v1933, %v1924
        %v2159 = vpack.c.b16 %v1934, %v1925
        %v2160 = vpack.c.b16 %v1935, %v1926
        %v2161 = vpack.c.b16 %v1936, %v1927
        %v2162 = vpack.c.b16 %v1937, %v1928
        %v2163 = vpack.c.b16 %v1947, %v1938
        %v2164 = vpack.c.b16 %v1948, %v1939
        %v2165 = vpack.c.b16 %v1949, %v1940
        %v2166 = vpack.c.b16 %v1950, %v1941
        %v2167 = vpack.c.b16 %v1951, %v1942
        %v2168 = vpack.c.b16 %v1952, %v1943
        %v2169 = vpack.c.b16 %v1953, %v1944
        %v2170 = vpack.c.b16 %v1954, %v1945
        %v2171 = vpack.c.b16 %v1955, %v1946
        %v2172 = vpack.c.b16 %v1965, %v1956
        %v2173 = vpack.c.b16 %v1966, %v1957
        %v2174 = vpack.c.b16 %v1967, %v1958
        %v2175 = vpack.c.b16 %v1968, %v1959
        %v2176 = vpack.c.b16 %v1969, %v1960
        %v2177 = vpack.c.b16 %v1970, %v1961
        %v2178 = vpack.c.b16 %v1971, %v1962
        %v2179 = vpack.c.b16 %v1972, %v1963
        %v2180 = vpack.c.b16 %v1973, %v1964
        %v2181 = vpack.c.b16 %v1983, %v1974
        %v2182 = vpack.c.b16 %v1984, %v1975
        %v2183 = vpack.c.b16 %v1985, %v1976
        %v2184 = vpack.c.b16 %v1986, %v1977
        %v2185 = vpack.c.b16 %v1987, %v1978
        %v2186 = vpack.c.b16 %v1988, %v1979
        %v2187 = vpack.c.b16 %v1989, %v1980
        %v2188 = vpack.c.b16 %v1990, %v1981
        %v2189 = vpack.c.b16 %v1991, %v1982
        %v2190 = vpack.c.b16 %v2001, %v1992
        %v2191 = vpack.c.b16 %v2002, %v1993
        %v2192 = vpack.c.b16 %v2003, %v1994
        %v2193 = vpack.c.b16 %v2004, %v1995
        %v2194 = vpack.c.b16 %v2005, %v1996
        %v2195 = vpack.c.b16 %v2006, %v1997
        %v2196 = vpack.c.b16 %v2007, %v1998
        %v2197 = vpack.c.b16 %v2008, %v1999
        %v2198 = vpack.c.b16 %v2009, %v2000
        %v2199 = vpack.c.b16 %v2019, %v2010
        %v2200 = vpack.c.b16 %v2020, %v2011
        %v2201 = vpack.c.b16 %v2021, %v2012
        %v2202 = vpack.c.b16 %v2022, %v2013
        %v2203 = vpack.c.b16 %v2023, %v2014
        %v2204 = vpack.c.b16 %v2024, %v2015
        %v2205 = vpack.c.b16 %v2025, %v2016
        %v2206 = vpack.c.b16 %v2026, %v2017
        %v2207 = vpack.c.b16 %v2027, %v2018
        %v2208 = vpack.c.b16 %v2037, %v2028
        %v2209 = vpack.c.b16 %v2038, %v2029
        %v2210 = vpack.c.b16 %v2039, %v2030
        %v2211 = vpack.c.b16 %v2040, %v2031
        %v2212 = vpack.c.b16 %v2041, %v2032
        %v2213 = vpack.c.b16 %v2042, %v2033
        %v2214 = vpack.c.b16 %v2043, %v2034
        %v2215 = vpack.c.b16 %v2044, %v2035
        %v2216 = vpack.c.b16 %v2045, %v2036
        %v2217 = vpack.c.b16 %v2055, %v2046
        %v2218 = vpack.c.b16 %v2056, %v2047
        %v2219 = vpack.c.b16 %v2057, %v2048
        %v2220 = vpack.c.b16 %v2058, %v2049
        %v2221 = vpack.c.b16 %v2059, %v2050
        %v2222 = vpack.c.b16 %v2060, %v2051
        %v2223 = vpack.c.b16 %v2061, %v2052
        %v2224 = vpack.c.b16 %v2062, %v2053
        %v2225 = vpack.c.b16 %v2063, %v2054
        %v2226 = vpack.c.b16 %v2073, %v2064
        %v2227 = vpack.c.b16 %v2074, %v2065
        %v2228 = vpack.c.b16 %v2075, %v2066
        %v2229 = vpack.c.b16 %v2076, %v2067
        %v2230 = vpack.c.b16 %v2077, %v2068
        %v2231 = vpack.c.b16 %v2078, %v2069
        %v2232 = vpack.c.b16 %v2079, %v2070
        %v2233 = vpack.c.b16 %v2080, %v2071
        %v2234 = vpack.c.b16 %v2081, %v2072
        %v2235 = vpack.c.b16 %v2091, %v2082
        %v2236 = vpack.c.b16 %v2092, %v2083
        %v2237 = vpack.c.b16 %v2093, %v2084
        %v2238 = vpack.c.b16 %v2094, %v2085
        %v2239 = vpack.c.b16 %v2095, %v2086
        %v2240 = vpack.c.b16 %v2096, %v2087
        %v2241 = vpack.c.b16 %v2097, %v2088
        %v2242 = vpack.c.b16 %v2098, %v2089
        %v2243 = vpack.c.b16 %v2099, %v2090
        %v2532 = vunpack.c.l.b16 %v1508
        %v2533 = vunpack.c.l.b16 %v1509
        %v2534 = vunpack.c.l.b16 %v1510
        %v2535 = vunpack.c.l.b16 %v1511
        %v2536 = vunpack.c.l.b16 %v1512
        %v2537 = vunpack.c.l.b16 %v1513
        %v2538 = vunpack.c.l.b16 %v1514
        %v2539 = vunpack.c.l.b16 %v1515
        %v2540 = vunpack.c.l.b16 %v1516
        %v2541 = vunpack.c.l.b16 %v1517
        %v2542 = vunpack.c.l.b16 %v1518
        %v2543 = vunpack.c.l.b16 %v1519
        %v2544 = vunpack.c.l.b16 %v1520
        %v2545 = vunpack.c.l.b16 %v1521
        %v2546 = vunpack.c.l.b16 %v1522
        %v2547 = vunpack.c.l.b16 %v1523
        %v2548 = vunpack.c.l.b16 %v1524
        %v2549 = vunpack.c.l.b16 %v1525
        %v2550 = vunpack.c.l.b16 %v1526
        %v2551 = vunpack.c.l.b16 %v1527
        %v2552 = vunpack.c.l.b16 %v1528
        %v2553 = vunpack.c.l.b16 %v1529
        %v2554 = vunpack.c.l.b16 %v1530
        %v2555 = vunpack.c.l.b16 %v1531
        %v2556 = vunpack.c.l.b16 %v1532
        %v2557 = vunpack.c.l.b16 %v1533
        %v2558 = vunpack.c.l.b16 %v1534
        %v2559 = vunpack.c.l.b16 %v1535
        %v2560 = vunpack.c.l.b16 %v1536
        %v2561 = vunpack.c.l.b16 %v1537
        %v2562 = vunpack.c.l.b16 %v1538
        %v2563 = vunpack.c.l.b16 %v1539
        %v2564 = vunpack.c.l.b16 %v1540
        %v2565 = vunpack.c.l.b16 %v1541
        %v2566 = vunpack.c.l.b16 %v1542
        %v2567 = vunpack.c.l.b16 %v1543
        %v2568 = vunpack.c.l.b16 %v1544
        %v2569 = vunpack.c.l.b16 %v1545
        %v2570 = vunpack.c.l.b16 %v1546
        %v2571 = vunpack.c.l.b16 %v1547
        %v2572 = vunpack.c.l.b16 %v1548
        %v2573 = vunpack.c.l.b16 %v1549
        %v2574 = vunpack.c.l.b16 %v1550
        %v2575 = vunpack.c.l.b16 %v1551
        %v2576 = vunpack.c.l.b16 %v1552
        %v2577 = vunpack.c.l.b16 %v1553
        %v2578 = vunpack.c.l.b16 %v1554
        %v2579 = vunpack.c.l.b16 %v1555
        %v2580 = vunpack.c.l.b16 %v1556
        %v2581 = vunpack.c.l.b16 %v1557
        %v2582 = vunpack.c.l.b16 %v1558
        %v2583 = vunpack.c.l.b16 %v1559
        %v2584 = vunpack.c.l.b16 %v1560
        %v2585 = vunpack.c.l.b16 %v1561
        %v2586 = vunpack.c.l.b16 %v1562
        %v2587 = vunpack.c.l.b16 %v1563
        %v2588 = vunpack.c.l.b16 %v1564
        %v2589 = vunpack.c.l.b16 %v1565
        %v2590 = vunpack.c.l.b16 %v1566
        %v2591 = vunpack.c.l.b16 %v1567
        %v2592 = vunpack.c.l.b16 %v1568
        %v2593 = vunpack.c.l.b16 %v1569
        %v2594 = vunpack.c.l.b16 %v1570
        %v2595 = vunpack.c.l.b16 %v1571
        %v2596 = vunpack.c.l.b16 %v1572
        %v2597 = vunpack.c.l.b16 %v1573
        %v2598 = vunpack.c.l.b16 %v1574
        %v2599 = vunpack.c.l.b16 %v1575
        %v2600 = vunpack.c.l.b16 %v1576
        %v2601 = vunpack.c.l.b16 %v1577
        %v2602 = vunpack.c.l.b16 %v1578
        %v2603 = vunpack.c.l.b16 %v1579
        %v2604 = vunpack.c.l.b16 %v1580
        %v2605 = vunpack.c.l.b16 %v1581
        %v2606 = vunpack.c.l.b16 %v1582
        %v2607 = vunpack.c.l.b16 %v1583
        %v2608 = vunpack.c.l.b16 %v1584
        %v2609 = vunpack.c.l.b16 %v1585
        %v2610 = vunpack.c.l.b16 %v1586
        %v2611 = vunpack.c.l.b16 %v1587
        %v2612 = vunpack.c.l.b16 %v1588
        %v2613 = vunpack.c.l.b16 %v1589
        %v2614 = vunpack.c.l.b16 %v1590
        %v2615 = vunpack.c.l.b16 %v1591
        %v2616 = vunpack.c.l.b16 %v1592
        %v2617 = vunpack.c.l.b16 %v1593
        %v2618 = vunpack.c.l.b16 %v1594
        %v2619 = vunpack.c.l.b16 %v1595
        %v2620 = vunpack.c.l.b16 %v1596
        %v2621 = vunpack.c.l.b16 %v1597
        %v2622 = vunpack.c.l.b16 %v1598
        %v2623 = vunpack.c.l.b16 %v1599
        %v2624 = vunpack.c.l.b16 %v1600
        %v2625 = vunpack.c.l.b16 %v1601
        %v2626 = vunpack.c.l.b16 %v1602
        %v2627 = vunpack.c.l.b16 %v1603
        %v2628 = vunpack.c.l.b16 %v1604
        %v2629 = vunpack.c.l.b16 %v1605
        %v2630 = vunpack.c.l.b16 %v1606
        %v2631 = vunpack.c.l.b16 %v1607
        %v2632 = vunpack.c.l.b16 %v1608
        %v2633 = vunpack.c.l.b16 %v1609
        %v2634 = vunpack.c.l.b16 %v1610
        %v2635 = vunpack.c.l.b16 %v1611
        %v2636 = vunpack.c.l.b16 %v1612
        %v2637 = vunpack.c.l.b16 %v1613
        %v2638 = vunpack.c.l.b16 %v1614
        %v2639 = vunpack.c.l.b16 %v1615
        %v2640 = vunpack.c.l.b16 %v1616
        %v2641 = vunpack.c.l.b16 %v1617
        %v2642 = vunpack.c.l.b16 %v1618
        %v2643 = vunpack.c.l.b16 %v1619
        %v2644 = vunpack.c.l.b16 %v1620
        %v2645 = vunpack.c.l.b16 %v1621
        %v2646 = vunpack.c.l.b16 %v1622
        %v2647 = vunpack.c.l.b16 %v1623
        %v2648 = vunpack.c.l.b16 %v1624
        %v2649 = vunpack.c.l.b16 %v1625
        %v2650 = vunpack.c.l.b16 %v1626
        %v2651 = vunpack.c.l.b16 %v1627
        %v2652 = vunpack.c.l.b16 %v1628
        %v2653 = vunpack.c.l.b16 %v1629
        %v2654 = vunpack.c.l.b16 %v1630
        %v2655 = vunpack.c.l.b16 %v1631
        %v2656 = vunpack.c.l.b16 %v1632
        %v2657 = vunpack.c.l.b16 %v1633
        %v2658 = vunpack.c.l.b16 %v1634
        %v2659 = vunpack.c.l.b16 %v1635
        %v2660 = vunpack.c.l.b16 %v1636
        %v2661 = vunpack.c.l.b16 %v1637
        %v2662 = vunpack.c.l.b16 %v1638
        %v2663 = vunpack.c.l.b16 %v1639
        %v2664 = vunpack.c.l.b16 %v1640
        %v2665 = vunpack.c.l.b16 %v1641
        %v2666 = vunpack.c.l.b16 %v1642
        %v2667 = vunpack.c.l.b16 %v1643
        %v2668 = vunpack.c.l.b16 %v1644
        %v2669 = vunpack.c.l.b16 %v1645
        %v2670 = vunpack.c.l.b16 %v1646
        %v2671 = vunpack.c.l.b16 %v1647
        %v2672 = vunpack.c.l.b16 %v1648
        %v2673 = vunpack.c.l.b16 %v1649
        %v2674 = vunpack.c.l.b16 %v1650
        %v2675 = vunpack.c.l.b16 %v1651
        %v2676 = vpack.c.b16 %v2533, %v2532
        %v2677 = vpack.c.b16 %v2535, %v2534
        %v2678 = vpack.c.b16 %v2537, %v2536
        %v2679 = vpack.c.b16 %v2539, %v2538
        %v2680 = vpack.c.b16 %v2541, %v2540
        %v2681 = vpack.c.b16 %v2543, %v2542
        %v2682 = vpack.c.b16 %v2545, %v2544
        %v2683 = vpack.c.b16 %v2547, %v2546
        %v2684 = vpack.c.b16 %v2549, %v2548
        %v2685 = vpack.c.b16 %v2551, %v2550
        %v2686 = vpack.c.b16 %v2553, %v2552
        %v2687 = vpack.c.b16 %v2555, %v2554
        %v2688 = vpack.c.b16 %v2557, %v2556
        %v2689 = vpack.c.b16 %v2559, %v2558
        %v2690 = vpack.c.b16 %v2561, %v2560
        %v2691 = vpack.c.b16 %v2563, %v2562
        %v2692 = vpack.c.b16 %v2565, %v2564
        %v2693 = vpack.c.b16 %v2567, %v2566
        %v2694 = vpack.c.b16 %v2569, %v2568
        %v2695 = vpack.c.b16 %v2571, %v2570
        %v2696 = vpack.c.b16 %v2573, %v2572
        %v2697 = vpack.c.b16 %v2575, %v2574
        %v2698 = vpack.c.b16 %v2577, %v2576
        %v2699 = vpack.c.b16 %v2579, %v2578
        %v2700 = vpack.c.b16 %v2581, %v2580
        %v2701 = vpack.c.b16 %v2583, %v2582
        %v2702 = vpack.c.b16 %v2585, %v2584
        %v2703 = vpack.c.b16 %v2587, %v2586
        %v2704 = vpack.c.b16 %v2589, %v2588
        %v2705 = vpack.c.b16 %v2591, %v2590
        %v2706 = vpack.c.b16 %v2593, %v2592
        %v2707 = vpack.c.b16 %v2595, %v2594
        %v2708 = vpack.c.b16 %v2597, %v2596
        %v2709 = vpack.c.b16 %v2599, %v2598
        %v2710 = vpack.c.b16 %v2601, %v2600
        %v2711 = vpack.c.b16 %v2603, %v2602
        %v2712 = vpack.c.b16 %v2605, %v2604
        %v2713 = vpack.c.b16 %v2607, %v2606
        %v2714 = vpack.c.b16 %v2609, %v2608
        %v2715 = vpack.c.b16 %v2611, %v2610
        %v2716 = vpack.c.b16 %v2613, %v2612
        %v2717 = vpack.c.b16 %v2615, %v2614
        %v2718 = vpack.c.b16 %v2617, %v2616
        %v2719 = vpack.c.b16 %v2619, %v2618
        %v2720 = vpack.c.b16 %v2621, %v2620
        %v2721 = vpack.c.b16 %v2623, %v2622
        %v2722 = vpack.c.b16 %v2625, %v2624
        %v2723 = vpack.c.b16 %v2627, %v2626
        %v2724 = vpack.c.b16 %v2629, %v2628
        %v2725 = vpack.c.b16 %v2631, %v2630
        %v2726 = vpack.c.b16 %v2633, %v2632
        %v2727 = vpack.c.b16 %v2635, %v2634
        %v2728 = vpack.c.b16 %v2637, %v2636
        %v2729 = vpack.c.b16 %v2639, %v2638
        %v2730 = vpack.c.b16 %v2641, %v2640
        %v2731 = vpack.c.b16 %v2643, %v2642
        %v2732 = vpack.c.b16 %v2645, %v2644
        %v2733 = vpack.c.b16 %v2647, %v2646
        %v2734 = vpack.c.b16 %v2649, %v2648
        %v2735 = vpack.c.b16 %v2651, %v2650
        %v2736 = vpack.c.b16 %v2653, %v2652
        %v2737 = vpack.c.b16 %v2655, %v2654
        %v2738 = vpack.c.b16 %v2657, %v2656
        %v2739 = vpack.c.b16 %v2659, %v2658
        %v2740 = vpack.c.b16 %v2661, %v2660
        %v2741 = vpack.c.b16 %v2663, %v2662
        %v2742 = vpack.c.b16 %v2665, %v2664
        %v2743 = vpack.c.b16 %v2667, %v2666
        %v2744 = vpack.c.b16 %v2669, %v2668
        %v2745 = vpack.c.b16 %v2671, %v2670
        %v2746 = vpack.c.b16 %v2673, %v2672
        %v2747 = vpack.c.b16 %v2675, %v2674
        %2820 = vmatpush.bf16.msra.mxu0 %v2683
        %2821 = vmatpush.bf16.msra.mxu0 %v2682
        %2822 = vmatpush.bf16.msra.mxu0 %v2681
        %2823 = vmatpush.bf16.msra.mxu0 %v2680
        %2824 = vmatpush.bf16.msra.mxu0 %v2679
        %2825 = vmatpush.bf16.msra.mxu0 %v2678
        %2826 = vmatpush.bf16.msra.mxu0 %v2677
        %2827 = vmatpush.bf16.msra.mxu0 %v2676
        %2828 = vmatmul.bf16.gmra.mxu0 %v2100
        %v2829 = vpop.f32.mrf.mxu0
        %v2830 = vadd.f32 0.0, %v2829
        %v2831 = vpop.f32.mrf.mxu0
        %v2832 = vadd.f32 0.0, %v2831
        %2833 = vmatmul.bf16.gmra.mxu0 %v2109
        %v2834 = vpop.f32.mrf.mxu0
        %v2835 = vadd.f32 0.0, %v2834
        %v2836 = vpop.f32.mrf.mxu0
        %v2837 = vadd.f32 0.0, %v2836
        %2838 = vmatmul.bf16.gmra.mxu0 %v2118
        %v2839 = vpop.f32.mrf.mxu0
        %v2840 = vadd.f32 0.0, %v2839
        %v2841 = vpop.f32.mrf.mxu0
        %v2842 = vadd.f32 0.0, %v2841
        %2843 = vmatmul.bf16.gmra.mxu0 %v2127
        %v2844 = vpop.f32.mrf.mxu0
        %v2845 = vadd.f32 0.0, %v2844
        %v2846 = vpop.f32.mrf.mxu0
        %v2847 = vadd.f32 0.0, %v2846
        %2848 = vmatmul.bf16.gmra.mxu0 %v2136
        %v2849 = vpop.f32.mrf.mxu0
        %v2850 = vadd.f32 0.0, %v2849
        %v2851 = vpop.f32.mrf.mxu0
        %v2852 = vadd.f32 0.0, %v2851
        %2853 = vmatmul.bf16.gmra.mxu0 %v2145
        %v2854 = vpop.f32.mrf.mxu0
        %v2855 = vadd.f32 0.0, %v2854
        %v2856 = vpop.f32.mrf.mxu0
        %v2857 = vadd.f32 0.0, %v2856
        %2858 = vmatmul.bf16.gmra.mxu0 %v2154
        %v2859 = vpop.f32.mrf.mxu0
        %v2860 = vadd.f32 0.0, %v2859
        %v2861 = vpop.f32.mrf.mxu0
        %v2862 = vadd.f32 0.0, %v2861
        %2863 = vmatmul.bf16.gmra.mxu0 %v2163
        %v2864 = vpop.f32.mrf.mxu0
        %v2865 = vadd.f32 0.0, %v2864
        %v2866 = vpop.f32.mrf.mxu0
        %v2867 = vadd.f32 0.0, %v2866
        %2868 = vmatmul.bf16.gmra.mxu0 %v2172
        %v2869 = vpop.f32.mrf.mxu0
        %v2870 = vadd.f32 0.0, %v2869
        %v2871 = vpop.f32.mrf.mxu0
        %v2872 = vadd.f32 0.0, %v2871
        %2873 = vmatmul.bf16.gmra.mxu0 %v2181
        %v2874 = vpop.f32.mrf.mxu0
        %v2875 = vadd.f32 0.0, %v2874
        %v2876 = vpop.f32.mrf.mxu0
        %v2877 = vadd.f32 0.0, %v2876
        %2878 = vmatmul.bf16.gmra.mxu0 %v2190
        %v2879 = vpop.f32.mrf.mxu0
        %v2880 = vadd.f32 0.0, %v2879
        %v2881 = vpop.f32.mrf.mxu0
        %v2882 = vadd.f32 0.0, %v2881
        %2883 = vmatmul.bf16.gmra.mxu0 %v2199
        %v2884 = vpop.f32.mrf.mxu0
        %v2885 = vadd.f32 0.0, %v2884
        %v2886 = vpop.f32.mrf.mxu0
        %v2887 = vadd.f32 0.0, %v2886
        %2888 = vmatmul.bf16.gmra.mxu0 %v2208
        %v2889 = vpop.f32.mrf.mxu0
        %v2890 = vadd.f32 0.0, %v2889
        %v2891 = vpop.f32.mrf.mxu0
        %v2892 = vadd.f32 0.0, %v2891
        %2893 = vmatmul.bf16.gmra.mxu0 %v2217
        %v2894 = vpop.f32.mrf.mxu0
        %v2895 = vadd.f32 0.0, %v2894
        %v2896 = vpop.f32.mrf.mxu0
        %v2897 = vadd.f32 0.0, %v2896
        %2898 = vmatmul.bf16.gmra.mxu0 %v2226
        %v2899 = vpop.f32.mrf.mxu0
        %v2900 = vadd.f32 0.0, %v2899
        %v2901 = vpop.f32.mrf.mxu0
        %v2902 = vadd.f32 0.0, %v2901
        %2903 = vmatmul.bf16.gmra.mxu0 %v2235
        %v2904 = vpop.f32.mrf.mxu0
        %v2905 = vadd.f32 0.0, %v2904
        %v2906 = vpop.f32.mrf.mxu0
        %v2907 = vadd.f32 0.0, %v2906
        %2908 = vdwg.mxu0
        %2909 = vmatpush.bf16.msra.mxu0 %v2691
        %2910 = vmatpush.bf16.msra.mxu0 %v2690
        %2911 = vmatpush.bf16.msra.mxu0 %v2689
        %2912 = vmatpush.bf16.msra.mxu0 %v2688
        %2913 = vmatpush.bf16.msra.mxu0 %v2687
        %2914 = vmatpush.bf16.msra.mxu0 %v2686
        %2915 = vmatpush.bf16.msra.mxu0 %v2685
        %2916 = vmatpush.bf16.msra.mxu0 %v2684
        %2917 = vmatmul.bf16.gmra.mxu0 %v2101
        %v2918 = vpop.f32.mrf.mxu0
        %v2919 = vadd.f32 %v2830, %v2918
        %v2920 = vpop.f32.mrf.mxu0
        %v2921 = vadd.f32 %v2832, %v2920
        %2922 = vmatmul.bf16.gmra.mxu0 %v2110
        %v2923 = vpop.f32.mrf.mxu0
        %v2924 = vadd.f32 %v2835, %v2923
        %v2925 = vpop.f32.mrf.mxu0
        %v2926 = vadd.f32 %v2837, %v2925
        %2927 = vmatmul.bf16.gmra.mxu0 %v2119
        %v2928 = vpop.f32.mrf.mxu0
        %v2929 = vadd.f32 %v2840, %v2928
        %v2930 = vpop.f32.mrf.mxu0
        %v2931 = vadd.f32 %v2842, %v2930
        %2932 = vmatmul.bf16.gmra.mxu0 %v2128
        %v2933 = vpop.f32.mrf.mxu0
        %v2934 = vadd.f32 %v2845, %v2933
        %v2935 = vpop.f32.mrf.mxu0
        %v2936 = vadd.f32 %v2847, %v2935
        %2937 = vmatmul.bf16.gmra.mxu0 %v2137
        %v2938 = vpop.f32.mrf.mxu0
        %v2939 = vadd.f32 %v2850, %v2938
        %v2940 = vpop.f32.mrf.mxu0
        %v2941 = vadd.f32 %v2852, %v2940
        %2942 = vmatmul.bf16.gmra.mxu0 %v2146
        %v2943 = vpop.f32.mrf.mxu0
        %v2944 = vadd.f32 %v2855, %v2943
        %v2945 = vpop.f32.mrf.mxu0
        %v2946 = vadd.f32 %v2857, %v2945
        %2947 = vmatmul.bf16.gmra.mxu0 %v2155
        %v2948 = vpop.f32.mrf.mxu0
        %v2949 = vadd.f32 %v2860, %v2948
        %v2950 = vpop.f32.mrf.mxu0
        %v2951 = vadd.f32 %v2862, %v2950
        %2952 = vmatmul.bf16.gmra.mxu0 %v2164
        %v2953 = vpop.f32.mrf.mxu0
        %v2954 = vadd.f32 %v2865, %v2953
        %v2955 = vpop.f32.mrf.mxu0
        %v2956 = vadd.f32 %v2867, %v2955
        %2957 = vmatmul.bf16.gmra.mxu0 %v2173
        %v2958 = vpop.f32.mrf.mxu0
        %v2959 = vadd.f32 %v2870, %v2958
        %v2960 = vpop.f32.mrf.mxu0
        %v2961 = vadd.f32 %v2872, %v2960
        %2962 = vmatmul.bf16.gmra.mxu0 %v2182
        %v2963 = vpop.f32.mrf.mxu0
        %v2964 = vadd.f32 %v2875, %v2963
        %v2965 = vpop.f32.mrf.mxu0
        %v2966 = vadd.f32 %v2877, %v2965
        %2967 = vmatmul.bf16.gmra.mxu0 %v2191
        %v2968 = vpop.f32.mrf.mxu0
        %v2969 = vadd.f32 %v2880, %v2968
        %v2970 = vpop.f32.mrf.mxu0
        %v2971 = vadd.f32 %v2882, %v2970
        %2972 = vmatmul.bf16.gmra.mxu0 %v2200
        %v2973 = vpop.f32.mrf.mxu0
        %v2974 = vadd.f32 %v2885, %v2973
        %v2975 = vpop.f32.mrf.mxu0
        %v2976 = vadd.f32 %v2887, %v2975
        %2977 = vmatmul.bf16.gmra.mxu0 %v2209
        %v2978 = vpop.f32.mrf.mxu0
        %v2979 = vadd.f32 %v2890, %v2978
        %v2980 = vpop.f32.mrf.mxu0
        %v2981 = vadd.f32 %v2892, %v2980
        %2982 = vmatmul.bf16.gmra.mxu0 %v2218
        %v2983 = vpop.f32.mrf.mxu0
        %v2984 = vadd.f32 %v2895, %v2983
        %v2985 = vpop.f32.mrf.mxu0
        %v2986 = vadd.f32 %v2897, %v2985
        %2987 = vmatmul.bf16.gmra.mxu0 %v2227
        %v2988 = vpop.f32.mrf.mxu0
        %v2989 = vadd.f32 %v2900, %v2988
        %v2990 = vpop.f32.mrf.mxu0
        %v2991 = vadd.f32 %v2902, %v2990
        %2992 = vmatmul.bf16.gmra.mxu0 %v2236
        %v2993 = vpop.f32.mrf.mxu0
        %v2994 = vadd.f32 %v2905, %v2993
        %v2995 = vpop.f32.mrf.mxu0
        %v2996 = vadd.f32 %v2907, %v2995
        %2997 = vdwg.mxu0
        %2998 = vmatpush.bf16.msra.mxu0 %v2699
        %2999 = vmatpush.bf16.msra.mxu0 %v2698
        %3000 = vmatpush.bf16.msra.mxu0 %v2697
        %3001 = vmatpush.bf16.msra.mxu0 %v2696
        %3002 = vmatpush.bf16.msra.mxu0 %v2695
        %3003 = vmatpush.bf16.msra.mxu0 %v2694
        %3004 = vmatpush.bf16.msra.mxu0 %v2693
        %3005 = vmatpush.bf16.msra.mxu0 %v2692
        %3006 = vmatmul.bf16.gmra.mxu0 %v2102
        %v3007 = vpop.f32.mrf.mxu0
        %v3008 = vadd.f32 %v2919, %v3007
        %v3009 = vpop.f32.mrf.mxu0
        %v3010 = vadd.f32 %v2921, %v3009
        %3011 = vmatmul.bf16.gmra.mxu0 %v2111
        %v3012 = vpop.f32.mrf.mxu0
        %v3013 = vadd.f32 %v2924, %v3012
        %v3014 = vpop.f32.mrf.mxu0
        %v3015 = vadd.f32 %v2926, %v3014
        %3016 = vmatmul.bf16.gmra.mxu0 %v2120
        %v3017 = vpop.f32.mrf.mxu0
        %v3018 = vadd.f32 %v2929, %v3017
        %v3019 = vpop.f32.mrf.mxu0
        %v3020 = vadd.f32 %v2931, %v3019
        %3021 = vmatmul.bf16.gmra.mxu0 %v2129
        %v3022 = vpop.f32.mrf.mxu0
        %v3023 = vadd.f32 %v2934, %v3022
        %v3024 = vpop.f32.mrf.mxu0
        %v3025 = vadd.f32 %v2936, %v3024
        %3026 = vmatmul.bf16.gmra.mxu0 %v2138
        %v3027 = vpop.f32.mrf.mxu0
        %v3028 = vadd.f32 %v2939, %v3027
        %v3029 = vpop.f32.mrf.mxu0
        %v3030 = vadd.f32 %v2941, %v3029
        %3031 = vmatmul.bf16.gmra.mxu0 %v2147
        %v3032 = vpop.f32.mrf.mxu0
        %v3033 = vadd.f32 %v2944, %v3032
        %v3034 = vpop.f32.mrf.mxu0
        %v3035 = vadd.f32 %v2946, %v3034
        %3036 = vmatmul.bf16.gmra.mxu0 %v2156
        %v3037 = vpop.f32.mrf.mxu0
        %v3038 = vadd.f32 %v2949, %v3037
        %v3039 = vpop.f32.mrf.mxu0
        %v3040 = vadd.f32 %v2951, %v3039
        %3041 = vmatmul.bf16.gmra.mxu0 %v2165
        %v3042 = vpop.f32.mrf.mxu0
        %v3043 = vadd.f32 %v2954, %v3042
        %v3044 = vpop.f32.mrf.mxu0
        %v3045 = vadd.f32 %v2956, %v3044
        %3046 = vmatmul.bf16.gmra.mxu0 %v2174
        %v3047 = vpop.f32.mrf.mxu0
        %v3048 = vadd.f32 %v2959, %v3047
        %v3049 = vpop.f32.mrf.mxu0
        %v3050 = vadd.f32 %v2961, %v3049
        %3051 = vmatmul.bf16.gmra.mxu0 %v2183
        %v3052 = vpop.f32.mrf.mxu0
        %v3053 = vadd.f32 %v2964, %v3052
        %v3054 = vpop.f32.mrf.mxu0
        %v3055 = vadd.f32 %v2966, %v3054
        %3056 = vmatmul.bf16.gmra.mxu0 %v2192
        %v3057 = vpop.f32.mrf.mxu0
        %v3058 = vadd.f32 %v2969, %v3057
        %v3059 = vpop.f32.mrf.mxu0
        %v3060 = vadd.f32 %v2971, %v3059
        %3061 = vmatmul.bf16.gmra.mxu0 %v2201
        %v3062 = vpop.f32.mrf.mxu0
        %v3063 = vadd.f32 %v2974, %v3062
        %v3064 = vpop.f32.mrf.mxu0
        %v3065 = vadd.f32 %v2976, %v3064
        %3066 = vmatmul.bf16.gmra.mxu0 %v2210
        %v3067 = vpop.f32.mrf.mxu0
        %v3068 = vadd.f32 %v2979, %v3067
        %v3069 = vpop.f32.mrf.mxu0
        %v3070 = vadd.f32 %v2981, %v3069
        %3071 = vmatmul.bf16.gmra.mxu0 %v2219
        %v3072 = vpop.f32.mrf.mxu0
        %v3073 = vadd.f32 %v2984, %v3072
        %v3074 = vpop.f32.mrf.mxu0
        %v3075 = vadd.f32 %v2986, %v3074
        %3076 = vmatmul.bf16.gmra.mxu0 %v2228
        %v3077 = vpop.f32.mrf.mxu0
        %v3078 = vadd.f32 %v2989, %v3077
        %v3079 = vpop.f32.mrf.mxu0
        %v3080 = vadd.f32 %v2991, %v3079
        %3081 = vmatmul.bf16.gmra.mxu0 %v2237
        %v3082 = vpop.f32.mrf.mxu0
        %v3083 = vadd.f32 %v2994, %v3082
        %v3084 = vpop.f32.mrf.mxu0
        %v3085 = vadd.f32 %v2996, %v3084
        %3086 = vdwg.mxu0
        %3087 = vmatpush.bf16.msra.mxu0 %v2707
        %3088 = vmatpush.bf16.msra.mxu0 %v2706
        %3089 = vmatpush.bf16.msra.mxu0 %v2705
        %3090 = vmatpush.bf16.msra.mxu0 %v2704
        %3091 = vmatpush.bf16.msra.mxu0 %v2703
        %3092 = vmatpush.bf16.msra.mxu0 %v2702
        %3093 = vmatpush.bf16.msra.mxu0 %v2701
        %3094 = vmatpush.bf16.msra.mxu0 %v2700
        %3095 = vmatmul.bf16.gmra.mxu0 %v2103
        %v3096 = vpop.f32.mrf.mxu0
        %v3097 = vadd.f32 %v3008, %v3096
        %v3098 = vpop.f32.mrf.mxu0
        %v3099 = vadd.f32 %v3010, %v3098
        %3100 = vmatmul.bf16.gmra.mxu0 %v2112
        %v3101 = vpop.f32.mrf.mxu0
        %v3102 = vadd.f32 %v3013, %v3101
        %v3103 = vpop.f32.mrf.mxu0
        %v3104 = vadd.f32 %v3015, %v3103
        %3105 = vmatmul.bf16.gmra.mxu0 %v2121
        %v3106 = vpop.f32.mrf.mxu0
        %v3107 = vadd.f32 %v3018, %v3106
        %v3108 = vpop.f32.mrf.mxu0
        %v3109 = vadd.f32 %v3020, %v3108
        %3110 = vmatmul.bf16.gmra.mxu0 %v2130
        %v3111 = vpop.f32.mrf.mxu0
        %v3112 = vadd.f32 %v3023, %v3111
        %v3113 = vpop.f32.mrf.mxu0
        %v3114 = vadd.f32 %v3025, %v3113
        %3115 = vmatmul.bf16.gmra.mxu0 %v2139
        %v3116 = vpop.f32.mrf.mxu0
        %v3117 = vadd.f32 %v3028, %v3116
        %v3118 = vpop.f32.mrf.mxu0
        %v3119 = vadd.f32 %v3030, %v3118
        %3120 = vmatmul.bf16.gmra.mxu0 %v2148
        %v3121 = vpop.f32.mrf.mxu0
        %v3122 = vadd.f32 %v3033, %v3121
        %v3123 = vpop.f32.mrf.mxu0
        %v3124 = vadd.f32 %v3035, %v3123
        %3125 = vmatmul.bf16.gmra.mxu0 %v2157
        %v3126 = vpop.f32.mrf.mxu0
        %v3127 = vadd.f32 %v3038, %v3126
        %v3128 = vpop.f32.mrf.mxu0
        %v3129 = vadd.f32 %v3040, %v3128
        %3130 = vmatmul.bf16.gmra.mxu0 %v2166
        %v3131 = vpop.f32.mrf.mxu0
        %v3132 = vadd.f32 %v3043, %v3131
        %v3133 = vpop.f32.mrf.mxu0
        %v3134 = vadd.f32 %v3045, %v3133
        %3135 = vmatmul.bf16.gmra.mxu0 %v2175
        %v3136 = vpop.f32.mrf.mxu0
        %v3137 = vadd.f32 %v3048, %v3136
        %v3138 = vpop.f32.mrf.mxu0
        %v3139 = vadd.f32 %v3050, %v3138
        %3140 = vmatmul.bf16.gmra.mxu0 %v2184
        %v3141 = vpop.f32.mrf.mxu0
        %v3142 = vadd.f32 %v3053, %v3141
        %v3143 = vpop.f32.mrf.mxu0
        %v3144 = vadd.f32 %v3055, %v3143
        %3145 = vmatmul.bf16.gmra.mxu0 %v2193
        %v3146 = vpop.f32.mrf.mxu0
        %v3147 = vadd.f32 %v3058, %v3146
        %v3148 = vpop.f32.mrf.mxu0
        %v3149 = vadd.f32 %v3060, %v3148
        %3150 = vmatmul.bf16.gmra.mxu0 %v2202
        %v3151 = vpop.f32.mrf.mxu0
        %v3152 = vadd.f32 %v3063, %v3151
        %v3153 = vpop.f32.mrf.mxu0
        %v3154 = vadd.f32 %v3065, %v3153
        %3155 = vmatmul.bf16.gmra.mxu0 %v2211
        %v3156 = vpop.f32.mrf.mxu0
        %v3157 = vadd.f32 %v3068, %v3156
        %v3158 = vpop.f32.mrf.mxu0
        %v3159 = vadd.f32 %v3070, %v3158
        %3160 = vmatmul.bf16.gmra.mxu0 %v2220
        %v3161 = vpop.f32.mrf.mxu0
        %v3162 = vadd.f32 %v3073, %v3161
        %v3163 = vpop.f32.mrf.mxu0
        %v3164 = vadd.f32 %v3075, %v3163
        %3165 = vmatmul.bf16.gmra.mxu0 %v2229
        %v3166 = vpop.f32.mrf.mxu0
        %v3167 = vadd.f32 %v3078, %v3166
        %v3168 = vpop.f32.mrf.mxu0
        %v3169 = vadd.f32 %v3080, %v3168
        %3170 = vmatmul.bf16.gmra.mxu0 %v2238
        %v3171 = vpop.f32.mrf.mxu0
        %v3172 = vadd.f32 %v3083, %v3171
        %v3173 = vpop.f32.mrf.mxu0
        %v3174 = vadd.f32 %v3085, %v3173
        %3175 = vdwg.mxu0
        %3176 = vmatpush.bf16.msra.mxu0 %v2715
        %3177 = vmatpush.bf16.msra.mxu0 %v2714
        %3178 = vmatpush.bf16.msra.mxu0 %v2713
        %3179 = vmatpush.bf16.msra.mxu0 %v2712
        %3180 = vmatpush.bf16.msra.mxu0 %v2711
        %3181 = vmatpush.bf16.msra.mxu0 %v2710
        %3182 = vmatpush.bf16.msra.mxu0 %v2709
        %3183 = vmatpush.bf16.msra.mxu0 %v2708
        %3184 = vmatmul.bf16.gmra.mxu0 %v2104
        %v3185 = vpop.f32.mrf.mxu0
        %v3186 = vadd.f32 %v3097, %v3185
        %v3187 = vpop.f32.mrf.mxu0
        %v3188 = vadd.f32 %v3099, %v3187
        %3189 = vmatmul.bf16.gmra.mxu0 %v2113
        %v3190 = vpop.f32.mrf.mxu0
        %v3191 = vadd.f32 %v3102, %v3190
        %v3192 = vpop.f32.mrf.mxu0
        %v3193 = vadd.f32 %v3104, %v3192
        %3194 = vmatmul.bf16.gmra.mxu0 %v2122
        %v3195 = vpop.f32.mrf.mxu0
        %v3196 = vadd.f32 %v3107, %v3195
        %v3197 = vpop.f32.mrf.mxu0
        %v3198 = vadd.f32 %v3109, %v3197
        %3199 = vmatmul.bf16.gmra.mxu0 %v2131
        %v3200 = vpop.f32.mrf.mxu0
        %v3201 = vadd.f32 %v3112, %v3200
        %v3202 = vpop.f32.mrf.mxu0
        %v3203 = vadd.f32 %v3114, %v3202
        %3204 = vmatmul.bf16.gmra.mxu0 %v2140
        %v3205 = vpop.f32.mrf.mxu0
        %v3206 = vadd.f32 %v3117, %v3205
        %v3207 = vpop.f32.mrf.mxu0
        %v3208 = vadd.f32 %v3119, %v3207
        %3209 = vmatmul.bf16.gmra.mxu0 %v2149
        %v3210 = vpop.f32.mrf.mxu0
        %v3211 = vadd.f32 %v3122, %v3210
        %v3212 = vpop.f32.mrf.mxu0
        %v3213 = vadd.f32 %v3124, %v3212
        %3214 = vmatmul.bf16.gmra.mxu0 %v2158
        %v3215 = vpop.f32.mrf.mxu0
        %v3216 = vadd.f32 %v3127, %v3215
        %v3217 = vpop.f32.mrf.mxu0
        %v3218 = vadd.f32 %v3129, %v3217
        %3219 = vmatmul.bf16.gmra.mxu0 %v2167
        %v3220 = vpop.f32.mrf.mxu0
        %v3221 = vadd.f32 %v3132, %v3220
        %v3222 = vpop.f32.mrf.mxu0
        %v3223 = vadd.f32 %v3134, %v3222
        %3224 = vmatmul.bf16.gmra.mxu0 %v2176
        %v3225 = vpop.f32.mrf.mxu0
        %v3226 = vadd.f32 %v3137, %v3225
        %v3227 = vpop.f32.mrf.mxu0
        %v3228 = vadd.f32 %v3139, %v3227
        %3229 = vmatmul.bf16.gmra.mxu0 %v2185
        %v3230 = vpop.f32.mrf.mxu0
        %v3231 = vadd.f32 %v3142, %v3230
        %v3232 = vpop.f32.mrf.mxu0
        %v3233 = vadd.f32 %v3144, %v3232
        %3234 = vmatmul.bf16.gmra.mxu0 %v2194
        %v3235 = vpop.f32.mrf.mxu0
        %v3236 = vadd.f32 %v3147, %v3235
        %v3237 = vpop.f32.mrf.mxu0
        %v3238 = vadd.f32 %v3149, %v3237
        %3239 = vmatmul.bf16.gmra.mxu0 %v2203
        %v3240 = vpop.f32.mrf.mxu0
        %v3241 = vadd.f32 %v3152, %v3240
        %v3242 = vpop.f32.mrf.mxu0
        %v3243 = vadd.f32 %v3154, %v3242
        %3244 = vmatmul.bf16.gmra.mxu0 %v2212
        %v3245 = vpop.f32.mrf.mxu0
        %v3246 = vadd.f32 %v3157, %v3245
        %v3247 = vpop.f32.mrf.mxu0
        %v3248 = vadd.f32 %v3159, %v3247
        %3249 = vmatmul.bf16.gmra.mxu0 %v2221
        %v3250 = vpop.f32.mrf.mxu0
        %v3251 = vadd.f32 %v3162, %v3250
        %v3252 = vpop.f32.mrf.mxu0
        %v3253 = vadd.f32 %v3164, %v3252
        %3254 = vmatmul.bf16.gmra.mxu0 %v2230
        %v3255 = vpop.f32.mrf.mxu0
        %v3256 = vadd.f32 %v3167, %v3255
        %v3257 = vpop.f32.mrf.mxu0
        %v3258 = vadd.f32 %v3169, %v3257
        %3259 = vmatmul.bf16.gmra.mxu0 %v2239
        %v3260 = vpop.f32.mrf.mxu0
        %v3261 = vadd.f32 %v3172, %v3260
        %v3262 = vpop.f32.mrf.mxu0
        %v3263 = vadd.f32 %v3174, %v3262
        %3264 = vdwg.mxu0
        %3265 = vmatpush.bf16.msra.mxu0 %v2723
        %3266 = vmatpush.bf16.msra.mxu0 %v2722
        %3267 = vmatpush.bf16.msra.mxu0 %v2721
        %3268 = vmatpush.bf16.msra.mxu0 %v2720
        %3269 = vmatpush.bf16.msra.mxu0 %v2719
        %3270 = vmatpush.bf16.msra.mxu0 %v2718
        %3271 = vmatpush.bf16.msra.mxu0 %v2717
        %3272 = vmatpush.bf16.msra.mxu0 %v2716
        %3273 = vmatmul.bf16.gmra.mxu0 %v2105
        %v3274 = vpop.f32.mrf.mxu0
        %v3275 = vadd.f32 %v3186, %v3274
        %v3276 = vpop.f32.mrf.mxu0
        %v3277 = vadd.f32 %v3188, %v3276
        %3278 = vmatmul.bf16.gmra.mxu0 %v2114
        %v3279 = vpop.f32.mrf.mxu0
        %v3280 = vadd.f32 %v3191, %v3279
        %v3281 = vpop.f32.mrf.mxu0
        %v3282 = vadd.f32 %v3193, %v3281
        %3283 = vmatmul.bf16.gmra.mxu0 %v2123
        %v3284 = vpop.f32.mrf.mxu0
        %v3285 = vadd.f32 %v3196, %v3284
        %v3286 = vpop.f32.mrf.mxu0
        %v3287 = vadd.f32 %v3198, %v3286
        %3288 = vmatmul.bf16.gmra.mxu0 %v2132
        %v3289 = vpop.f32.mrf.mxu0
        %v3290 = vadd.f32 %v3201, %v3289
        %v3291 = vpop.f32.mrf.mxu0
        %v3292 = vadd.f32 %v3203, %v3291
        %3293 = vmatmul.bf16.gmra.mxu0 %v2141
        %v3294 = vpop.f32.mrf.mxu0
        %v3295 = vadd.f32 %v3206, %v3294
        %v3296 = vpop.f32.mrf.mxu0
        %v3297 = vadd.f32 %v3208, %v3296
        %3298 = vmatmul.bf16.gmra.mxu0 %v2150
        %v3299 = vpop.f32.mrf.mxu0
        %v3300 = vadd.f32 %v3211, %v3299
        %v3301 = vpop.f32.mrf.mxu0
        %v3302 = vadd.f32 %v3213, %v3301
        %3303 = vmatmul.bf16.gmra.mxu0 %v2159
        %v3304 = vpop.f32.mrf.mxu0
        %v3305 = vadd.f32 %v3216, %v3304
        %v3306 = vpop.f32.mrf.mxu0
        %v3307 = vadd.f32 %v3218, %v3306
        %3308 = vmatmul.bf16.gmra.mxu0 %v2168
        %v3309 = vpop.f32.mrf.mxu0
        %v3310 = vadd.f32 %v3221, %v3309
        %v3311 = vpop.f32.mrf.mxu0
        %v3312 = vadd.f32 %v3223, %v3311
        %3313 = vmatmul.bf16.gmra.mxu0 %v2177
        %v3314 = vpop.f32.mrf.mxu0
        %v3315 = vadd.f32 %v3226, %v3314
        %v3316 = vpop.f32.mrf.mxu0
        %v3317 = vadd.f32 %v3228, %v3316
        %3318 = vmatmul.bf16.gmra.mxu0 %v2186
        %v3319 = vpop.f32.mrf.mxu0
        %v3320 = vadd.f32 %v3231, %v3319
        %v3321 = vpop.f32.mrf.mxu0
        %v3322 = vadd.f32 %v3233, %v3321
        %3323 = vmatmul.bf16.gmra.mxu0 %v2195
        %v3324 = vpop.f32.mrf.mxu0
        %v3325 = vadd.f32 %v3236, %v3324
        %v3326 = vpop.f32.mrf.mxu0
        %v3327 = vadd.f32 %v3238, %v3326
        %3328 = vmatmul.bf16.gmra.mxu0 %v2204
        %v3329 = vpop.f32.mrf.mxu0
        %v3330 = vadd.f32 %v3241, %v3329
        %v3331 = vpop.f32.mrf.mxu0
        %v3332 = vadd.f32 %v3243, %v3331
        %3333 = vmatmul.bf16.gmra.mxu0 %v2213
        %v3334 = vpop.f32.mrf.mxu0
        %v3335 = vadd.f32 %v3246, %v3334
        %v3336 = vpop.f32.mrf.mxu0
        %v3337 = vadd.f32 %v3248, %v3336
        %3338 = vmatmul.bf16.gmra.mxu0 %v2222
        %v3339 = vpop.f32.mrf.mxu0
        %v3340 = vadd.f32 %v3251, %v3339
        %v3341 = vpop.f32.mrf.mxu0
        %v3342 = vadd.f32 %v3253, %v3341
        %3343 = vmatmul.bf16.gmra.mxu0 %v2231
        %v3344 = vpop.f32.mrf.mxu0
        %v3345 = vadd.f32 %v3256, %v3344
        %v3346 = vpop.f32.mrf.mxu0
        %v3347 = vadd.f32 %v3258, %v3346
        %3348 = vmatmul.bf16.gmra.mxu0 %v2240
        %v3349 = vpop.f32.mrf.mxu0
        %v3350 = vadd.f32 %v3261, %v3349
        %v3351 = vpop.f32.mrf.mxu0
        %v3352 = vadd.f32 %v3263, %v3351
        %3353 = vdwg.mxu0
        %3354 = vmatpush.bf16.msra.mxu0 %v2731
        %3355 = vmatpush.bf16.msra.mxu0 %v2730
        %3356 = vmatpush.bf16.msra.mxu0 %v2729
        %3357 = vmatpush.bf16.msra.mxu0 %v2728
        %3358 = vmatpush.bf16.msra.mxu0 %v2727
        %3359 = vmatpush.bf16.msra.mxu0 %v2726
        %3360 = vmatpush.bf16.msra.mxu0 %v2725
        %3361 = vmatpush.bf16.msra.mxu0 %v2724
        %3362 = vmatmul.bf16.gmra.mxu0 %v2106
        %v3363 = vpop.f32.mrf.mxu0
        %v3364 = vadd.f32 %v3275, %v3363
        %v3365 = vpop.f32.mrf.mxu0
        %v3366 = vadd.f32 %v3277, %v3365
        %3367 = vmatmul.bf16.gmra.mxu0 %v2115
        %v3368 = vpop.f32.mrf.mxu0
        %v3369 = vadd.f32 %v3280, %v3368
        %v3370 = vpop.f32.mrf.mxu0
        %v3371 = vadd.f32 %v3282, %v3370
        %3372 = vmatmul.bf16.gmra.mxu0 %v2124
        %v3373 = vpop.f32.mrf.mxu0
        %v3374 = vadd.f32 %v3285, %v3373
        %v3375 = vpop.f32.mrf.mxu0
        %v3376 = vadd.f32 %v3287, %v3375
        %3377 = vmatmul.bf16.gmra.mxu0 %v2133
        %v3378 = vpop.f32.mrf.mxu0
        %v3379 = vadd.f32 %v3290, %v3378
        %v3380 = vpop.f32.mrf.mxu0
        %v3381 = vadd.f32 %v3292, %v3380
        %3382 = vmatmul.bf16.gmra.mxu0 %v2142
        %v3383 = vpop.f32.mrf.mxu0
        %v3384 = vadd.f32 %v3295, %v3383
        %v3385 = vpop.f32.mrf.mxu0
        %v3386 = vadd.f32 %v3297, %v3385
        %3387 = vmatmul.bf16.gmra.mxu0 %v2151
        %v3388 = vpop.f32.mrf.mxu0
        %v3389 = vadd.f32 %v3300, %v3388
        %v3390 = vpop.f32.mrf.mxu0
        %v3391 = vadd.f32 %v3302, %v3390
        %3392 = vmatmul.bf16.gmra.mxu0 %v2160
        %v3393 = vpop.f32.mrf.mxu0
        %v3394 = vadd.f32 %v3305, %v3393
        %v3395 = vpop.f32.mrf.mxu0
        %v3396 = vadd.f32 %v3307, %v3395
        %3397 = vmatmul.bf16.gmra.mxu0 %v2169
        %v3398 = vpop.f32.mrf.mxu0
        %v3399 = vadd.f32 %v3310, %v3398
        %v3400 = vpop.f32.mrf.mxu0
        %v3401 = vadd.f32 %v3312, %v3400
        %3402 = vmatmul.bf16.gmra.mxu0 %v2178
        %v3403 = vpop.f32.mrf.mxu0
        %v3404 = vadd.f32 %v3315, %v3403
        %v3405 = vpop.f32.mrf.mxu0
        %v3406 = vadd.f32 %v3317, %v3405
        %3407 = vmatmul.bf16.gmra.mxu0 %v2187
        %v3408 = vpop.f32.mrf.mxu0
        %v3409 = vadd.f32 %v3320, %v3408
        %v3410 = vpop.f32.mrf.mxu0
        %v3411 = vadd.f32 %v3322, %v3410
        %3412 = vmatmul.bf16.gmra.mxu0 %v2196
        %v3413 = vpop.f32.mrf.mxu0
        %v3414 = vadd.f32 %v3325, %v3413
        %v3415 = vpop.f32.mrf.mxu0
        %v3416 = vadd.f32 %v3327, %v3415
        %3417 = vmatmul.bf16.gmra.mxu0 %v2205
        %v3418 = vpop.f32.mrf.mxu0
        %v3419 = vadd.f32 %v3330, %v3418
        %v3420 = vpop.f32.mrf.mxu0
        %v3421 = vadd.f32 %v3332, %v3420
        %3422 = vmatmul.bf16.gmra.mxu0 %v2214
        %v3423 = vpop.f32.mrf.mxu0
        %v3424 = vadd.f32 %v3335, %v3423
        %v3425 = vpop.f32.mrf.mxu0
        %v3426 = vadd.f32 %v3337, %v3425
        %3427 = vmatmul.bf16.gmra.mxu0 %v2223
        %v3428 = vpop.f32.mrf.mxu0
        %v3429 = vadd.f32 %v3340, %v3428
        %v3430 = vpop.f32.mrf.mxu0
        %v3431 = vadd.f32 %v3342, %v3430
        %3432 = vmatmul.bf16.gmra.mxu0 %v2232
        %v3433 = vpop.f32.mrf.mxu0
        %v3434 = vadd.f32 %v3345, %v3433
        %v3435 = vpop.f32.mrf.mxu0
        %v3436 = vadd.f32 %v3347, %v3435
        %3437 = vmatmul.bf16.gmra.mxu0 %v2241
        %v3438 = vpop.f32.mrf.mxu0
        %v3439 = vadd.f32 %v3350, %v3438
        %v3440 = vpop.f32.mrf.mxu0
        %v3441 = vadd.f32 %v3352, %v3440
        %3442 = vdwg.mxu0
        %3443 = vmatpush.bf16.msra.mxu0 %v2739
        %3444 = vmatpush.bf16.msra.mxu0 %v2738
        %3445 = vmatpush.bf16.msra.mxu0 %v2737
        %3446 = vmatpush.bf16.msra.mxu0 %v2736
        %3447 = vmatpush.bf16.msra.mxu0 %v2735
        %3448 = vmatpush.bf16.msra.mxu0 %v2734
        %3449 = vmatpush.bf16.msra.mxu0 %v2733
        %3450 = vmatpush.bf16.msra.mxu0 %v2732
        %3451 = vmatmul.bf16.gmra.mxu0 %v2107
        %v3452 = vpop.f32.mrf.mxu0
        %v3453 = vadd.f32 %v3364, %v3452
        %v3454 = vpop.f32.mrf.mxu0
        %v3455 = vadd.f32 %v3366, %v3454
        %3456 = vmatmul.bf16.gmra.mxu0 %v2116
        %v3457 = vpop.f32.mrf.mxu0
        %v3458 = vadd.f32 %v3369, %v3457
        %v3459 = vpop.f32.mrf.mxu0
        %v3460 = vadd.f32 %v3371, %v3459
        %3461 = vmatmul.bf16.gmra.mxu0 %v2125
        %v3462 = vpop.f32.mrf.mxu0
        %v3463 = vadd.f32 %v3374, %v3462
        %v3464 = vpop.f32.mrf.mxu0
        %v3465 = vadd.f32 %v3376, %v3464
        %3466 = vmatmul.bf16.gmra.mxu0 %v2134
        %v3467 = vpop.f32.mrf.mxu0
        %v3468 = vadd.f32 %v3379, %v3467
        %v3469 = vpop.f32.mrf.mxu0
        %v3470 = vadd.f32 %v3381, %v3469
        %3471 = vmatmul.bf16.gmra.mxu0 %v2143
        %v3472 = vpop.f32.mrf.mxu0
        %v3473 = vadd.f32 %v3384, %v3472
        %v3474 = vpop.f32.mrf.mxu0
        %v3475 = vadd.f32 %v3386, %v3474
        %3476 = vmatmul.bf16.gmra.mxu0 %v2152
        %v3477 = vpop.f32.mrf.mxu0
        %v3478 = vadd.f32 %v3389, %v3477
        %v3479 = vpop.f32.mrf.mxu0
        %v3480 = vadd.f32 %v3391, %v3479
        %3481 = vmatmul.bf16.gmra.mxu0 %v2161
        %v3482 = vpop.f32.mrf.mxu0
        %v3483 = vadd.f32 %v3394, %v3482
        %v3484 = vpop.f32.mrf.mxu0
        %v3485 = vadd.f32 %v3396, %v3484
        %3486 = vmatmul.bf16.gmra.mxu0 %v2170
        %v3487 = vpop.f32.mrf.mxu0
        %v3488 = vadd.f32 %v3399, %v3487
        %v3489 = vpop.f32.mrf.mxu0
        %v3490 = vadd.f32 %v3401, %v3489
        %3491 = vmatmul.bf16.gmra.mxu0 %v2179
        %v3492 = vpop.f32.mrf.mxu0
        %v3493 = vadd.f32 %v3404, %v3492
        %v3494 = vpop.f32.mrf.mxu0
        %v3495 = vadd.f32 %v3406, %v3494
        %3496 = vmatmul.bf16.gmra.mxu0 %v2188
        %v3497 = vpop.f32.mrf.mxu0
        %v3498 = vadd.f32 %v3409, %v3497
        %v3499 = vpop.f32.mrf.mxu0
        %v3500 = vadd.f32 %v3411, %v3499
        %3501 = vmatmul.bf16.gmra.mxu0 %v2197
        %v3502 = vpop.f32.mrf.mxu0
        %v3503 = vadd.f32 %v3414, %v3502
        %v3504 = vpop.f32.mrf.mxu0
        %v3505 = vadd.f32 %v3416, %v3504
        %3506 = vmatmul.bf16.gmra.mxu0 %v2206
        %v3507 = vpop.f32.mrf.mxu0
        %v3508 = vadd.f32 %v3419, %v3507
        %v3509 = vpop.f32.mrf.mxu0
        %v3510 = vadd.f32 %v3421, %v3509
        %3511 = vmatmul.bf16.gmra.mxu0 %v2215
        %v3512 = vpop.f32.mrf.mxu0
        %v3513 = vadd.f32 %v3424, %v3512
        %v3514 = vpop.f32.mrf.mxu0
        %v3515 = vadd.f32 %v3426, %v3514
        %3516 = vmatmul.bf16.gmra.mxu0 %v2224
        %v3517 = vpop.f32.mrf.mxu0
        %v3518 = vadd.f32 %v3429, %v3517
        %v3519 = vpop.f32.mrf.mxu0
        %v3520 = vadd.f32 %v3431, %v3519
        %3521 = vmatmul.bf16.gmra.mxu0 %v2233
        %v3522 = vpop.f32.mrf.mxu0
        %v3523 = vadd.f32 %v3434, %v3522
        %v3524 = vpop.f32.mrf.mxu0
        %v3525 = vadd.f32 %v3436, %v3524
        %3526 = vmatmul.bf16.gmra.mxu0 %v2242
        %v3527 = vpop.f32.mrf.mxu0
        %v3528 = vadd.f32 %v3439, %v3527
        %v3529 = vpop.f32.mrf.mxu0
        %v3530 = vadd.f32 %v3441, %v3529
        %3531 = vdwg.mxu0
        %3532 = vmatpush.bf16.msra.mxu0 %v2747
        %3533 = vmatpush.bf16.msra.mxu0 %v2746
        %3534 = vmatpush.bf16.msra.mxu0 %v2745
        %3535 = vmatpush.bf16.msra.mxu0 %v2744
        %3536 = vmatpush.bf16.msra.mxu0 %v2743
        %3537 = vmatpush.bf16.msra.mxu0 %v2742
        %3538 = vmatpush.bf16.msra.mxu0 %v2741
        %3539 = vmatpush.bf16.msra.mxu0 %v2740
        %3540 = vmatmul.bf16.gmra.mxu0 %v2108
        %v3541 = vpop.f32.mrf.mxu0
        %v3542 = vadd.f32 %v3453, %v3541
        %v3543 = vpop.f32.mrf.mxu0
        %v3544 = vadd.f32 %v3455, %v3543
        %3545 = vmatmul.bf16.gmra.mxu0 %v2117
        %v3546 = vpop.f32.mrf.mxu0
        %v3547 = vadd.f32 %v3458, %v3546
        %v3548 = vpop.f32.mrf.mxu0
        %v3549 = vadd.f32 %v3460, %v3548
        %3550 = vmatmul.bf16.gmra.mxu0 %v2126
        %v3551 = vpop.f32.mrf.mxu0
        %v3552 = vadd.f32 %v3463, %v3551
        %v3553 = vpop.f32.mrf.mxu0
        %v3554 = vadd.f32 %v3465, %v3553
        %3555 = vmatmul.bf16.gmra.mxu0 %v2135
        %v3556 = vpop.f32.mrf.mxu0
        %v3557 = vadd.f32 %v3468, %v3556
        %v3558 = vpop.f32.mrf.mxu0
        %v3559 = vadd.f32 %v3470, %v3558
        %3560 = vmatmul.bf16.gmra.mxu0 %v2144
        %v3561 = vpop.f32.mrf.mxu0
        %v3562 = vadd.f32 %v3473, %v3561
        %v3563 = vpop.f32.mrf.mxu0
        %v3564 = vadd.f32 %v3475, %v3563
        %3565 = vmatmul.bf16.gmra.mxu0 %v2153
        %v3566 = vpop.f32.mrf.mxu0
        %v3567 = vadd.f32 %v3478, %v3566
        %v3568 = vpop.f32.mrf.mxu0
        %v3569 = vadd.f32 %v3480, %v3568
        %3570 = vmatmul.bf16.gmra.mxu0 %v2162
        %v3571 = vpop.f32.mrf.mxu0
        %v3572 = vadd.f32 %v3483, %v3571
        %v3573 = vpop.f32.mrf.mxu0
        %v3574 = vadd.f32 %v3485, %v3573
        %3575 = vmatmul.bf16.gmra.mxu0 %v2171
        %v3576 = vpop.f32.mrf.mxu0
        %v3577 = vadd.f32 %v3488, %v3576
        %v3578 = vpop.f32.mrf.mxu0
        %v3579 = vadd.f32 %v3490, %v3578
        %3580 = vmatmul.bf16.gmra.mxu0 %v2180
        %v3581 = vpop.f32.mrf.mxu0
        %v3582 = vadd.f32 %v3493, %v3581
        %v3583 = vpop.f32.mrf.mxu0
        %v3584 = vadd.f32 %v3495, %v3583
        %3585 = vmatmul.bf16.gmra.mxu0 %v2189
        %v3586 = vpop.f32.mrf.mxu0
        %v3587 = vadd.f32 %v3498, %v3586
        %v3588 = vpop.f32.mrf.mxu0
        %v3589 = vadd.f32 %v3500, %v3588
        %3590 = vmatmul.bf16.gmra.mxu0 %v2198
        %v3591 = vpop.f32.mrf.mxu0
        %v3592 = vadd.f32 %v3503, %v3591
        %v3593 = vpop.f32.mrf.mxu0
        %v3594 = vadd.f32 %v3505, %v3593
        %3595 = vmatmul.bf16.gmra.mxu0 %v2207
        %v3596 = vpop.f32.mrf.mxu0
        %v3597 = vadd.f32 %v3508, %v3596
        %v3598 = vpop.f32.mrf.mxu0
        %v3599 = vadd.f32 %v3510, %v3598
        %3600 = vmatmul.bf16.gmra.mxu0 %v2216
        %v3601 = vpop.f32.mrf.mxu0
        %v3602 = vadd.f32 %v3513, %v3601
        %v3603 = vpop.f32.mrf.mxu0
        %v3604 = vadd.f32 %v3515, %v3603
        %3605 = vmatmul.bf16.gmra.mxu0 %v2225
        %v3606 = vpop.f32.mrf.mxu0
        %v3607 = vadd.f32 %v3518, %v3606
        %v3608 = vpop.f32.mrf.mxu0
        %v3609 = vadd.f32 %v3520, %v3608
        %3610 = vmatmul.bf16.gmra.mxu0 %v2234
        %v3611 = vpop.f32.mrf.mxu0
        %v3612 = vadd.f32 %v3523, %v3611
        %v3613 = vpop.f32.mrf.mxu0
        %v3614 = vadd.f32 %v3525, %v3613
        %3615 = vmatmul.bf16.gmra.mxu0 %v2243
        %v3616 = vpop.f32.mrf.mxu0
        %v3617 = vadd.f32 %v3528, %v3616
        %v3618 = vpop.f32.mrf.mxu0
        %v3619 = vadd.f32 %v3530, %v3618
        %3620 = vdwg.mxu0
        %v3621 = vld [vmem:[%s2] sm:$0x1]
        %v3623 = vperm.slane %v3621, 0
        %v3625 = vmul.f32 %v3542, %v3623
        %v3626 = vmul.f32 %v3544, %v3623
        %v3627 = vmul.f32 %v3547, %v3623
        %v3628 = vmul.f32 %v3549, %v3623
        %v3629 = vmul.f32 %v3552, %v3623
        %v3630 = vmul.f32 %v3554, %v3623
        %v3631 = vmul.f32 %v3557, %v3623
        %v3632 = vmul.f32 %v3559, %v3623
        %v3633 = vmul.f32 %v3562, %v3623
        %v3634 = vmul.f32 %v3564, %v3623
        %v3635 = vmul.f32 %v3567, %v3623
        %v3636 = vmul.f32 %v3569, %v3623
        %v3637 = vmul.f32 %v3572, %v3623
        %v3638 = vmul.f32 %v3574, %v3623
        %v3639 = vmul.f32 %v3577, %v3623
        %v3640 = vmul.f32 %v3579, %v3623
        %v3641 = vmul.f32 %v3582, %v3623
        %v3642 = vmul.f32 %v3584, %v3623
        %v3643 = vmul.f32 %v3587, %v3623
        %v3644 = vmul.f32 %v3589, %v3623
        %v3645 = vmul.f32 %v3592, %v3623
        %v3646 = vmul.f32 %v3594, %v3623
        %v3647 = vmul.f32 %v3597, %v3623
        %v3648 = vmul.f32 %v3599, %v3623
        %v3649 = vmul.f32 %v3602, %v3623
        %v3650 = vmul.f32 %v3604, %v3623
        %v3651 = vmul.f32 %v3607, %v3623
        %v3652 = vmul.f32 %v3609, %v3623
        %v3653 = vmul.f32 %v3612, %v3623
        %v3654 = vmul.f32 %v3614, %v3623
        %v3655 = vmul.f32 %v3617, %v3623
        %v3656 = vmul.f32 %v3619, %v3623
        %v3657 = vld [vmem:[%s3] sm:$0x1]
        %v3659 = vperm.slane %v3657, 0
        %v3661 = vadd.f32 %v3625, %v3659
        %v3662 = vadd.f32 %v3626, %v3659
        %v3663 = vadd.f32 %v3627, %v3659
        %v3664 = vadd.f32 %v3628, %v3659
        %v3665 = vadd.f32 %v3629, %v3659
        %v3666 = vadd.f32 %v3630, %v3659
        %v3667 = vadd.f32 %v3631, %v3659
        %v3668 = vadd.f32 %v3632, %v3659
        %v3669 = vadd.f32 %v3633, %v3659
        %v3670 = vadd.f32 %v3634, %v3659
        %v3671 = vadd.f32 %v3635, %v3659
        %v3672 = vadd.f32 %v3636, %v3659
        %v3673 = vadd.f32 %v3637, %v3659
        %v3674 = vadd.f32 %v3638, %v3659
        %v3675 = vadd.f32 %v3639, %v3659
        %v3676 = vadd.f32 %v3640, %v3659
        %v3677 = vadd.f32 %v3641, %v3659
        %v3678 = vadd.f32 %v3642, %v3659
        %v3679 = vadd.f32 %v3643, %v3659
        %v3680 = vadd.f32 %v3644, %v3659
        %v3681 = vadd.f32 %v3645, %v3659
        %v3682 = vadd.f32 %v3646, %v3659
        %v3683 = vadd.f32 %v3647, %v3659
        %v3684 = vadd.f32 %v3648, %v3659
        %v3685 = vadd.f32 %v3649, %v3659
        %v3686 = vadd.f32 %v3650, %v3659
        %v3687 = vadd.f32 %v3651, %v3659
        %v3688 = vadd.f32 %v3652, %v3659
        %v3689 = vadd.f32 %v3653, %v3659
        %v3690 = vadd.f32 %v3654, %v3659
        %v3691 = vadd.f32 %v3655, %v3659
        %v3692 = vadd.f32 %v3656, %v3659
        %v3693 = vmax.f32 %v3661, 0.0
        %v3694 = vmax.f32 %v3662, 0.0
        %v3695 = vmax.f32 %v3663, 0.0
        %v3696 = vmax.f32 %v3664, 0.0
        %v3697 = vmax.f32 %v3665, 0.0
        %v3698 = vmax.f32 %v3666, 0.0
        %v3699 = vmax.f32 %v3667, 0.0
        %v3700 = vmax.f32 %v3668, 0.0
        %v3701 = vmax.f32 %v3669, 0.0
        %v3702 = vmax.f32 %v3670, 0.0
        %v3703 = vmax.f32 %v3671, 0.0
        %v3704 = vmax.f32 %v3672, 0.0
        %v3705 = vmax.f32 %v3673, 0.0
        %v3706 = vmax.f32 %v3674, 0.0
        %v3707 = vmax.f32 %v3675, 0.0
        %v3708 = vmax.f32 %v3676, 0.0
        %v3709 = vmax.f32 %v3677, 0.0
        %v3710 = vmax.f32 %v3678, 0.0
        %v3711 = vmax.f32 %v3679, 0.0
        %v3712 = vmax.f32 %v3680, 0.0
        %v3713 = vmax.f32 %v3681, 0.0
        %v3714 = vmax.f32 %v3682, 0.0
        %v3715 = vmax.f32 %v3683, 0.0
        %v3716 = vmax.f32 %v3684, 0.0
        %v3717 = vmax.f32 %v3685, 0.0
        %v3718 = vmax.f32 %v3686, 0.0
        %v3719 = vmax.f32 %v3687, 0.0
        %v3720 = vmax.f32 %v3688, 0.0
        %v3721 = vmax.f32 %v3689, 0.0
        %v3722 = vmax.f32 %v3690, 0.0
        %v3723 = vmax.f32 %v3691, 0.0
        %v3724 = vmax.f32 %v3692, 0.0
        %3725 = vst [vmem:[%s450 + $0x1] sm:$0xff] %v3693
        %3726 = vst [vmem:[%s450 + $0x9] sm:$0xff] %v3694
        %3727 = vst [vmem:[%s450 + $0x19] sm:$0xff] %v3695
        %3728 = vst [vmem:[%s450 + $0x21] sm:$0xff] %v3696
        %3729 = vst [vmem:[%s450 + $0x31] sm:$0xff] %v3697
        %3730 = vst [vmem:[%s450 + $0x39] sm:$0xff] %v3698
        %3731 = vst [vmem:[%s450 + $0x49] sm:$0xff] %v3699
        %3732 = vst [vmem:[%s450 + $0x51] sm:$0xff] %v3700
        %3733 = vst [vmem:[%s450 + $0x61] sm:$0xff] %v3701
        %3734 = vst [vmem:[%s450 + $0x69] sm:$0xff] %v3702
        %3735 = vst [vmem:[%s450 + $0x79] sm:$0xff] %v3703
        %3736 = vst [vmem:[%s450 + $0x81] sm:$0xff] %v3704
        %3737 = vst [vmem:[%s450 + $0x91] sm:$0xff] %v3705
        %3738 = vst [vmem:[%s450 + $0x99] sm:$0xff] %v3706
        %3739 = vst [vmem:[%s450 + $0xa9] sm:$0xff] %v3707
        %3740 = vst [vmem:[%s450 + $0xb1] sm:$0xff] %v3708
        %3741 = vst [vmem:[%s450 + $0xc1] sm:$0xff] %v3709
        %3742 = vst [vmem:[%s450 + $0xc9] sm:$0xff] %v3710
        %3743 = vst [vmem:[%s450 + $0xd9] sm:$0xff] %v3711
        %3744 = vst [vmem:[%s450 + $0xe1] sm:$0xff] %v3712
        %3745 = vst [vmem:[%s450 + $0xf1] sm:$0xff] %v3713
        %3746 = vst [vmem:[%s450 + $0xf9] sm:$0xff] %v3714
        %3747 = vst [vmem:[%s450 + $0x109] sm:$0xff] %v3715
        %3748 = vst [vmem:[%s450 + $0x111] sm:$0xff] %v3716
        %3749 = vst [vmem:[%s450 + $0x121] sm:$0xff] %v3717
        %3750 = vst [vmem:[%s450 + $0x129] sm:$0xff] %v3718
        %3751 = vst [vmem:[%s450 + $0x139] sm:$0xff] %v3719
        %3752 = vst [vmem:[%s450 + $0x141] sm:$0xff] %v3720
        %3753 = vst [vmem:[%s450 + $0x151] sm:$0xff] %v3721
        %3754 = vst [vmem:[%s450 + $0x159] sm:$0xff] %v3722
        %3755 = vst [vmem:[%s450 + $0x169] sm:$0xff] %v3723
        %3756 = vst [vmem:[%s450 + $0x171] sm:$0xff] %v3724
        %v3757 = vld [vmem:[#allocation2] sm:$0xff]
        %v3758 = vld [vmem:[#allocation2 + $0x8] sm:$0xff]
        %v3759 = vld [vmem:[#allocation2 + $0x18] sm:$0xff]
        %v3760 = vld [vmem:[#allocation2 + $0x20] sm:$0xff]
        %v3761 = vld [vmem:[#allocation2 + $0x30] sm:$0xff]
        %v3762 = vld [vmem:[#allocation2 + $0x38] sm:$0xff]
        %v3763 = vld [vmem:[#allocation2 + $0x48] sm:$0xff]
        %v3764 = vld [vmem:[#allocation2 + $0x50] sm:$0xff]
        %v3765 = vld [vmem:[#allocation2 + $0x60] sm:$0xff]
        %v3766 = vld [vmem:[#allocation2 + $0x68] sm:$0xff]
        %v3767 = vld [vmem:[#allocation2 + $0x78] sm:$0xff]
        %v3768 = vld [vmem:[#allocation2 + $0x80] sm:$0xff]
        %v3769 = vld [vmem:[#allocation2 + $0x90] sm:$0xff]
        %v3770 = vld [vmem:[#allocation2 + $0x98] sm:$0xff]
        %v3771 = vld [vmem:[#allocation2 + $0xa8] sm:$0xff]
        %v3772 = vld [vmem:[#allocation2 + $0xb0] sm:$0xff]
        %v3773 = vld [vmem:[#allocation2 + $0xc0] sm:$0xff]
        %v3774 = vld [vmem:[#allocation2 + $0xc8] sm:$0xff]
        %v3775 = vld [vmem:[#allocation2 + $0xd8] sm:$0xff]
        %v3776 = vld [vmem:[#allocation2 + $0xe0] sm:$0xff]
        %v3777 = vld [vmem:[#allocation2 + $0xf0] sm:$0xff]
        %v3778 = vld [vmem:[#allocation2 + $0xf8] sm:$0xff]
        %v3779 = vld [vmem:[#allocation2 + $0x108] sm:$0xff]
        %v3780 = vld [vmem:[#allocation2 + $0x110] sm:$0xff]
        %v3781 = vld [vmem:[#allocation2 + $0x120] sm:$0xff]
        %v3782 = vld [vmem:[#allocation2 + $0x128] sm:$0xff]
        %v3783 = vld [vmem:[#allocation2 + $0x138] sm:$0xff]
        %v3784 = vld [vmem:[#allocation2 + $0x140] sm:$0xff]
        %v3785 = vld [vmem:[#allocation2 + $0x150] sm:$0xff]
        %v3786 = vld [vmem:[#allocation2 + $0x158] sm:$0xff]
        %v3787 = vld [vmem:[#allocation2 + $0x168] sm:$0xff]
        %v3788 = vld [vmem:[#allocation2 + $0x170] sm:$0xff]
        %v3789 = vpack.c.bf16 %v3757, %v3757
        %v3790 = vpack.c.bf16 %v3758, %v3758
        %v3791 = vpack.c.bf16 %v3759, %v3759
        %v3792 = vpack.c.bf16 %v3760, %v3760
        %v3793 = vpack.c.bf16 %v3761, %v3761
        %v3794 = vpack.c.bf16 %v3762, %v3762
        %v3795 = vpack.c.bf16 %v3763, %v3763
        %v3796 = vpack.c.bf16 %v3764, %v3764
        %v3797 = vpack.c.bf16 %v3765, %v3765
        %v3798 = vpack.c.bf16 %v3766, %v3766
        %v3799 = vpack.c.bf16 %v3767, %v3767
        %v3800 = vpack.c.bf16 %v3768, %v3768
        %v3801 = vpack.c.bf16 %v3769, %v3769
        %v3802 = vpack.c.bf16 %v3770, %v3770
        %v3803 = vpack.c.bf16 %v3771, %v3771
        %v3804 = vpack.c.bf16 %v3772, %v3772
        %v3805 = vpack.c.bf16 %v3773, %v3773
        %v3806 = vpack.c.bf16 %v3774, %v3774
        %v3807 = vpack.c.bf16 %v3775, %v3775
        %v3808 = vpack.c.bf16 %v3776, %v3776
        %v3809 = vpack.c.bf16 %v3777, %v3777
        %v3810 = vpack.c.bf16 %v3778, %v3778
        %v3811 = vpack.c.bf16 %v3779, %v3779
        %v3812 = vpack.c.bf16 %v3780, %v3780
        %v3813 = vpack.c.bf16 %v3781, %v3781
        %v3814 = vpack.c.bf16 %v3782, %v3782
        %v3815 = vpack.c.bf16 %v3783, %v3783
        %v3816 = vpack.c.bf16 %v3784, %v3784
        %v3817 = vpack.c.bf16 %v3785, %v3785
        %v3818 = vpack.c.bf16 %v3786, %v3786
        %v3819 = vpack.c.bf16 %v3787, %v3787
        %v3820 = vpack.c.bf16 %v3788, %v3788
        %3821 = vst [vmem:[#allocation3] sm:$0xf] %v3789
        %3822 = vst [vmem:[#allocation3 + $0x24] sm:$0xf] %v3790
        %3823 = vst [vmem:[#allocation3 + $0x48] sm:$0xf] %v3791
        %3824 = vst [vmem:[#allocation3 + $0x6c] sm:$0xf] %v3792
        %3825 = vst [vmem:[#allocation3 + $0x90] sm:$0xf] %v3793
        %3826 = vst [vmem:[#allocation3 + $0xb4] sm:$0xf] %v3794
        %3827 = vst [vmem:[#allocation3 + $0xd8] sm:$0xf] %v3795
        %3828 = vst [vmem:[#allocation3 + $0xfc] sm:$0xf] %v3796
        %3829 = vst [vmem:[#allocation3 + $0x120] sm:$0xf] %v3797
        %3830 = vst [vmem:[#allocation3 + $0x144] sm:$0xf] %v3798
        %3831 = vst [vmem:[#allocation3 + $0x168] sm:$0xf] %v3799
        %3832 = vst [vmem:[#allocation3 + $0x18c] sm:$0xf] %v3800
        %3833 = vst [vmem:[#allocation3 + $0x1b0] sm:$0xf] %v3801
        %3834 = vst [vmem:[#allocation3 + $0x1d4] sm:$0xf] %v3802
        %3835 = vst [vmem:[#allocation3 + $0x1f8] sm:$0xf] %v3803
        %3836 = vst [vmem:[#allocation3 + $0x21c] sm:$0xf] %v3804
        %3837 = vst [vmem:[#allocation3 + $0x240] sm:$0xf] %v3805
        %3838 = vst [vmem:[#allocation3 + $0x264] sm:$0xf] %v3806
        %3839 = vst [vmem:[#allocation3 + $0x288] sm:$0xf] %v3807
        %3840 = vst [vmem:[#allocation3 + $0x2ac] sm:$0xf] %v3808
        %3841 = vst [vmem:[#allocation3 + $0x2d0] sm:$0xf] %v3809
        %3842 = vst [vmem:[#allocation3 + $0x2f4] sm:$0xf] %v3810
        %3843 = vst [vmem:[#allocation3 + $0x318] sm:$0xf] %v3811
        %3844 = vst [vmem:[#allocation3 + $0x33c] sm:$0xf] %v3812
        %3845 = vst [vmem:[#allocation3 + $0x360] sm:$0xf] %v3813
        %3846 = vst [vmem:[#allocation3 + $0x384] sm:$0xf] %v3814
        %3847 = vst [vmem:[#allocation3 + $0x3a8] sm:$0xf] %v3815
        %3848 = vst [vmem:[#allocation3 + $0x3cc] sm:$0xf] %v3816
        %3849 = vst [vmem:[#allocation3 + $0x3f0] sm:$0xf] %v3817
        %3850 = vst [vmem:[#allocation3 + $0x414] sm:$0xf] %v3818
        %3851 = vst [vmem:[#allocation3 + $0x438] sm:$0xf] %v3819
        %3852 = vst [vmem:[#allocation3 + $0x45c] sm:$0xf] %v3820
        %v3853 = vld [vmem:[#allocation2 + $0x1] sm:$0xff]
        %v3854 = vld [vmem:[#allocation2 + $0x9] sm:$0xff]
        %v3855 = vld [vmem:[#allocation2 + $0x19] sm:$0xff]
        %v3856 = vld [vmem:[#allocation2 + $0x21] sm:$0xff]
        %v3857 = vld [vmem:[#allocation2 + $0x31] sm:$0xff]
        %v3858 = vld [vmem:[#allocation2 + $0x39] sm:$0xff]
        %v3859 = vld [vmem:[#allocation2 + $0x49] sm:$0xff]
        %v3860 = vld [vmem:[#allocation2 + $0x51] sm:$0xff]
        %v3861 = vld [vmem:[#allocation2 + $0x61] sm:$0xff]
        %v3862 = vld [vmem:[#allocation2 + $0x69] sm:$0xff]
        %v3863 = vld [vmem:[#allocation2 + $0x79] sm:$0xff]
        %v3864 = vld [vmem:[#allocation2 + $0x81] sm:$0xff]
        %v3865 = vld [vmem:[#allocation2 + $0x91] sm:$0xff]
        %v3866 = vld [vmem:[#allocation2 + $0x99] sm:$0xff]
        %v3867 = vld [vmem:[#allocation2 + $0xa9] sm:$0xff]
        %v3868 = vld [vmem:[#allocation2 + $0xb1] sm:$0xff]
        %v3869 = vld [vmem:[#allocation2 + $0xc1] sm:$0xff]
        %v3870 = vld [vmem:[#allocation2 + $0xc9] sm:$0xff]
        %v3871 = vld [vmem:[#allocation2 + $0xd9] sm:$0xff]
        %v3872 = vld [vmem:[#allocation2 + $0xe1] sm:$0xff]
        %v3873 = vld [vmem:[#allocation2 + $0xf1] sm:$0xff]
        %v3874 = vld [vmem:[#allocation2 + $0xf9] sm:$0xff]
        %v3875 = vld [vmem:[#allocation2 + $0x109] sm:$0xff]
        %v3876 = vld [vmem:[#allocation2 + $0x111] sm:$0xff]
        %v3877 = vld [vmem:[#allocation2 + $0x121] sm:$0xff]
        %v3878 = vld [vmem:[#allocation2 + $0x129] sm:$0xff]
        %v3879 = vld [vmem:[#allocation2 + $0x139] sm:$0xff]
        %v3880 = vld [vmem:[#allocation2 + $0x141] sm:$0xff]
        %v3881 = vld [vmem:[#allocation2 + $0x151] sm:$0xff]
        %v3882 = vld [vmem:[#allocation2 + $0x159] sm:$0xff]
        %v3883 = vld [vmem:[#allocation2 + $0x169] sm:$0xff]
        %v3884 = vld [vmem:[#allocation2 + $0x171] sm:$0xff]
        %v3885 = vpack.c.bf16 %v3853, %v3853
        %v3886 = vpack.c.bf16 %v3854, %v3854
        %v3887 = vpack.c.bf16 %v3855, %v3855
        %v3888 = vpack.c.bf16 %v3856, %v3856
        %v3889 = vpack.c.bf16 %v3857, %v3857
        %v3890 = vpack.c.bf16 %v3858, %v3858
        %v3891 = vpack.c.bf16 %v3859, %v3859
        %v3892 = vpack.c.bf16 %v3860, %v3860
        %v3893 = vpack.c.bf16 %v3861, %v3861
        %v3894 = vpack.c.bf16 %v3862, %v3862
        %v3895 = vpack.c.bf16 %v3863, %v3863
        %v3896 = vpack.c.bf16 %v3864, %v3864
        %v3897 = vpack.c.bf16 %v3865, %v3865
        %v3898 = vpack.c.bf16 %v3866, %v3866
        %v3899 = vpack.c.bf16 %v3867, %v3867
        %v3900 = vpack.c.bf16 %v3868, %v3868
        %v3901 = vpack.c.bf16 %v3869, %v3869
        %v3902 = vpack.c.bf16 %v3870, %v3870
        %v3903 = vpack.c.bf16 %v3871, %v3871
        %v3904 = vpack.c.bf16 %v3872, %v3872
        %v3905 = vpack.c.bf16 %v3873, %v3873
        %v3906 = vpack.c.bf16 %v3874, %v3874
        %v3907 = vpack.c.bf16 %v3875, %v3875
        %v3908 = vpack.c.bf16 %v3876, %v3876
        %v3909 = vpack.c.bf16 %v3877, %v3877
        %v3910 = vpack.c.bf16 %v3878, %v3878
        %v3911 = vpack.c.bf16 %v3879, %v3879
        %v3912 = vpack.c.bf16 %v3880, %v3880
        %v3913 = vpack.c.bf16 %v3881, %v3881
        %v3914 = vpack.c.bf16 %v3882, %v3882
        %v3915 = vpack.c.bf16 %v3883, %v3883
        %v3916 = vpack.c.bf16 %v3884, %v3884
        %3917 = vst [vmem:[#allocation3 + $0x4] sm:$0xf] %v3885
        %3918 = vst [vmem:[#allocation3 + $0x28] sm:$0xf] %v3886
        %3919 = vst [vmem:[#allocation3 + $0x4c] sm:$0xf] %v3887
        %3920 = vst [vmem:[#allocation3 + $0x70] sm:$0xf] %v3888
        %3921 = vst [vmem:[#allocation3 + $0x94] sm:$0xf] %v3889
        %3922 = vst [vmem:[#allocation3 + $0xb8] sm:$0xf] %v3890
        %3923 = vst [vmem:[#allocation3 + $0xdc] sm:$0xf] %v3891
        %3924 = vst [vmem:[#allocation3 + $0x100] sm:$0xf] %v3892
        %3925 = vst [vmem:[#allocation3 + $0x124] sm:$0xf] %v3893
        %3926 = vst [vmem:[#allocation3 + $0x148] sm:$0xf] %v3894
        %3927 = vst [vmem:[#allocation3 + $0x16c] sm:$0xf] %v3895
        %3928 = vst [vmem:[#allocation3 + $0x190] sm:$0xf] %v3896
        %3929 = vst [vmem:[#allocation3 + $0x1b4] sm:$0xf] %v3897
        %3930 = vst [vmem:[#allocation3 + $0x1d8] sm:$0xf] %v3898
        %3931 = vst [vmem:[#allocation3 + $0x1fc] sm:$0xf] %v3899
        %3932 = vst [vmem:[#allocation3 + $0x220] sm:$0xf] %v3900
        %3933 = vst [vmem:[#allocation3 + $0x244] sm:$0xf] %v3901
        %3934 = vst [vmem:[#allocation3 + $0x268] sm:$0xf] %v3902
        %3935 = vst [vmem:[#allocation3 + $0x28c] sm:$0xf] %v3903
        %3936 = vst [vmem:[#allocation3 + $0x2b0] sm:$0xf] %v3904
        %3937 = vst [vmem:[#allocation3 + $0x2d4] sm:$0xf] %v3905
        %3938 = vst [vmem:[#allocation3 + $0x2f8] sm:$0xf] %v3906
        %3939 = vst [vmem:[#allocation3 + $0x31c] sm:$0xf] %v3907
        %3940 = vst [vmem:[#allocation3 + $0x340] sm:$0xf] %v3908
        %3941 = vst [vmem:[#allocation3 + $0x364] sm:$0xf] %v3909
        %3942 = vst [vmem:[#allocation3 + $0x388] sm:$0xf] %v3910
        %3943 = vst [vmem:[#allocation3 + $0x3ac] sm:$0xf] %v3911
        %3944 = vst [vmem:[#allocation3 + $0x3d0] sm:$0xf] %v3912
        %3945 = vst [vmem:[#allocation3 + $0x3f4] sm:$0xf] %v3913
        %3946 = vst [vmem:[#allocation3 + $0x418] sm:$0xf] %v3914
        %3947 = vst [vmem:[#allocation3 + $0x43c] sm:$0xf] %v3915
        %3948 = vst [vmem:[#allocation3 + $0x460] sm:$0xf] %v3916
        %v3949 = vld [vmem:[#allocation2 + $0x2] sm:$0xff]
        %v3950 = vld [vmem:[#allocation2 + $0xa] sm:$0xff]
        %v3951 = vld [vmem:[#allocation2 + $0x1a] sm:$0xff]
        %v3952 = vld [vmem:[#allocation2 + $0x22] sm:$0xff]
        %v3953 = vld [vmem:[#allocation2 + $0x32] sm:$0xff]
        %v3954 = vld [vmem:[#allocation2 + $0x3a] sm:$0xff]
        %v3955 = vld [vmem:[#allocation2 + $0x4a] sm:$0xff]
        %v3956 = vld [vmem:[#allocation2 + $0x52] sm:$0xff]
        %v3957 = vld [vmem:[#allocation2 + $0x62] sm:$0xff]
        %v3958 = vld [vmem:[#allocation2 + $0x6a] sm:$0xff]
        %v3959 = vld [vmem:[#allocation2 + $0x7a] sm:$0xff]
        %v3960 = vld [vmem:[#allocation2 + $0x82] sm:$0xff]
        %v3961 = vld [vmem:[#allocation2 + $0x92] sm:$0xff]
        %v3962 = vld [vmem:[#allocation2 + $0x9a] sm:$0xff]
        %v3963 = vld [vmem:[#allocation2 + $0xaa] sm:$0xff]
        %v3964 = vld [vmem:[#allocation2 + $0xb2] sm:$0xff]
        %v3965 = vld [vmem:[#allocation2 + $0xc2] sm:$0xff]
        %v3966 = vld [vmem:[#allocation2 + $0xca] sm:$0xff]
        %v3967 = vld [vmem:[#allocation2 + $0xda] sm:$0xff]
        %v3968 = vld [vmem:[#allocation2 + $0xe2] sm:$0xff]
        %v3969 = vld [vmem:[#allocation2 + $0xf2] sm:$0xff]
        %v3970 = vld [vmem:[#allocation2 + $0xfa] sm:$0xff]
        %v3971 = vld [vmem:[#allocation2 + $0x10a] sm:$0xff]
        %v3972 = vld [vmem:[#allocation2 + $0x112] sm:$0xff]
        %v3973 = vld [vmem:[#allocation2 + $0x122] sm:$0xff]
        %v3974 = vld [vmem:[#allocation2 + $0x12a] sm:$0xff]
        %v3975 = vld [vmem:[#allocation2 + $0x13a] sm:$0xff]
        %v3976 = vld [vmem:[#allocation2 + $0x142] sm:$0xff]
        %v3977 = vld [vmem:[#allocation2 + $0x152] sm:$0xff]
        %v3978 = vld [vmem:[#allocation2 + $0x15a] sm:$0xff]
        %v3979 = vld [vmem:[#allocation2 + $0x16a] sm:$0xff]
        %v3980 = vld [vmem:[#allocation2 + $0x172] sm:$0xff]
        %v3981 = vpack.c.bf16 %v3949, %v3949
        %v3982 = vpack.c.bf16 %v3950, %v3950
        %v3983 = vpack.c.bf16 %v3951, %v3951
        %v3984 = vpack.c.bf16 %v3952, %v3952
        %v3985 = vpack.c.bf16 %v3953, %v3953
        %v3986 = vpack.c.bf16 %v3954, %v3954
        %v3987 = vpack.c.bf16 %v3955, %v3955
        %v3988 = vpack.c.bf16 %v3956, %v3956
        %v3989 = vpack.c.bf16 %v3957, %v3957
        %v3990 = vpack.c.bf16 %v3958, %v3958
        %v3991 = vpack.c.bf16 %v3959, %v3959
        %v3992 = vpack.c.bf16 %v3960, %v3960
        %v3993 = vpack.c.bf16 %v3961, %v3961
        %v3994 = vpack.c.bf16 %v3962, %v3962
        %v3995 = vpack.c.bf16 %v3963, %v3963
        %v3996 = vpack.c.bf16 %v3964, %v3964
        %v3997 = vpack.c.bf16 %v3965, %v3965
        %v3998 = vpack.c.bf16 %v3966, %v3966
        %v3999 = vpack.c.bf16 %v3967, %v3967
        %v4000 = vpack.c.bf16 %v3968, %v3968
        %v4001 = vpack.c.bf16 %v3969, %v3969
        %v4002 = vpack.c.bf16 %v3970, %v3970
        %v4003 = vpack.c.bf16 %v3971, %v3971
        %v4004 = vpack.c.bf16 %v3972, %v3972
        %v4005 = vpack.c.bf16 %v3973, %v3973
        %v4006 = vpack.c.bf16 %v3974, %v3974
        %v4007 = vpack.c.bf16 %v3975, %v3975
        %v4008 = vpack.c.bf16 %v3976, %v3976
        %v4009 = vpack.c.bf16 %v3977, %v3977
        %v4010 = vpack.c.bf16 %v3978, %v3978
        %v4011 = vpack.c.bf16 %v3979, %v3979
        %v4012 = vpack.c.bf16 %v3980, %v3980
        %4013 = vst [vmem:[#allocation3 + $0x8] sm:$0xf] %v3981
        %4014 = vst [vmem:[#allocation3 + $0x2c] sm:$0xf] %v3982
        %4015 = vst [vmem:[#allocation3 + $0x50] sm:$0xf] %v3983
        %4016 = vst [vmem:[#allocation3 + $0x74] sm:$0xf] %v3984
        %4017 = vst [vmem:[#allocation3 + $0x98] sm:$0xf] %v3985
        %4018 = vst [vmem:[#allocation3 + $0xbc] sm:$0xf] %v3986
        %4019 = vst [vmem:[#allocation3 + $0xe0] sm:$0xf] %v3987
        %4020 = vst [vmem:[#allocation3 + $0x104] sm:$0xf] %v3988
        %4021 = vst [vmem:[#allocation3 + $0x128] sm:$0xf] %v3989
        %4022 = vst [vmem:[#allocation3 + $0x14c] sm:$0xf] %v3990
        %4023 = vst [vmem:[#allocation3 + $0x170] sm:$0xf] %v3991
        %4024 = vst [vmem:[#allocation3 + $0x194] sm:$0xf] %v3992
        %4025 = vst [vmem:[#allocation3 + $0x1b8] sm:$0xf] %v3993
        %4026 = vst [vmem:[#allocation3 + $0x1dc] sm:$0xf] %v3994
        %4027 = vst [vmem:[#allocation3 + $0x200] sm:$0xf] %v3995
        %4028 = vst [vmem:[#allocation3 + $0x224] sm:$0xf] %v3996
        %4029 = vst [vmem:[#allocation3 + $0x248] sm:$0xf] %v3997
        %4030 = vst [vmem:[#allocation3 + $0x26c] sm:$0xf] %v3998
        %4031 = vst [vmem:[#allocation3 + $0x290] sm:$0xf] %v3999
        %4032 = vst [vmem:[#allocation3 + $0x2b4] sm:$0xf] %v4000
        %4033 = vst [vmem:[#allocation3 + $0x2d8] sm:$0xf] %v4001
        %4034 = vst [vmem:[#allocation3 + $0x2fc] sm:$0xf] %v4002
        %4035 = vst [vmem:[#allocation3 + $0x320] sm:$0xf] %v4003
        %4036 = vst [vmem:[#allocation3 + $0x344] sm:$0xf] %v4004
        %4037 = vst [vmem:[#allocation3 + $0x368] sm:$0xf] %v4005
        %4038 = vst [vmem:[#allocation3 + $0x38c] sm:$0xf] %v4006
        %4039 = vst [vmem:[#allocation3 + $0x3b0] sm:$0xf] %v4007
        %4040 = vst [vmem:[#allocation3 + $0x3d4] sm:$0xf] %v4008
        %4041 = vst [vmem:[#allocation3 + $0x3f8] sm:$0xf] %v4009
        %4042 = vst [vmem:[#allocation3 + $0x41c] sm:$0xf] %v4010
        %4043 = vst [vmem:[#allocation3 + $0x440] sm:$0xf] %v4011
        %4044 = vst [vmem:[#allocation3 + $0x464] sm:$0xf] %v4012
        %v4045 = vld [vmem:[%s450] sm:$0xff]
        %v4046 = vld [vmem:[%s450 + $0x8] sm:$0xff]
        %v4047 = vld [vmem:[%s450 + $0x18] sm:$0xff]
        %v4048 = vld [vmem:[%s450 + $0x20] sm:$0xff]
        %v4049 = vld [vmem:[%s450 + $0x30] sm:$0xff]
        %v4050 = vld [vmem:[%s450 + $0x38] sm:$0xff]
        %v4051 = vld [vmem:[%s450 + $0x48] sm:$0xff]
        %v4052 = vld [vmem:[%s450 + $0x50] sm:$0xff]
        %v4053 = vld [vmem:[%s450 + $0x60] sm:$0xff]
        %v4054 = vld [vmem:[%s450 + $0x68] sm:$0xff]
        %v4055 = vld [vmem:[%s450 + $0x78] sm:$0xff]
        %v4056 = vld [vmem:[%s450 + $0x80] sm:$0xff]
        %v4057 = vld [vmem:[%s450 + $0x90] sm:$0xff]
        %v4058 = vld [vmem:[%s450 + $0x98] sm:$0xff]
        %v4059 = vld [vmem:[%s450 + $0xa8] sm:$0xff]
        %v4060 = vld [vmem:[%s450 + $0xb0] sm:$0xff]
        %v4061 = vld [vmem:[%s450 + $0xc0] sm:$0xff]
        %v4062 = vld [vmem:[%s450 + $0xc8] sm:$0xff]
        %v4063 = vld [vmem:[%s450 + $0xd8] sm:$0xff]
        %v4064 = vld [vmem:[%s450 + $0xe0] sm:$0xff]
        %v4065 = vld [vmem:[%s450 + $0xf0] sm:$0xff]
        %v4066 = vld [vmem:[%s450 + $0xf8] sm:$0xff]
        %v4067 = vld [vmem:[%s450 + $0x108] sm:$0xff]
        %v4068 = vld [vmem:[%s450 + $0x110] sm:$0xff]
        %v4069 = vld [vmem:[%s450 + $0x120] sm:$0xff]
        %v4070 = vld [vmem:[%s450 + $0x128] sm:$0xff]
        %v4071 = vld [vmem:[%s450 + $0x138] sm:$0xff]
        %v4072 = vld [vmem:[%s450 + $0x140] sm:$0xff]
        %v4073 = vld [vmem:[%s450 + $0x150] sm:$0xff]
        %v4074 = vld [vmem:[%s450 + $0x158] sm:$0xff]
        %v4075 = vld [vmem:[%s450 + $0x168] sm:$0xff]
        %v4076 = vld [vmem:[%s450 + $0x170] sm:$0xff]
        %v4077 = vpack.c.bf16 %v4045, %v4045
        %v4078 = vpack.c.bf16 %v4046, %v4046
        %v4079 = vpack.c.bf16 %v4047, %v4047
        %v4080 = vpack.c.bf16 %v4048, %v4048
        %v4081 = vpack.c.bf16 %v4049, %v4049
        %v4082 = vpack.c.bf16 %v4050, %v4050
        %v4083 = vpack.c.bf16 %v4051, %v4051
        %v4084 = vpack.c.bf16 %v4052, %v4052
        %v4085 = vpack.c.bf16 %v4053, %v4053
        %v4086 = vpack.c.bf16 %v4054, %v4054
        %v4087 = vpack.c.bf16 %v4055, %v4055
        %v4088 = vpack.c.bf16 %v4056, %v4056
        %v4089 = vpack.c.bf16 %v4057, %v4057
        %v4090 = vpack.c.bf16 %v4058, %v4058
        %v4091 = vpack.c.bf16 %v4059, %v4059
        %v4092 = vpack.c.bf16 %v4060, %v4060
        %v4093 = vpack.c.bf16 %v4061, %v4061
        %v4094 = vpack.c.bf16 %v4062, %v4062
        %v4095 = vpack.c.bf16 %v4063, %v4063
        %v4096 = vpack.c.bf16 %v4064, %v4064
        %v4097 = vpack.c.bf16 %v4065, %v4065
        %v4098 = vpack.c.bf16 %v4066, %v4066
        %v4099 = vpack.c.bf16 %v4067, %v4067
        %v4100 = vpack.c.bf16 %v4068, %v4068
        %v4101 = vpack.c.bf16 %v4069, %v4069
        %v4102 = vpack.c.bf16 %v4070, %v4070
        %v4103 = vpack.c.bf16 %v4071, %v4071
        %v4104 = vpack.c.bf16 %v4072, %v4072
        %v4105 = vpack.c.bf16 %v4073, %v4073
        %v4106 = vpack.c.bf16 %v4074, %v4074
        %v4107 = vpack.c.bf16 %v4075, %v4075
        %v4108 = vpack.c.bf16 %v4076, %v4076
        %4109 = vst [vmem:[#allocation3 + $0xc] sm:$0xf] %v4077
        %4110 = vst [vmem:[#allocation3 + $0x30] sm:$0xf] %v4078
        %4111 = vst [vmem:[#allocation3 + $0x54] sm:$0xf] %v4079
        %4112 = vst [vmem:[#allocation3 + $0x78] sm:$0xf] %v4080
        %4113 = vst [vmem:[#allocation3 + $0x9c] sm:$0xf] %v4081
        %4114 = vst [vmem:[#allocation3 + $0xc0] sm:$0xf] %v4082
        %4115 = vst [vmem:[#allocation3 + $0xe4] sm:$0xf] %v4083
        %4116 = vst [vmem:[#allocation3 + $0x108] sm:$0xf] %v4084
        %4117 = vst [vmem:[#allocation3 + $0x12c] sm:$0xf] %v4085
        %4118 = vst [vmem:[#allocation3 + $0x150] sm:$0xf] %v4086
        %4119 = vst [vmem:[#allocation3 + $0x174] sm:$0xf] %v4087
        %4120 = vst [vmem:[#allocation3 + $0x198] sm:$0xf] %v4088
        %4121 = vst [vmem:[#allocation3 + $0x1bc] sm:$0xf] %v4089
        %4122 = vst [vmem:[#allocation3 + $0x1e0] sm:$0xf] %v4090
        %4123 = vst [vmem:[#allocation3 + $0x204] sm:$0xf] %v4091
        %4124 = vst [vmem:[#allocation3 + $0x228] sm:$0xf] %v4092
        %4125 = vst [vmem:[#allocation3 + $0x24c] sm:$0xf] %v4093
        %4126 = vst [vmem:[#allocation3 + $0x270] sm:$0xf] %v4094
        %4127 = vst [vmem:[#allocation3 + $0x294] sm:$0xf] %v4095
        %4128 = vst [vmem:[#allocation3 + $0x2b8] sm:$0xf] %v4096
        %4129 = vst [vmem:[#allocation3 + $0x2dc] sm:$0xf] %v4097
        %4130 = vst [vmem:[#allocation3 + $0x300] sm:$0xf] %v4098
        %4131 = vst [vmem:[#allocation3 + $0x324] sm:$0xf] %v4099
        %4132 = vst [vmem:[#allocation3 + $0x348] sm:$0xf] %v4100
        %4133 = vst [vmem:[#allocation3 + $0x36c] sm:$0xf] %v4101
        %4134 = vst [vmem:[#allocation3 + $0x390] sm:$0xf] %v4102
        %4135 = vst [vmem:[#allocation3 + $0x3b4] sm:$0xf] %v4103
        %4136 = vst [vmem:[#allocation3 + $0x3d8] sm:$0xf] %v4104
        %4137 = vst [vmem:[#allocation3 + $0x3fc] sm:$0xf] %v4105
        %4138 = vst [vmem:[#allocation3 + $0x420] sm:$0xf] %v4106
        %4139 = vst [vmem:[#allocation3 + $0x444] sm:$0xf] %v4107
        %4140 = vst [vmem:[#allocation3 + $0x468] sm:$0xf] %v4108
        %v4141 = vld [vmem:[%s450 + $0x1] sm:$0xff]
        %v4142 = vld [vmem:[%s450 + $0x9] sm:$0xff]
        %v4143 = vld [vmem:[%s450 + $0x19] sm:$0xff]
        %v4144 = vld [vmem:[%s450 + $0x21] sm:$0xff]
        %v4145 = vld [vmem:[%s450 + $0x31] sm:$0xff]
        %v4146 = vld [vmem:[%s450 + $0x39] sm:$0xff]
        %v4147 = vld [vmem:[%s450 + $0x49] sm:$0xff]
        %v4148 = vld [vmem:[%s450 + $0x51] sm:$0xff]
        %v4149 = vld [vmem:[%s450 + $0x61] sm:$0xff]
        %v4150 = vld [vmem:[%s450 + $0x69] sm:$0xff]
        %v4151 = vld [vmem:[%s450 + $0x79] sm:$0xff]
        %v4152 = vld [vmem:[%s450 + $0x81] sm:$0xff]
        %v4153 = vld [vmem:[%s450 + $0x91] sm:$0xff]
        %v4154 = vld [vmem:[%s450 + $0x99] sm:$0xff]
        %v4155 = vld [vmem:[%s450 + $0xa9] sm:$0xff]
        %v4156 = vld [vmem:[%s450 + $0xb1] sm:$0xff]
        %v4157 = vld [vmem:[%s450 + $0xc1] sm:$0xff]
        %v4158 = vld [vmem:[%s450 + $0xc9] sm:$0xff]
        %v4159 = vld [vmem:[%s450 + $0xd9] sm:$0xff]
        %v4160 = vld [vmem:[%s450 + $0xe1] sm:$0xff]
        %v4161 = vld [vmem:[%s450 + $0xf1] sm:$0xff]
        %v4162 = vld [vmem:[%s450 + $0xf9] sm:$0xff]
        %v4163 = vld [vmem:[%s450 + $0x109] sm:$0xff]
        %v4164 = vld [vmem:[%s450 + $0x111] sm:$0xff]
        %v4165 = vld [vmem:[%s450 + $0x121] sm:$0xff]
        %v4166 = vld [vmem:[%s450 + $0x129] sm:$0xff]
        %v4167 = vld [vmem:[%s450 + $0x139] sm:$0xff]
        %v4168 = vld [vmem:[%s450 + $0x141] sm:$0xff]
        %v4169 = vld [vmem:[%s450 + $0x151] sm:$0xff]
        %v4170 = vld [vmem:[%s450 + $0x159] sm:$0xff]
        %v4171 = vld [vmem:[%s450 + $0x169] sm:$0xff]
        %v4172 = vld [vmem:[%s450 + $0x171] sm:$0xff]
        %v4173 = vpack.c.bf16 %v4141, %v4141
        %v4174 = vpack.c.bf16 %v4142, %v4142
        %v4175 = vpack.c.bf16 %v4143, %v4143
        %v4176 = vpack.c.bf16 %v4144, %v4144
        %v4177 = vpack.c.bf16 %v4145, %v4145
        %v4178 = vpack.c.bf16 %v4146, %v4146
        %v4179 = vpack.c.bf16 %v4147, %v4147
        %v4180 = vpack.c.bf16 %v4148, %v4148
        %v4181 = vpack.c.bf16 %v4149, %v4149
        %v4182 = vpack.c.bf16 %v4150, %v4150
        %v4183 = vpack.c.bf16 %v4151, %v4151
        %v4184 = vpack.c.bf16 %v4152, %v4152
        %v4185 = vpack.c.bf16 %v4153, %v4153
        %v4186 = vpack.c.bf16 %v4154, %v4154
        %v4187 = vpack.c.bf16 %v4155, %v4155
        %v4188 = vpack.c.bf16 %v4156, %v4156
        %v4189 = vpack.c.bf16 %v4157, %v4157
        %v4190 = vpack.c.bf16 %v4158, %v4158
        %v4191 = vpack.c.bf16 %v4159, %v4159
        %v4192 = vpack.c.bf16 %v4160, %v4160
        %v4193 = vpack.c.bf16 %v4161, %v4161
        %v4194 = vpack.c.bf16 %v4162, %v4162
        %v4195 = vpack.c.bf16 %v4163, %v4163
        %v4196 = vpack.c.bf16 %v4164, %v4164
        %v4197 = vpack.c.bf16 %v4165, %v4165
        %v4198 = vpack.c.bf16 %v4166, %v4166
        %v4199 = vpack.c.bf16 %v4167, %v4167
        %v4200 = vpack.c.bf16 %v4168, %v4168
        %v4201 = vpack.c.bf16 %v4169, %v4169
        %v4202 = vpack.c.bf16 %v4170, %v4170
        %v4203 = vpack.c.bf16 %v4171, %v4171
        %v4204 = vpack.c.bf16 %v4172, %v4172
        %4205 = vst [vmem:[#allocation3 + $0x10] sm:$0xf] %v4173
        %4206 = vst [vmem:[#allocation3 + $0x34] sm:$0xf] %v4174
        %4207 = vst [vmem:[#allocation3 + $0x58] sm:$0xf] %v4175
        %4208 = vst [vmem:[#allocation3 + $0x7c] sm:$0xf] %v4176
        %4209 = vst [vmem:[#allocation3 + $0xa0] sm:$0xf] %v4177
        %4210 = vst [vmem:[#allocation3 + $0xc4] sm:$0xf] %v4178
        %4211 = vst [vmem:[#allocation3 + $0xe8] sm:$0xf] %v4179
        %4212 = vst [vmem:[#allocation3 + $0x10c] sm:$0xf] %v4180
        %4213 = vst [vmem:[#allocation3 + $0x130] sm:$0xf] %v4181
        %4214 = vst [vmem:[#allocation3 + $0x154] sm:$0xf] %v4182
        %4215 = vst [vmem:[#allocation3 + $0x178] sm:$0xf] %v4183
        %4216 = vst [vmem:[#allocation3 + $0x19c] sm:$0xf] %v4184
        %4217 = vst [vmem:[#allocation3 + $0x1c0] sm:$0xf] %v4185
        %4218 = vst [vmem:[#allocation3 + $0x1e4] sm:$0xf] %v4186
        %4219 = vst [vmem:[#allocation3 + $0x208] sm:$0xf] %v4187
        %4220 = vst [vmem:[#allocation3 + $0x22c] sm:$0xf] %v4188
        %4221 = vst [vmem:[#allocation3 + $0x250] sm:$0xf] %v4189
        %4222 = vst [vmem:[#allocation3 + $0x274] sm:$0xf] %v4190
        %4223 = vst [vmem:[#allocation3 + $0x298] sm:$0xf] %v4191
        %4224 = vst [vmem:[#allocation3 + $0x2bc] sm:$0xf] %v4192
        %4225 = vst [vmem:[#allocation3 + $0x2e0] sm:$0xf] %v4193
        %4226 = vst [vmem:[#allocation3 + $0x304] sm:$0xf] %v4194
        %4227 = vst [vmem:[#allocation3 + $0x328] sm:$0xf] %v4195
        %4228 = vst [vmem:[#allocation3 + $0x34c] sm:$0xf] %v4196
        %4229 = vst [vmem:[#allocation3 + $0x370] sm:$0xf] %v4197
        %4230 = vst [vmem:[#allocation3 + $0x394] sm:$0xf] %v4198
        %4231 = vst [vmem:[#allocation3 + $0x3b8] sm:$0xf] %v4199
        %4232 = vst [vmem:[#allocation3 + $0x3dc] sm:$0xf] %v4200
        %4233 = vst [vmem:[#allocation3 + $0x400] sm:$0xf] %v4201
        %4234 = vst [vmem:[#allocation3 + $0x424] sm:$0xf] %v4202
        %4235 = vst [vmem:[#allocation3 + $0x448] sm:$0xf] %v4203
        %4236 = vst [vmem:[#allocation3 + $0x46c] sm:$0xf] %v4204
        %v4237 = vld [vmem:[%s450 + $0x2] sm:$0xff]
        %v4238 = vld [vmem:[%s450 + $0xa] sm:$0xff]
        %v4239 = vld [vmem:[%s450 + $0x1a] sm:$0xff]
        %v4240 = vld [vmem:[%s450 + $0x22] sm:$0xff]
        %v4241 = vld [vmem:[%s450 + $0x32] sm:$0xff]
        %v4242 = vld [vmem:[%s450 + $0x3a] sm:$0xff]
        %v4243 = vld [vmem:[%s450 + $0x4a] sm:$0xff]
        %v4244 = vld [vmem:[%s450 + $0x52] sm:$0xff]
        %v4245 = vld [vmem:[%s450 + $0x62] sm:$0xff]
        %v4246 = vld [vmem:[%s450 + $0x6a] sm:$0xff]
        %v4247 = vld [vmem:[%s450 + $0x7a] sm:$0xff]
        %v4248 = vld [vmem:[%s450 + $0x82] sm:$0xff]
        %v4249 = vld [vmem:[%s450 + $0x92] sm:$0xff]
        %v4250 = vld [vmem:[%s450 + $0x9a] sm:$0xff]
        %v4251 = vld [vmem:[%s450 + $0xaa] sm:$0xff]
        %v4252 = vld [vmem:[%s450 + $0xb2] sm:$0xff]
        %v4253 = vld [vmem:[%s450 + $0xc2] sm:$0xff]
        %v4254 = vld [vmem:[%s450 + $0xca] sm:$0xff]
        %v4255 = vld [vmem:[%s450 + $0xda] sm:$0xff]
        %v4256 = vld [vmem:[%s450 + $0xe2] sm:$0xff]
        %v4257 = vld [vmem:[%s450 + $0xf2] sm:$0xff]
        %v4258 = vld [vmem:[%s450 + $0xfa] sm:$0xff]
        %v4259 = vld [vmem:[%s450 + $0x10a] sm:$0xff]
        %v4260 = vld [vmem:[%s450 + $0x112] sm:$0xff]
        %v4261 = vld [vmem:[%s450 + $0x122] sm:$0xff]
        %v4262 = vld [vmem:[%s450 + $0x12a] sm:$0xff]
        %v4263 = vld [vmem:[%s450 + $0x13a] sm:$0xff]
        %v4264 = vld [vmem:[%s450 + $0x142] sm:$0xff]
        %v4265 = vld [vmem:[%s450 + $0x152] sm:$0xff]
        %v4266 = vld [vmem:[%s450 + $0x15a] sm:$0xff]
        %v4267 = vld [vmem:[%s450 + $0x16a] sm:$0xff]
        %v4268 = vld [vmem:[%s450 + $0x172] sm:$0xff]
        %v4269 = vpack.c.bf16 %v4237, %v4237
        %v4270 = vpack.c.bf16 %v4238, %v4238
        %v4271 = vpack.c.bf16 %v4239, %v4239
        %v4272 = vpack.c.bf16 %v4240, %v4240
        %v4273 = vpack.c.bf16 %v4241, %v4241
        %v4274 = vpack.c.bf16 %v4242, %v4242
        %v4275 = vpack.c.bf16 %v4243, %v4243
        %v4276 = vpack.c.bf16 %v4244, %v4244
        %v4277 = vpack.c.bf16 %v4245, %v4245
        %v4278 = vpack.c.bf16 %v4246, %v4246
        %v4279 = vpack.c.bf16 %v4247, %v4247
        %v4280 = vpack.c.bf16 %v4248, %v4248
        %v4281 = vpack.c.bf16 %v4249, %v4249
        %v4282 = vpack.c.bf16 %v4250, %v4250
        %v4283 = vpack.c.bf16 %v4251, %v4251
        %v4284 = vpack.c.bf16 %v4252, %v4252
        %v4285 = vpack.c.bf16 %v4253, %v4253
        %v4286 = vpack.c.bf16 %v4254, %v4254
        %v4287 = vpack.c.bf16 %v4255, %v4255
        %v4288 = vpack.c.bf16 %v4256, %v4256
        %v4289 = vpack.c.bf16 %v4257, %v4257
        %v4290 = vpack.c.bf16 %v4258, %v4258
        %v4291 = vpack.c.bf16 %v4259, %v4259
        %v4292 = vpack.c.bf16 %v4260, %v4260
        %v4293 = vpack.c.bf16 %v4261, %v4261
        %v4294 = vpack.c.bf16 %v4262, %v4262
        %v4295 = vpack.c.bf16 %v4263, %v4263
        %v4296 = vpack.c.bf16 %v4264, %v4264
        %v4297 = vpack.c.bf16 %v4265, %v4265
        %v4298 = vpack.c.bf16 %v4266, %v4266
        %v4299 = vpack.c.bf16 %v4267, %v4267
        %v4300 = vpack.c.bf16 %v4268, %v4268
        %4301 = vst [vmem:[#allocation3 + $0x14] sm:$0xf] %v4269
        %4302 = vst [vmem:[#allocation3 + $0x38] sm:$0xf] %v4270
        %4303 = vst [vmem:[#allocation3 + $0x5c] sm:$0xf] %v4271
        %4304 = vst [vmem:[#allocation3 + $0x80] sm:$0xf] %v4272
        %4305 = vst [vmem:[#allocation3 + $0xa4] sm:$0xf] %v4273
        %4306 = vst [vmem:[#allocation3 + $0xc8] sm:$0xf] %v4274
        %4307 = vst [vmem:[#allocation3 + $0xec] sm:$0xf] %v4275
        %4308 = vst [vmem:[#allocation3 + $0x110] sm:$0xf] %v4276
        %4309 = vst [vmem:[#allocation3 + $0x134] sm:$0xf] %v4277
        %4310 = vst [vmem:[#allocation3 + $0x158] sm:$0xf] %v4278
        %4311 = vst [vmem:[#allocation3 + $0x17c] sm:$0xf] %v4279
        %4312 = vst [vmem:[#allocation3 + $0x1a0] sm:$0xf] %v4280
        %4313 = vst [vmem:[#allocation3 + $0x1c4] sm:$0xf] %v4281
        %4314 = vst [vmem:[#allocation3 + $0x1e8] sm:$0xf] %v4282
        %4315 = vst [vmem:[#allocation3 + $0x20c] sm:$0xf] %v4283
        %4316 = vst [vmem:[#allocation3 + $0x230] sm:$0xf] %v4284
        %4317 = vst [vmem:[#allocation3 + $0x254] sm:$0xf] %v4285
        %4318 = vst [vmem:[#allocation3 + $0x278] sm:$0xf] %v4286
        %4319 = vst [vmem:[#allocation3 + $0x29c] sm:$0xf] %v4287
        %4320 = vst [vmem:[#allocation3 + $0x2c0] sm:$0xf] %v4288
        %4321 = vst [vmem:[#allocation3 + $0x2e4] sm:$0xf] %v4289
        %4322 = vst [vmem:[#allocation3 + $0x308] sm:$0xf] %v4290
        %4323 = vst [vmem:[#allocation3 + $0x32c] sm:$0xf] %v4291
        %4324 = vst [vmem:[#allocation3 + $0x350] sm:$0xf] %v4292
        %4325 = vst [vmem:[#allocation3 + $0x374] sm:$0xf] %v4293
        %4326 = vst [vmem:[#allocation3 + $0x398] sm:$0xf] %v4294
        %4327 = vst [vmem:[#allocation3 + $0x3bc] sm:$0xf] %v4295
        %4328 = vst [vmem:[#allocation3 + $0x3e0] sm:$0xf] %v4296
        %4329 = vst [vmem:[#allocation3 + $0x404] sm:$0xf] %v4297
        %4330 = vst [vmem:[#allocation3 + $0x428] sm:$0xf] %v4298
        %4331 = vst [vmem:[#allocation3 + $0x44c] sm:$0xf] %v4299
        %4332 = vst [vmem:[#allocation3 + $0x470] sm:$0xf] %v4300
        %v4333 = vld [vmem:[%s1059] sm:$0xff]
        %v4334 = vld [vmem:[%s1059 + $0x8] sm:$0xff]
        %v4335 = vld [vmem:[%s1059 + $0x18] sm:$0xff]
        %v4336 = vld [vmem:[%s1059 + $0x20] sm:$0xff]
        %v4337 = vld [vmem:[%s1059 + $0x30] sm:$0xff]
        %v4338 = vld [vmem:[%s1059 + $0x38] sm:$0xff]
        %v4339 = vld [vmem:[%s1059 + $0x48] sm:$0xff]
        %v4340 = vld [vmem:[%s1059 + $0x50] sm:$0xff]
        %v4341 = vld [vmem:[%s1059 + $0x60] sm:$0xff]
        %v4342 = vld [vmem:[%s1059 + $0x68] sm:$0xff]
        %v4343 = vld [vmem:[%s1059 + $0x78] sm:$0xff]
        %v4344 = vld [vmem:[%s1059 + $0x80] sm:$0xff]
        %v4345 = vld [vmem:[%s1059 + $0x90] sm:$0xff]
        %v4346 = vld [vmem:[%s1059 + $0x98] sm:$0xff]
        %v4347 = vld [vmem:[%s1059 + $0xa8] sm:$0xff]
        %v4348 = vld [vmem:[%s1059 + $0xb0] sm:$0xff]
        %v4349 = vld [vmem:[%s1059 + $0xc0] sm:$0xff]
        %v4350 = vld [vmem:[%s1059 + $0xc8] sm:$0xff]
        %v4351 = vld [vmem:[%s1059 + $0xd8] sm:$0xff]
        %v4352 = vld [vmem:[%s1059 + $0xe0] sm:$0xff]
        %v4353 = vld [vmem:[%s1059 + $0xf0] sm:$0xff]
        %v4354 = vld [vmem:[%s1059 + $0xf8] sm:$0xff]
        %v4355 = vld [vmem:[%s1059 + $0x108] sm:$0xff]
        %v4356 = vld [vmem:[%s1059 + $0x110] sm:$0xff]
        %v4357 = vld [vmem:[%s1059 + $0x120] sm:$0xff]
        %v4358 = vld [vmem:[%s1059 + $0x128] sm:$0xff]
        %v4359 = vld [vmem:[%s1059 + $0x138] sm:$0xff]
        %v4360 = vld [vmem:[%s1059 + $0x140] sm:$0xff]
        %v4361 = vld [vmem:[%s1059 + $0x150] sm:$0xff]
        %v4362 = vld [vmem:[%s1059 + $0x158] sm:$0xff]
        %v4363 = vld [vmem:[%s1059 + $0x168] sm:$0xff]
        %v4364 = vld [vmem:[%s1059 + $0x170] sm:$0xff]
        %v4365 = vpack.c.bf16 %v4333, %v4333
        %v4366 = vpack.c.bf16 %v4334, %v4334
        %v4367 = vpack.c.bf16 %v4335, %v4335
        %v4368 = vpack.c.bf16 %v4336, %v4336
        %v4369 = vpack.c.bf16 %v4337, %v4337
        %v4370 = vpack.c.bf16 %v4338, %v4338
        %v4371 = vpack.c.bf16 %v4339, %v4339
        %v4372 = vpack.c.bf16 %v4340, %v4340
        %v4373 = vpack.c.bf16 %v4341, %v4341
        %v4374 = vpack.c.bf16 %v4342, %v4342
        %v4375 = vpack.c.bf16 %v4343, %v4343
        %v4376 = vpack.c.bf16 %v4344, %v4344
        %v4377 = vpack.c.bf16 %v4345, %v4345
        %v4378 = vpack.c.bf16 %v4346, %v4346
        %v4379 = vpack.c.bf16 %v4347, %v4347
        %v4380 = vpack.c.bf16 %v4348, %v4348
        %v4381 = vpack.c.bf16 %v4349, %v4349
        %v4382 = vpack.c.bf16 %v4350, %v4350
        %v4383 = vpack.c.bf16 %v4351, %v4351
        %v4384 = vpack.c.bf16 %v4352, %v4352
        %v4385 = vpack.c.bf16 %v4353, %v4353
        %v4386 = vpack.c.bf16 %v4354, %v4354
        %v4387 = vpack.c.bf16 %v4355, %v4355
        %v4388 = vpack.c.bf16 %v4356, %v4356
        %v4389 = vpack.c.bf16 %v4357, %v4357
        %v4390 = vpack.c.bf16 %v4358, %v4358
        %v4391 = vpack.c.bf16 %v4359, %v4359
        %v4392 = vpack.c.bf16 %v4360, %v4360
        %v4393 = vpack.c.bf16 %v4361, %v4361
        %v4394 = vpack.c.bf16 %v4362, %v4362
        %v4395 = vpack.c.bf16 %v4363, %v4363
        %v4396 = vpack.c.bf16 %v4364, %v4364
        %4397 = vst [vmem:[#allocation3 + $0x18] sm:$0xf] %v4365
        %4398 = vst [vmem:[#allocation3 + $0x3c] sm:$0xf] %v4366
        %4399 = vst [vmem:[#allocation3 + $0x60] sm:$0xf] %v4367
        %4400 = vst [vmem:[#allocation3 + $0x84] sm:$0xf] %v4368
        %4401 = vst [vmem:[#allocation3 + $0xa8] sm:$0xf] %v4369
        %4402 = vst [vmem:[#allocation3 + $0xcc] sm:$0xf] %v4370
        %4403 = vst [vmem:[#allocation3 + $0xf0] sm:$0xf] %v4371
        %4404 = vst [vmem:[#allocation3 + $0x114] sm:$0xf] %v4372
        %4405 = vst [vmem:[#allocation3 + $0x138] sm:$0xf] %v4373
        %4406 = vst [vmem:[#allocation3 + $0x15c] sm:$0xf] %v4374
        %4407 = vst [vmem:[#allocation3 + $0x180] sm:$0xf] %v4375
        %4408 = vst [vmem:[#allocation3 + $0x1a4] sm:$0xf] %v4376
        %4409 = vst [vmem:[#allocation3 + $0x1c8] sm:$0xf] %v4377
        %4410 = vst [vmem:[#allocation3 + $0x1ec] sm:$0xf] %v4378
        %4411 = vst [vmem:[#allocation3 + $0x210] sm:$0xf] %v4379
        %4412 = vst [vmem:[#allocation3 + $0x234] sm:$0xf] %v4380
        %4413 = vst [vmem:[#allocation3 + $0x258] sm:$0xf] %v4381
        %4414 = vst [vmem:[#allocation3 + $0x27c] sm:$0xf] %v4382
        %4415 = vst [vmem:[#allocation3 + $0x2a0] sm:$0xf] %v4383
        %4416 = vst [vmem:[#allocation3 + $0x2c4] sm:$0xf] %v4384
        %4417 = vst [vmem:[#allocation3 + $0x2e8] sm:$0xf] %v4385
        %4418 = vst [vmem:[#allocation3 + $0x30c] sm:$0xf] %v4386
        %4419 = vst [vmem:[#allocation3 + $0x330] sm:$0xf] %v4387
        %4420 = vst [vmem:[#allocation3 + $0x354] sm:$0xf] %v4388
        %4421 = vst [vmem:[#allocation3 + $0x378] sm:$0xf] %v4389
        %4422 = vst [vmem:[#allocation3 + $0x39c] sm:$0xf] %v4390
        %4423 = vst [vmem:[#allocation3 + $0x3c0] sm:$0xf] %v4391
        %4424 = vst [vmem:[#allocation3 + $0x3e4] sm:$0xf] %v4392
        %4425 = vst [vmem:[#allocation3 + $0x408] sm:$0xf] %v4393
        %4426 = vst [vmem:[#allocation3 + $0x42c] sm:$0xf] %v4394
        %4427 = vst [vmem:[#allocation3 + $0x450] sm:$0xf] %v4395
        %4428 = vst [vmem:[#allocation3 + $0x474] sm:$0xf] %v4396
        %v4429 = vld [vmem:[%s1059 + $0x1] sm:$0xff]
        %v4430 = vld [vmem:[%s1059 + $0x9] sm:$0xff]
        %v4431 = vld [vmem:[%s1059 + $0x19] sm:$0xff]
        %v4432 = vld [vmem:[%s1059 + $0x21] sm:$0xff]
        %v4433 = vld [vmem:[%s1059 + $0x31] sm:$0xff]
        %v4434 = vld [vmem:[%s1059 + $0x39] sm:$0xff]
        %v4435 = vld [vmem:[%s1059 + $0x49] sm:$0xff]
        %v4436 = vld [vmem:[%s1059 + $0x51] sm:$0xff]
        %v4437 = vld [vmem:[%s1059 + $0x61] sm:$0xff]
        %v4438 = vld [vmem:[%s1059 + $0x69] sm:$0xff]
        %v4439 = vld [vmem:[%s1059 + $0x79] sm:$0xff]
        %v4440 = vld [vmem:[%s1059 + $0x81] sm:$0xff]
        %v4441 = vld [vmem:[%s1059 + $0x91] sm:$0xff]
        %v4442 = vld [vmem:[%s1059 + $0x99] sm:$0xff]
        %v4443 = vld [vmem:[%s1059 + $0xa9] sm:$0xff]
        %v4444 = vld [vmem:[%s1059 + $0xb1] sm:$0xff]
        %v4445 = vld [vmem:[%s1059 + $0xc1] sm:$0xff]
        %v4446 = vld [vmem:[%s1059 + $0xc9] sm:$0xff]
        %v4447 = vld [vmem:[%s1059 + $0xd9] sm:$0xff]
        %v4448 = vld [vmem:[%s1059 + $0xe1] sm:$0xff]
        %v4449 = vld [vmem:[%s1059 + $0xf1] sm:$0xff]
        %v4450 = vld [vmem:[%s1059 + $0xf9] sm:$0xff]
        %v4451 = vld [vmem:[%s1059 + $0x109] sm:$0xff]
        %v4452 = vld [vmem:[%s1059 + $0x111] sm:$0xff]
        %v4453 = vld [vmem:[%s1059 + $0x121] sm:$0xff]
        %v4454 = vld [vmem:[%s1059 + $0x129] sm:$0xff]
        %v4455 = vld [vmem:[%s1059 + $0x139] sm:$0xff]
        %v4456 = vld [vmem:[%s1059 + $0x141] sm:$0xff]
        %v4457 = vld [vmem:[%s1059 + $0x151] sm:$0xff]
        %v4458 = vld [vmem:[%s1059 + $0x159] sm:$0xff]
        %v4459 = vld [vmem:[%s1059 + $0x169] sm:$0xff]
        %v4460 = vld [vmem:[%s1059 + $0x171] sm:$0xff]
        %v4461 = vpack.c.bf16 %v4429, %v4429
        %v4462 = vpack.c.bf16 %v4430, %v4430
        %v4463 = vpack.c.bf16 %v4431, %v4431
        %v4464 = vpack.c.bf16 %v4432, %v4432
        %v4465 = vpack.c.bf16 %v4433, %v4433
        %v4466 = vpack.c.bf16 %v4434, %v4434
        %v4467 = vpack.c.bf16 %v4435, %v4435
        %v4468 = vpack.c.bf16 %v4436, %v4436
        %v4469 = vpack.c.bf16 %v4437, %v4437
        %v4470 = vpack.c.bf16 %v4438, %v4438
        %v4471 = vpack.c.bf16 %v4439, %v4439
        %v4472 = vpack.c.bf16 %v4440, %v4440
        %v4473 = vpack.c.bf16 %v4441, %v4441
        %v4474 = vpack.c.bf16 %v4442, %v4442
        %v4475 = vpack.c.bf16 %v4443, %v4443
        %v4476 = vpack.c.bf16 %v4444, %v4444
        %v4477 = vpack.c.bf16 %v4445, %v4445
        %v4478 = vpack.c.bf16 %v4446, %v4446
        %v4479 = vpack.c.bf16 %v4447, %v4447
        %v4480 = vpack.c.bf16 %v4448, %v4448
        %v4481 = vpack.c.bf16 %v4449, %v4449
        %v4482 = vpack.c.bf16 %v4450, %v4450
        %v4483 = vpack.c.bf16 %v4451, %v4451
        %v4484 = vpack.c.bf16 %v4452, %v4452
        %v4485 = vpack.c.bf16 %v4453, %v4453
        %v4486 = vpack.c.bf16 %v4454, %v4454
        %v4487 = vpack.c.bf16 %v4455, %v4455
        %v4488 = vpack.c.bf16 %v4456, %v4456
        %v4489 = vpack.c.bf16 %v4457, %v4457
        %v4490 = vpack.c.bf16 %v4458, %v4458
        %v4491 = vpack.c.bf16 %v4459, %v4459
        %v4492 = vpack.c.bf16 %v4460, %v4460
        %4493 = vst [vmem:[#allocation3 + $0x1c] sm:$0xf] %v4461
        %4494 = vst [vmem:[#allocation3 + $0x40] sm:$0xf] %v4462
        %4495 = vst [vmem:[#allocation3 + $0x64] sm:$0xf] %v4463
        %4496 = vst [vmem:[#allocation3 + $0x88] sm:$0xf] %v4464
        %4497 = vst [vmem:[#allocation3 + $0xac] sm:$0xf] %v4465
        %4498 = vst [vmem:[#allocation3 + $0xd0] sm:$0xf] %v4466
        %4499 = vst [vmem:[#allocation3 + $0xf4] sm:$0xf] %v4467
        %4500 = vst [vmem:[#allocation3 + $0x118] sm:$0xf] %v4468
        %4501 = vst [vmem:[#allocation3 + $0x13c] sm:$0xf] %v4469
        %4502 = vst [vmem:[#allocation3 + $0x160] sm:$0xf] %v4470
        %4503 = vst [vmem:[#allocation3 + $0x184] sm:$0xf] %v4471
        %4504 = vst [vmem:[#allocation3 + $0x1a8] sm:$0xf] %v4472
        %4505 = vst [vmem:[#allocation3 + $0x1cc] sm:$0xf] %v4473
        %4506 = vst [vmem:[#allocation3 + $0x1f0] sm:$0xf] %v4474
        %4507 = vst [vmem:[#allocation3 + $0x214] sm:$0xf] %v4475
        %4508 = vst [vmem:[#allocation3 + $0x238] sm:$0xf] %v4476
        %4509 = vst [vmem:[#allocation3 + $0x25c] sm:$0xf] %v4477
        %4510 = vst [vmem:[#allocation3 + $0x280] sm:$0xf] %v4478
        %4511 = vst [vmem:[#allocation3 + $0x2a4] sm:$0xf] %v4479
        %4512 = vst [vmem:[#allocation3 + $0x2c8] sm:$0xf] %v4480
        %4513 = vst [vmem:[#allocation3 + $0x2ec] sm:$0xf] %v4481
        %4514 = vst [vmem:[#allocation3 + $0x310] sm:$0xf] %v4482
        %4515 = vst [vmem:[#allocation3 + $0x334] sm:$0xf] %v4483
        %4516 = vst [vmem:[#allocation3 + $0x358] sm:$0xf] %v4484
        %4517 = vst [vmem:[#allocation3 + $0x37c] sm:$0xf] %v4485
        %4518 = vst [vmem:[#allocation3 + $0x3a0] sm:$0xf] %v4486
        %4519 = vst [vmem:[#allocation3 + $0x3c4] sm:$0xf] %v4487
        %4520 = vst [vmem:[#allocation3 + $0x3e8] sm:$0xf] %v4488
        %4521 = vst [vmem:[#allocation3 + $0x40c] sm:$0xf] %v4489
        %4522 = vst [vmem:[#allocation3 + $0x430] sm:$0xf] %v4490
        %4523 = vst [vmem:[#allocation3 + $0x454] sm:$0xf] %v4491
        %4524 = vst [vmem:[#allocation3 + $0x478] sm:$0xf] %v4492
        %v4525 = vld [vmem:[%s1059 + $0x2] sm:$0xff]
        %v4526 = vld [vmem:[%s1059 + $0xa] sm:$0xff]
        %v4527 = vld [vmem:[%s1059 + $0x1a] sm:$0xff]
        %v4528 = vld [vmem:[%s1059 + $0x22] sm:$0xff]
        %v4529 = vld [vmem:[%s1059 + $0x32] sm:$0xff]
        %v4530 = vld [vmem:[%s1059 + $0x3a] sm:$0xff]
        %v4531 = vld [vmem:[%s1059 + $0x4a] sm:$0xff]
        %v4532 = vld [vmem:[%s1059 + $0x52] sm:$0xff]
        %v4533 = vld [vmem:[%s1059 + $0x62] sm:$0xff]
        %v4534 = vld [vmem:[%s1059 + $0x6a] sm:$0xff]
        %v4535 = vld [vmem:[%s1059 + $0x7a] sm:$0xff]
        %v4536 = vld [vmem:[%s1059 + $0x82] sm:$0xff]
        %v4537 = vld [vmem:[%s1059 + $0x92] sm:$0xff]
        %v4538 = vld [vmem:[%s1059 + $0x9a] sm:$0xff]
        %v4539 = vld [vmem:[%s1059 + $0xaa] sm:$0xff]
        %v4540 = vld [vmem:[%s1059 + $0xb2] sm:$0xff]
        %v4541 = vld [vmem:[%s1059 + $0xc2] sm:$0xff]
        %v4542 = vld [vmem:[%s1059 + $0xca] sm:$0xff]
        %v4543 = vld [vmem:[%s1059 + $0xda] sm:$0xff]
        %v4544 = vld [vmem:[%s1059 + $0xe2] sm:$0xff]
        %v4545 = vld [vmem:[%s1059 + $0xf2] sm:$0xff]
        %v4546 = vld [vmem:[%s1059 + $0xfa] sm:$0xff]
        %v4547 = vld [vmem:[%s1059 + $0x10a] sm:$0xff]
        %v4548 = vld [vmem:[%s1059 + $0x112] sm:$0xff]
        %v4549 = vld [vmem:[%s1059 + $0x122] sm:$0xff]
        %v4550 = vld [vmem:[%s1059 + $0x12a] sm:$0xff]
        %v4551 = vld [vmem:[%s1059 + $0x13a] sm:$0xff]
        %v4552 = vld [vmem:[%s1059 + $0x142] sm:$0xff]
        %v4553 = vld [vmem:[%s1059 + $0x152] sm:$0xff]
        %v4554 = vld [vmem:[%s1059 + $0x15a] sm:$0xff]
        %v4555 = vld [vmem:[%s1059 + $0x16a] sm:$0xff]
        %v4556 = vld [vmem:[%s1059 + $0x172] sm:$0xff]
        %v4557 = vpack.c.bf16 %v4525, %v4525
        %v4558 = vpack.c.bf16 %v4526, %v4526
        %v4559 = vpack.c.bf16 %v4527, %v4527
        %v4560 = vpack.c.bf16 %v4528, %v4528
        %v4561 = vpack.c.bf16 %v4529, %v4529
        %v4562 = vpack.c.bf16 %v4530, %v4530
        %v4563 = vpack.c.bf16 %v4531, %v4531
        %v4564 = vpack.c.bf16 %v4532, %v4532
        %v4565 = vpack.c.bf16 %v4533, %v4533
        %v4566 = vpack.c.bf16 %v4534, %v4534
        %v4567 = vpack.c.bf16 %v4535, %v4535
        %v4568 = vpack.c.bf16 %v4536, %v4536
        %v4569 = vpack.c.bf16 %v4537, %v4537
        %v4570 = vpack.c.bf16 %v4538, %v4538
        %v4571 = vpack.c.bf16 %v4539, %v4539
        %v4572 = vpack.c.bf16 %v4540, %v4540
        %v4573 = vpack.c.bf16 %v4541, %v4541
        %v4574 = vpack.c.bf16 %v4542, %v4542
        %v4575 = vpack.c.bf16 %v4543, %v4543
        %v4576 = vpack.c.bf16 %v4544, %v4544
        %v4577 = vpack.c.bf16 %v4545, %v4545
        %v4578 = vpack.c.bf16 %v4546, %v4546
        %v4579 = vpack.c.bf16 %v4547, %v4547
        %v4580 = vpack.c.bf16 %v4548, %v4548
        %v4581 = vpack.c.bf16 %v4549, %v4549
        %v4582 = vpack.c.bf16 %v4550, %v4550
        %v4583 = vpack.c.bf16 %v4551, %v4551
        %v4584 = vpack.c.bf16 %v4552, %v4552
        %v4585 = vpack.c.bf16 %v4553, %v4553
        %v4586 = vpack.c.bf16 %v4554, %v4554
        %v4587 = vpack.c.bf16 %v4555, %v4555
        %v4588 = vpack.c.bf16 %v4556, %v4556
        %4589 = vst [vmem:[#allocation3 + $0x20] sm:$0xf] %v4557
        %4590 = vst [vmem:[#allocation3 + $0x44] sm:$0xf] %v4558
        %4591 = vst [vmem:[#allocation3 + $0x68] sm:$0xf] %v4559
        %4592 = vst [vmem:[#allocation3 + $0x8c] sm:$0xf] %v4560
        %4593 = vst [vmem:[#allocation3 + $0xb0] sm:$0xf] %v4561
        %4594 = vst [vmem:[#allocation3 + $0xd4] sm:$0xf] %v4562
        %4595 = vst [vmem:[#allocation3 + $0xf8] sm:$0xf] %v4563
        %4596 = vst [vmem:[#allocation3 + $0x11c] sm:$0xf] %v4564
        %4597 = vst [vmem:[#allocation3 + $0x140] sm:$0xf] %v4565
        %4598 = vst [vmem:[#allocation3 + $0x164] sm:$0xf] %v4566
        %4599 = vst [vmem:[#allocation3 + $0x188] sm:$0xf] %v4567
        %4600 = vst [vmem:[#allocation3 + $0x1ac] sm:$0xf] %v4568
        %4601 = vst [vmem:[#allocation3 + $0x1d0] sm:$0xf] %v4569
        %4602 = vst [vmem:[#allocation3 + $0x1f4] sm:$0xf] %v4570
        %4603 = vst [vmem:[#allocation3 + $0x218] sm:$0xf] %v4571
        %4604 = vst [vmem:[#allocation3 + $0x23c] sm:$0xf] %v4572
        %4605 = vst [vmem:[#allocation3 + $0x260] sm:$0xf] %v4573
        %4606 = vst [vmem:[#allocation3 + $0x284] sm:$0xf] %v4574
        %4607 = vst [vmem:[#allocation3 + $0x2a8] sm:$0xf] %v4575
        %4608 = vst [vmem:[#allocation3 + $0x2cc] sm:$0xf] %v4576
        %4609 = vst [vmem:[#allocation3 + $0x2f0] sm:$0xf] %v4577
        %4610 = vst [vmem:[#allocation3 + $0x314] sm:$0xf] %v4578
        %4611 = vst [vmem:[#allocation3 + $0x338] sm:$0xf] %v4579
        %4612 = vst [vmem:[#allocation3 + $0x35c] sm:$0xf] %v4580
        %4613 = vst [vmem:[#allocation3 + $0x380] sm:$0xf] %v4581
        %4614 = vst [vmem:[#allocation3 + $0x3a4] sm:$0xf] %v4582
        %4615 = vst [vmem:[#allocation3 + $0x3c8] sm:$0xf] %v4583
        %4616 = vst [vmem:[#allocation3 + $0x3ec] sm:$0xf] %v4584
        %4617 = vst [vmem:[#allocation3 + $0x410] sm:$0xf] %v4585
        %4618 = vst [vmem:[#allocation3 + $0x434] sm:$0xf] %v4586
        %4619 = vst [vmem:[#allocation3 + $0x458] sm:$0xf] %v4587
        %4620 = vst [vmem:[#allocation3 + $0x47c] sm:$0xf] %v4588
        %v4621 = vld [vmem:[#allocation3] sm:$0xff]
        %v4622 = vld [vmem:[#allocation3 + $0x8] sm:$0xff]
        %v4623 = vld [vmem:[#allocation3 + $0x10] sm:$0xff]
        %v4624 = vld [vmem:[#allocation3 + $0x18] sm:$0xff]
        %v4625 = vld [vmem:[#allocation3 + $0x20] sm:$0xf]
        %v4626 = vld [vmem:[#allocation3 + $0x24] sm:$0xff]
        %v4627 = vld [vmem:[#allocation3 + $0x2c] sm:$0xff]
        %v4628 = vld [vmem:[#allocation3 + $0x34] sm:$0xff]
        %v4629 = vld [vmem:[#allocation3 + $0x3c] sm:$0xff]
        %v4630 = vld [vmem:[#allocation3 + $0x44] sm:$0xf]
        %v4631 = vld [vmem:[#allocation3 + $0x48] sm:$0xff]
        %v4632 = vld [vmem:[#allocation3 + $0x50] sm:$0xff]
        %v4633 = vld [vmem:[#allocation3 + $0x58] sm:$0xff]
        %v4634 = vld [vmem:[#allocation3 + $0x60] sm:$0xff]
        %v4635 = vld [vmem:[#allocation3 + $0x68] sm:$0xf]
        %v4636 = vld [vmem:[#allocation3 + $0x6c] sm:$0xff]
        %v4637 = vld [vmem:[#allocation3 + $0x74] sm:$0xff]
        %v4638 = vld [vmem:[#allocation3 + $0x7c] sm:$0xff]
        %v4639 = vld [vmem:[#allocation3 + $0x84] sm:$0xff]
        %v4640 = vld [vmem:[#allocation3 + $0x8c] sm:$0xf]
        %v4641 = vld [vmem:[#allocation3 + $0x90] sm:$0xff]
        %v4642 = vld [vmem:[#allocation3 + $0x98] sm:$0xff]
        %v4643 = vld [vmem:[#allocation3 + $0xa0] sm:$0xff]
        %v4644 = vld [vmem:[#allocation3 + $0xa8] sm:$0xff]
        %v4645 = vld [vmem:[#allocation3 + $0xb0] sm:$0xf]
        %v4646 = vld [vmem:[#allocation3 + $0xb4] sm:$0xff]
        %v4647 = vld [vmem:[#allocation3 + $0xbc] sm:$0xff]
        %v4648 = vld [vmem:[#allocation3 + $0xc4] sm:$0xff]
        %v4649 = vld [vmem:[#allocation3 + $0xcc] sm:$0xff]
        %v4650 = vld [vmem:[#allocation3 + $0xd4] sm:$0xf]
        %v4651 = vld [vmem:[#allocation3 + $0xd8] sm:$0xff]
        %v4652 = vld [vmem:[#allocation3 + $0xe0] sm:$0xff]
        %v4653 = vld [vmem:[#allocation3 + $0xe8] sm:$0xff]
        %v4654 = vld [vmem:[#allocation3 + $0xf0] sm:$0xff]
        %v4655 = vld [vmem:[#allocation3 + $0xf8] sm:$0xf]
        %v4656 = vld [vmem:[#allocation3 + $0xfc] sm:$0xff]
        %v4657 = vld [vmem:[#allocation3 + $0x104] sm:$0xff]
        %v4658 = vld [vmem:[#allocation3 + $0x10c] sm:$0xff]
        %v4659 = vld [vmem:[#allocation3 + $0x114] sm:$0xff]
        %v4660 = vld [vmem:[#allocation3 + $0x11c] sm:$0xf]
        %v4661 = vld [vmem:[#allocation3 + $0x120] sm:$0xff]
        %v4662 = vld [vmem:[#allocation3 + $0x128] sm:$0xff]
        %v4663 = vld [vmem:[#allocation3 + $0x130] sm:$0xff]
        %v4664 = vld [vmem:[#allocation3 + $0x138] sm:$0xff]
        %v4665 = vld [vmem:[#allocation3 + $0x140] sm:$0xf]
        %v4666 = vld [vmem:[#allocation3 + $0x144] sm:$0xff]
        %v4667 = vld [vmem:[#allocation3 + $0x14c] sm:$0xff]
        %v4668 = vld [vmem:[#allocation3 + $0x154] sm:$0xff]
        %v4669 = vld [vmem:[#allocation3 + $0x15c] sm:$0xff]
        %v4670 = vld [vmem:[#allocation3 + $0x164] sm:$0xf]
        %v4671 = vld [vmem:[#allocation3 + $0x168] sm:$0xff]
        %v4672 = vld [vmem:[#allocation3 + $0x170] sm:$0xff]
        %v4673 = vld [vmem:[#allocation3 + $0x178] sm:$0xff]
        %v4674 = vld [vmem:[#allocation3 + $0x180] sm:$0xff]
        %v4675 = vld [vmem:[#allocation3 + $0x188] sm:$0xf]
        %v4676 = vld [vmem:[#allocation3 + $0x18c] sm:$0xff]
        %v4677 = vld [vmem:[#allocation3 + $0x194] sm:$0xff]
        %v4678 = vld [vmem:[#allocation3 + $0x19c] sm:$0xff]
        %v4679 = vld [vmem:[#allocation3 + $0x1a4] sm:$0xff]
        %v4680 = vld [vmem:[#allocation3 + $0x1ac] sm:$0xf]
        %v4681 = vld [vmem:[#allocation3 + $0x1b0] sm:$0xff]
        %v4682 = vld [vmem:[#allocation3 + $0x1b8] sm:$0xff]
        %v4683 = vld [vmem:[#allocation3 + $0x1c0] sm:$0xff]
        %v4684 = vld [vmem:[#allocation3 + $0x1c8] sm:$0xff]
        %v4685 = vld [vmem:[#allocation3 + $0x1d0] sm:$0xf]
        %v4686 = vld [vmem:[#allocation3 + $0x1d4] sm:$0xff]
        %v4687 = vld [vmem:[#allocation3 + $0x1dc] sm:$0xff]
        %v4688 = vld [vmem:[#allocation3 + $0x1e4] sm:$0xff]
        %v4689 = vld [vmem:[#allocation3 + $0x1ec] sm:$0xff]
        %v4690 = vld [vmem:[#allocation3 + $0x1f4] sm:$0xf]
        %v4691 = vld [vmem:[#allocation3 + $0x1f8] sm:$0xff]
        %v4692 = vld [vmem:[#allocation3 + $0x200] sm:$0xff]
        %v4693 = vld [vmem:[#allocation3 + $0x208] sm:$0xff]
        %v4694 = vld [vmem:[#allocation3 + $0x210] sm:$0xff]
        %v4695 = vld [vmem:[#allocation3 + $0x218] sm:$0xf]
        %v4696 = vld [vmem:[#allocation3 + $0x21c] sm:$0xff]
        %v4697 = vld [vmem:[#allocation3 + $0x224] sm:$0xff]
        %v4698 = vld [vmem:[#allocation3 + $0x22c] sm:$0xff]
        %v4699 = vld [vmem:[#allocation3 + $0x234] sm:$0xff]
        %v4700 = vld [vmem:[#allocation3 + $0x23c] sm:$0xf]
        %v4701 = vld [vmem:[#allocation3 + $0x240] sm:$0xff]
        %v4702 = vld [vmem:[#allocation3 + $0x248] sm:$0xff]
        %v4703 = vld [vmem:[#allocation3 + $0x250] sm:$0xff]
        %v4704 = vld [vmem:[#allocation3 + $0x258] sm:$0xff]
        %v4705 = vld [vmem:[#allocation3 + $0x260] sm:$0xf]
        %v4706 = vld [vmem:[#allocation3 + $0x264] sm:$0xff]
        %v4707 = vld [vmem:[#allocation3 + $0x26c] sm:$0xff]
        %v4708 = vld [vmem:[#allocation3 + $0x274] sm:$0xff]
        %v4709 = vld [vmem:[#allocation3 + $0x27c] sm:$0xff]
        %v4710 = vld [vmem:[#allocation3 + $0x284] sm:$0xf]
        %v4711 = vld [vmem:[#allocation3 + $0x288] sm:$0xff]
        %v4712 = vld [vmem:[#allocation3 + $0x290] sm:$0xff]
        %v4713 = vld [vmem:[#allocation3 + $0x298] sm:$0xff]
        %v4714 = vld [vmem:[#allocation3 + $0x2a0] sm:$0xff]
        %v4715 = vld [vmem:[#allocation3 + $0x2a8] sm:$0xf]
        %v4716 = vld [vmem:[#allocation3 + $0x2ac] sm:$0xff]
        %v4717 = vld [vmem:[#allocation3 + $0x2b4] sm:$0xff]
        %v4718 = vld [vmem:[#allocation3 + $0x2bc] sm:$0xff]
        %v4719 = vld [vmem:[#allocation3 + $0x2c4] sm:$0xff]
        %v4720 = vld [vmem:[#allocation3 + $0x2cc] sm:$0xf]
        %v4721 = vld [vmem:[#allocation3 + $0x2d0] sm:$0xff]
        %v4722 = vld [vmem:[#allocation3 + $0x2d8] sm:$0xff]
        %v4723 = vld [vmem:[#allocation3 + $0x2e0] sm:$0xff]
        %v4724 = vld [vmem:[#allocation3 + $0x2e8] sm:$0xff]
        %v4725 = vld [vmem:[#allocation3 + $0x2f0] sm:$0xf]
        %v4726 = vld [vmem:[#allocation3 + $0x2f4] sm:$0xff]
        %v4727 = vld [vmem:[#allocation3 + $0x2fc] sm:$0xff]
        %v4728 = vld [vmem:[#allocation3 + $0x304] sm:$0xff]
        %v4729 = vld [vmem:[#allocation3 + $0x30c] sm:$0xff]
        %v4730 = vld [vmem:[#allocation3 + $0x314] sm:$0xf]
        %v4731 = vld [vmem:[#allocation3 + $0x318] sm:$0xff]
        %v4732 = vld [vmem:[#allocation3 + $0x320] sm:$0xff]
        %v4733 = vld [vmem:[#allocation3 + $0x328] sm:$0xff]
        %v4734 = vld [vmem:[#allocation3 + $0x330] sm:$0xff]
        %v4735 = vld [vmem:[#allocation3 + $0x338] sm:$0xf]
        %v4736 = vld [vmem:[#allocation3 + $0x33c] sm:$0xff]
        %v4737 = vld [vmem:[#allocation3 + $0x344] sm:$0xff]
        %v4738 = vld [vmem:[#allocation3 + $0x34c] sm:$0xff]
        %v4739 = vld [vmem:[#allocation3 + $0x354] sm:$0xff]
        %v4740 = vld [vmem:[#allocation3 + $0x35c] sm:$0xf]
        %v4741 = vld [vmem:[#allocation3 + $0x360] sm:$0xff]
        %v4742 = vld [vmem:[#allocation3 + $0x368] sm:$0xff]
        %v4743 = vld [vmem:[#allocation3 + $0x370] sm:$0xff]
        %v4744 = vld [vmem:[#allocation3 + $0x378] sm:$0xff]
        %v4745 = vld [vmem:[#allocation3 + $0x380] sm:$0xf]
        %v4746 = vld [vmem:[#allocation3 + $0x384] sm:$0xff]
        %v4747 = vld [vmem:[#allocation3 + $0x38c] sm:$0xff]
        %v4748 = vld [vmem:[#allocation3 + $0x394] sm:$0xff]
        %v4749 = vld [vmem:[#allocation3 + $0x39c] sm:$0xff]
        %v4750 = vld [vmem:[#allocation3 + $0x3a4] sm:$0xf]
        %v4751 = vld [vmem:[#allocation3 + $0x3a8] sm:$0xff]
        %v4752 = vld [vmem:[#allocation3 + $0x3b0] sm:$0xff]
        %v4753 = vld [vmem:[#allocation3 + $0x3b8] sm:$0xff]
        %v4754 = vld [vmem:[#allocation3 + $0x3c0] sm:$0xff]
        %v4755 = vld [vmem:[#allocation3 + $0x3c8] sm:$0xf]
        %v4756 = vld [vmem:[#allocation3 + $0x3cc] sm:$0xff]
        %v4757 = vld [vmem:[#allocation3 + $0x3d4] sm:$0xff]
        %v4758 = vld [vmem:[#allocation3 + $0x3dc] sm:$0xff]
        %v4759 = vld [vmem:[#allocation3 + $0x3e4] sm:$0xff]
        %v4760 = vld [vmem:[#allocation3 + $0x3ec] sm:$0xf]
        %v4761 = vld [vmem:[#allocation3 + $0x3f0] sm:$0xff]
        %v4762 = vld [vmem:[#allocation3 + $0x3f8] sm:$0xff]
        %v4763 = vld [vmem:[#allocation3 + $0x400] sm:$0xff]
        %v4764 = vld [vmem:[#allocation3 + $0x408] sm:$0xff]
        %v4765 = vld [vmem:[#allocation3 + $0x410] sm:$0xf]
        %v4766 = vld [vmem:[#allocation3 + $0x414] sm:$0xff]
        %v4767 = vld [vmem:[#allocation3 + $0x41c] sm:$0xff]
        %v4768 = vld [vmem:[#allocation3 + $0x424] sm:$0xff]
        %v4769 = vld [vmem:[#allocation3 + $0x42c] sm:$0xff]
        %v4770 = vld [vmem:[#allocation3 + $0x434] sm:$0xf]
        %v4771 = vld [vmem:[#allocation3 + $0x438] sm:$0xff]
        %v4772 = vld [vmem:[#allocation3 + $0x440] sm:$0xff]
        %v4773 = vld [vmem:[#allocation3 + $0x448] sm:$0xff]
        %v4774 = vld [vmem:[#allocation3 + $0x450] sm:$0xff]
        %v4775 = vld [vmem:[#allocation3 + $0x458] sm:$0xf]
        %v4776 = vld [vmem:[#allocation3 + $0x45c] sm:$0xff]
        %v4777 = vld [vmem:[#allocation3 + $0x464] sm:$0xff]
        %v4778 = vld [vmem:[#allocation3 + $0x46c] sm:$0xff]
        %v4779 = vld [vmem:[#allocation3 + $0x474] sm:$0xff]
        %v4780 = vld [vmem:[#allocation3 + $0x47c] sm:$0xf]
        %v4781 = vld [vmem:[#allocation9] sm:$0xf]
        %v4782 = vld [vmem:[#allocation9 + $0x4] sm:$0xf]
        %v4783 = vld [vmem:[#allocation9 + $0x8] sm:$0xf]
        %v4784 = vld [vmem:[#allocation9 + $0xc] sm:$0xf]
        %v4785 = vld [vmem:[#allocation9 + $0x10] sm:$0xf]
        %v4786 = vld [vmem:[#allocation9 + $0x14] sm:$0xf]
        %v4787 = vld [vmem:[#allocation9 + $0x18] sm:$0xf]
        %v4788 = vld [vmem:[#allocation9 + $0x1c] sm:$0xf]
        %v4789 = vld [vmem:[#allocation9 + $0x20] sm:$0xf]
        %v4790 = vld [vmem:[#allocation9 + $0x24] sm:$0xf]
        %v4791 = vld [vmem:[#allocation9 + $0x28] sm:$0xf]
        %v4792 = vld [vmem:[#allocation9 + $0x2c] sm:$0xf]
        %v4793 = vld [vmem:[#allocation9 + $0x30] sm:$0xf]
        %v4794 = vld [vmem:[#allocation9 + $0x34] sm:$0xf]
        %v4795 = vld [vmem:[#allocation9 + $0x38] sm:$0xf]
        %v4796 = vld [vmem:[#allocation9 + $0x3c] sm:$0xf]
        %v4797 = vld [vmem:[#allocation9 + $0x40] sm:$0xf]
        %v4798 = vld [vmem:[#allocation9 + $0x44] sm:$0xf]
        %v4799 = vld [vmem:[#allocation9 + $0x48] sm:$0xf]
        %v4800 = vld [vmem:[#allocation9 + $0x4c] sm:$0xf]
        %v4801 = vld [vmem:[#allocation9 + $0x50] sm:$0xf]
        %v4802 = vld [vmem:[#allocation9 + $0x54] sm:$0xf]
        %v4803 = vld [vmem:[#allocation9 + $0x58] sm:$0xf]
        %v4804 = vld [vmem:[#allocation9 + $0x5c] sm:$0xf]
        %v4805 = vld [vmem:[#allocation9 + $0x60] sm:$0xf]
        %v4806 = vld [vmem:[#allocation9 + $0x64] sm:$0xf]
        %v4807 = vld [vmem:[#allocation9 + $0x68] sm:$0xf]
        %v4808 = vld [vmem:[#allocation9 + $0x6c] sm:$0xf]
        %v4809 = vld [vmem:[#allocation9 + $0x70] sm:$0xf]
        %v4810 = vld [vmem:[#allocation9 + $0x74] sm:$0xf]
        %v4811 = vld [vmem:[#allocation9 + $0x78] sm:$0xf]
        %v4812 = vld [vmem:[#allocation9 + $0x7c] sm:$0xf]
        %v4813 = vld [vmem:[#allocation9 + $0x80] sm:$0xf]
        %v4814 = vld [vmem:[#allocation9 + $0x84] sm:$0xf]
        %v4815 = vld [vmem:[#allocation9 + $0x88] sm:$0xf]
        %v4816 = vld [vmem:[#allocation9 + $0x8c] sm:$0xf]
        %v4817 = vld [vmem:[#allocation9 + $0x90] sm:$0xf]
        %v4818 = vld [vmem:[#allocation9 + $0x94] sm:$0xf]
        %v4819 = vld [vmem:[#allocation9 + $0x98] sm:$0xf]
        %v4820 = vld [vmem:[#allocation9 + $0x9c] sm:$0xf]
        %v4821 = vld [vmem:[#allocation9 + $0xa0] sm:$0xf]
        %v4822 = vld [vmem:[#allocation9 + $0xa4] sm:$0xf]
        %v4823 = vld [vmem:[#allocation9 + $0xa8] sm:$0xf]
        %v4824 = vld [vmem:[#allocation9 + $0xac] sm:$0xf]
        %v4825 = vld [vmem:[#allocation9 + $0xb0] sm:$0xf]
        %v4826 = vld [vmem:[#allocation9 + $0xb4] sm:$0xf]
        %v4827 = vld [vmem:[#allocation9 + $0xb8] sm:$0xf]
        %v4828 = vld [vmem:[#allocation9 + $0xbc] sm:$0xf]
        %v4829 = vld [vmem:[#allocation9 + $0xc0] sm:$0xf]
        %v4830 = vld [vmem:[#allocation9 + $0xc4] sm:$0xf]
        %v4831 = vld [vmem:[#allocation9 + $0xc8] sm:$0xf]
        %v4832 = vld [vmem:[#allocation9 + $0xcc] sm:$0xf]
        %v4833 = vld [vmem:[#allocation9 + $0xd0] sm:$0xf]
        %v4834 = vld [vmem:[#allocation9 + $0xd4] sm:$0xf]
        %v4835 = vld [vmem:[#allocation9 + $0xd8] sm:$0xf]
        %v4836 = vld [vmem:[#allocation9 + $0xdc] sm:$0xf]
        %v4837 = vld [vmem:[#allocation9 + $0xe0] sm:$0xf]
        %v4838 = vld [vmem:[#allocation9 + $0xe4] sm:$0xf]
        %v4839 = vld [vmem:[#allocation9 + $0xe8] sm:$0xf]
        %v4840 = vld [vmem:[#allocation9 + $0xec] sm:$0xf]
        %v4841 = vld [vmem:[#allocation9 + $0xf0] sm:$0xf]
        %v4842 = vld [vmem:[#allocation9 + $0xf4] sm:$0xf]
        %v4843 = vld [vmem:[#allocation9 + $0xf8] sm:$0xf]
        %v4844 = vld [vmem:[#allocation9 + $0xfc] sm:$0xf]
        %v4845 = vld [vmem:[#allocation9 + $0x100] sm:$0xf]
        %v4846 = vld [vmem:[#allocation9 + $0x104] sm:$0xf]
        %v4847 = vld [vmem:[#allocation9 + $0x108] sm:$0xf]
        %v4848 = vld [vmem:[#allocation9 + $0x10c] sm:$0xf]
        %v4849 = vld [vmem:[#allocation9 + $0x110] sm:$0xf]
        %v4850 = vld [vmem:[#allocation9 + $0x114] sm:$0xf]
        %v4851 = vld [vmem:[#allocation9 + $0x118] sm:$0xf]
        %v4852 = vld [vmem:[#allocation9 + $0x11c] sm:$0xf]
        %v4853 = vld [vmem:[#allocation9 + $0x120] sm:$0xf]
        %v4854 = vld [vmem:[#allocation9 + $0x124] sm:$0xf]
        %v4855 = vld [vmem:[#allocation9 + $0x128] sm:$0xf]
        %v4856 = vld [vmem:[#allocation9 + $0x12c] sm:$0xf]
        %v4857 = vld [vmem:[#allocation9 + $0x130] sm:$0xf]
        %v4858 = vld [vmem:[#allocation9 + $0x134] sm:$0xf]
        %v4859 = vld [vmem:[#allocation9 + $0x138] sm:$0xf]
        %v4860 = vld [vmem:[#allocation9 + $0x13c] sm:$0xf]
        %v4861 = vld [vmem:[#allocation9 + $0x140] sm:$0xf]
        %v4862 = vld [vmem:[#allocation9 + $0x144] sm:$0xf]
        %v4863 = vld [vmem:[#allocation9 + $0x148] sm:$0xf]
        %v4864 = vld [vmem:[#allocation9 + $0x14c] sm:$0xf]
        %v4865 = vld [vmem:[#allocation9 + $0x150] sm:$0xf]
        %v4866 = vld [vmem:[#allocation9 + $0x154] sm:$0xf]
        %v4867 = vld [vmem:[#allocation9 + $0x158] sm:$0xf]
        %v4868 = vld [vmem:[#allocation9 + $0x15c] sm:$0xf]
        %v4869 = vld [vmem:[#allocation9 + $0x160] sm:$0xf]
        %v4870 = vld [vmem:[#allocation9 + $0x164] sm:$0xf]
        %v4871 = vld [vmem:[#allocation9 + $0x168] sm:$0xf]
        %v4872 = vld [vmem:[#allocation9 + $0x16c] sm:$0xf]
        %v4873 = vld [vmem:[#allocation9 + $0x170] sm:$0xf]
        %v4874 = vld [vmem:[#allocation9 + $0x174] sm:$0xf]
        %v4875 = vld [vmem:[#allocation9 + $0x178] sm:$0xf]
        %v4876 = vld [vmem:[#allocation9 + $0x17c] sm:$0xf]
        %v4877 = vld [vmem:[#allocation9 + $0x180] sm:$0xf]
        %v4878 = vld [vmem:[#allocation9 + $0x184] sm:$0xf]
        %v4879 = vld [vmem:[#allocation9 + $0x188] sm:$0xf]
        %v4880 = vld [vmem:[#allocation9 + $0x18c] sm:$0xf]
        %v4881 = vld [vmem:[#allocation9 + $0x190] sm:$0xf]
        %v4882 = vld [vmem:[#allocation9 + $0x194] sm:$0xf]
        %v4883 = vld [vmem:[#allocation9 + $0x198] sm:$0xf]
        %v4884 = vld [vmem:[#allocation9 + $0x19c] sm:$0xf]
        %v4885 = vld [vmem:[#allocation9 + $0x1a0] sm:$0xf]
        %v4886 = vld [vmem:[#allocation9 + $0x1a4] sm:$0xf]
        %v4887 = vld [vmem:[#allocation9 + $0x1a8] sm:$0xf]
        %v4888 = vld [vmem:[#allocation9 + $0x1ac] sm:$0xf]
        %v4889 = vld [vmem:[#allocation9 + $0x1b0] sm:$0xf]
        %v4890 = vld [vmem:[#allocation9 + $0x1b4] sm:$0xf]
        %v4891 = vld [vmem:[#allocation9 + $0x1b8] sm:$0xf]
        %v4892 = vld [vmem:[#allocation9 + $0x1bc] sm:$0xf]
        %v4893 = vld [vmem:[#allocation9 + $0x1c0] sm:$0xf]
        %v4894 = vld [vmem:[#allocation9 + $0x1c4] sm:$0xf]
        %v4895 = vld [vmem:[#allocation9 + $0x1c8] sm:$0xf]
        %v4896 = vld [vmem:[#allocation9 + $0x1cc] sm:$0xf]
        %v4897 = vld [vmem:[#allocation9 + $0x1d0] sm:$0xf]
        %v4898 = vld [vmem:[#allocation9 + $0x1d4] sm:$0xf]
        %v4899 = vld [vmem:[#allocation9 + $0x1d8] sm:$0xf]
        %v4900 = vld [vmem:[#allocation9 + $0x1dc] sm:$0xf]
        %v4901 = vld [vmem:[#allocation9 + $0x1e0] sm:$0xf]
        %v4902 = vld [vmem:[#allocation9 + $0x1e4] sm:$0xf]
        %v4903 = vld [vmem:[#allocation9 + $0x1e8] sm:$0xf]
        %v4904 = vld [vmem:[#allocation9 + $0x1ec] sm:$0xf]
        %v4905 = vld [vmem:[#allocation9 + $0x1f0] sm:$0xf]
        %v4906 = vld [vmem:[#allocation9 + $0x1f4] sm:$0xf]
        %v4907 = vld [vmem:[#allocation9 + $0x1f8] sm:$0xf]
        %v4908 = vld [vmem:[#allocation9 + $0x1fc] sm:$0xf]
        %v4909 = vld [vmem:[#allocation9 + $0x200] sm:$0xf]
        %v4910 = vld [vmem:[#allocation9 + $0x204] sm:$0xf]
        %v4911 = vld [vmem:[#allocation9 + $0x208] sm:$0xf]
        %v4912 = vld [vmem:[#allocation9 + $0x20c] sm:$0xf]
        %v4913 = vld [vmem:[#allocation9 + $0x210] sm:$0xf]
        %v4914 = vld [vmem:[#allocation9 + $0x214] sm:$0xf]
        %v4915 = vld [vmem:[#allocation9 + $0x218] sm:$0xf]
        %v4916 = vld [vmem:[#allocation9 + $0x21c] sm:$0xf]
        %v4917 = vld [vmem:[#allocation9 + $0x220] sm:$0xf]
        %v4918 = vld [vmem:[#allocation9 + $0x224] sm:$0xf]
        %v4919 = vld [vmem:[#allocation9 + $0x228] sm:$0xf]
        %v4920 = vld [vmem:[#allocation9 + $0x22c] sm:$0xf]
        %v4921 = vld [vmem:[#allocation9 + $0x230] sm:$0xf]
        %v4922 = vld [vmem:[#allocation9 + $0x234] sm:$0xf]
        %v4923 = vld [vmem:[#allocation9 + $0x238] sm:$0xf]
        %v4924 = vld [vmem:[#allocation9 + $0x23c] sm:$0xf]
        %v5085 = vunpack.c.l.b16 %v4621
        %v5086 = vunpack.c.h.b16 %v4621
        %v5087 = vunpack.c.l.b16 %v4622
        %v5088 = vunpack.c.h.b16 %v4622
        %v5089 = vunpack.c.l.b16 %v4623
        %v5090 = vunpack.c.h.b16 %v4623
        %v5091 = vunpack.c.l.b16 %v4624
        %v5092 = vunpack.c.h.b16 %v4624
        %v5093 = vunpack.c.l.b16 %v4625
        %v5094 = vunpack.c.l.b16 %v4626
        %v5095 = vunpack.c.h.b16 %v4626
        %v5096 = vunpack.c.l.b16 %v4627
        %v5097 = vunpack.c.h.b16 %v4627
        %v5098 = vunpack.c.l.b16 %v4628
        %v5099 = vunpack.c.h.b16 %v4628
        %v5100 = vunpack.c.l.b16 %v4629
        %v5101 = vunpack.c.h.b16 %v4629
        %v5102 = vunpack.c.l.b16 %v4630
        %v5103 = vunpack.c.l.b16 %v4631
        %v5104 = vunpack.c.h.b16 %v4631
        %v5105 = vunpack.c.l.b16 %v4632
        %v5106 = vunpack.c.h.b16 %v4632
        %v5107 = vunpack.c.l.b16 %v4633
        %v5108 = vunpack.c.h.b16 %v4633
        %v5109 = vunpack.c.l.b16 %v4634
        %v5110 = vunpack.c.h.b16 %v4634
        %v5111 = vunpack.c.l.b16 %v4635
        %v5112 = vunpack.c.l.b16 %v4636
        %v5113 = vunpack.c.h.b16 %v4636
        %v5114 = vunpack.c.l.b16 %v4637
        %v5115 = vunpack.c.h.b16 %v4637
        %v5116 = vunpack.c.l.b16 %v4638
        %v5117 = vunpack.c.h.b16 %v4638
        %v5118 = vunpack.c.l.b16 %v4639
        %v5119 = vunpack.c.h.b16 %v4639
        %v5120 = vunpack.c.l.b16 %v4640
        %v5121 = vunpack.c.l.b16 %v4641
        %v5122 = vunpack.c.h.b16 %v4641
        %v5123 = vunpack.c.l.b16 %v4642
        %v5124 = vunpack.c.h.b16 %v4642
        %v5125 = vunpack.c.l.b16 %v4643
        %v5126 = vunpack.c.h.b16 %v4643
        %v5127 = vunpack.c.l.b16 %v4644
        %v5128 = vunpack.c.h.b16 %v4644
        %v5129 = vunpack.c.l.b16 %v4645
        %v5130 = vunpack.c.l.b16 %v4646
        %v5131 = vunpack.c.h.b16 %v4646
        %v5132 = vunpack.c.l.b16 %v4647
        %v5133 = vunpack.c.h.b16 %v4647
        %v5134 = vunpack.c.l.b16 %v4648
        %v5135 = vunpack.c.h.b16 %v4648
        %v5136 = vunpack.c.l.b16 %v4649
        %v5137 = vunpack.c.h.b16 %v4649
        %v5138 = vunpack.c.l.b16 %v4650
        %v5139 = vunpack.c.l.b16 %v4651
        %v5140 = vunpack.c.h.b16 %v4651
        %v5141 = vunpack.c.l.b16 %v4652
        %v5142 = vunpack.c.h.b16 %v4652
        %v5143 = vunpack.c.l.b16 %v4653
        %v5144 = vunpack.c.h.b16 %v4653
        %v5145 = vunpack.c.l.b16 %v4654
        %v5146 = vunpack.c.h.b16 %v4654
        %v5147 = vunpack.c.l.b16 %v4655
        %v5148 = vunpack.c.l.b16 %v4656
        %v5149 = vunpack.c.h.b16 %v4656
        %v5150 = vunpack.c.l.b16 %v4657
        %v5151 = vunpack.c.h.b16 %v4657
        %v5152 = vunpack.c.l.b16 %v4658
        %v5153 = vunpack.c.h.b16 %v4658
        %v5154 = vunpack.c.l.b16 %v4659
        %v5155 = vunpack.c.h.b16 %v4659
        %v5156 = vunpack.c.l.b16 %v4660
        %v5157 = vunpack.c.l.b16 %v4661
        %v5158 = vunpack.c.h.b16 %v4661
        %v5159 = vunpack.c.l.b16 %v4662
        %v5160 = vunpack.c.h.b16 %v4662
        %v5161 = vunpack.c.l.b16 %v4663
        %v5162 = vunpack.c.h.b16 %v4663
        %v5163 = vunpack.c.l.b16 %v4664
        %v5164 = vunpack.c.h.b16 %v4664
        %v5165 = vunpack.c.l.b16 %v4665
        %v5166 = vunpack.c.l.b16 %v4666
        %v5167 = vunpack.c.h.b16 %v4666
        %v5168 = vunpack.c.l.b16 %v4667
        %v5169 = vunpack.c.h.b16 %v4667
        %v5170 = vunpack.c.l.b16 %v4668
        %v5171 = vunpack.c.h.b16 %v4668
        %v5172 = vunpack.c.l.b16 %v4669
        %v5173 = vunpack.c.h.b16 %v4669
        %v5174 = vunpack.c.l.b16 %v4670
        %v5175 = vunpack.c.l.b16 %v4671
        %v5176 = vunpack.c.h.b16 %v4671
        %v5177 = vunpack.c.l.b16 %v4672
        %v5178 = vunpack.c.h.b16 %v4672
        %v5179 = vunpack.c.l.b16 %v4673
        %v5180 = vunpack.c.h.b16 %v4673
        %v5181 = vunpack.c.l.b16 %v4674
        %v5182 = vunpack.c.h.b16 %v4674
        %v5183 = vunpack.c.l.b16 %v4675
        %v5184 = vunpack.c.l.b16 %v4676
        %v5185 = vunpack.c.h.b16 %v4676
        %v5186 = vunpack.c.l.b16 %v4677
        %v5187 = vunpack.c.h.b16 %v4677
        %v5188 = vunpack.c.l.b16 %v4678
        %v5189 = vunpack.c.h.b16 %v4678
        %v5190 = vunpack.c.l.b16 %v4679
        %v5191 = vunpack.c.h.b16 %v4679
        %v5192 = vunpack.c.l.b16 %v4680
        %v5193 = vunpack.c.l.b16 %v4681
        %v5194 = vunpack.c.h.b16 %v4681
        %v5195 = vunpack.c.l.b16 %v4682
        %v5196 = vunpack.c.h.b16 %v4682
        %v5197 = vunpack.c.l.b16 %v4683
        %v5198 = vunpack.c.h.b16 %v4683
        %v5199 = vunpack.c.l.b16 %v4684
        %v5200 = vunpack.c.h.b16 %v4684
        %v5201 = vunpack.c.l.b16 %v4685
        %v5202 = vunpack.c.l.b16 %v4686
        %v5203 = vunpack.c.h.b16 %v4686
        %v5204 = vunpack.c.l.b16 %v4687
        %v5205 = vunpack.c.h.b16 %v4687
        %v5206 = vunpack.c.l.b16 %v4688
        %v5207 = vunpack.c.h.b16 %v4688
        %v5208 = vunpack.c.l.b16 %v4689
        %v5209 = vunpack.c.h.b16 %v4689
        %v5210 = vunpack.c.l.b16 %v4690
        %v5211 = vunpack.c.l.b16 %v4691
        %v5212 = vunpack.c.h.b16 %v4691
        %v5213 = vunpack.c.l.b16 %v4692
        %v5214 = vunpack.c.h.b16 %v4692
        %v5215 = vunpack.c.l.b16 %v4693
        %v5216 = vunpack.c.h.b16 %v4693
        %v5217 = vunpack.c.l.b16 %v4694
        %v5218 = vunpack.c.h.b16 %v4694
        %v5219 = vunpack.c.l.b16 %v4695
        %v5220 = vunpack.c.l.b16 %v4696
        %v5221 = vunpack.c.h.b16 %v4696
        %v5222 = vunpack.c.l.b16 %v4697
        %v5223 = vunpack.c.h.b16 %v4697
        %v5224 = vunpack.c.l.b16 %v4698
        %v5225 = vunpack.c.h.b16 %v4698
        %v5226 = vunpack.c.l.b16 %v4699
        %v5227 = vunpack.c.h.b16 %v4699
        %v5228 = vunpack.c.l.b16 %v4700
        %v5229 = vunpack.c.l.b16 %v4701
        %v5230 = vunpack.c.h.b16 %v4701
        %v5231 = vunpack.c.l.b16 %v4702
        %v5232 = vunpack.c.h.b16 %v4702
        %v5233 = vunpack.c.l.b16 %v4703
        %v5234 = vunpack.c.h.b16 %v4703
        %v5235 = vunpack.c.l.b16 %v4704
        %v5236 = vunpack.c.h.b16 %v4704
        %v5237 = vunpack.c.l.b16 %v4705
        %v5238 = vunpack.c.l.b16 %v4706
        %v5239 = vunpack.c.h.b16 %v4706
        %v5240 = vunpack.c.l.b16 %v4707
        %v5241 = vunpack.c.h.b16 %v4707
        %v5242 = vunpack.c.l.b16 %v4708
        %v5243 = vunpack.c.h.b16 %v4708
        %v5244 = vunpack.c.l.b16 %v4709
        %v5245 = vunpack.c.h.b16 %v4709
        %v5246 = vunpack.c.l.b16 %v4710
        %v5247 = vunpack.c.l.b16 %v4711
        %v5248 = vunpack.c.h.b16 %v4711
        %v5249 = vunpack.c.l.b16 %v4712
        %v5250 = vunpack.c.h.b16 %v4712
        %v5251 = vunpack.c.l.b16 %v4713
        %v5252 = vunpack.c.h.b16 %v4713
        %v5253 = vunpack.c.l.b16 %v4714
        %v5254 = vunpack.c.h.b16 %v4714
        %v5255 = vunpack.c.l.b16 %v4715
        %v5256 = vunpack.c.l.b16 %v4716
        %v5257 = vunpack.c.h.b16 %v4716
        %v5258 = vunpack.c.l.b16 %v4717
        %v5259 = vunpack.c.h.b16 %v4717
        %v5260 = vunpack.c.l.b16 %v4718
        %v5261 = vunpack.c.h.b16 %v4718
        %v5262 = vunpack.c.l.b16 %v4719
        %v5263 = vunpack.c.h.b16 %v4719
        %v5264 = vunpack.c.l.b16 %v4720
        %v5265 = vunpack.c.l.b16 %v4721
        %v5266 = vunpack.c.h.b16 %v4721
        %v5267 = vunpack.c.l.b16 %v4722
        %v5268 = vunpack.c.h.b16 %v4722
        %v5269 = vunpack.c.l.b16 %v4723
        %v5270 = vunpack.c.h.b16 %v4723
        %v5271 = vunpack.c.l.b16 %v4724
        %v5272 = vunpack.c.h.b16 %v4724
        %v5273 = vunpack.c.l.b16 %v4725
        %v5274 = vunpack.c.l.b16 %v4726
        %v5275 = vunpack.c.h.b16 %v4726
        %v5276 = vunpack.c.l.b16 %v4727
        %v5277 = vunpack.c.h.b16 %v4727
        %v5278 = vunpack.c.l.b16 %v4728
        %v5279 = vunpack.c.h.b16 %v4728
        %v5280 = vunpack.c.l.b16 %v4729
        %v5281 = vunpack.c.h.b16 %v4729
        %v5282 = vunpack.c.l.b16 %v4730
        %v5283 = vunpack.c.l.b16 %v4731
        %v5284 = vunpack.c.h.b16 %v4731
        %v5285 = vunpack.c.l.b16 %v4732
        %v5286 = vunpack.c.h.b16 %v4732
        %v5287 = vunpack.c.l.b16 %v4733
        %v5288 = vunpack.c.h.b16 %v4733
        %v5289 = vunpack.c.l.b16 %v4734
        %v5290 = vunpack.c.h.b16 %v4734
        %v5291 = vunpack.c.l.b16 %v4735
        %v5292 = vunpack.c.l.b16 %v4736
        %v5293 = vunpack.c.h.b16 %v4736
        %v5294 = vunpack.c.l.b16 %v4737
        %v5295 = vunpack.c.h.b16 %v4737
        %v5296 = vunpack.c.l.b16 %v4738
        %v5297 = vunpack.c.h.b16 %v4738
        %v5298 = vunpack.c.l.b16 %v4739
        %v5299 = vunpack.c.h.b16 %v4739
        %v5300 = vunpack.c.l.b16 %v4740
        %v5301 = vunpack.c.l.b16 %v4741
        %v5302 = vunpack.c.h.b16 %v4741
        %v5303 = vunpack.c.l.b16 %v4742
        %v5304 = vunpack.c.h.b16 %v4742
        %v5305 = vunpack.c.l.b16 %v4743
        %v5306 = vunpack.c.h.b16 %v4743
        %v5307 = vunpack.c.l.b16 %v4744
        %v5308 = vunpack.c.h.b16 %v4744
        %v5309 = vunpack.c.l.b16 %v4745
        %v5310 = vunpack.c.l.b16 %v4746
        %v5311 = vunpack.c.h.b16 %v4746
        %v5312 = vunpack.c.l.b16 %v4747
        %v5313 = vunpack.c.h.b16 %v4747
        %v5314 = vunpack.c.l.b16 %v4748
        %v5315 = vunpack.c.h.b16 %v4748
        %v5316 = vunpack.c.l.b16 %v4749
        %v5317 = vunpack.c.h.b16 %v4749
        %v5318 = vunpack.c.l.b16 %v4750
        %v5319 = vunpack.c.l.b16 %v4751
        %v5320 = vunpack.c.h.b16 %v4751
        %v5321 = vunpack.c.l.b16 %v4752
        %v5322 = vunpack.c.h.b16 %v4752
        %v5323 = vunpack.c.l.b16 %v4753
        %v5324 = vunpack.c.h.b16 %v4753
        %v5325 = vunpack.c.l.b16 %v4754
        %v5326 = vunpack.c.h.b16 %v4754
        %v5327 = vunpack.c.l.b16 %v4755
        %v5328 = vunpack.c.l.b16 %v4756
        %v5329 = vunpack.c.h.b16 %v4756
        %v5330 = vunpack.c.l.b16 %v4757
        %v5331 = vunpack.c.h.b16 %v4757
        %v5332 = vunpack.c.l.b16 %v4758
        %v5333 = vunpack.c.h.b16 %v4758
        %v5334 = vunpack.c.l.b16 %v4759
        %v5335 = vunpack.c.h.b16 %v4759
        %v5336 = vunpack.c.l.b16 %v4760
        %v5337 = vunpack.c.l.b16 %v4761
        %v5338 = vunpack.c.h.b16 %v4761
        %v5339 = vunpack.c.l.b16 %v4762
        %v5340 = vunpack.c.h.b16 %v4762
        %v5341 = vunpack.c.l.b16 %v4763
        %v5342 = vunpack.c.h.b16 %v4763
        %v5343 = vunpack.c.l.b16 %v4764
        %v5344 = vunpack.c.h.b16 %v4764
        %v5345 = vunpack.c.l.b16 %v4765
        %v5346 = vunpack.c.l.b16 %v4766
        %v5347 = vunpack.c.h.b16 %v4766
        %v5348 = vunpack.c.l.b16 %v4767
        %v5349 = vunpack.c.h.b16 %v4767
        %v5350 = vunpack.c.l.b16 %v4768
        %v5351 = vunpack.c.h.b16 %v4768
        %v5352 = vunpack.c.l.b16 %v4769
        %v5353 = vunpack.c.h.b16 %v4769
        %v5354 = vunpack.c.l.b16 %v4770
        %v5355 = vunpack.c.l.b16 %v4771
        %v5356 = vunpack.c.h.b16 %v4771
        %v5357 = vunpack.c.l.b16 %v4772
        %v5358 = vunpack.c.h.b16 %v4772
        %v5359 = vunpack.c.l.b16 %v4773
        %v5360 = vunpack.c.h.b16 %v4773
        %v5361 = vunpack.c.l.b16 %v4774
        %v5362 = vunpack.c.h.b16 %v4774
        %v5363 = vunpack.c.l.b16 %v4775
        %v5364 = vunpack.c.l.b16 %v4776
        %v5365 = vunpack.c.h.b16 %v4776
        %v5366 = vunpack.c.l.b16 %v4777
        %v5367 = vunpack.c.h.b16 %v4777
        %v5368 = vunpack.c.l.b16 %v4778
        %v5369 = vunpack.c.h.b16 %v4778
        %v5370 = vunpack.c.l.b16 %v4779
        %v5371 = vunpack.c.h.b16 %v4779
        %v5372 = vunpack.c.l.b16 %v4780
        %v5373 = vpack.c.b16 %v5094, %v5085
        %v5374 = vpack.c.b16 %v5095, %v5086
        %v5375 = vpack.c.b16 %v5096, %v5087
        %v5376 = vpack.c.b16 %v5097, %v5088
        %v5377 = vpack.c.b16 %v5098, %v5089
        %v5378 = vpack.c.b16 %v5099, %v5090
        %v5379 = vpack.c.b16 %v5100, %v5091
        %v5380 = vpack.c.b16 %v5101, %v5092
        %v5381 = vpack.c.b16 %v5102, %v5093
        %v5382 = vpack.c.b16 %v5112, %v5103
        %v5383 = vpack.c.b16 %v5113, %v5104
        %v5384 = vpack.c.b16 %v5114, %v5105
        %v5385 = vpack.c.b16 %v5115, %v5106
        %v5386 = vpack.c.b16 %v5116, %v5107
        %v5387 = vpack.c.b16 %v5117, %v5108
        %v5388 = vpack.c.b16 %v5118, %v5109
        %v5389 = vpack.c.b16 %v5119, %v5110
        %v5390 = vpack.c.b16 %v5120, %v5111
        %v5391 = vpack.c.b16 %v5130, %v5121
        %v5392 = vpack.c.b16 %v5131, %v5122
        %v5393 = vpack.c.b16 %v5132, %v5123
        %v5394 = vpack.c.b16 %v5133, %v5124
        %v5395 = vpack.c.b16 %v5134, %v5125
        %v5396 = vpack.c.b16 %v5135, %v5126
        %v5397 = vpack.c.b16 %v5136, %v5127
        %v5398 = vpack.c.b16 %v5137, %v5128
        %v5399 = vpack.c.b16 %v5138, %v5129
        %v5400 = vpack.c.b16 %v5148, %v5139
        %v5401 = vpack.c.b16 %v5149, %v5140
        %v5402 = vpack.c.b16 %v5150, %v5141
        %v5403 = vpack.c.b16 %v5151, %v5142
        %v5404 = vpack.c.b16 %v5152, %v5143
        %v5405 = vpack.c.b16 %v5153, %v5144
        %v5406 = vpack.c.b16 %v5154, %v5145
        %v5407 = vpack.c.b16 %v5155, %v5146
        %v5408 = vpack.c.b16 %v5156, %v5147
        %v5409 = vpack.c.b16 %v5166, %v5157
        %v5410 = vpack.c.b16 %v5167, %v5158
        %v5411 = vpack.c.b16 %v5168, %v5159
        %v5412 = vpack.c.b16 %v5169, %v5160
        %v5413 = vpack.c.b16 %v5170, %v5161
        %v5414 = vpack.c.b16 %v5171, %v5162
        %v5415 = vpack.c.b16 %v5172, %v5163
        %v5416 = vpack.c.b16 %v5173, %v5164
        %v5417 = vpack.c.b16 %v5174, %v5165
        %v5418 = vpack.c.b16 %v5184, %v5175
        %v5419 = vpack.c.b16 %v5185, %v5176
        %v5420 = vpack.c.b16 %v5186, %v5177
        %v5421 = vpack.c.b16 %v5187, %v5178
        %v5422 = vpack.c.b16 %v5188, %v5179
        %v5423 = vpack.c.b16 %v5189, %v5180
        %v5424 = vpack.c.b16 %v5190, %v5181
        %v5425 = vpack.c.b16 %v5191, %v5182
        %v5426 = vpack.c.b16 %v5192, %v5183
        %v5427 = vpack.c.b16 %v5202, %v5193
        %v5428 = vpack.c.b16 %v5203, %v5194
        %v5429 = vpack.c.b16 %v5204, %v5195
        %v5430 = vpack.c.b16 %v5205, %v5196
        %v5431 = vpack.c.b16 %v5206, %v5197
        %v5432 = vpack.c.b16 %v5207, %v5198
        %v5433 = vpack.c.b16 %v5208, %v5199
        %v5434 = vpack.c.b16 %v5209, %v5200
        %v5435 = vpack.c.b16 %v5210, %v5201
        %v5436 = vpack.c.b16 %v5220, %v5211
        %v5437 = vpack.c.b16 %v5221, %v5212
        %v5438 = vpack.c.b16 %v5222, %v5213
        %v5439 = vpack.c.b16 %v5223, %v5214
        %v5440 = vpack.c.b16 %v5224, %v5215
        %v5441 = vpack.c.b16 %v5225, %v5216
        %v5442 = vpack.c.b16 %v5226, %v5217
        %v5443 = vpack.c.b16 %v5227, %v5218
        %v5444 = vpack.c.b16 %v5228, %v5219
        %v5445 = vpack.c.b16 %v5238, %v5229
        %v5446 = vpack.c.b16 %v5239, %v5230
        %v5447 = vpack.c.b16 %v5240, %v5231
        %v5448 = vpack.c.b16 %v5241, %v5232
        %v5449 = vpack.c.b16 %v5242, %v5233
        %v5450 = vpack.c.b16 %v5243, %v5234
        %v5451 = vpack.c.b16 %v5244, %v5235
        %v5452 = vpack.c.b16 %v5245, %v5236
        %v5453 = vpack.c.b16 %v5246, %v5237
        %v5454 = vpack.c.b16 %v5256, %v5247
        %v5455 = vpack.c.b16 %v5257, %v5248
        %v5456 = vpack.c.b16 %v5258, %v5249
        %v5457 = vpack.c.b16 %v5259, %v5250
        %v5458 = vpack.c.b16 %v5260, %v5251
        %v5459 = vpack.c.b16 %v5261, %v5252
        %v5460 = vpack.c.b16 %v5262, %v5253
        %v5461 = vpack.c.b16 %v5263, %v5254
        %v5462 = vpack.c.b16 %v5264, %v5255
        %v5463 = vpack.c.b16 %v5274, %v5265
        %v5464 = vpack.c.b16 %v5275, %v5266
        %v5465 = vpack.c.b16 %v5276, %v5267
        %v5466 = vpack.c.b16 %v5277, %v5268
        %v5467 = vpack.c.b16 %v5278, %v5269
        %v5468 = vpack.c.b16 %v5279, %v5270
        %v5469 = vpack.c.b16 %v5280, %v5271
        %v5470 = vpack.c.b16 %v5281, %v5272
        %v5471 = vpack.c.b16 %v5282, %v5273
        %v5472 = vpack.c.b16 %v5292, %v5283
        %v5473 = vpack.c.b16 %v5293, %v5284
        %v5474 = vpack.c.b16 %v5294, %v5285
        %v5475 = vpack.c.b16 %v5295, %v5286
        %v5476 = vpack.c.b16 %v5296, %v5287
        %v5477 = vpack.c.b16 %v5297, %v5288
        %v5478 = vpack.c.b16 %v5298, %v5289
        %v5479 = vpack.c.b16 %v5299, %v5290
        %v5480 = vpack.c.b16 %v5300, %v5291
        %v5481 = vpack.c.b16 %v5310, %v5301
        %v5482 = vpack.c.b16 %v5311, %v5302
        %v5483 = vpack.c.b16 %v5312, %v5303
        %v5484 = vpack.c.b16 %v5313, %v5304
        %v5485 = vpack.c.b16 %v5314, %v5305
        %v5486 = vpack.c.b16 %v5315, %v5306
        %v5487 = vpack.c.b16 %v5316, %v5307
        %v5488 = vpack.c.b16 %v5317, %v5308
        %v5489 = vpack.c.b16 %v5318, %v5309
        %v5490 = vpack.c.b16 %v5328, %v5319
        %v5491 = vpack.c.b16 %v5329, %v5320
        %v5492 = vpack.c.b16 %v5330, %v5321
        %v5493 = vpack.c.b16 %v5331, %v5322
        %v5494 = vpack.c.b16 %v5332, %v5323
        %v5495 = vpack.c.b16 %v5333, %v5324
        %v5496 = vpack.c.b16 %v5334, %v5325
        %v5497 = vpack.c.b16 %v5335, %v5326
        %v5498 = vpack.c.b16 %v5336, %v5327
        %v5499 = vpack.c.b16 %v5346, %v5337
        %v5500 = vpack.c.b16 %v5347, %v5338
        %v5501 = vpack.c.b16 %v5348, %v5339
        %v5502 = vpack.c.b16 %v5349, %v5340
        %v5503 = vpack.c.b16 %v5350, %v5341
        %v5504 = vpack.c.b16 %v5351, %v5342
        %v5505 = vpack.c.b16 %v5352, %v5343
        %v5506 = vpack.c.b16 %v5353, %v5344
        %v5507 = vpack.c.b16 %v5354, %v5345
        %v5508 = vpack.c.b16 %v5364, %v5355
        %v5509 = vpack.c.b16 %v5365, %v5356
        %v5510 = vpack.c.b16 %v5366, %v5357
        %v5511 = vpack.c.b16 %v5367, %v5358
        %v5512 = vpack.c.b16 %v5368, %v5359
        %v5513 = vpack.c.b16 %v5369, %v5360
        %v5514 = vpack.c.b16 %v5370, %v5361
        %v5515 = vpack.c.b16 %v5371, %v5362
        %v5516 = vpack.c.b16 %v5372, %v5363
        %v5805 = vunpack.c.l.b16 %v4781
        %v5806 = vunpack.c.l.b16 %v4782
        %v5807 = vunpack.c.l.b16 %v4783
        %v5808 = vunpack.c.l.b16 %v4784
        %v5809 = vunpack.c.l.b16 %v4785
        %v5810 = vunpack.c.l.b16 %v4786
        %v5811 = vunpack.c.l.b16 %v4787
        %v5812 = vunpack.c.l.b16 %v4788
        %v5813 = vunpack.c.l.b16 %v4789
        %v5814 = vunpack.c.l.b16 %v4790
        %v5815 = vunpack.c.l.b16 %v4791
        %v5816 = vunpack.c.l.b16 %v4792
        %v5817 = vunpack.c.l.b16 %v4793
        %v5818 = vunpack.c.l.b16 %v4794
        %v5819 = vunpack.c.l.b16 %v4795
        %v5820 = vunpack.c.l.b16 %v4796
        %v5821 = vunpack.c.l.b16 %v4797
        %v5822 = vunpack.c.l.b16 %v4798
        %v5823 = vunpack.c.l.b16 %v4799
        %v5824 = vunpack.c.l.b16 %v4800
        %v5825 = vunpack.c.l.b16 %v4801
        %v5826 = vunpack.c.l.b16 %v4802
        %v5827 = vunpack.c.l.b16 %v4803
        %v5828 = vunpack.c.l.b16 %v4804
        %v5829 = vunpack.c.l.b16 %v4805
        %v5830 = vunpack.c.l.b16 %v4806
        %v5831 = vunpack.c.l.b16 %v4807
        %v5832 = vunpack.c.l.b16 %v4808
        %v5833 = vunpack.c.l.b16 %v4809
        %v5834 = vunpack.c.l.b16 %v4810
        %v5835 = vunpack.c.l.b16 %v4811
        %v5836 = vunpack.c.l.b16 %v4812
        %v5837 = vunpack.c.l.b16 %v4813
        %v5838 = vunpack.c.l.b16 %v4814
        %v5839 = vunpack.c.l.b16 %v4815
        %v5840 = vunpack.c.l.b16 %v4816
        %v5841 = vunpack.c.l.b16 %v4817
        %v5842 = vunpack.c.l.b16 %v4818
        %v5843 = vunpack.c.l.b16 %v4819
        %v5844 = vunpack.c.l.b16 %v4820
        %v5845 = vunpack.c.l.b16 %v4821
        %v5846 = vunpack.c.l.b16 %v4822
        %v5847 = vunpack.c.l.b16 %v4823
        %v5848 = vunpack.c.l.b16 %v4824
        %v5849 = vunpack.c.l.b16 %v4825
        %v5850 = vunpack.c.l.b16 %v4826
        %v5851 = vunpack.c.l.b16 %v4827
        %v5852 = vunpack.c.l.b16 %v4828
        %v5853 = vunpack.c.l.b16 %v4829
        %v5854 = vunpack.c.l.b16 %v4830
        %v5855 = vunpack.c.l.b16 %v4831
        %v5856 = vunpack.c.l.b16 %v4832
        %v5857 = vunpack.c.l.b16 %v4833
        %v5858 = vunpack.c.l.b16 %v4834
        %v5859 = vunpack.c.l.b16 %v4835
        %v5860 = vunpack.c.l.b16 %v4836
        %v5861 = vunpack.c.l.b16 %v4837
        %v5862 = vunpack.c.l.b16 %v4838
        %v5863 = vunpack.c.l.b16 %v4839
        %v5864 = vunpack.c.l.b16 %v4840
        %v5865 = vunpack.c.l.b16 %v4841
        %v5866 = vunpack.c.l.b16 %v4842
        %v5867 = vunpack.c.l.b16 %v4843
        %v5868 = vunpack.c.l.b16 %v4844
        %v5869 = vunpack.c.l.b16 %v4845
        %v5870 = vunpack.c.l.b16 %v4846
        %v5871 = vunpack.c.l.b16 %v4847
        %v5872 = vunpack.c.l.b16 %v4848
        %v5873 = vunpack.c.l.b16 %v4849
        %v5874 = vunpack.c.l.b16 %v4850
        %v5875 = vunpack.c.l.b16 %v4851
        %v5876 = vunpack.c.l.b16 %v4852
        %v5877 = vunpack.c.l.b16 %v4853
        %v5878 = vunpack.c.l.b16 %v4854
        %v5879 = vunpack.c.l.b16 %v4855
        %v5880 = vunpack.c.l.b16 %v4856
        %v5881 = vunpack.c.l.b16 %v4857
        %v5882 = vunpack.c.l.b16 %v4858
        %v5883 = vunpack.c.l.b16 %v4859
        %v5884 = vunpack.c.l.b16 %v4860
        %v5885 = vunpack.c.l.b16 %v4861
        %v5886 = vunpack.c.l.b16 %v4862
        %v5887 = vunpack.c.l.b16 %v4863
        %v5888 = vunpack.c.l.b16 %v4864
        %v5889 = vunpack.c.l.b16 %v4865
        %v5890 = vunpack.c.l.b16 %v4866
        %v5891 = vunpack.c.l.b16 %v4867
        %v5892 = vunpack.c.l.b16 %v4868
        %v5893 = vunpack.c.l.b16 %v4869
        %v5894 = vunpack.c.l.b16 %v4870
        %v5895 = vunpack.c.l.b16 %v4871
        %v5896 = vunpack.c.l.b16 %v4872
        %v5897 = vunpack.c.l.b16 %v4873
        %v5898 = vunpack.c.l.b16 %v4874
        %v5899 = vunpack.c.l.b16 %v4875
        %v5900 = vunpack.c.l.b16 %v4876
        %v5901 = vunpack.c.l.b16 %v4877
        %v5902 = vunpack.c.l.b16 %v4878
        %v5903 = vunpack.c.l.b16 %v4879
        %v5904 = vunpack.c.l.b16 %v4880
        %v5905 = vunpack.c.l.b16 %v4881
        %v5906 = vunpack.c.l.b16 %v4882
        %v5907 = vunpack.c.l.b16 %v4883
        %v5908 = vunpack.c.l.b16 %v4884
        %v5909 = vunpack.c.l.b16 %v4885
        %v5910 = vunpack.c.l.b16 %v4886
        %v5911 = vunpack.c.l.b16 %v4887
        %v5912 = vunpack.c.l.b16 %v4888
        %v5913 = vunpack.c.l.b16 %v4889
        %v5914 = vunpack.c.l.b16 %v4890
        %v5915 = vunpack.c.l.b16 %v4891
        %v5916 = vunpack.c.l.b16 %v4892
        %v5917 = vunpack.c.l.b16 %v4893
        %v5918 = vunpack.c.l.b16 %v4894
        %v5919 = vunpack.c.l.b16 %v4895
        %v5920 = vunpack.c.l.b16 %v4896
        %v5921 = vunpack.c.l.b16 %v4897
        %v5922 = vunpack.c.l.b16 %v4898
        %v5923 = vunpack.c.l.b16 %v4899
        %v5924 = vunpack.c.l.b16 %v4900
        %v5925 = vunpack.c.l.b16 %v4901
        %v5926 = vunpack.c.l.b16 %v4902
        %v5927 = vunpack.c.l.b16 %v4903
        %v5928 = vunpack.c.l.b16 %v4904
        %v5929 = vunpack.c.l.b16 %v4905
        %v5930 = vunpack.c.l.b16 %v4906
        %v5931 = vunpack.c.l.b16 %v4907
        %v5932 = vunpack.c.l.b16 %v4908
        %v5933 = vunpack.c.l.b16 %v4909
        %v5934 = vunpack.c.l.b16 %v4910
        %v5935 = vunpack.c.l.b16 %v4911
        %v5936 = vunpack.c.l.b16 %v4912
        %v5937 = vunpack.c.l.b16 %v4913
        %v5938 = vunpack.c.l.b16 %v4914
        %v5939 = vunpack.c.l.b16 %v4915
        %v5940 = vunpack.c.l.b16 %v4916
        %v5941 = vunpack.c.l.b16 %v4917
        %v5942 = vunpack.c.l.b16 %v4918
        %v5943 = vunpack.c.l.b16 %v4919
        %v5944 = vunpack.c.l.b16 %v4920
        %v5945 = vunpack.c.l.b16 %v4921
        %v5946 = vunpack.c.l.b16 %v4922
        %v5947 = vunpack.c.l.b16 %v4923
        %v5948 = vunpack.c.l.b16 %v4924
        %v5949 = vpack.c.b16 %v5806, %v5805
        %v5950 = vpack.c.b16 %v5808, %v5807
        %v5951 = vpack.c.b16 %v5810, %v5809
        %v5952 = vpack.c.b16 %v5812, %v5811
        %v5953 = vpack.c.b16 %v5814, %v5813
        %v5954 = vpack.c.b16 %v5816, %v5815
        %v5955 = vpack.c.b16 %v5818, %v5817
        %v5956 = vpack.c.b16 %v5820, %v5819
        %v5957 = vpack.c.b16 %v5822, %v5821
        %v5958 = vpack.c.b16 %v5824, %v5823
        %v5959 = vpack.c.b16 %v5826, %v5825
        %v5960 = vpack.c.b16 %v5828, %v5827
        %v5961 = vpack.c.b16 %v5830, %v5829
        %v5962 = vpack.c.b16 %v5832, %v5831
        %v5963 = vpack.c.b16 %v5834, %v5833
        %v5964 = vpack.c.b16 %v5836, %v5835
        %v5965 = vpack.c.b16 %v5838, %v5837
        %v5966 = vpack.c.b16 %v5840, %v5839
        %v5967 = vpack.c.b16 %v5842, %v5841
        %v5968 = vpack.c.b16 %v5844, %v5843
        %v5969 = vpack.c.b16 %v5846, %v5845
        %v5970 = vpack.c.b16 %v5848, %v5847
        %v5971 = vpack.c.b16 %v5850, %v5849
        %v5972 = vpack.c.b16 %v5852, %v5851
        %v5973 = vpack.c.b16 %v5854, %v5853
        %v5974 = vpack.c.b16 %v5856, %v5855
        %v5975 = vpack.c.b16 %v5858, %v5857
        %v5976 = vpack.c.b16 %v5860, %v5859
        %v5977 = vpack.c.b16 %v5862, %v5861
        %v5978 = vpack.c.b16 %v5864, %v5863
        %v5979 = vpack.c.b16 %v5866, %v5865
        %v5980 = vpack.c.b16 %v5868, %v5867
        %v5981 = vpack.c.b16 %v5870, %v5869
        %v5982 = vpack.c.b16 %v5872, %v5871
        %v5983 = vpack.c.b16 %v5874, %v5873
        %v5984 = vpack.c.b16 %v5876, %v5875
        %v5985 = vpack.c.b16 %v5878, %v5877
        %v5986 = vpack.c.b16 %v5880, %v5879
        %v5987 = vpack.c.b16 %v5882, %v5881
        %v5988 = vpack.c.b16 %v5884, %v5883
        %v5989 = vpack.c.b16 %v5886, %v5885
        %v5990 = vpack.c.b16 %v5888, %v5887
        %v5991 = vpack.c.b16 %v5890, %v5889
        %v5992 = vpack.c.b16 %v5892, %v5891
        %v5993 = vpack.c.b16 %v5894, %v5893
        %v5994 = vpack.c.b16 %v5896, %v5895
        %v5995 = vpack.c.b16 %v5898, %v5897
        %v5996 = vpack.c.b16 %v5900, %v5899
        %v5997 = vpack.c.b16 %v5902, %v5901
        %v5998 = vpack.c.b16 %v5904, %v5903
        %v5999 = vpack.c.b16 %v5906, %v5905
        %v6000 = vpack.c.b16 %v5908, %v5907
        %v6001 = vpack.c.b16 %v5910, %v5909
        %v6002 = vpack.c.b16 %v5912, %v5911
        %v6003 = vpack.c.b16 %v5914, %v5913
        %v6004 = vpack.c.b16 %v5916, %v5915
        %v6005 = vpack.c.b16 %v5918, %v5917
        %v6006 = vpack.c.b16 %v5920, %v5919
        %v6007 = vpack.c.b16 %v5922, %v5921
        %v6008 = vpack.c.b16 %v5924, %v5923
        %v6009 = vpack.c.b16 %v5926, %v5925
        %v6010 = vpack.c.b16 %v5928, %v5927
        %v6011 = vpack.c.b16 %v5930, %v5929
        %v6012 = vpack.c.b16 %v5932, %v5931
        %v6013 = vpack.c.b16 %v5934, %v5933
        %v6014 = vpack.c.b16 %v5936, %v5935
        %v6015 = vpack.c.b16 %v5938, %v5937
        %v6016 = vpack.c.b16 %v5940, %v5939
        %v6017 = vpack.c.b16 %v5942, %v5941
        %v6018 = vpack.c.b16 %v5944, %v5943
        %v6019 = vpack.c.b16 %v5946, %v5945
        %v6020 = vpack.c.b16 %v5948, %v5947
        %6093 = vmatpush.bf16.msra.mxu0 %v5956
        %6094 = vmatpush.bf16.msra.mxu0 %v5955
        %6095 = vmatpush.bf16.msra.mxu0 %v5954
        %6096 = vmatpush.bf16.msra.mxu0 %v5953
        %6097 = vmatpush.bf16.msra.mxu0 %v5952
        %6098 = vmatpush.bf16.msra.mxu0 %v5951
        %6099 = vmatpush.bf16.msra.mxu0 %v5950
        %6100 = vmatpush.bf16.msra.mxu0 %v5949
        %6101 = vmatmul.bf16.gmra.mxu0 %v5373
        %v6102 = vpop.f32.mrf.mxu0
        %v6103 = vadd.f32 0.0, %v6102
        %v6104 = vpop.f32.mrf.mxu0
        %v6105 = vadd.f32 0.0, %v6104
        %6106 = vmatmul.bf16.gmra.mxu0 %v5382
        %v6107 = vpop.f32.mrf.mxu0
        %v6108 = vadd.f32 0.0, %v6107
        %v6109 = vpop.f32.mrf.mxu0
        %v6110 = vadd.f32 0.0, %v6109
        %6111 = vmatmul.bf16.gmra.mxu0 %v5391
        %v6112 = vpop.f32.mrf.mxu0
        %v6113 = vadd.f32 0.0, %v6112
        %v6114 = vpop.f32.mrf.mxu0
        %v6115 = vadd.f32 0.0, %v6114
        %6116 = vmatmul.bf16.gmra.mxu0 %v5400
        %v6117 = vpop.f32.mrf.mxu0
        %v6118 = vadd.f32 0.0, %v6117
        %v6119 = vpop.f32.mrf.mxu0
        %v6120 = vadd.f32 0.0, %v6119
        %6121 = vmatmul.bf16.gmra.mxu0 %v5409
        %v6122 = vpop.f32.mrf.mxu0
        %v6123 = vadd.f32 0.0, %v6122
        %v6124 = vpop.f32.mrf.mxu0
        %v6125 = vadd.f32 0.0, %v6124
        %6126 = vmatmul.bf16.gmra.mxu0 %v5418
        %v6127 = vpop.f32.mrf.mxu0
        %v6128 = vadd.f32 0.0, %v6127
        %v6129 = vpop.f32.mrf.mxu0
        %v6130 = vadd.f32 0.0, %v6129
        %6131 = vmatmul.bf16.gmra.mxu0 %v5427
        %v6132 = vpop.f32.mrf.mxu0
        %v6133 = vadd.f32 0.0, %v6132
        %v6134 = vpop.f32.mrf.mxu0
        %v6135 = vadd.f32 0.0, %v6134
        %6136 = vmatmul.bf16.gmra.mxu0 %v5436
        %v6137 = vpop.f32.mrf.mxu0
        %v6138 = vadd.f32 0.0, %v6137
        %v6139 = vpop.f32.mrf.mxu0
        %v6140 = vadd.f32 0.0, %v6139
        %6141 = vmatmul.bf16.gmra.mxu0 %v5445
        %v6142 = vpop.f32.mrf.mxu0
        %v6143 = vadd.f32 0.0, %v6142
        %v6144 = vpop.f32.mrf.mxu0
        %v6145 = vadd.f32 0.0, %v6144
        %6146 = vmatmul.bf16.gmra.mxu0 %v5454
        %v6147 = vpop.f32.mrf.mxu0
        %v6148 = vadd.f32 0.0, %v6147
        %v6149 = vpop.f32.mrf.mxu0
        %v6150 = vadd.f32 0.0, %v6149
        %6151 = vmatmul.bf16.gmra.mxu0 %v5463
        %v6152 = vpop.f32.mrf.mxu0
        %v6153 = vadd.f32 0.0, %v6152
        %v6154 = vpop.f32.mrf.mxu0
        %v6155 = vadd.f32 0.0, %v6154
        %6156 = vmatmul.bf16.gmra.mxu0 %v5472
        %v6157 = vpop.f32.mrf.mxu0
        %v6158 = vadd.f32 0.0, %v6157
        %v6159 = vpop.f32.mrf.mxu0
        %v6160 = vadd.f32 0.0, %v6159
        %6161 = vmatmul.bf16.gmra.mxu0 %v5481
        %v6162 = vpop.f32.mrf.mxu0
        %v6163 = vadd.f32 0.0, %v6162
        %v6164 = vpop.f32.mrf.mxu0
        %v6165 = vadd.f32 0.0, %v6164
        %6166 = vmatmul.bf16.gmra.mxu0 %v5490
        %v6167 = vpop.f32.mrf.mxu0
        %v6168 = vadd.f32 0.0, %v6167
        %v6169 = vpop.f32.mrf.mxu0
        %v6170 = vadd.f32 0.0, %v6169
        %6171 = vmatmul.bf16.gmra.mxu0 %v5499
        %v6172 = vpop.f32.mrf.mxu0
        %v6173 = vadd.f32 0.0, %v6172
        %v6174 = vpop.f32.mrf.mxu0
        %v6175 = vadd.f32 0.0, %v6174
        %6176 = vmatmul.bf16.gmra.mxu0 %v5508
        %v6177 = vpop.f32.mrf.mxu0
        %v6178 = vadd.f32 0.0, %v6177
        %v6179 = vpop.f32.mrf.mxu0
        %v6180 = vadd.f32 0.0, %v6179
        %6181 = vdwg.mxu0
        %6182 = vmatpush.bf16.msra.mxu0 %v5964
        %6183 = vmatpush.bf16.msra.mxu0 %v5963
        %6184 = vmatpush.bf16.msra.mxu0 %v5962
        %6185 = vmatpush.bf16.msra.mxu0 %v5961
        %6186 = vmatpush.bf16.msra.mxu0 %v5960
        %6187 = vmatpush.bf16.msra.mxu0 %v5959
        %6188 = vmatpush.bf16.msra.mxu0 %v5958
        %6189 = vmatpush.bf16.msra.mxu0 %v5957
        %6190 = vmatmul.bf16.gmra.mxu0 %v5374
        %v6191 = vpop.f32.mrf.mxu0
        %v6192 = vadd.f32 %v6103, %v6191
        %v6193 = vpop.f32.mrf.mxu0
        %v6194 = vadd.f32 %v6105, %v6193
        %6195 = vmatmul.bf16.gmra.mxu0 %v5383
        %v6196 = vpop.f32.mrf.mxu0
        %v6197 = vadd.f32 %v6108, %v6196
        %v6198 = vpop.f32.mrf.mxu0
        %v6199 = vadd.f32 %v6110, %v6198
        %6200 = vmatmul.bf16.gmra.mxu0 %v5392
        %v6201 = vpop.f32.mrf.mxu0
        %v6202 = vadd.f32 %v6113, %v6201
        %v6203 = vpop.f32.mrf.mxu0
        %v6204 = vadd.f32 %v6115, %v6203
        %6205 = vmatmul.bf16.gmra.mxu0 %v5401
        %v6206 = vpop.f32.mrf.mxu0
        %v6207 = vadd.f32 %v6118, %v6206
        %v6208 = vpop.f32.mrf.mxu0
        %v6209 = vadd.f32 %v6120, %v6208
        %6210 = vmatmul.bf16.gmra.mxu0 %v5410
        %v6211 = vpop.f32.mrf.mxu0
        %v6212 = vadd.f32 %v6123, %v6211
        %v6213 = vpop.f32.mrf.mxu0
        %v6214 = vadd.f32 %v6125, %v6213
        %6215 = vmatmul.bf16.gmra.mxu0 %v5419
        %v6216 = vpop.f32.mrf.mxu0
        %v6217 = vadd.f32 %v6128, %v6216
        %v6218 = vpop.f32.mrf.mxu0
        %v6219 = vadd.f32 %v6130, %v6218
        %6220 = vmatmul.bf16.gmra.mxu0 %v5428
        %v6221 = vpop.f32.mrf.mxu0
        %v6222 = vadd.f32 %v6133, %v6221
        %v6223 = vpop.f32.mrf.mxu0
        %v6224 = vadd.f32 %v6135, %v6223
        %6225 = vmatmul.bf16.gmra.mxu0 %v5437
        %v6226 = vpop.f32.mrf.mxu0
        %v6227 = vadd.f32 %v6138, %v6226
        %v6228 = vpop.f32.mrf.mxu0
        %v6229 = vadd.f32 %v6140, %v6228
        %6230 = vmatmul.bf16.gmra.mxu0 %v5446
        %v6231 = vpop.f32.mrf.mxu0
        %v6232 = vadd.f32 %v6143, %v6231
        %v6233 = vpop.f32.mrf.mxu0
        %v6234 = vadd.f32 %v6145, %v6233
        %6235 = vmatmul.bf16.gmra.mxu0 %v5455
        %v6236 = vpop.f32.mrf.mxu0
        %v6237 = vadd.f32 %v6148, %v6236
        %v6238 = vpop.f32.mrf.mxu0
        %v6239 = vadd.f32 %v6150, %v6238
        %6240 = vmatmul.bf16.gmra.mxu0 %v5464
        %v6241 = vpop.f32.mrf.mxu0
        %v6242 = vadd.f32 %v6153, %v6241
        %v6243 = vpop.f32.mrf.mxu0
        %v6244 = vadd.f32 %v6155, %v6243
        %6245 = vmatmul.bf16.gmra.mxu0 %v5473
        %v6246 = vpop.f32.mrf.mxu0
        %v6247 = vadd.f32 %v6158, %v6246
        %v6248 = vpop.f32.mrf.mxu0
        %v6249 = vadd.f32 %v6160, %v6248
        %6250 = vmatmul.bf16.gmra.mxu0 %v5482
        %v6251 = vpop.f32.mrf.mxu0
        %v6252 = vadd.f32 %v6163, %v6251
        %v6253 = vpop.f32.mrf.mxu0
        %v6254 = vadd.f32 %v6165, %v6253
        %6255 = vmatmul.bf16.gmra.mxu0 %v5491
        %v6256 = vpop.f32.mrf.mxu0
        %v6257 = vadd.f32 %v6168, %v6256
        %v6258 = vpop.f32.mrf.mxu0
        %v6259 = vadd.f32 %v6170, %v6258
        %6260 = vmatmul.bf16.gmra.mxu0 %v5500
        %v6261 = vpop.f32.mrf.mxu0
        %v6262 = vadd.f32 %v6173, %v6261
        %v6263 = vpop.f32.mrf.mxu0
        %v6264 = vadd.f32 %v6175, %v6263
        %6265 = vmatmul.bf16.gmra.mxu0 %v5509
        %v6266 = vpop.f32.mrf.mxu0
        %v6267 = vadd.f32 %v6178, %v6266
        %v6268 = vpop.f32.mrf.mxu0
        %v6269 = vadd.f32 %v6180, %v6268
        %6270 = vdwg.mxu0
        %6271 = vmatpush.bf16.msra.mxu0 %v5972
        %6272 = vmatpush.bf16.msra.mxu0 %v5971
        %6273 = vmatpush.bf16.msra.mxu0 %v5970
        %6274 = vmatpush.bf16.msra.mxu0 %v5969
        %6275 = vmatpush.bf16.msra.mxu0 %v5968
        %6276 = vmatpush.bf16.msra.mxu0 %v5967
        %6277 = vmatpush.bf16.msra.mxu0 %v5966
        %6278 = vmatpush.bf16.msra.mxu0 %v5965
        %6279 = vmatmul.bf16.gmra.mxu0 %v5375
        %v6280 = vpop.f32.mrf.mxu0
        %v6281 = vadd.f32 %v6192, %v6280
        %v6282 = vpop.f32.mrf.mxu0
        %v6283 = vadd.f32 %v6194, %v6282
        %6284 = vmatmul.bf16.gmra.mxu0 %v5384
        %v6285 = vpop.f32.mrf.mxu0
        %v6286 = vadd.f32 %v6197, %v6285
        %v6287 = vpop.f32.mrf.mxu0
        %v6288 = vadd.f32 %v6199, %v6287
        %6289 = vmatmul.bf16.gmra.mxu0 %v5393
        %v6290 = vpop.f32.mrf.mxu0
        %v6291 = vadd.f32 %v6202, %v6290
        %v6292 = vpop.f32.mrf.mxu0
        %v6293 = vadd.f32 %v6204, %v6292
        %6294 = vmatmul.bf16.gmra.mxu0 %v5402
        %v6295 = vpop.f32.mrf.mxu0
        %v6296 = vadd.f32 %v6207, %v6295
        %v6297 = vpop.f32.mrf.mxu0
        %v6298 = vadd.f32 %v6209, %v6297
        %6299 = vmatmul.bf16.gmra.mxu0 %v5411
        %v6300 = vpop.f32.mrf.mxu0
        %v6301 = vadd.f32 %v6212, %v6300
        %v6302 = vpop.f32.mrf.mxu0
        %v6303 = vadd.f32 %v6214, %v6302
        %6304 = vmatmul.bf16.gmra.mxu0 %v5420
        %v6305 = vpop.f32.mrf.mxu0
        %v6306 = vadd.f32 %v6217, %v6305
        %v6307 = vpop.f32.mrf.mxu0
        %v6308 = vadd.f32 %v6219, %v6307
        %6309 = vmatmul.bf16.gmra.mxu0 %v5429
        %v6310 = vpop.f32.mrf.mxu0
        %v6311 = vadd.f32 %v6222, %v6310
        %v6312 = vpop.f32.mrf.mxu0
        %v6313 = vadd.f32 %v6224, %v6312
        %6314 = vmatmul.bf16.gmra.mxu0 %v5438
        %v6315 = vpop.f32.mrf.mxu0
        %v6316 = vadd.f32 %v6227, %v6315
        %v6317 = vpop.f32.mrf.mxu0
        %v6318 = vadd.f32 %v6229, %v6317
        %6319 = vmatmul.bf16.gmra.mxu0 %v5447
        %v6320 = vpop.f32.mrf.mxu0
        %v6321 = vadd.f32 %v6232, %v6320
        %v6322 = vpop.f32.mrf.mxu0
        %v6323 = vadd.f32 %v6234, %v6322
        %6324 = vmatmul.bf16.gmra.mxu0 %v5456
        %v6325 = vpop.f32.mrf.mxu0
        %v6326 = vadd.f32 %v6237, %v6325
        %v6327 = vpop.f32.mrf.mxu0
        %v6328 = vadd.f32 %v6239, %v6327
        %6329 = vmatmul.bf16.gmra.mxu0 %v5465
        %v6330 = vpop.f32.mrf.mxu0
        %v6331 = vadd.f32 %v6242, %v6330
        %v6332 = vpop.f32.mrf.mxu0
        %v6333 = vadd.f32 %v6244, %v6332
        %6334 = vmatmul.bf16.gmra.mxu0 %v5474
        %v6335 = vpop.f32.mrf.mxu0
        %v6336 = vadd.f32 %v6247, %v6335
        %v6337 = vpop.f32.mrf.mxu0
        %v6338 = vadd.f32 %v6249, %v6337
        %6339 = vmatmul.bf16.gmra.mxu0 %v5483
        %v6340 = vpop.f32.mrf.mxu0
        %v6341 = vadd.f32 %v6252, %v6340
        %v6342 = vpop.f32.mrf.mxu0
        %v6343 = vadd.f32 %v6254, %v6342
        %6344 = vmatmul.bf16.gmra.mxu0 %v5492
        %v6345 = vpop.f32.mrf.mxu0
        %v6346 = vadd.f32 %v6257, %v6345
        %v6347 = vpop.f32.mrf.mxu0
        %v6348 = vadd.f32 %v6259, %v6347
        %6349 = vmatmul.bf16.gmra.mxu0 %v5501
        %v6350 = vpop.f32.mrf.mxu0
        %v6351 = vadd.f32 %v6262, %v6350
        %v6352 = vpop.f32.mrf.mxu0
        %v6353 = vadd.f32 %v6264, %v6352
        %6354 = vmatmul.bf16.gmra.mxu0 %v5510
        %v6355 = vpop.f32.mrf.mxu0
        %v6356 = vadd.f32 %v6267, %v6355
        %v6357 = vpop.f32.mrf.mxu0
        %v6358 = vadd.f32 %v6269, %v6357
        %6359 = vdwg.mxu0
        %6360 = vmatpush.bf16.msra.mxu0 %v5980
        %6361 = vmatpush.bf16.msra.mxu0 %v5979
        %6362 = vmatpush.bf16.msra.mxu0 %v5978
        %6363 = vmatpush.bf16.msra.mxu0 %v5977
        %6364 = vmatpush.bf16.msra.mxu0 %v5976
        %6365 = vmatpush.bf16.msra.mxu0 %v5975
        %6366 = vmatpush.bf16.msra.mxu0 %v5974
        %6367 = vmatpush.bf16.msra.mxu0 %v5973
        %6368 = vmatmul.bf16.gmra.mxu0 %v5376
        %v6369 = vpop.f32.mrf.mxu0
        %v6370 = vadd.f32 %v6281, %v6369
        %v6371 = vpop.f32.mrf.mxu0
        %v6372 = vadd.f32 %v6283, %v6371
        %6373 = vmatmul.bf16.gmra.mxu0 %v5385
        %v6374 = vpop.f32.mrf.mxu0
        %v6375 = vadd.f32 %v6286, %v6374
        %v6376 = vpop.f32.mrf.mxu0
        %v6377 = vadd.f32 %v6288, %v6376
        %6378 = vmatmul.bf16.gmra.mxu0 %v5394
        %v6379 = vpop.f32.mrf.mxu0
        %v6380 = vadd.f32 %v6291, %v6379
        %v6381 = vpop.f32.mrf.mxu0
        %v6382 = vadd.f32 %v6293, %v6381
        %6383 = vmatmul.bf16.gmra.mxu0 %v5403
        %v6384 = vpop.f32.mrf.mxu0
        %v6385 = vadd.f32 %v6296, %v6384
        %v6386 = vpop.f32.mrf.mxu0
        %v6387 = vadd.f32 %v6298, %v6386
        %6388 = vmatmul.bf16.gmra.mxu0 %v5412
        %v6389 = vpop.f32.mrf.mxu0
        %v6390 = vadd.f32 %v6301, %v6389
        %v6391 = vpop.f32.mrf.mxu0
        %v6392 = vadd.f32 %v6303, %v6391
        %6393 = vmatmul.bf16.gmra.mxu0 %v5421
        %v6394 = vpop.f32.mrf.mxu0
        %v6395 = vadd.f32 %v6306, %v6394
        %v6396 = vpop.f32.mrf.mxu0
        %v6397 = vadd.f32 %v6308, %v6396
        %6398 = vmatmul.bf16.gmra.mxu0 %v5430
        %v6399 = vpop.f32.mrf.mxu0
        %v6400 = vadd.f32 %v6311, %v6399
        %v6401 = vpop.f32.mrf.mxu0
        %v6402 = vadd.f32 %v6313, %v6401
        %6403 = vmatmul.bf16.gmra.mxu0 %v5439
        %v6404 = vpop.f32.mrf.mxu0
        %v6405 = vadd.f32 %v6316, %v6404
        %v6406 = vpop.f32.mrf.mxu0
        %v6407 = vadd.f32 %v6318, %v6406
        %6408 = vmatmul.bf16.gmra.mxu0 %v5448
        %v6409 = vpop.f32.mrf.mxu0
        %v6410 = vadd.f32 %v6321, %v6409
        %v6411 = vpop.f32.mrf.mxu0
        %v6412 = vadd.f32 %v6323, %v6411
        %6413 = vmatmul.bf16.gmra.mxu0 %v5457
        %v6414 = vpop.f32.mrf.mxu0
        %v6415 = vadd.f32 %v6326, %v6414
        %v6416 = vpop.f32.mrf.mxu0
        %v6417 = vadd.f32 %v6328, %v6416
        %6418 = vmatmul.bf16.gmra.mxu0 %v5466
        %v6419 = vpop.f32.mrf.mxu0
        %v6420 = vadd.f32 %v6331, %v6419
        %v6421 = vpop.f32.mrf.mxu0
        %v6422 = vadd.f32 %v6333, %v6421
        %6423 = vmatmul.bf16.gmra.mxu0 %v5475
        %v6424 = vpop.f32.mrf.mxu0
        %v6425 = vadd.f32 %v6336, %v6424
        %v6426 = vpop.f32.mrf.mxu0
        %v6427 = vadd.f32 %v6338, %v6426
        %6428 = vmatmul.bf16.gmra.mxu0 %v5484
        %v6429 = vpop.f32.mrf.mxu0
        %v6430 = vadd.f32 %v6341, %v6429
        %v6431 = vpop.f32.mrf.mxu0
        %v6432 = vadd.f32 %v6343, %v6431
        %6433 = vmatmul.bf16.gmra.mxu0 %v5493
        %v6434 = vpop.f32.mrf.mxu0
        %v6435 = vadd.f32 %v6346, %v6434
        %v6436 = vpop.f32.mrf.mxu0
        %v6437 = vadd.f32 %v6348, %v6436
        %6438 = vmatmul.bf16.gmra.mxu0 %v5502
        %v6439 = vpop.f32.mrf.mxu0
        %v6440 = vadd.f32 %v6351, %v6439
        %v6441 = vpop.f32.mrf.mxu0
        %v6442 = vadd.f32 %v6353, %v6441
        %6443 = vmatmul.bf16.gmra.mxu0 %v5511
        %v6444 = vpop.f32.mrf.mxu0
        %v6445 = vadd.f32 %v6356, %v6444
        %v6446 = vpop.f32.mrf.mxu0
        %v6447 = vadd.f32 %v6358, %v6446
        %6448 = vdwg.mxu0
        %6449 = vmatpush.bf16.msra.mxu0 %v5988
        %6450 = vmatpush.bf16.msra.mxu0 %v5987
        %6451 = vmatpush.bf16.msra.mxu0 %v5986
        %6452 = vmatpush.bf16.msra.mxu0 %v5985
        %6453 = vmatpush.bf16.msra.mxu0 %v5984
        %6454 = vmatpush.bf16.msra.mxu0 %v5983
        %6455 = vmatpush.bf16.msra.mxu0 %v5982
        %6456 = vmatpush.bf16.msra.mxu0 %v5981
        %6457 = vmatmul.bf16.gmra.mxu0 %v5377
        %v6458 = vpop.f32.mrf.mxu0
        %v6459 = vadd.f32 %v6370, %v6458
        %v6460 = vpop.f32.mrf.mxu0
        %v6461 = vadd.f32 %v6372, %v6460
        %6462 = vmatmul.bf16.gmra.mxu0 %v5386
        %v6463 = vpop.f32.mrf.mxu0
        %v6464 = vadd.f32 %v6375, %v6463
        %v6465 = vpop.f32.mrf.mxu0
        %v6466 = vadd.f32 %v6377, %v6465
        %6467 = vmatmul.bf16.gmra.mxu0 %v5395
        %v6468 = vpop.f32.mrf.mxu0
        %v6469 = vadd.f32 %v6380, %v6468
        %v6470 = vpop.f32.mrf.mxu0
        %v6471 = vadd.f32 %v6382, %v6470
        %6472 = vmatmul.bf16.gmra.mxu0 %v5404
        %v6473 = vpop.f32.mrf.mxu0
        %v6474 = vadd.f32 %v6385, %v6473
        %v6475 = vpop.f32.mrf.mxu0
        %v6476 = vadd.f32 %v6387, %v6475
        %6477 = vmatmul.bf16.gmra.mxu0 %v5413
        %v6478 = vpop.f32.mrf.mxu0
        %v6479 = vadd.f32 %v6390, %v6478
        %v6480 = vpop.f32.mrf.mxu0
        %v6481 = vadd.f32 %v6392, %v6480
        %6482 = vmatmul.bf16.gmra.mxu0 %v5422
        %v6483 = vpop.f32.mrf.mxu0
        %v6484 = vadd.f32 %v6395, %v6483
        %v6485 = vpop.f32.mrf.mxu0
        %v6486 = vadd.f32 %v6397, %v6485
        %6487 = vmatmul.bf16.gmra.mxu0 %v5431
        %v6488 = vpop.f32.mrf.mxu0
        %v6489 = vadd.f32 %v6400, %v6488
        %v6490 = vpop.f32.mrf.mxu0
        %v6491 = vadd.f32 %v6402, %v6490
        %6492 = vmatmul.bf16.gmra.mxu0 %v5440
        %v6493 = vpop.f32.mrf.mxu0
        %v6494 = vadd.f32 %v6405, %v6493
        %v6495 = vpop.f32.mrf.mxu0
        %v6496 = vadd.f32 %v6407, %v6495
        %6497 = vmatmul.bf16.gmra.mxu0 %v5449
        %v6498 = vpop.f32.mrf.mxu0
        %v6499 = vadd.f32 %v6410, %v6498
        %v6500 = vpop.f32.mrf.mxu0
        %v6501 = vadd.f32 %v6412, %v6500
        %6502 = vmatmul.bf16.gmra.mxu0 %v5458
        %v6503 = vpop.f32.mrf.mxu0
        %v6504 = vadd.f32 %v6415, %v6503
        %v6505 = vpop.f32.mrf.mxu0
        %v6506 = vadd.f32 %v6417, %v6505
        %6507 = vmatmul.bf16.gmra.mxu0 %v5467
        %v6508 = vpop.f32.mrf.mxu0
        %v6509 = vadd.f32 %v6420, %v6508
        %v6510 = vpop.f32.mrf.mxu0
        %v6511 = vadd.f32 %v6422, %v6510
        %6512 = vmatmul.bf16.gmra.mxu0 %v5476
        %v6513 = vpop.f32.mrf.mxu0
        %v6514 = vadd.f32 %v6425, %v6513
        %v6515 = vpop.f32.mrf.mxu0
        %v6516 = vadd.f32 %v6427, %v6515
        %6517 = vmatmul.bf16.gmra.mxu0 %v5485
        %v6518 = vpop.f32.mrf.mxu0
        %v6519 = vadd.f32 %v6430, %v6518
        %v6520 = vpop.f32.mrf.mxu0
        %v6521 = vadd.f32 %v6432, %v6520
        %6522 = vmatmul.bf16.gmra.mxu0 %v5494
        %v6523 = vpop.f32.mrf.mxu0
        %v6524 = vadd.f32 %v6435, %v6523
        %v6525 = vpop.f32.mrf.mxu0
        %v6526 = vadd.f32 %v6437, %v6525
        %6527 = vmatmul.bf16.gmra.mxu0 %v5503
        %v6528 = vpop.f32.mrf.mxu0
        %v6529 = vadd.f32 %v6440, %v6528
        %v6530 = vpop.f32.mrf.mxu0
        %v6531 = vadd.f32 %v6442, %v6530
        %6532 = vmatmul.bf16.gmra.mxu0 %v5512
        %v6533 = vpop.f32.mrf.mxu0
        %v6534 = vadd.f32 %v6445, %v6533
        %v6535 = vpop.f32.mrf.mxu0
        %v6536 = vadd.f32 %v6447, %v6535
        %6537 = vdwg.mxu0
        %6538 = vmatpush.bf16.msra.mxu0 %v5996
        %6539 = vmatpush.bf16.msra.mxu0 %v5995
        %6540 = vmatpush.bf16.msra.mxu0 %v5994
        %6541 = vmatpush.bf16.msra.mxu0 %v5993
        %6542 = vmatpush.bf16.msra.mxu0 %v5992
        %6543 = vmatpush.bf16.msra.mxu0 %v5991
        %6544 = vmatpush.bf16.msra.mxu0 %v5990
        %6545 = vmatpush.bf16.msra.mxu0 %v5989
        %6546 = vmatmul.bf16.gmra.mxu0 %v5378
        %v6547 = vpop.f32.mrf.mxu0
        %v6548 = vadd.f32 %v6459, %v6547
        %v6549 = vpop.f32.mrf.mxu0
        %v6550 = vadd.f32 %v6461, %v6549
        %6551 = vmatmul.bf16.gmra.mxu0 %v5387
        %v6552 = vpop.f32.mrf.mxu0
        %v6553 = vadd.f32 %v6464, %v6552
        %v6554 = vpop.f32.mrf.mxu0
        %v6555 = vadd.f32 %v6466, %v6554
        %6556 = vmatmul.bf16.gmra.mxu0 %v5396
        %v6557 = vpop.f32.mrf.mxu0
        %v6558 = vadd.f32 %v6469, %v6557
        %v6559 = vpop.f32.mrf.mxu0
        %v6560 = vadd.f32 %v6471, %v6559
        %6561 = vmatmul.bf16.gmra.mxu0 %v5405
        %v6562 = vpop.f32.mrf.mxu0
        %v6563 = vadd.f32 %v6474, %v6562
        %v6564 = vpop.f32.mrf.mxu0
        %v6565 = vadd.f32 %v6476, %v6564
        %6566 = vmatmul.bf16.gmra.mxu0 %v5414
        %v6567 = vpop.f32.mrf.mxu0
        %v6568 = vadd.f32 %v6479, %v6567
        %v6569 = vpop.f32.mrf.mxu0
        %v6570 = vadd.f32 %v6481, %v6569
        %6571 = vmatmul.bf16.gmra.mxu0 %v5423
        %v6572 = vpop.f32.mrf.mxu0
        %v6573 = vadd.f32 %v6484, %v6572
        %v6574 = vpop.f32.mrf.mxu0
        %v6575 = vadd.f32 %v6486, %v6574
        %6576 = vmatmul.bf16.gmra.mxu0 %v5432
        %v6577 = vpop.f32.mrf.mxu0
        %v6578 = vadd.f32 %v6489, %v6577
        %v6579 = vpop.f32.mrf.mxu0
        %v6580 = vadd.f32 %v6491, %v6579
        %6581 = vmatmul.bf16.gmra.mxu0 %v5441
        %v6582 = vpop.f32.mrf.mxu0
        %v6583 = vadd.f32 %v6494, %v6582
        %v6584 = vpop.f32.mrf.mxu0
        %v6585 = vadd.f32 %v6496, %v6584
        %6586 = vmatmul.bf16.gmra.mxu0 %v5450
        %v6587 = vpop.f32.mrf.mxu0
        %v6588 = vadd.f32 %v6499, %v6587
        %v6589 = vpop.f32.mrf.mxu0
        %v6590 = vadd.f32 %v6501, %v6589
        %6591 = vmatmul.bf16.gmra.mxu0 %v5459
        %v6592 = vpop.f32.mrf.mxu0
        %v6593 = vadd.f32 %v6504, %v6592
        %v6594 = vpop.f32.mrf.mxu0
        %v6595 = vadd.f32 %v6506, %v6594
        %6596 = vmatmul.bf16.gmra.mxu0 %v5468
        %v6597 = vpop.f32.mrf.mxu0
        %v6598 = vadd.f32 %v6509, %v6597
        %v6599 = vpop.f32.mrf.mxu0
        %v6600 = vadd.f32 %v6511, %v6599
        %6601 = vmatmul.bf16.gmra.mxu0 %v5477
        %v6602 = vpop.f32.mrf.mxu0
        %v6603 = vadd.f32 %v6514, %v6602
        %v6604 = vpop.f32.mrf.mxu0
        %v6605 = vadd.f32 %v6516, %v6604
        %6606 = vmatmul.bf16.gmra.mxu0 %v5486
        %v6607 = vpop.f32.mrf.mxu0
        %v6608 = vadd.f32 %v6519, %v6607
        %v6609 = vpop.f32.mrf.mxu0
        %v6610 = vadd.f32 %v6521, %v6609
        %6611 = vmatmul.bf16.gmra.mxu0 %v5495
        %v6612 = vpop.f32.mrf.mxu0
        %v6613 = vadd.f32 %v6524, %v6612
        %v6614 = vpop.f32.mrf.mxu0
        %v6615 = vadd.f32 %v6526, %v6614
        %6616 = vmatmul.bf16.gmra.mxu0 %v5504
        %v6617 = vpop.f32.mrf.mxu0
        %v6618 = vadd.f32 %v6529, %v6617
        %v6619 = vpop.f32.mrf.mxu0
        %v6620 = vadd.f32 %v6531, %v6619
        %6621 = vmatmul.bf16.gmra.mxu0 %v5513
        %v6622 = vpop.f32.mrf.mxu0
        %v6623 = vadd.f32 %v6534, %v6622
        %v6624 = vpop.f32.mrf.mxu0
        %v6625 = vadd.f32 %v6536, %v6624
        %6626 = vdwg.mxu0
        %6627 = vmatpush.bf16.msra.mxu0 %v6004
        %6628 = vmatpush.bf16.msra.mxu0 %v6003
        %6629 = vmatpush.bf16.msra.mxu0 %v6002
        %6630 = vmatpush.bf16.msra.mxu0 %v6001
        %6631 = vmatpush.bf16.msra.mxu0 %v6000
        %6632 = vmatpush.bf16.msra.mxu0 %v5999
        %6633 = vmatpush.bf16.msra.mxu0 %v5998
        %6634 = vmatpush.bf16.msra.mxu0 %v5997
        %6635 = vmatmul.bf16.gmra.mxu0 %v5379
        %v6636 = vpop.f32.mrf.mxu0
        %v6637 = vadd.f32 %v6548, %v6636
        %v6638 = vpop.f32.mrf.mxu0
        %v6639 = vadd.f32 %v6550, %v6638
        %6640 = vmatmul.bf16.gmra.mxu0 %v5388
        %v6641 = vpop.f32.mrf.mxu0
        %v6642 = vadd.f32 %v6553, %v6641
        %v6643 = vpop.f32.mrf.mxu0
        %v6644 = vadd.f32 %v6555, %v6643
        %6645 = vmatmul.bf16.gmra.mxu0 %v5397
        %v6646 = vpop.f32.mrf.mxu0
        %v6647 = vadd.f32 %v6558, %v6646
        %v6648 = vpop.f32.mrf.mxu0
        %v6649 = vadd.f32 %v6560, %v6648
        %6650 = vmatmul.bf16.gmra.mxu0 %v5406
        %v6651 = vpop.f32.mrf.mxu0
        %v6652 = vadd.f32 %v6563, %v6651
        %v6653 = vpop.f32.mrf.mxu0
        %v6654 = vadd.f32 %v6565, %v6653
        %6655 = vmatmul.bf16.gmra.mxu0 %v5415
        %v6656 = vpop.f32.mrf.mxu0
        %v6657 = vadd.f32 %v6568, %v6656
        %v6658 = vpop.f32.mrf.mxu0
        %v6659 = vadd.f32 %v6570, %v6658
        %6660 = vmatmul.bf16.gmra.mxu0 %v5424
        %v6661 = vpop.f32.mrf.mxu0
        %v6662 = vadd.f32 %v6573, %v6661
        %v6663 = vpop.f32.mrf.mxu0
        %v6664 = vadd.f32 %v6575, %v6663
        %6665 = vmatmul.bf16.gmra.mxu0 %v5433
        %v6666 = vpop.f32.mrf.mxu0
        %v6667 = vadd.f32 %v6578, %v6666
        %v6668 = vpop.f32.mrf.mxu0
        %v6669 = vadd.f32 %v6580, %v6668
        %6670 = vmatmul.bf16.gmra.mxu0 %v5442
        %v6671 = vpop.f32.mrf.mxu0
        %v6672 = vadd.f32 %v6583, %v6671
        %v6673 = vpop.f32.mrf.mxu0
        %v6674 = vadd.f32 %v6585, %v6673
        %6675 = vmatmul.bf16.gmra.mxu0 %v5451
        %v6676 = vpop.f32.mrf.mxu0
        %v6677 = vadd.f32 %v6588, %v6676
        %v6678 = vpop.f32.mrf.mxu0
        %v6679 = vadd.f32 %v6590, %v6678
        %6680 = vmatmul.bf16.gmra.mxu0 %v5460
        %v6681 = vpop.f32.mrf.mxu0
        %v6682 = vadd.f32 %v6593, %v6681
        %v6683 = vpop.f32.mrf.mxu0
        %v6684 = vadd.f32 %v6595, %v6683
        %6685 = vmatmul.bf16.gmra.mxu0 %v5469
        %v6686 = vpop.f32.mrf.mxu0
        %v6687 = vadd.f32 %v6598, %v6686
        %v6688 = vpop.f32.mrf.mxu0
        %v6689 = vadd.f32 %v6600, %v6688
        %6690 = vmatmul.bf16.gmra.mxu0 %v5478
        %v6691 = vpop.f32.mrf.mxu0
        %v6692 = vadd.f32 %v6603, %v6691
        %v6693 = vpop.f32.mrf.mxu0
        %v6694 = vadd.f32 %v6605, %v6693
        %6695 = vmatmul.bf16.gmra.mxu0 %v5487
        %v6696 = vpop.f32.mrf.mxu0
        %v6697 = vadd.f32 %v6608, %v6696
        %v6698 = vpop.f32.mrf.mxu0
        %v6699 = vadd.f32 %v6610, %v6698
        %6700 = vmatmul.bf16.gmra.mxu0 %v5496
        %v6701 = vpop.f32.mrf.mxu0
        %v6702 = vadd.f32 %v6613, %v6701
        %v6703 = vpop.f32.mrf.mxu0
        %v6704 = vadd.f32 %v6615, %v6703
        %6705 = vmatmul.bf16.gmra.mxu0 %v5505
        %v6706 = vpop.f32.mrf.mxu0
        %v6707 = vadd.f32 %v6618, %v6706
        %v6708 = vpop.f32.mrf.mxu0
        %v6709 = vadd.f32 %v6620, %v6708
        %6710 = vmatmul.bf16.gmra.mxu0 %v5514
        %v6711 = vpop.f32.mrf.mxu0
        %v6712 = vadd.f32 %v6623, %v6711
        %v6713 = vpop.f32.mrf.mxu0
        %v6714 = vadd.f32 %v6625, %v6713
        %6715 = vdwg.mxu0
        %6716 = vmatpush.bf16.msra.mxu0 %v6012
        %6717 = vmatpush.bf16.msra.mxu0 %v6011
        %6718 = vmatpush.bf16.msra.mxu0 %v6010
        %6719 = vmatpush.bf16.msra.mxu0 %v6009
        %6720 = vmatpush.bf16.msra.mxu0 %v6008
        %6721 = vmatpush.bf16.msra.mxu0 %v6007
        %6722 = vmatpush.bf16.msra.mxu0 %v6006
        %6723 = vmatpush.bf16.msra.mxu0 %v6005
        %6724 = vmatmul.bf16.gmra.mxu0 %v5380
        %v6725 = vpop.f32.mrf.mxu0
        %v6726 = vadd.f32 %v6637, %v6725
        %v6727 = vpop.f32.mrf.mxu0
        %v6728 = vadd.f32 %v6639, %v6727
        %6729 = vmatmul.bf16.gmra.mxu0 %v5389
        %v6730 = vpop.f32.mrf.mxu0
        %v6731 = vadd.f32 %v6642, %v6730
        %v6732 = vpop.f32.mrf.mxu0
        %v6733 = vadd.f32 %v6644, %v6732
        %6734 = vmatmul.bf16.gmra.mxu0 %v5398
        %v6735 = vpop.f32.mrf.mxu0
        %v6736 = vadd.f32 %v6647, %v6735
        %v6737 = vpop.f32.mrf.mxu0
        %v6738 = vadd.f32 %v6649, %v6737
        %6739 = vmatmul.bf16.gmra.mxu0 %v5407
        %v6740 = vpop.f32.mrf.mxu0
        %v6741 = vadd.f32 %v6652, %v6740
        %v6742 = vpop.f32.mrf.mxu0
        %v6743 = vadd.f32 %v6654, %v6742
        %6744 = vmatmul.bf16.gmra.mxu0 %v5416
        %v6745 = vpop.f32.mrf.mxu0
        %v6746 = vadd.f32 %v6657, %v6745
        %v6747 = vpop.f32.mrf.mxu0
        %v6748 = vadd.f32 %v6659, %v6747
        %6749 = vmatmul.bf16.gmra.mxu0 %v5425
        %v6750 = vpop.f32.mrf.mxu0
        %v6751 = vadd.f32 %v6662, %v6750
        %v6752 = vpop.f32.mrf.mxu0
        %v6753 = vadd.f32 %v6664, %v6752
        %6754 = vmatmul.bf16.gmra.mxu0 %v5434
        %v6755 = vpop.f32.mrf.mxu0
        %v6756 = vadd.f32 %v6667, %v6755
        %v6757 = vpop.f32.mrf.mxu0
        %v6758 = vadd.f32 %v6669, %v6757
        %6759 = vmatmul.bf16.gmra.mxu0 %v5443
        %v6760 = vpop.f32.mrf.mxu0
        %v6761 = vadd.f32 %v6672, %v6760
        %v6762 = vpop.f32.mrf.mxu0
        %v6763 = vadd.f32 %v6674, %v6762
        %6764 = vmatmul.bf16.gmra.mxu0 %v5452
        %v6765 = vpop.f32.mrf.mxu0
        %v6766 = vadd.f32 %v6677, %v6765
        %v6767 = vpop.f32.mrf.mxu0
        %v6768 = vadd.f32 %v6679, %v6767
        %6769 = vmatmul.bf16.gmra.mxu0 %v5461
        %v6770 = vpop.f32.mrf.mxu0
        %v6771 = vadd.f32 %v6682, %v6770
        %v6772 = vpop.f32.mrf.mxu0
        %v6773 = vadd.f32 %v6684, %v6772
        %6774 = vmatmul.bf16.gmra.mxu0 %v5470
        %v6775 = vpop.f32.mrf.mxu0
        %v6776 = vadd.f32 %v6687, %v6775
        %v6777 = vpop.f32.mrf.mxu0
        %v6778 = vadd.f32 %v6689, %v6777
        %6779 = vmatmul.bf16.gmra.mxu0 %v5479
        %v6780 = vpop.f32.mrf.mxu0
        %v6781 = vadd.f32 %v6692, %v6780
        %v6782 = vpop.f32.mrf.mxu0
        %v6783 = vadd.f32 %v6694, %v6782
        %6784 = vmatmul.bf16.gmra.mxu0 %v5488
        %v6785 = vpop.f32.mrf.mxu0
        %v6786 = vadd.f32 %v6697, %v6785
        %v6787 = vpop.f32.mrf.mxu0
        %v6788 = vadd.f32 %v6699, %v6787
        %6789 = vmatmul.bf16.gmra.mxu0 %v5497
        %v6790 = vpop.f32.mrf.mxu0
        %v6791 = vadd.f32 %v6702, %v6790
        %v6792 = vpop.f32.mrf.mxu0
        %v6793 = vadd.f32 %v6704, %v6792
        %6794 = vmatmul.bf16.gmra.mxu0 %v5506
        %v6795 = vpop.f32.mrf.mxu0
        %v6796 = vadd.f32 %v6707, %v6795
        %v6797 = vpop.f32.mrf.mxu0
        %v6798 = vadd.f32 %v6709, %v6797
        %6799 = vmatmul.bf16.gmra.mxu0 %v5515
        %v6800 = vpop.f32.mrf.mxu0
        %v6801 = vadd.f32 %v6712, %v6800
        %v6802 = vpop.f32.mrf.mxu0
        %v6803 = vadd.f32 %v6714, %v6802
        %6804 = vdwg.mxu0
        %6805 = vmatpush.bf16.msra.mxu0 %v6020
        %6806 = vmatpush.bf16.msra.mxu0 %v6019
        %6807 = vmatpush.bf16.msra.mxu0 %v6018
        %6808 = vmatpush.bf16.msra.mxu0 %v6017
        %6809 = vmatpush.bf16.msra.mxu0 %v6016
        %6810 = vmatpush.bf16.msra.mxu0 %v6015
        %6811 = vmatpush.bf16.msra.mxu0 %v6014
        %6812 = vmatpush.bf16.msra.mxu0 %v6013
        %6813 = vmatmul.bf16.gmra.mxu0 %v5381
        %v6814 = vpop.f32.mrf.mxu0
        %v6815 = vadd.f32 %v6726, %v6814
        %v6816 = vpop.f32.mrf.mxu0
        %v6817 = vadd.f32 %v6728, %v6816
        %6818 = vmatmul.bf16.gmra.mxu0 %v5390
        %v6819 = vpop.f32.mrf.mxu0
        %v6820 = vadd.f32 %v6731, %v6819
        %v6821 = vpop.f32.mrf.mxu0
        %v6822 = vadd.f32 %v6733, %v6821
        %6823 = vmatmul.bf16.gmra.mxu0 %v5399
        %v6824 = vpop.f32.mrf.mxu0
        %v6825 = vadd.f32 %v6736, %v6824
        %v6826 = vpop.f32.mrf.mxu0
        %v6827 = vadd.f32 %v6738, %v6826
        %6828 = vmatmul.bf16.gmra.mxu0 %v5408
        %v6829 = vpop.f32.mrf.mxu0
        %v6830 = vadd.f32 %v6741, %v6829
        %v6831 = vpop.f32.mrf.mxu0
        %v6832 = vadd.f32 %v6743, %v6831
        %6833 = vmatmul.bf16.gmra.mxu0 %v5417
        %v6834 = vpop.f32.mrf.mxu0
        %v6835 = vadd.f32 %v6746, %v6834
        %v6836 = vpop.f32.mrf.mxu0
        %v6837 = vadd.f32 %v6748, %v6836
        %6838 = vmatmul.bf16.gmra.mxu0 %v5426
        %v6839 = vpop.f32.mrf.mxu0
        %v6840 = vadd.f32 %v6751, %v6839
        %v6841 = vpop.f32.mrf.mxu0
        %v6842 = vadd.f32 %v6753, %v6841
        %6843 = vmatmul.bf16.gmra.mxu0 %v5435
        %v6844 = vpop.f32.mrf.mxu0
        %v6845 = vadd.f32 %v6756, %v6844
        %v6846 = vpop.f32.mrf.mxu0
        %v6847 = vadd.f32 %v6758, %v6846
        %6848 = vmatmul.bf16.gmra.mxu0 %v5444
        %v6849 = vpop.f32.mrf.mxu0
        %v6850 = vadd.f32 %v6761, %v6849
        %v6851 = vpop.f32.mrf.mxu0
        %v6852 = vadd.f32 %v6763, %v6851
        %6853 = vmatmul.bf16.gmra.mxu0 %v5453
        %v6854 = vpop.f32.mrf.mxu0
        %v6855 = vadd.f32 %v6766, %v6854
        %v6856 = vpop.f32.mrf.mxu0
        %v6857 = vadd.f32 %v6768, %v6856
        %6858 = vmatmul.bf16.gmra.mxu0 %v5462
        %v6859 = vpop.f32.mrf.mxu0
        %v6860 = vadd.f32 %v6771, %v6859
        %v6861 = vpop.f32.mrf.mxu0
        %v6862 = vadd.f32 %v6773, %v6861
        %6863 = vmatmul.bf16.gmra.mxu0 %v5471
        %v6864 = vpop.f32.mrf.mxu0
        %v6865 = vadd.f32 %v6776, %v6864
        %v6866 = vpop.f32.mrf.mxu0
        %v6867 = vadd.f32 %v6778, %v6866
        %6868 = vmatmul.bf16.gmra.mxu0 %v5480
        %v6869 = vpop.f32.mrf.mxu0
        %v6870 = vadd.f32 %v6781, %v6869
        %v6871 = vpop.f32.mrf.mxu0
        %v6872 = vadd.f32 %v6783, %v6871
        %6873 = vmatmul.bf16.gmra.mxu0 %v5489
        %v6874 = vpop.f32.mrf.mxu0
        %v6875 = vadd.f32 %v6786, %v6874
        %v6876 = vpop.f32.mrf.mxu0
        %v6877 = vadd.f32 %v6788, %v6876
        %6878 = vmatmul.bf16.gmra.mxu0 %v5498
        %v6879 = vpop.f32.mrf.mxu0
        %v6880 = vadd.f32 %v6791, %v6879
        %v6881 = vpop.f32.mrf.mxu0
        %v6882 = vadd.f32 %v6793, %v6881
        %6883 = vmatmul.bf16.gmra.mxu0 %v5507
        %v6884 = vpop.f32.mrf.mxu0
        %v6885 = vadd.f32 %v6796, %v6884
        %v6886 = vpop.f32.mrf.mxu0
        %v6887 = vadd.f32 %v6798, %v6886
        %6888 = vmatmul.bf16.gmra.mxu0 %v5516
        %v6889 = vpop.f32.mrf.mxu0
        %v6890 = vadd.f32 %v6801, %v6889
        %v6891 = vpop.f32.mrf.mxu0
        %v6892 = vadd.f32 %v6803, %v6891
        %6893 = vdwg.mxu0
        %v6894 = vld [vmem:[%s5] sm:$0x1]
        %v6896 = vperm.slane %v6894, 0
        %v6898 = vmul.f32 %v6815, %v6896
        %v6899 = vmul.f32 %v6817, %v6896
        %v6900 = vmul.f32 %v6820, %v6896
        %v6901 = vmul.f32 %v6822, %v6896
        %v6902 = vmul.f32 %v6825, %v6896
        %v6903 = vmul.f32 %v6827, %v6896
        %v6904 = vmul.f32 %v6830, %v6896
        %v6905 = vmul.f32 %v6832, %v6896
        %v6906 = vmul.f32 %v6835, %v6896
        %v6907 = vmul.f32 %v6837, %v6896
        %v6908 = vmul.f32 %v6840, %v6896
        %v6909 = vmul.f32 %v6842, %v6896
        %v6910 = vmul.f32 %v6845, %v6896
        %v6911 = vmul.f32 %v6847, %v6896
        %v6912 = vmul.f32 %v6850, %v6896
        %v6913 = vmul.f32 %v6852, %v6896
        %v6914 = vmul.f32 %v6855, %v6896
        %v6915 = vmul.f32 %v6857, %v6896
        %v6916 = vmul.f32 %v6860, %v6896
        %v6917 = vmul.f32 %v6862, %v6896
        %v6918 = vmul.f32 %v6865, %v6896
        %v6919 = vmul.f32 %v6867, %v6896
        %v6920 = vmul.f32 %v6870, %v6896
        %v6921 = vmul.f32 %v6872, %v6896
        %v6922 = vmul.f32 %v6875, %v6896
        %v6923 = vmul.f32 %v6877, %v6896
        %v6924 = vmul.f32 %v6880, %v6896
        %v6925 = vmul.f32 %v6882, %v6896
        %v6926 = vmul.f32 %v6885, %v6896
        %v6927 = vmul.f32 %v6887, %v6896
        %v6928 = vmul.f32 %v6890, %v6896
        %v6929 = vmul.f32 %v6892, %v6896
        %v6930 = vld [vmem:[%s6] sm:$0x1]
        %v6932 = vperm.slane %v6930, 0
        %v6934 = vadd.f32 %v6898, %v6932
        %v6935 = vadd.f32 %v6899, %v6932
        %v6936 = vadd.f32 %v6900, %v6932
        %v6937 = vadd.f32 %v6901, %v6932
        %v6938 = vadd.f32 %v6902, %v6932
        %v6939 = vadd.f32 %v6903, %v6932
        %v6940 = vadd.f32 %v6904, %v6932
        %v6941 = vadd.f32 %v6905, %v6932
        %v6942 = vadd.f32 %v6906, %v6932
        %v6943 = vadd.f32 %v6907, %v6932
        %v6944 = vadd.f32 %v6908, %v6932
        %v6945 = vadd.f32 %v6909, %v6932
        %v6946 = vadd.f32 %v6910, %v6932
        %v6947 = vadd.f32 %v6911, %v6932
        %v6948 = vadd.f32 %v6912, %v6932
        %v6949 = vadd.f32 %v6913, %v6932
        %v6950 = vadd.f32 %v6914, %v6932
        %v6951 = vadd.f32 %v6915, %v6932
        %v6952 = vadd.f32 %v6916, %v6932
        %v6953 = vadd.f32 %v6917, %v6932
        %v6954 = vadd.f32 %v6918, %v6932
        %v6955 = vadd.f32 %v6919, %v6932
        %v6956 = vadd.f32 %v6920, %v6932
        %v6957 = vadd.f32 %v6921, %v6932
        %v6958 = vadd.f32 %v6922, %v6932
        %v6959 = vadd.f32 %v6923, %v6932
        %v6960 = vadd.f32 %v6924, %v6932
        %v6961 = vadd.f32 %v6925, %v6932
        %v6962 = vadd.f32 %v6926, %v6932
        %v6963 = vadd.f32 %v6927, %v6932
        %v6964 = vadd.f32 %v6928, %v6932
        %v6965 = vadd.f32 %v6929, %v6932
        %v6966 = vmax.f32 %v6934, 0.0
        %v6967 = vmax.f32 %v6935, 0.0
        %v6968 = vmax.f32 %v6936, 0.0
        %v6969 = vmax.f32 %v6937, 0.0
        %v6970 = vmax.f32 %v6938, 0.0
        %v6971 = vmax.f32 %v6939, 0.0
        %v6972 = vmax.f32 %v6940, 0.0
        %v6973 = vmax.f32 %v6941, 0.0
        %v6974 = vmax.f32 %v6942, 0.0
        %v6975 = vmax.f32 %v6943, 0.0
        %v6976 = vmax.f32 %v6944, 0.0
        %v6977 = vmax.f32 %v6945, 0.0
        %v6978 = vmax.f32 %v6946, 0.0
        %v6979 = vmax.f32 %v6947, 0.0
        %v6980 = vmax.f32 %v6948, 0.0
        %v6981 = vmax.f32 %v6949, 0.0
        %v6982 = vmax.f32 %v6950, 0.0
        %v6983 = vmax.f32 %v6951, 0.0
        %v6984 = vmax.f32 %v6952, 0.0
        %v6985 = vmax.f32 %v6953, 0.0
        %v6986 = vmax.f32 %v6954, 0.0
        %v6987 = vmax.f32 %v6955, 0.0
        %v6988 = vmax.f32 %v6956, 0.0
        %v6989 = vmax.f32 %v6957, 0.0
        %v6990 = vmax.f32 %v6958, 0.0
        %v6991 = vmax.f32 %v6959, 0.0
        %v6992 = vmax.f32 %v6960, 0.0
        %v6993 = vmax.f32 %v6961, 0.0
        %v6994 = vmax.f32 %v6962, 0.0
        %v6995 = vmax.f32 %v6963, 0.0
        %v6996 = vmax.f32 %v6964, 0.0
        %v6997 = vmax.f32 %v6965, 0.0
        %v6998 = vpack.c.bf16 %v6966, %v6966
        %v6999 = vpack.c.bf16 %v6967, %v6967
        %v7000 = vpack.c.bf16 %v6968, %v6968
        %v7001 = vpack.c.bf16 %v6969, %v6969
        %v7002 = vpack.c.bf16 %v6970, %v6970
        %v7003 = vpack.c.bf16 %v6971, %v6971
        %v7004 = vpack.c.bf16 %v6972, %v6972
        %v7005 = vpack.c.bf16 %v6973, %v6973
        %v7006 = vpack.c.bf16 %v6974, %v6974
        %v7007 = vpack.c.bf16 %v6975, %v6975
        %v7008 = vpack.c.bf16 %v6976, %v6976
        %v7009 = vpack.c.bf16 %v6977, %v6977
        %v7010 = vpack.c.bf16 %v6978, %v6978
        %v7011 = vpack.c.bf16 %v6979, %v6979
        %v7012 = vpack.c.bf16 %v6980, %v6980
        %v7013 = vpack.c.bf16 %v6981, %v6981
        %v7014 = vpack.c.bf16 %v6982, %v6982
        %v7015 = vpack.c.bf16 %v6983, %v6983
        %v7016 = vpack.c.bf16 %v6984, %v6984
        %v7017 = vpack.c.bf16 %v6985, %v6985
        %v7018 = vpack.c.bf16 %v6986, %v6986
        %v7019 = vpack.c.bf16 %v6987, %v6987
        %v7020 = vpack.c.bf16 %v6988, %v6988
        %v7021 = vpack.c.bf16 %v6989, %v6989
        %v7022 = vpack.c.bf16 %v6990, %v6990
        %v7023 = vpack.c.bf16 %v6991, %v6991
        %v7024 = vpack.c.bf16 %v6992, %v6992
        %v7025 = vpack.c.bf16 %v6993, %v6993
        %v7026 = vpack.c.bf16 %v6994, %v6994
        %v7027 = vpack.c.bf16 %v6995, %v6995
        %v7028 = vpack.c.bf16 %v6996, %v6996
        %v7029 = vpack.c.bf16 %v6997, %v6997
        %7030 = vst [vmem:[%s331] sm:$0xf] %v6998
        %7031 = vst [vmem:[%s331 + $0x4] sm:$0xf] %v6999
        %7032 = vst [vmem:[%s331 + $0x8] sm:$0xf] %v7000
        %7033 = vst [vmem:[%s331 + $0xc] sm:$0xf] %v7001
        %7034 = vst [vmem:[%s331 + $0x10] sm:$0xf] %v7002
        %7035 = vst [vmem:[%s331 + $0x14] sm:$0xf] %v7003
        %7036 = vst [vmem:[%s331 + $0x18] sm:$0xf] %v7004
        %7037 = vst [vmem:[%s331 + $0x1c] sm:$0xf] %v7005
        %7038 = vst [vmem:[%s331 + $0x20] sm:$0xf] %v7006
        %7039 = vst [vmem:[%s331 + $0x24] sm:$0xf] %v7007
        %7040 = vst [vmem:[%s331 + $0x28] sm:$0xf] %v7008
        %7041 = vst [vmem:[%s331 + $0x2c] sm:$0xf] %v7009
        %7042 = vst [vmem:[%s331 + $0x30] sm:$0xf] %v7010
        %7043 = vst [vmem:[%s331 + $0x34] sm:$0xf] %v7011
        %7044 = vst [vmem:[%s331 + $0x38] sm:$0xf] %v7012
        %7045 = vst [vmem:[%s331 + $0x3c] sm:$0xf] %v7013
        %7046 = vst [vmem:[%s331 + $0x40] sm:$0xf] %v7014
        %7047 = vst [vmem:[%s331 + $0x44] sm:$0xf] %v7015
        %7048 = vst [vmem:[%s331 + $0x48] sm:$0xf] %v7016
        %7049 = vst [vmem:[%s331 + $0x4c] sm:$0xf] %v7017
        %7050 = vst [vmem:[%s331 + $0x50] sm:$0xf] %v7018
        %7051 = vst [vmem:[%s331 + $0x54] sm:$0xf] %v7019
        %7052 = vst [vmem:[%s331 + $0x58] sm:$0xf] %v7020
        %7053 = vst [vmem:[%s331 + $0x5c] sm:$0xf] %v7021
        %7054 = vst [vmem:[%s331 + $0x60] sm:$0xf] %v7022
        %7055 = vst [vmem:[%s331 + $0x64] sm:$0xf] %v7023
        %7056 = vst [vmem:[%s331 + $0x68] sm:$0xf] %v7024
        %7057 = vst [vmem:[%s331 + $0x6c] sm:$0xf] %v7025
        %7058 = vst [vmem:[%s331 + $0x70] sm:$0xf] %v7026
        %7059 = vst [vmem:[%s331 + $0x74] sm:$0xf] %v7027
        %7060 = vst [vmem:[%s331 + $0x78] sm:$0xf] %v7028
        %7061 = vst [vmem:[%s331 + $0x7c] sm:$0xf] %v7029
        %s7062 = sand.u32 %s185, 1
        %s7063 = scalar_lea.sflag [#allocation6], %s7062
        %s7064 = sand.u32 %s185, 1
        %s7065 = smul.addr %s7064, 128
        %s7066 = scalar_lea.vmem [#allocation10], %s7065
        // Predicated region
        $region61: #{tpu_custom_call.1} parent=47 // pred_check
          %p7067 = pneg %p195
        $region62: #{tpu_custom_call.1} parent=47 // pred_check_branch
          %7069 = sbr.rel (%p7067) target = $region64
        $region63: #{tpu_custom_call.1} parent=47 // pred_region
          %7071 = vsyncadd %s7063, 0
          %s7072 = smul.addr %s25, 32
          %s7073 = smul.addr %s7072, 4
          %s7074 = scalar_lea.hbm %s7, %s7073
          %s7075 = sshll.u32 %s7066, 4
          %s7076 = int_to_ptr.vmem [resolvable:$true] %s7075
          %s7077 = sshll.u32 %s7074, 4
          %s7078 = int_to_ptr.hbm [resolvable:$true] %s7077
          %7083 = dma.vmem_to_hbm [thread:$0]  %s7076, 2048, %s7078, %s7063, 64, 64, 4
        $region64: #{tpu_custom_call.1} parent=47 // pred_fallthru
          _
      $region48: #{tpu_custom_call.1} parent=5 // pred_fallthru
        _
      %p7084 = scmp.le.s32.totalorder 2, %s20
      // Predicated region
      $region65: #{tpu_custom_call.1} parent=5 // pred_check
        %p7085 = pneg %p7084
      $region66: #{tpu_custom_call.1} parent=5 // pred_check_branch
        %7087 = sbr.rel (%p7085) target = $region68
      $region67: #{tpu_custom_call.1} parent=5 // pred_region
        %s7088 = ssub.s32 %s20, 2
        // Predicated region
        $region69: #{tpu_custom_call.1} parent=67 // pred_check
          %p7089 = pneg %p201
        $region70: #{tpu_custom_call.1} parent=67 // pred_check_branch
          %7091 = sbr.rel (%p7089) target = $region72
        $region71: #{tpu_custom_call.1} parent=67 // pred_region
          %s7092 = sand.u32 %s186, 1
          %s7093 = scalar_lea.sflag [#allocation6], %s7092
          %s7094 = sand.u32 %s186, 1
          %s7095 = smul.addr %s7094, 128
          %s7096 = scalar_lea.vmem [#allocation10], %s7095
          %7098 = dma.done %s7093, 2048
        $region72: #{tpu_custom_call.1} parent=67 // pred_fallthru
          _
      $region68: #{tpu_custom_call.1} parent=5 // pred_fallthru
        _
    $region6: #{tpu_custom_call.1} parent=1 // loop_footer
      %s24 = sadd.s32 1, %s20
    $region7: #{tpu_custom_call.1} parent=1 // loop_footer_branch
      %19 = sbr.rel target = $region3
    $region8: #{tpu_custom_call.1} parent=1 // loop_exit
      _
    %7099 = vsyncpa [#allocation5], 1
    %s7100 = scalar_lea.sflag [#allocation5], 1
    %7101 = vsyncpa %s7100, 1
    %7102 = vsyncpa [#allocation8], 1
    %7103 = vsyncpa [#allocation6], 1
    %s7104 = scalar_lea.sflag [#allocation6], 1
    %7105 = vsyncpa %s7104, 1

</llo_original>
